<compile_context>
chip_gen: v7x
topology: tpu7x:2x2x1
jax: 0.10.0
libtpu: 0.0.40
codegen_flags: <defaults>
</compile_context>

<pallas_src>
import math

import jax
import jax.numpy as jnp
from jax.experimental import pallas as pl
from jax.experimental.pallas import tpu as pltpu

# ----------------------------- configuration -------------------------------
B = 2                                   # batch
C = 4                                   # channels
H = W = 16                              # spatial
PATCH = 4                               # patch size
NP = (H // PATCH) * (W // PATCH)        # 16 patches
PATCH_DIM = C * PATCH * PATCH           # 64
EMB = 32                                # embedding dim
NUM_HEADS = 4
HEAD_DIM = EMB // NUM_HEADS             # 8
MLP = 4 * EMB                           # 128
NUM_CLASSES = 5
NUM_LAYERS = 3                          # wrapper replaces last layer with Identity
L_ACT = NUM_LAYERS - 1                  # actual transformer blocks (2)
DEPTH = 0                               # attribution insertion depth (< NUM_LAYERS)
S_ATTR = NP + 1                         # 17 tokens after class-token prepend
SP = 24                                 # padded sequence length (multiple of 8)


# ------------------------------ fused kernel --------------------------------
def _mixvit_kernel(
    patches_ref,
    pe_ln1_g_ref, pe_ln1_b_ref, pe_w_ref, pe_b_ref, pe_ln2_g_ref, pe_ln2_b_ref,
    pos_ref, attr_ref, cls_ref, head_w_ref, head_b_ref,
    ln1_g_ref, ln1_b_ref, wqkv_ref, bqkv_ref, wo_ref, bo_ref,
    ln2_g_ref, ln2_b_ref, w1_ref, b1_ref, w2_ref, b2_ref,
    out_ref, xbuf_ref,
):
    f32 = jnp.float32

    def layer_norm(x, g, b):
        mu = jnp.mean(x, axis=-1, keepdims=True)
        d = x - mu
        var = jnp.mean(d * d, axis=-1, keepdims=True)
        return d * jax.lax.rsqrt(var + 1e-5) * g + b

    def softmax_last(z):
        z = z - jnp.max(z, axis=-1, keepdims=True)
        e = jnp.exp(z)
        return e / jnp.sum(e, axis=-1, keepdims=True)      # exact (tiny)

    def block(x, l, valid_len=None):
        """Pre-LN MHSA + GELU-MLP transformer block. x: (Bk, S, D)."""
        Bk, S, D = x.shape
        xf = x.reshape(Bk * S, D)
        h = layer_norm(xf, ln1_g_ref[l], ln1_b_ref[l])
        # merged QKV projection: one (D, 3D) matmul
        qkv = jnp.dot(h, wqkv_ref[l], preferred_element_type=f32) + bqkv_ref[l]
        qkv3 = qkv.reshape(Bk, S, 3 * D)
        q = qkv3[:, :, 0 * D:1 * D]
        k = qkv3[:, :, 1 * D:2 * D]
        v = qkv3[:, :, 2 * D:3 * D]

        def split_heads(t):   # (Bk, S, D) -> (H*Bk, S, Dh), head-major
            return jnp.concatenate(
                [t[:, :, hh * HEAD_DIM:(hh + 1) * HEAD_DIM] for hh in range(NUM_HEADS)],
                axis=0)

        qh, kh, vh = split_heads(q), split_heads(k), split_heads(v)
        scale = 1.0 / math.sqrt(HEAD_DIM)
        s = jnp.einsum("nqd,nkd->nqk", qh, kh, preferred_element_type=f32) * scale
        if valid_len is not None:                          # mask padded key rows
            kidx = jax.lax.broadcasted_iota(jnp.int32, (1, 1, S), 2)
            s = jnp.where(kidx < valid_len, s, -1e30)
        s = s - jnp.max(s, axis=-1, keepdims=True)
        p = jnp.exp(s)
        p = p * pl.reciprocal(jnp.sum(p, axis=-1, keepdims=True), approx=True)
        oh = jnp.einsum("nqk,nkd->nqd", p, vh, preferred_element_type=f32)
        o = jnp.concatenate(
            [oh[hh * Bk:(hh + 1) * Bk] for hh in range(NUM_HEADS)], axis=-1)   # (Bk,S,D)
        xf = xf + jnp.dot(o.reshape(Bk * S, D), wo_ref[l],
                          preferred_element_type=f32) + bo_ref[l]
        h2 = layer_norm(xf, ln2_g_ref[l], ln2_b_ref[l])
        h2 = jnp.dot(h2, w1_ref[l], preferred_element_type=f32) + b1_ref[l]
        h2 = jax.nn.gelu(h2, approximate=True)  # TODO(synk): PyTorch default is exact erf
        h2 = jnp.dot(h2, w2_ref[l], preferred_element_type=f32) + b2_ref[l]
        xf = xf + h2
        return xf.reshape(Bk, S, D)

    # ---- MixTokenEmbedding (eval): patch embedding + positional encoding ----
    t = layer_norm(patches_ref[...], pe_ln1_g_ref[...], pe_ln1_b_ref[...])
    t = jnp.dot(t, pe_w_ref[...], preferred_element_type=f32) + pe_b_ref[...]
    t = layer_norm(t, pe_ln2_g_ref[...], pe_ln2_b_ref[...])
    tok = t.reshape(B, NP, EMB) + pos_ref[...][None, :, :]      # (B, NP, EMB)

    # ---- layers 0 .. DEPTH (pre-attribution, seq = NP, already 8-aligned) ----
    x = tok
    for li in range(0, DEPTH + 1):
        if li < L_ACT:
            x = block(x, li)
    cache = x                                                   # (B, NP, EMB)

    # ---- Attribution for BOTH eval passes at once, in-place into padded buf ----
    # pass A (rows 0..B-1): mask of ones  -> x + attribution[0]
    # pass B (rows B..2B-1): mask of zeros -> x + attribution[1]
    xbuf_ref[...] = jnp.zeros_like(xbuf_ref)                    # zero pad rows
    xbuf_ref[:, 0:1, :] = jnp.broadcast_to(
        cls_ref[...].reshape(1, 1, EMB), (2 * B, 1, EMB))       # class token at slot 0
    xbuf_ref[0:B, 1:NP + 1, :] = cache + attr_ref[0:1, :][None, :, :]
    xbuf_ref[B:2 * B, 1:NP + 1, :] = cache + attr_ref[1:2, :][None, :, :]
    xa = xbuf_ref[...]                                          # (2B, SP, EMB)

    # ---- layers DEPTH+1 .. end (shared weights, both passes batched) ----
    for li in range(DEPTH + 1, NUM_LAYERS):
        if li < L_ACT:
            xa = block(xa, li, valid_len=S_ATTR)

    # ---- head + output activation (per-member softmax over classes) ----
    x_cls = xa[:, 0:1, :].reshape(2 * B, EMB)                   # class-token features
    logits = jnp.dot(x_cls, head_w_ref[...], preferred_element_type=f32) + head_b_ref[...]
    out1 = softmax_last(logits[0:B, 0:NUM_CLASSES])                    # pass A, member 0
    out2 = softmax_last(logits[B:2 * B, NUM_CLASSES:2 * NUM_CLASSES])  # pass B, member 1
    out_ref[:, 0:1, :] = out1.reshape(B, 1, NUM_CLASSES)
    out_ref[:, 1:2, :] = out2.reshape(B, 1, NUM_CLASSES)


# ------------------------------- wrapper -------------------------------------
def mixvit_forward(params, x):
    """x: (B, 2, C, H, W) float32 -> (B, 2, NUM_CLASSES)  (eval-mode forward)."""
    bsz = x.shape[0]
    x0 = x[:, 0]                                                # eval: member 0
    hh = H // PATCH
    ww = W // PATCH
    # Rearrange 'b c (h p1) (w p2) -> (b h w) (p1 p2 c)'  (single XLA op at trace time)
    patches = (
        x0.reshape(bsz, C, hh, PATCH, ww, PATCH)
        .transpose(0, 2, 4, 3, 5, 1)
        .reshape(bsz * NP, PATCH_DIM)
    )
    args = (
        patches,
        params["pe_ln1_g"], params["pe_ln1_b"], params["pe_w"], params["pe_b"],
        params["pe_ln2_g"], params["pe_ln2_b"],
        params["pos"], params["attr"], params["cls"],
        params["head_w"], params["head_b"],
        params["ln1_g"], params["ln1_b"], params["wqkv"], params["bqkv"],
        params["wo"], params["bo"], params["ln2_g"], params["ln2_b"],
        params["w1"], params["b1"], params["w2"], params["b2"],
    )
    return pl.pallas_call(
        _mixvit_kernel,
        out_shape=jax.ShapeDtypeStruct((bsz, 2, NUM_CLASSES), jnp.float32),
        scratch_shapes=[pltpu.VMEM((2 * bsz, SP, EMB), jnp.float32)],
    )(*args)


# --------------------------- deterministic params ---------------------------
def init_params(key):
    std = 0.02

    def nrm(k, shape, s=std):
        return s * jax.random.normal(k, shape, jnp.float32)

    ki = iter(jax.random.split(key, 16))
    return {
        # MixTokenEmbedding
        "pe_ln1_g": jnp.ones((1, PATCH_DIM), jnp.float32),
        "pe_ln1_b": jnp.zeros((1, PATCH_DIM), jnp.float32),
        "pe_w": nrm(next(ki), (PATCH_DIM, EMB)),
        "pe_b": jnp.zeros((1, EMB), jnp.float32),
        "pe_ln2_g": jnp.ones((1, EMB), jnp.float32),
        "pe_ln2_b": jnp.zeros((1, EMB), jnp.float32),
        "pos": nrm(next(ki), (NP, EMB), 1.0),
        # Attribution (source attribution (1,2,D) and class token (1,1,D), squeezed)
        "attr": nrm(next(ki), (2, EMB), 1.0),
        "cls": nrm(next(ki), (1, EMB), 1.0),
        # Head (D -> 2*num_classes)
        "head_w": nrm(next(ki), (EMB, 2 * NUM_CLASSES)),
        "head_b": jnp.zeros((1, 2 * NUM_CLASSES), jnp.float32),
        # Transformer blocks (stacked over the L_ACT real layers; last ViT layer = Identity)
        "ln1_g": jnp.ones((L_ACT, 1, EMB), jnp.float32),
        "ln1_b": jnp.zeros((L_ACT, 1, EMB), jnp.float32),
        "wqkv": nrm(next(ki), (L_ACT, EMB, 3 * EMB)),
        "bqkv": jnp.zeros((L_ACT, 1, 3 * EMB), jnp.float32),
        "wo": nrm(next(ki), (L_ACT, EMB, EMB)),
        "bo": jnp.zeros((L_ACT, 1, EMB), jnp.float32),
        "ln2_g": jnp.ones((L_ACT, 1, EMB), jnp.float32),
        "ln2_b": jnp.zeros((L_ACT, 1, EMB), jnp.float32),
        "w1": nrm(next(ki), (L_ACT, EMB, MLP)),
        "b1": jnp.zeros((L_ACT, 1, MLP), jnp.float32),
        "w2": nrm(next(ki), (L_ACT, MLP, EMB)),
        "b2": jnp.zeros((L_ACT, 1, EMB), jnp.float32),
    }


# ---------------------------------- main ------------------------------------
if __name__ == "__main__":
    key = jax.random.PRNGKey(0)
    kp, kx = jax.random.split(key)
    params = init_params(kp)
    x = jax.random.normal(kx, (B, 2, C, H, W), jnp.float32)

    out = jax.jit(mixvit_forward)(params, x)
    out = jax.block_until_ready(out)

    assert out.shape == (B, 2, NUM_CLASSES), out.shape
    assert bool(jnp.all(jnp.isfinite(out)))
    # each row is a softmax distribution
    assert bool(jnp.allclose(jnp.sum(out, axis=-1), 1.0, atol=1e-4))
    print("KERNEL_OK")
</pallas_src>

<mosaic_0001>
module attributes {stable_mosaic.version = 11 : i64} {
  func.func @_mixvit_kernel(%arg0: memref<32x64xf32, #tpu.memory_space<vmem>>, %arg1: memref<1x64xf32, #tpu.memory_space<vmem>>, %arg2: memref<1x64xf32, #tpu.memory_space<vmem>>, %arg3: memref<64x32xf32, #tpu.memory_space<vmem>>, %arg4: memref<1x32xf32, #tpu.memory_space<vmem>>, %arg5: memref<1x32xf32, #tpu.memory_space<vmem>>, %arg6: memref<1x32xf32, #tpu.memory_space<vmem>>, %arg7: memref<16x32xf32, #tpu.memory_space<vmem>>, %arg8: memref<2x32xf32, #tpu.memory_space<vmem>>, %arg9: memref<1x32xf32, #tpu.memory_space<vmem>>, %arg10: memref<32x10xf32, #tpu.memory_space<vmem>>, %arg11: memref<1x10xf32, #tpu.memory_space<vmem>>, %arg12: memref<2x1x32xf32, #tpu.memory_space<vmem>>, %arg13: memref<2x1x32xf32, #tpu.memory_space<vmem>>, %arg14: memref<2x32x96xf32, #tpu.memory_space<vmem>>, %arg15: memref<2x1x96xf32, #tpu.memory_space<vmem>>, %arg16: memref<2x32x32xf32, #tpu.memory_space<vmem>>, %arg17: memref<2x1x32xf32, #tpu.memory_space<vmem>>, %arg18: memref<2x1x32xf32, #tpu.memory_space<vmem>>, %arg19: memref<2x1x32xf32, #tpu.memory_space<vmem>>, %arg20: memref<2x32x128xf32, #tpu.memory_space<vmem>>, %arg21: memref<2x1x128xf32, #tpu.memory_space<vmem>>, %arg22: memref<2x128x32xf32, #tpu.memory_space<vmem>>, %arg23: memref<2x1x32xf32, #tpu.memory_space<vmem>>, %arg24: memref<2x2x5xf32, #tpu.memory_space<vmem>>, %arg25: memref<4x24x32xf32, #tpu.memory_space<vmem>>) attributes {dimension_semantics = [], scalar_prefetch = 0 : i64, scratch_operands = 1 : i64, tpu.core_type = #tpu.core_type<tc>} {
    %c0 = arith.constant 0 : index
    %c0_0 = arith.constant 0 : index
    %0 = vector.load %arg0[%c0, %c0_0] : memref<32x64xf32, #tpu.memory_space<vmem>>, vector<32x64xf32>
    %c0_1 = arith.constant 0 : index
    %c0_2 = arith.constant 0 : index
    %1 = vector.load %arg1[%c0_1, %c0_2] : memref<1x64xf32, #tpu.memory_space<vmem>>, vector<1x64xf32>
    %c0_3 = arith.constant 0 : index
    %c0_4 = arith.constant 0 : index
    %2 = vector.load %arg2[%c0_3, %c0_4] : memref<1x64xf32, #tpu.memory_space<vmem>>, vector<1x64xf32>
    %cst = arith.constant dense<0.000000e+00> : vector<32xf32>
    %3 = vector.multi_reduction <add>, %0, %cst [1] : vector<32x64xf32> to vector<32xf32>
    %4 = vector.shape_cast %3 : vector<32xf32> to vector<32x1xf32>
    %cst_5 = arith.constant 6.400000e+01 : f32
    %5 = vector.broadcast %cst_5 : f32 to vector<32x1xf32>
    %6 = arith.divf %4, %5 : vector<32x1xf32>
    %7 = vector.broadcast %6 : vector<32x1xf32> to vector<32x64xf32>
    %8 = arith.subf %0, %7 : vector<32x64xf32>
    %9 = arith.mulf %8, %8 : vector<32x64xf32>
    %cst_6 = arith.constant dense<0.000000e+00> : vector<32xf32>
    %10 = vector.multi_reduction <add>, %9, %cst_6 [1] : vector<32x64xf32> to vector<32xf32>
    %11 = vector.shape_cast %10 : vector<32xf32> to vector<32x1xf32>
    %cst_7 = arith.constant 6.400000e+01 : f32
    %12 = vector.broadcast %cst_7 : f32 to vector<32x1xf32>
    %13 = arith.divf %11, %12 : vector<32x1xf32>
    %cst_8 = arith.constant 9.99999974E-6 : f32
    %14 = vector.broadcast %cst_8 : f32 to vector<32x1xf32>
    %15 = arith.addf %13, %14 : vector<32x1xf32>
    %16 = math.rsqrt %15 : vector<32x1xf32>
    %17 = vector.broadcast %16 : vector<32x1xf32> to vector<32x64xf32>
    %18 = arith.mulf %8, %17 : vector<32x64xf32>
    %19 = vector.broadcast %1 : vector<1x64xf32> to vector<32x64xf32>
    %20 = arith.mulf %18, %19 : vector<32x64xf32>
    %21 = vector.broadcast %2 : vector<1x64xf32> to vector<32x64xf32>
    %22 = arith.addf %20, %21 : vector<32x64xf32>
    %c0_9 = arith.constant 0 : index
    %c0_10 = arith.constant 0 : index
    %23 = vector.load %arg3[%c0_9, %c0_10] : memref<64x32xf32, #tpu.memory_space<vmem>>, vector<64x32xf32>
    %cst_11 = arith.constant dense<0.000000e+00> : vector<32x32xf32>
    %24 = tpu.matmul %22, %23, %cst_11 {dimension_numbers = #tpu.dot_dimension_numbers<[1], [0], [0], [1], [0, 0, 1, 1], [], []>} : vector<32x64xf32>, vector<64x32xf32>, vector<32x32xf32> -> vector<32x32xf32>
    %c0_12 = arith.constant 0 : index
    %c0_13 = arith.constant 0 : index
    %25 = vector.load %arg4[%c0_12, %c0_13] : memref<1x32xf32, #tpu.memory_space<vmem>>, vector<1x32xf32>
    %26 = vector.broadcast %25 : vector<1x32xf32> to vector<32x32xf32>
    %27 = arith.addf %24, %26 : vector<32x32xf32>
    %c0_14 = arith.constant 0 : index
    %c0_15 = arith.constant 0 : index
    %28 = vector.load %arg5[%c0_14, %c0_15] : memref<1x32xf32, #tpu.memory_space<vmem>>, vector<1x32xf32>
    %c0_16 = arith.constant 0 : index
    %c0_17 = arith.constant 0 : index
    %29 = vector.load %arg6[%c0_16, %c0_17] : memref<1x32xf32, #tpu.memory_space<vmem>>, vector<1x32xf32>
    %cst_18 = arith.constant dense<0.000000e+00> : vector<32xf32>
    %30 = vector.multi_reduction <add>, %27, %cst_18 [1] : vector<32x32xf32> to vector<32xf32>
    %31 = vector.shape_cast %30 : vector<32xf32> to vector<32x1xf32>
    %cst_19 = arith.constant 3.200000e+01 : f32
    %32 = vector.broadcast %cst_19 : f32 to vector<32x1xf32>
    %33 = arith.divf %31, %32 : vector<32x1xf32>
    %34 = vector.broadcast %33 : vector<32x1xf32> to vector<32x32xf32>
    %35 = arith.subf %27, %34 : vector<32x32xf32>
    %36 = arith.mulf %35, %35 : vector<32x32xf32>
    %cst_20 = arith.constant dense<0.000000e+00> : vector<32xf32>
    %37 = vector.multi_reduction <add>, %36, %cst_20 [1] : vector<32x32xf32> to vector<32xf32>
    %38 = vector.shape_cast %37 : vector<32xf32> to vector<32x1xf32>
    %cst_21 = arith.constant 3.200000e+01 : f32
    %39 = vector.broadcast %cst_21 : f32 to vector<32x1xf32>
    %40 = arith.divf %38, %39 : vector<32x1xf32>
    %cst_22 = arith.constant 9.99999974E-6 : f32
    %41 = vector.broadcast %cst_22 : f32 to vector<32x1xf32>
    %42 = arith.addf %40, %41 : vector<32x1xf32>
    %43 = math.rsqrt %42 : vector<32x1xf32>
    %44 = vector.broadcast %43 : vector<32x1xf32> to vector<32x32xf32>
    %45 = arith.mulf %35, %44 : vector<32x32xf32>
    %46 = vector.broadcast %28 : vector<1x32xf32> to vector<32x32xf32>
    %47 = arith.mulf %45, %46 : vector<32x32xf32>
    %48 = vector.broadcast %29 : vector<1x32xf32> to vector<32x32xf32>
    %49 = arith.addf %47, %48 : vector<32x32xf32>
    %50 = vector.shape_cast %49 : vector<32x32xf32> to vector<2x16x32xf32>
    %c0_23 = arith.constant 0 : index
    %c0_24 = arith.constant 0 : index
    %51 = vector.load %arg7[%c0_23, %c0_24] : memref<16x32xf32, #tpu.memory_space<vmem>>, vector<16x32xf32>
    %52 = vector.shape_cast %51 : vector<16x32xf32> to vector<1x16x32xf32>
    %53 = vector.broadcast %52 : vector<1x16x32xf32> to vector<2x16x32xf32>
    %54 = arith.addf %50, %53 : vector<2x16x32xf32>
    %55 = vector.shape_cast %54 : vector<2x16x32xf32> to vector<32x32xf32>
    %c0_25 = arith.constant 0 : index
    %c0_26 = arith.constant 0 : index
    %c0_27 = arith.constant 0 : index
    %56 = vector.load %arg12[%c0_25, %c0_26, %c0_27] : memref<2x1x32xf32, #tpu.memory_space<vmem>>, vector<1x1x32xf32>
    %57 = vector.shape_cast %56 : vector<1x1x32xf32> to vector<1x32xf32>
    %c0_28 = arith.constant 0 : index
    %c0_29 = arith.constant 0 : index
    %c0_30 = arith.constant 0 : index
    %58 = vector.load %arg13[%c0_28, %c0_29, %c0_30] : memref<2x1x32xf32, #tpu.memory_space<vmem>>, vector<1x1x32xf32>
    %59 = vector.shape_cast %58 : vector<1x1x32xf32> to vector<1x32xf32>
    %cst_31 = arith.constant dense<0.000000e+00> : vector<32xf32>
    %60 = vector.multi_reduction <add>, %55, %cst_31 [1] : vector<32x32xf32> to vector<32xf32>
    %61 = vector.shape_cast %60 : vector<32xf32> to vector<32x1xf32>
    %cst_32 = arith.constant 3.200000e+01 : f32
    %62 = vector.broadcast %cst_32 : f32 to vector<32x1xf32>
    %63 = arith.divf %61, %62 : vector<32x1xf32>
    %64 = vector.broadcast %63 : vector<32x1xf32> to vector<32x32xf32>
    %65 = arith.subf %55, %64 : vector<32x32xf32>
    %66 = arith.mulf %65, %65 : vector<32x32xf32>
    %cst_33 = arith.constant dense<0.000000e+00> : vector<32xf32>
    %67 = vector.multi_reduction <add>, %66, %cst_33 [1] : vector<32x32xf32> to vector<32xf32>
    %68 = vector.shape_cast %67 : vector<32xf32> to vector<32x1xf32>
    %cst_34 = arith.constant 3.200000e+01 : f32
    %69 = vector.broadcast %cst_34 : f32 to vector<32x1xf32>
    %70 = arith.divf %68, %69 : vector<32x1xf32>
    %cst_35 = arith.constant 9.99999974E-6 : f32
    %71 = vector.broadcast %cst_35 : f32 to vector<32x1xf32>
    %72 = arith.addf %70, %71 : vector<32x1xf32>
    %73 = math.rsqrt %72 : vector<32x1xf32>
    %74 = vector.broadcast %73 : vector<32x1xf32> to vector<32x32xf32>
    %75 = arith.mulf %65, %74 : vector<32x32xf32>
    %76 = vector.broadcast %57 : vector<1x32xf32> to vector<32x32xf32>
    %77 = arith.mulf %75, %76 : vector<32x32xf32>
    %78 = vector.broadcast %59 : vector<1x32xf32> to vector<32x32xf32>
    %79 = arith.addf %77, %78 : vector<32x32xf32>
    %c0_36 = arith.constant 0 : index
    %c0_37 = arith.constant 0 : index
    %c0_38 = arith.constant 0 : index
    %80 = vector.load %arg14[%c0_36, %c0_37, %c0_38] : memref<2x32x96xf32, #tpu.memory_space<vmem>>, vector<1x32x96xf32>
    %81 = vector.shape_cast %80 : vector<1x32x96xf32> to vector<32x96xf32>
    %cst_39 = arith.constant dense<0.000000e+00> : vector<32x96xf32>
    %82 = tpu.matmul %79, %81, %cst_39 {dimension_numbers = #tpu.dot_dimension_numbers<[1], [0], [0], [1], [0, 0, 1, 1], [], []>} : vector<32x32xf32>, vector<32x96xf32>, vector<32x96xf32> -> vector<32x96xf32>
    %c0_40 = arith.constant 0 : index
    %c0_41 = arith.constant 0 : index
    %c0_42 = arith.constant 0 : index
    %83 = vector.load %arg15[%c0_40, %c0_41, %c0_42] : memref<2x1x96xf32, #tpu.memory_space<vmem>>, vector<1x1x96xf32>
    %84 = vector.shape_cast %83 : vector<1x1x96xf32> to vector<1x96xf32>
    %85 = vector.broadcast %84 : vector<1x96xf32> to vector<32x96xf32>
    %86 = arith.addf %82, %85 : vector<32x96xf32>
    %87 = vector.shape_cast %86 : vector<32x96xf32> to vector<2x16x96xf32>
    %88 = vector.extract_strided_slice %87 {offsets = [0, 0, 0], sizes = [2, 16, 32], strides = [1, 1, 1]} : vector<2x16x96xf32> to vector<2x16x32xf32>
    %89 = vector.extract_strided_slice %87 {offsets = [0, 0, 32], sizes = [2, 16, 32], strides = [1, 1, 1]} : vector<2x16x96xf32> to vector<2x16x32xf32>
    %90 = vector.extract_strided_slice %87 {offsets = [0, 0, 64], sizes = [2, 16, 32], strides = [1, 1, 1]} : vector<2x16x96xf32> to vector<2x16x32xf32>
    %91 = vector.extract_strided_slice %88 {offsets = [0, 0, 0], sizes = [2, 16, 8], strides = [1, 1, 1]} : vector<2x16x32xf32> to vector<2x16x8xf32>
    %92 = vector.extract_strided_slice %88 {offsets = [0, 0, 8], sizes = [2, 16, 8], strides = [1, 1, 1]} : vector<2x16x32xf32> to vector<2x16x8xf32>
    %93 = vector.extract_strided_slice %88 {offsets = [0, 0, 16], sizes = [2, 16, 8], strides = [1, 1, 1]} : vector<2x16x32xf32> to vector<2x16x8xf32>
    %94 = vector.extract_strided_slice %88 {offsets = [0, 0, 24], sizes = [2, 16, 8], strides = [1, 1, 1]} : vector<2x16x32xf32> to vector<2x16x8xf32>
    %95 = tpu.concatenate %91, %92, %93, %94 in 0 : vector<2x16x8xf32>, vector<2x16x8xf32>, vector<2x16x8xf32>, vector<2x16x8xf32> -> vector<8x16x8xf32>
    %96 = vector.extract_strided_slice %89 {offsets = [0, 0, 0], sizes = [2, 16, 8], strides = [1, 1, 1]} : vector<2x16x32xf32> to vector<2x16x8xf32>
    %97 = vector.extract_strided_slice %89 {offsets = [0, 0, 8], sizes = [2, 16, 8], strides = [1, 1, 1]} : vector<2x16x32xf32> to vector<2x16x8xf32>
    %98 = vector.extract_strided_slice %89 {offsets = [0, 0, 16], sizes = [2, 16, 8], strides = [1, 1, 1]} : vector<2x16x32xf32> to vector<2x16x8xf32>
    %99 = vector.extract_strided_slice %89 {offsets = [0, 0, 24], sizes = [2, 16, 8], strides = [1, 1, 1]} : vector<2x16x32xf32> to vector<2x16x8xf32>
    %100 = tpu.concatenate %96, %97, %98, %99 in 0 : vector<2x16x8xf32>, vector<2x16x8xf32>, vector<2x16x8xf32>, vector<2x16x8xf32> -> vector<8x16x8xf32>
    %101 = vector.extract_strided_slice %90 {offsets = [0, 0, 0], sizes = [2, 16, 8], strides = [1, 1, 1]} : vector<2x16x32xf32> to vector<2x16x8xf32>
    %102 = vector.extract_strided_slice %90 {offsets = [0, 0, 8], sizes = [2, 16, 8], strides = [1, 1, 1]} : vector<2x16x32xf32> to vector<2x16x8xf32>
    %103 = vector.extract_strided_slice %90 {offsets = [0, 0, 16], sizes = [2, 16, 8], strides = [1, 1, 1]} : vector<2x16x32xf32> to vector<2x16x8xf32>
    %104 = vector.extract_strided_slice %90 {offsets = [0, 0, 24], sizes = [2, 16, 8], strides = [1, 1, 1]} : vector<2x16x32xf32> to vector<2x16x8xf32>
    %105 = tpu.concatenate %101, %102, %103, %104 in 0 : vector<2x16x8xf32>, vector<2x16x8xf32>, vector<2x16x8xf32>, vector<2x16x8xf32> -> vector<8x16x8xf32>
    "tpu.trace_start"() <{level = 10 : i32, message = "nqd,nkd->nqk"}> : () -> ()
    %cst_43 = arith.constant dense<0.000000e+00> : vector<8x16x16xf32>
    %106 = tpu.matmul %95, %100, %cst_43 {dimension_numbers = #tpu.dot_dimension_numbers<[2], [2], [1], [1], [0, 0, 0, 1, 1, 1], [0], [0]>} : vector<8x16x8xf32>, vector<8x16x8xf32>, vector<8x16x16xf32> -> vector<8x16x16xf32>
    "tpu.trace_stop"() : () -> ()
    %cst_44 = arith.constant 0.353553385 : f32
    %107 = vector.broadcast %cst_44 : f32 to vector<8x16x16xf32>
    %108 = arith.mulf %106, %107 : vector<8x16x16xf32>
    %cst_45 = arith.constant dense<0xFF800000> : vector<8x16xf32>
    %109 = vector.multi_reduction <maximumf>, %108, %cst_45 [2] : vector<8x16x16xf32> to vector<8x16xf32>
    %110 = vector.shape_cast %109 : vector<8x16xf32> to vector<8x16x1xf32>
    %111 = vector.broadcast %110 : vector<8x16x1xf32> to vector<8x16x16xf32>
    %112 = arith.subf %108, %111 : vector<8x16x16xf32>
    %113 = math.exp %112 : vector<8x16x16xf32>
    %cst_46 = arith.constant dense<0.000000e+00> : vector<8x16xf32>
    %114 = vector.multi_reduction <add>, %113, %cst_46 [2] : vector<8x16x16xf32> to vector<8x16xf32>
    %115 = vector.shape_cast %114 : vector<8x16xf32> to vector<8x16x1xf32>
    %116 = tpu.reciprocal %115 {approx = true} : vector<8x16x1xf32> -> vector<8x16x1xf32>
    %117 = vector.broadcast %116 : vector<8x16x1xf32> to vector<8x16x16xf32>
    %118 = arith.mulf %113, %117 : vector<8x16x16xf32>
    "tpu.trace_start"() <{level = 10 : i32, message = "nqk,nkd->nqd"}> : () -> ()
    %cst_47 = arith.constant dense<0.000000e+00> : vector<8x16x8xf32>
    %119 = tpu.matmul %118, %105, %cst_47 {dimension_numbers = #tpu.dot_dimension_numbers<[2], [1], [1], [2], [0, 0, 0, 1, 1, 2], [0], [0]>} : vector<8x16x16xf32>, vector<8x16x8xf32>, vector<8x16x8xf32> -> vector<8x16x8xf32>
    "tpu.trace_stop"() : () -> ()
    %120 = vector.extract_strided_slice %119 {offsets = [0, 0, 0], sizes = [2, 16, 8], strides = [1, 1, 1]} : vector<8x16x8xf32> to vector<2x16x8xf32>
    %121 = vector.extract_strided_slice %119 {offsets = [2, 0, 0], sizes = [2, 16, 8], strides = [1, 1, 1]} : vector<8x16x8xf32> to vector<2x16x8xf32>
    %122 = vector.extract_strided_slice %119 {offsets = [4, 0, 0], sizes = [2, 16, 8], strides = [1, 1, 1]} : vector<8x16x8xf32> to vector<2x16x8xf32>
    %123 = vector.extract_strided_slice %119 {offsets = [6, 0, 0], sizes = [2, 16, 8], strides = [1, 1, 1]} : vector<8x16x8xf32> to vector<2x16x8xf32>
    %124 = tpu.concatenate %120, %121, %122, %123 in 2 : vector<2x16x8xf32>, vector<2x16x8xf32>, vector<2x16x8xf32>, vector<2x16x8xf32> -> vector<2x16x32xf32>
    %125 = vector.shape_cast %124 : vector<2x16x32xf32> to vector<32x32xf32>
    %c0_48 = arith.constant 0 : index
    %c0_49 = arith.constant 0 : index
    %c0_50 = arith.constant 0 : index
    %126 = vector.load %arg16[%c0_48, %c0_49, %c0_50] : memref<2x32x32xf32, #tpu.memory_space<vmem>>, vector<1x32x32xf32>
    %127 = vector.shape_cast %126 : vector<1x32x32xf32> to vector<32x32xf32>
    %cst_51 = arith.constant dense<0.000000e+00> : vector<32x32xf32>
    %128 = tpu.matmul %125, %127, %cst_51 {dimension_numbers = #tpu.dot_dimension_numbers<[1], [0], [0], [1], [0, 0, 1, 1], [], []>} : vector<32x32xf32>, vector<32x32xf32>, vector<32x32xf32> -> vector<32x32xf32>
    %129 = arith.addf %55, %128 : vector<32x32xf32>
    %c0_52 = arith.constant 0 : index
    %c0_53 = arith.constant 0 : index
    %c0_54 = arith.constant 0 : index
    %130 = vector.load %arg17[%c0_52, %c0_53, %c0_54] : memref<2x1x32xf32, #tpu.memory_space<vmem>>, vector<1x1x32xf32>
    %131 = vector.shape_cast %130 : vector<1x1x32xf32> to vector<1x32xf32>
    %132 = vector.broadcast %131 : vector<1x32xf32> to vector<32x32xf32>
    %133 = arith.addf %129, %132 : vector<32x32xf32>
    %c0_55 = arith.constant 0 : index
    %c0_56 = arith.constant 0 : index
    %c0_57 = arith.constant 0 : index
    %134 = vector.load %arg18[%c0_55, %c0_56, %c0_57] : memref<2x1x32xf32, #tpu.memory_space<vmem>>, vector<1x1x32xf32>
    %135 = vector.shape_cast %134 : vector<1x1x32xf32> to vector<1x32xf32>
    %c0_58 = arith.constant 0 : index
    %c0_59 = arith.constant 0 : index
    %c0_60 = arith.constant 0 : index
    %136 = vector.load %arg19[%c0_58, %c0_59, %c0_60] : memref<2x1x32xf32, #tpu.memory_space<vmem>>, vector<1x1x32xf32>
    %137 = vector.shape_cast %136 : vector<1x1x32xf32> to vector<1x32xf32>
    %cst_61 = arith.constant dense<0.000000e+00> : vector<32xf32>
    %138 = vector.multi_reduction <add>, %133, %cst_61 [1] : vector<32x32xf32> to vector<32xf32>
    %139 = vector.shape_cast %138 : vector<32xf32> to vector<32x1xf32>
    %cst_62 = arith.constant 3.200000e+01 : f32
    %140 = vector.broadcast %cst_62 : f32 to vector<32x1xf32>
    %141 = arith.divf %139, %140 : vector<32x1xf32>
    %142 = vector.broadcast %141 : vector<32x1xf32> to vector<32x32xf32>
    %143 = arith.subf %133, %142 : vector<32x32xf32>
    %144 = arith.mulf %143, %143 : vector<32x32xf32>
    %cst_63 = arith.constant dense<0.000000e+00> : vector<32xf32>
    %145 = vector.multi_reduction <add>, %144, %cst_63 [1] : vector<32x32xf32> to vector<32xf32>
    %146 = vector.shape_cast %145 : vector<32xf32> to vector<32x1xf32>
    %cst_64 = arith.constant 3.200000e+01 : f32
    %147 = vector.broadcast %cst_64 : f32 to vector<32x1xf32>
    %148 = arith.divf %146, %147 : vector<32x1xf32>
    %cst_65 = arith.constant 9.99999974E-6 : f32
    %149 = vector.broadcast %cst_65 : f32 to vector<32x1xf32>
    %150 = arith.addf %148, %149 : vector<32x1xf32>
    %151 = math.rsqrt %150 : vector<32x1xf32>
    %152 = vector.broadcast %151 : vector<32x1xf32> to vector<32x32xf32>
    %153 = arith.mulf %143, %152 : vector<32x32xf32>
    %154 = vector.broadcast %135 : vector<1x32xf32> to vector<32x32xf32>
    %155 = arith.mulf %153, %154 : vector<32x32xf32>
    %156 = vector.broadcast %137 : vector<1x32xf32> to vector<32x32xf32>
    %157 = arith.addf %155, %156 : vector<32x32xf32>
    %c0_66 = arith.constant 0 : index
    %c0_67 = arith.constant 0 : index
    %c0_68 = arith.constant 0 : index
    %158 = vector.load %arg20[%c0_66, %c0_67, %c0_68] : memref<2x32x128xf32, #tpu.memory_space<vmem>>, vector<1x32x128xf32>
    %159 = vector.shape_cast %158 : vector<1x32x128xf32> to vector<32x128xf32>
    %cst_69 = arith.constant dense<0.000000e+00> : vector<32x128xf32>
    %160 = tpu.matmul %157, %159, %cst_69 {dimension_numbers = #tpu.dot_dimension_numbers<[1], [0], [0], [1], [0, 0, 1, 1], [], []>} : vector<32x32xf32>, vector<32x128xf32>, vector<32x128xf32> -> vector<32x128xf32>
    %c0_70 = arith.constant 0 : index
    %c0_71 = arith.constant 0 : index
    %c0_72 = arith.constant 0 : index
    %161 = vector.load %arg21[%c0_70, %c0_71, %c0_72] : memref<2x1x128xf32, #tpu.memory_space<vmem>>, vector<1x1x128xf32>
    %162 = vector.shape_cast %161 : vector<1x1x128xf32> to vector<1x128xf32>
    %163 = vector.broadcast %162 : vector<1x128xf32> to vector<32x128xf32>
    %164 = arith.addf %160, %163 : vector<32x128xf32>
    %165 = arith.mulf %164, %164 : vector<32x128xf32>
    %166 = arith.mulf %164, %165 : vector<32x128xf32>
    %cst_73 = arith.constant 4.471500e-02 : f32
    %167 = vector.broadcast %cst_73 : f32 to vector<32x128xf32>
    %168 = arith.mulf %167, %166 : vector<32x128xf32>
    %169 = arith.addf %164, %168 : vector<32x128xf32>
    %cst_74 = arith.constant 0.797884583 : f32
    %170 = vector.broadcast %cst_74 : f32 to vector<32x128xf32>
    %171 = arith.mulf %170, %169 : vector<32x128xf32>
    %172 = math.tanh %171 : vector<32x128xf32>
    %cst_75 = arith.constant 1.000000e+00 : f32
    %173 = vector.broadcast %cst_75 : f32 to vector<32x128xf32>
    %174 = arith.addf %173, %172 : vector<32x128xf32>
    %cst_76 = arith.constant 5.000000e-01 : f32
    %175 = vector.broadcast %cst_76 : f32 to vector<32x128xf32>
    %176 = arith.mulf %175, %174 : vector<32x128xf32>
    %177 = arith.mulf %164, %176 : vector<32x128xf32>
    %c0_77 = arith.constant 0 : index
    %c0_78 = arith.constant 0 : index
    %c0_79 = arith.constant 0 : index
    %178 = vector.load %arg22[%c0_77, %c0_78, %c0_79] : memref<2x128x32xf32, #tpu.memory_space<vmem>>, vector<1x128x32xf32>
    %179 = vector.shape_cast %178 : vector<1x128x32xf32> to vector<128x32xf32>
    %cst_80 = arith.constant dense<0.000000e+00> : vector<32x32xf32>
    %180 = tpu.matmul %177, %179, %cst_80 {dimension_numbers = #tpu.dot_dimension_numbers<[1], [0], [0], [1], [0, 0, 1, 1], [], []>} : vector<32x128xf32>, vector<128x32xf32>, vector<32x32xf32> -> vector<32x32xf32>
    %c0_81 = arith.constant 0 : index
    %c0_82 = arith.constant 0 : index
    %c0_83 = arith.constant 0 : index
    %181 = vector.load %arg23[%c0_81, %c0_82, %c0_83] : memref<2x1x32xf32, #tpu.memory_space<vmem>>, vector<1x1x32xf32>
    %182 = vector.shape_cast %181 : vector<1x1x32xf32> to vector<1x32xf32>
    %183 = vector.broadcast %182 : vector<1x32xf32> to vector<32x32xf32>
    %184 = arith.addf %180, %183 : vector<32x32xf32>
    %185 = arith.addf %133, %184 : vector<32x32xf32>
    %186 = vector.shape_cast %185 : vector<32x32xf32> to vector<2x16x32xf32>
    %cst_84 = arith.constant 0.000000e+00 : f32
    %187 = vector.broadcast %cst_84 : f32 to vector<4x24x32xf32>
    %c0_85 = arith.constant 0 : index
    %c0_86 = arith.constant 0 : index
    %c0_87 = arith.constant 0 : index
    %188 = vector.load %arg25[%c0_85, %c0_86, %c0_87] : memref<4x24x32xf32, #tpu.memory_space<vmem>>, vector<4x24x32xf32>
    tpu.vector_store %arg25[%c0_85, %c0_86, %c0_87], %187 {strides = array<i32>} : memref<4x24x32xf32, #tpu.memory_space<vmem>>, vector<4x24x32xf32>,
    %c0_88 = arith.constant 0 : index
    %c0_89 = arith.constant 0 : index
    %189 = vector.load %arg9[%c0_88, %c0_89] : memref<1x32xf32, #tpu.memory_space<vmem>>, vector<1x32xf32>
    %190 = vector.shape_cast %189 : vector<1x32xf32> to vector<1x1x32xf32>
    %191 = vector.shape_cast %190 : vector<1x1x32xf32> to vector<1x1x32xf32>
    %192 = vector.broadcast %191 : vector<1x1x32xf32> to vector<4x1x32xf32>
    %c0_90 = arith.constant 0 : index
    %c0_91 = arith.constant 0 : index
    %c0_92 = arith.constant 0 : index
    %193 = vector.load %arg25[%c0_90, %c0_91, %c0_92] : memref<4x24x32xf32, #tpu.memory_space<vmem>>, vector<4x1x32xf32>
    tpu.vector_store %arg25[%c0_90, %c0_91, %c0_92], %192 {strides = array<i32>} : memref<4x24x32xf32, #tpu.memory_space<vmem>>, vector<4x1x32xf32>,
    %c0_93 = arith.constant 0 : index
    %c0_94 = arith.constant 0 : index
    %194 = vector.load %arg8[%c0_93, %c0_94] : memref<2x32xf32, #tpu.memory_space<vmem>>, vector<1x32xf32>
    %195 = vector.shape_cast %194 : vector<1x32xf32> to vector<1x1x32xf32>
    %196 = vector.broadcast %195 : vector<1x1x32xf32> to vector<2x16x32xf32>
    %197 = arith.addf %186, %196 : vector<2x16x32xf32>
    %c0_95 = arith.constant 0 : index
    %c1 = arith.constant 1 : index
    %c0_96 = arith.constant 0 : index
    %198 = vector.load %arg25[%c0_95, %c1, %c0_96] : memref<4x24x32xf32, #tpu.memory_space<vmem>>, vector<2x16x32xf32>
    tpu.vector_store %arg25[%c0_95, %c1, %c0_96], %197 {strides = array<i32>} : memref<4x24x32xf32, #tpu.memory_space<vmem>>, vector<2x16x32xf32>,
    %c1_97 = arith.constant 1 : index
    %c0_98 = arith.constant 0 : index
    %199 = vector.load %arg8[%c1_97, %c0_98] : memref<2x32xf32, #tpu.memory_space<vmem>>, vector<1x32xf32>
    %200 = vector.shape_cast %199 : vector<1x32xf32> to vector<1x1x32xf32>
    %201 = vector.broadcast %200 : vector<1x1x32xf32> to vector<2x16x32xf32>
    %202 = arith.addf %186, %201 : vector<2x16x32xf32>
    %c2 = arith.constant 2 : index
    %c1_99 = arith.constant 1 : index
    %c0_100 = arith.constant 0 : index
    %203 = vector.load %arg25[%c2, %c1_99, %c0_100] : memref<4x24x32xf32, #tpu.memory_space<vmem>>, vector<2x16x32xf32>
    tpu.vector_store %arg25[%c2, %c1_99, %c0_100], %202 {strides = array<i32>} : memref<4x24x32xf32, #tpu.memory_space<vmem>>, vector<2x16x32xf32>,
    %c0_101 = arith.constant 0 : index
    %c0_102 = arith.constant 0 : index
    %c0_103 = arith.constant 0 : index
    %204 = vector.load %arg25[%c0_101, %c0_102, %c0_103] : memref<4x24x32xf32, #tpu.memory_space<vmem>>, vector<4x24x32xf32>
    %205 = vector.shape_cast %204 : vector<4x24x32xf32> to vector<96x32xf32>
    %c1_104 = arith.constant 1 : index
    %c0_105 = arith.constant 0 : index
    %c0_106 = arith.constant 0 : index
    %206 = vector.load %arg12[%c1_104, %c0_105, %c0_106] : memref<2x1x32xf32, #tpu.memory_space<vmem>>, vector<1x1x32xf32>
    %207 = vector.shape_cast %206 : vector<1x1x32xf32> to vector<1x32xf32>
    %c1_107 = arith.constant 1 : index
    %c0_108 = arith.constant 0 : index
    %c0_109 = arith.constant 0 : index
    %208 = vector.load %arg13[%c1_107, %c0_108, %c0_109] : memref<2x1x32xf32, #tpu.memory_space<vmem>>, vector<1x1x32xf32>
    %209 = vector.shape_cast %208 : vector<1x1x32xf32> to vector<1x32xf32>
    %cst_110 = arith.constant dense<0.000000e+00> : vector<96xf32>
    %210 = vector.multi_reduction <add>, %205, %cst_110 [1] : vector<96x32xf32> to vector<96xf32>
    %211 = vector.shape_cast %210 : vector<96xf32> to vector<96x1xf32>
    %cst_111 = arith.constant 3.200000e+01 : f32
    %212 = vector.broadcast %cst_111 : f32 to vector<96x1xf32>
    %213 = arith.divf %211, %212 : vector<96x1xf32>
    %214 = vector.broadcast %213 : vector<96x1xf32> to vector<96x32xf32>
    %215 = arith.subf %205, %214 : vector<96x32xf32>
    %216 = arith.mulf %215, %215 : vector<96x32xf32>
    %cst_112 = arith.constant dense<0.000000e+00> : vector<96xf32>
    %217 = vector.multi_reduction <add>, %216, %cst_112 [1] : vector<96x32xf32> to vector<96xf32>
    %218 = vector.shape_cast %217 : vector<96xf32> to vector<96x1xf32>
    %cst_113 = arith.constant 3.200000e+01 : f32
    %219 = vector.broadcast %cst_113 : f32 to vector<96x1xf32>
    %220 = arith.divf %218, %219 : vector<96x1xf32>
    %cst_114 = arith.constant 9.99999974E-6 : f32
    %221 = vector.broadcast %cst_114 : f32 to vector<96x1xf32>
    %222 = arith.addf %220, %221 : vector<96x1xf32>
    %223 = math.rsqrt %222 : vector<96x1xf32>
    %224 = vector.broadcast %223 : vector<96x1xf32> to vector<96x32xf32>
    %225 = arith.mulf %215, %224 : vector<96x32xf32>
    %226 = vector.broadcast %207 : vector<1x32xf32> to vector<96x32xf32>
    %227 = arith.mulf %225, %226 : vector<96x32xf32>
    %228 = vector.broadcast %209 : vector<1x32xf32> to vector<96x32xf32>
    %229 = arith.addf %227, %228 : vector<96x32xf32>
    %c1_115 = arith.constant 1 : index
    %c0_116 = arith.constant 0 : index
    %c0_117 = arith.constant 0 : index
    %230 = vector.load %arg14[%c1_115, %c0_116, %c0_117] : memref<2x32x96xf32, #tpu.memory_space<vmem>>, vector<1x32x96xf32>
    %231 = vector.shape_cast %230 : vector<1x32x96xf32> to vector<32x96xf32>
    %cst_118 = arith.constant dense<0.000000e+00> : vector<96x96xf32>
    %232 = tpu.matmul %229, %231, %cst_118 {dimension_numbers = #tpu.dot_dimension_numbers<[1], [0], [0], [1], [0, 0, 1, 1], [], []>} : vector<96x32xf32>, vector<32x96xf32>, vector<96x96xf32> -> vector<96x96xf32>
    %c1_119 = arith.constant 1 : index
    %c0_120 = arith.constant 0 : index
    %c0_121 = arith.constant 0 : index
    %233 = vector.load %arg15[%c1_119, %c0_120, %c0_121] : memref<2x1x96xf32, #tpu.memory_space<vmem>>, vector<1x1x96xf32>
    %234 = vector.shape_cast %233 : vector<1x1x96xf32> to vector<1x96xf32>
    %235 = vector.broadcast %234 : vector<1x96xf32> to vector<96x96xf32>
    %236 = arith.addf %232, %235 : vector<96x96xf32>
    %237 = vector.shape_cast %236 : vector<96x96xf32> to vector<4x24x96xf32>
    %238 = vector.extract_strided_slice %237 {offsets = [0, 0, 0], sizes = [4, 24, 32], strides = [1, 1, 1]} : vector<4x24x96xf32> to vector<4x24x32xf32>
    %239 = vector.extract_strided_slice %237 {offsets = [0, 0, 32], sizes = [4, 24, 32], strides = [1, 1, 1]} : vector<4x24x96xf32> to vector<4x24x32xf32>
    %240 = vector.extract_strided_slice %237 {offsets = [0, 0, 64], sizes = [4, 24, 32], strides = [1, 1, 1]} : vector<4x24x96xf32> to vector<4x24x32xf32>
    %241 = vector.extract_strided_slice %238 {offsets = [0, 0, 0], sizes = [4, 24, 8], strides = [1, 1, 1]} : vector<4x24x32xf32> to vector<4x24x8xf32>
    %242 = vector.extract_strided_slice %238 {offsets = [0, 0, 8], sizes = [4, 24, 8], strides = [1, 1, 1]} : vector<4x24x32xf32> to vector<4x24x8xf32>
    %243 = vector.extract_strided_slice %238 {offsets = [0, 0, 16], sizes = [4, 24, 8], strides = [1, 1, 1]} : vector<4x24x32xf32> to vector<4x24x8xf32>
    %244 = vector.extract_strided_slice %238 {offsets = [0, 0, 24], sizes = [4, 24, 8], strides = [1, 1, 1]} : vector<4x24x32xf32> to vector<4x24x8xf32>
    %245 = tpu.concatenate %241, %242, %243, %244 in 0 : vector<4x24x8xf32>, vector<4x24x8xf32>, vector<4x24x8xf32>, vector<4x24x8xf32> -> vector<16x24x8xf32>
    %246 = vector.extract_strided_slice %239 {offsets = [0, 0, 0], sizes = [4, 24, 8], strides = [1, 1, 1]} : vector<4x24x32xf32> to vector<4x24x8xf32>
    %247 = vector.extract_strided_slice %239 {offsets = [0, 0, 8], sizes = [4, 24, 8], strides = [1, 1, 1]} : vector<4x24x32xf32> to vector<4x24x8xf32>
    %248 = vector.extract_strided_slice %239 {offsets = [0, 0, 16], sizes = [4, 24, 8], strides = [1, 1, 1]} : vector<4x24x32xf32> to vector<4x24x8xf32>
    %249 = vector.extract_strided_slice %239 {offsets = [0, 0, 24], sizes = [4, 24, 8], strides = [1, 1, 1]} : vector<4x24x32xf32> to vector<4x24x8xf32>
    %250 = tpu.concatenate %246, %247, %248, %249 in 0 : vector<4x24x8xf32>, vector<4x24x8xf32>, vector<4x24x8xf32>, vector<4x24x8xf32> -> vector<16x24x8xf32>
    %251 = vector.extract_strided_slice %240 {offsets = [0, 0, 0], sizes = [4, 24, 8], strides = [1, 1, 1]} : vector<4x24x32xf32> to vector<4x24x8xf32>
    %252 = vector.extract_strided_slice %240 {offsets = [0, 0, 8], sizes = [4, 24, 8], strides = [1, 1, 1]} : vector<4x24x32xf32> to vector<4x24x8xf32>
    %253 = vector.extract_strided_slice %240 {offsets = [0, 0, 16], sizes = [4, 24, 8], strides = [1, 1, 1]} : vector<4x24x32xf32> to vector<4x24x8xf32>
    %254 = vector.extract_strided_slice %240 {offsets = [0, 0, 24], sizes = [4, 24, 8], strides = [1, 1, 1]} : vector<4x24x32xf32> to vector<4x24x8xf32>
    %255 = tpu.concatenate %251, %252, %253, %254 in 0 : vector<4x24x8xf32>, vector<4x24x8xf32>, vector<4x24x8xf32>, vector<4x24x8xf32> -> vector<16x24x8xf32>
    "tpu.trace_start"() <{level = 10 : i32, message = "nqd,nkd->nqk"}> : () -> ()
    %cst_122 = arith.constant dense<0.000000e+00> : vector<16x24x24xf32>
    %256 = tpu.matmul %245, %250, %cst_122 {dimension_numbers = #tpu.dot_dimension_numbers<[2], [2], [1], [1], [0, 0, 0, 1, 1, 1], [0], [0]>} : vector<16x24x8xf32>, vector<16x24x8xf32>, vector<16x24x24xf32> -> vector<16x24x24xf32>
    "tpu.trace_stop"() : () -> ()
    %cst_123 = arith.constant 0.353553385 : f32
    %257 = vector.broadcast %cst_123 : f32 to vector<16x24x24xf32>
    %258 = arith.mulf %256, %257 : vector<16x24x24xf32>
    %259 = tpu.iota {dimensions = array<i32: 2>} : vector<1x1x24xi32>
    %c17_i32 = arith.constant 17 : i32
    %260 = vector.broadcast %c17_i32 : i32 to vector<1x1x24xi32>
    %261 = arith.cmpi slt, %259, %260 : vector<1x1x24xi32>
    %cst_124 = arith.constant -1.000000e+30 : f32
    %262 = vector.shape_cast %261 : vector<1x1x24xi1> to vector<1x1x24xi1>
    %263 = vector.broadcast %262 : vector<1x1x24xi1> to vector<16x24x24xi1>
    %264 = vector.broadcast %cst_124 : f32 to vector<16x24x24xf32>
    %265 = arith.select %263, %258, %264 : vector<16x24x24xi1>, vector<16x24x24xf32>
    %cst_125 = arith.constant dense<0xFF800000> : vector<16x24xf32>
    %266 = vector.multi_reduction <maximumf>, %265, %cst_125 [2] : vector<16x24x24xf32> to vector<16x24xf32>
    %267 = vector.shape_cast %266 : vector<16x24xf32> to vector<16x24x1xf32>
    %268 = vector.broadcast %267 : vector<16x24x1xf32> to vector<16x24x24xf32>
    %269 = arith.subf %265, %268 : vector<16x24x24xf32>
    %270 = math.exp %269 : vector<16x24x24xf32>
    %cst_126 = arith.constant dense<0.000000e+00> : vector<16x24xf32>
    %271 = vector.multi_reduction <add>, %270, %cst_126 [2] : vector<16x24x24xf32> to vector<16x24xf32>
    %272 = vector.shape_cast %271 : vector<16x24xf32> to vector<16x24x1xf32>
    %273 = tpu.reciprocal %272 {approx = true} : vector<16x24x1xf32> -> vector<16x24x1xf32>
    %274 = vector.broadcast %273 : vector<16x24x1xf32> to vector<16x24x24xf32>
    %275 = arith.mulf %270, %274 : vector<16x24x24xf32>
    "tpu.trace_start"() <{level = 10 : i32, message = "nqk,nkd->nqd"}> : () -> ()
    %cst_127 = arith.constant dense<0.000000e+00> : vector<16x24x8xf32>
    %276 = tpu.matmul %275, %255, %cst_127 {dimension_numbers = #tpu.dot_dimension_numbers<[2], [1], [1], [2], [0, 0, 0, 1, 1, 2], [0], [0]>} : vector<16x24x24xf32>, vector<16x24x8xf32>, vector<16x24x8xf32> -> vector<16x24x8xf32>
    "tpu.trace_stop"() : () -> ()
    %277 = vector.extract_strided_slice %276 {offsets = [0, 0, 0], sizes = [4, 24, 8], strides = [1, 1, 1]} : vector<16x24x8xf32> to vector<4x24x8xf32>
    %278 = vector.extract_strided_slice %276 {offsets = [4, 0, 0], sizes = [4, 24, 8], strides = [1, 1, 1]} : vector<16x24x8xf32> to vector<4x24x8xf32>
    %279 = vector.extract_strided_slice %276 {offsets = [8, 0, 0], sizes = [4, 24, 8], strides = [1, 1, 1]} : vector<16x24x8xf32> to vector<4x24x8xf32>
    %280 = vector.extract_strided_slice %276 {offsets = [12, 0, 0], sizes = [4, 24, 8], strides = [1, 1, 1]} : vector<16x24x8xf32> to vector<4x24x8xf32>
    %281 = tpu.concatenate %277, %278, %279, %280 in 2 : vector<4x24x8xf32>, vector<4x24x8xf32>, vector<4x24x8xf32>, vector<4x24x8xf32> -> vector<4x24x32xf32>
    %282 = vector.shape_cast %281 : vector<4x24x32xf32> to vector<96x32xf32>
    %c1_128 = arith.constant 1 : index
    %c0_129 = arith.constant 0 : index
    %c0_130 = arith.constant 0 : index
    %283 = vector.load %arg16[%c1_128, %c0_129, %c0_130] : memref<2x32x32xf32, #tpu.memory_space<vmem>>, vector<1x32x32xf32>
    %284 = vector.shape_cast %283 : vector<1x32x32xf32> to vector<32x32xf32>
    %cst_131 = arith.constant dense<0.000000e+00> : vector<96x32xf32>
    %285 = tpu.matmul %282, %284, %cst_131 {dimension_numbers = #tpu.dot_dimension_numbers<[1], [0], [0], [1], [0, 0, 1, 1], [], []>} : vector<96x32xf32>, vector<32x32xf32>, vector<96x32xf32> -> vector<96x32xf32>
    %286 = arith.addf %205, %285 : vector<96x32xf32>
    %c1_132 = arith.constant 1 : index
    %c0_133 = arith.constant 0 : index
    %c0_134 = arith.constant 0 : index
    %287 = vector.load %arg17[%c1_132, %c0_133, %c0_134] : memref<2x1x32xf32, #tpu.memory_space<vmem>>, vector<1x1x32xf32>
    %288 = vector.shape_cast %287 : vector<1x1x32xf32> to vector<1x32xf32>
    %289 = vector.broadcast %288 : vector<1x32xf32> to vector<96x32xf32>
    %290 = arith.addf %286, %289 : vector<96x32xf32>
    %c1_135 = arith.constant 1 : index
    %c0_136 = arith.constant 0 : index
    %c0_137 = arith.constant 0 : index
    %291 = vector.load %arg18[%c1_135, %c0_136, %c0_137] : memref<2x1x32xf32, #tpu.memory_space<vmem>>, vector<1x1x32xf32>
    %292 = vector.shape_cast %291 : vector<1x1x32xf32> to vector<1x32xf32>
    %c1_138 = arith.constant 1 : index
    %c0_139 = arith.constant 0 : index
    %c0_140 = arith.constant 0 : index
    %293 = vector.load %arg19[%c1_138, %c0_139, %c0_140] : memref<2x1x32xf32, #tpu.memory_space<vmem>>, vector<1x1x32xf32>
    %294 = vector.shape_cast %293 : vector<1x1x32xf32> to vector<1x32xf32>
    %cst_141 = arith.constant dense<0.000000e+00> : vector<96xf32>
    %295 = vector.multi_reduction <add>, %290, %cst_141 [1] : vector<96x32xf32> to vector<96xf32>
    %296 = vector.shape_cast %295 : vector<96xf32> to vector<96x1xf32>
    %cst_142 = arith.constant 3.200000e+01 : f32
    %297 = vector.broadcast %cst_142 : f32 to vector<96x1xf32>
    %298 = arith.divf %296, %297 : vector<96x1xf32>
    %299 = vector.broadcast %298 : vector<96x1xf32> to vector<96x32xf32>
    %300 = arith.subf %290, %299 : vector<96x32xf32>
    %301 = arith.mulf %300, %300 : vector<96x32xf32>
    %cst_143 = arith.constant dense<0.000000e+00> : vector<96xf32>
    %302 = vector.multi_reduction <add>, %301, %cst_143 [1] : vector<96x32xf32> to vector<96xf32>
    %303 = vector.shape_cast %302 : vector<96xf32> to vector<96x1xf32>
    %cst_144 = arith.constant 3.200000e+01 : f32
    %304 = vector.broadcast %cst_144 : f32 to vector<96x1xf32>
    %305 = arith.divf %303, %304 : vector<96x1xf32>
    %cst_145 = arith.constant 9.99999974E-6 : f32
    %306 = vector.broadcast %cst_145 : f32 to vector<96x1xf32>
    %307 = arith.addf %305, %306 : vector<96x1xf32>
    %308 = math.rsqrt %307 : vector<96x1xf32>
    %309 = vector.broadcast %308 : vector<96x1xf32> to vector<96x32xf32>
    %310 = arith.mulf %300, %309 : vector<96x32xf32>
    %311 = vector.broadcast %292 : vector<1x32xf32> to vector<96x32xf32>
    %312 = arith.mulf %310, %311 : vector<96x32xf32>
    %313 = vector.broadcast %294 : vector<1x32xf32> to vector<96x32xf32>
    %314 = arith.addf %312, %313 : vector<96x32xf32>
    %c1_146 = arith.constant 1 : index
    %c0_147 = arith.constant 0 : index
    %c0_148 = arith.constant 0 : index
    %315 = vector.load %arg20[%c1_146, %c0_147, %c0_148] : memref<2x32x128xf32, #tpu.memory_space<vmem>>, vector<1x32x128xf32>
    %316 = vector.shape_cast %315 : vector<1x32x128xf32> to vector<32x128xf32>
    %cst_149 = arith.constant dense<0.000000e+00> : vector<96x128xf32>
    %317 = tpu.matmul %314, %316, %cst_149 {dimension_numbers = #tpu.dot_dimension_numbers<[1], [0], [0], [1], [0, 0, 1, 1], [], []>} : vector<96x32xf32>, vector<32x128xf32>, vector<96x128xf32> -> vector<96x128xf32>
    %c1_150 = arith.constant 1 : index
    %c0_151 = arith.constant 0 : index
    %c0_152 = arith.constant 0 : index
    %318 = vector.load %arg21[%c1_150, %c0_151, %c0_152] : memref<2x1x128xf32, #tpu.memory_space<vmem>>, vector<1x1x128xf32>
    %319 = vector.shape_cast %318 : vector<1x1x128xf32> to vector<1x128xf32>
    %320 = vector.broadcast %319 : vector<1x128xf32> to vector<96x128xf32>
    %321 = arith.addf %317, %320 : vector<96x128xf32>
    %322 = arith.mulf %321, %321 : vector<96x128xf32>
    %323 = arith.mulf %321, %322 : vector<96x128xf32>
    %cst_153 = arith.constant 4.471500e-02 : f32
    %324 = vector.broadcast %cst_153 : f32 to vector<96x128xf32>
    %325 = arith.mulf %324, %323 : vector<96x128xf32>
    %326 = arith.addf %321, %325 : vector<96x128xf32>
    %cst_154 = arith.constant 0.797884583 : f32
    %327 = vector.broadcast %cst_154 : f32 to vector<96x128xf32>
    %328 = arith.mulf %327, %326 : vector<96x128xf32>
    %329 = math.tanh %328 : vector<96x128xf32>
    %cst_155 = arith.constant 1.000000e+00 : f32
    %330 = vector.broadcast %cst_155 : f32 to vector<96x128xf32>
    %331 = arith.addf %330, %329 : vector<96x128xf32>
    %cst_156 = arith.constant 5.000000e-01 : f32
    %332 = vector.broadcast %cst_156 : f32 to vector<96x128xf32>
    %333 = arith.mulf %332, %331 : vector<96x128xf32>
    %334 = arith.mulf %321, %333 : vector<96x128xf32>
    %c1_157 = arith.constant 1 : index
    %c0_158 = arith.constant 0 : index
    %c0_159 = arith.constant 0 : index
    %335 = vector.load %arg22[%c1_157, %c0_158, %c0_159] : memref<2x128x32xf32, #tpu.memory_space<vmem>>, vector<1x128x32xf32>
    %336 = vector.shape_cast %335 : vector<1x128x32xf32> to vector<128x32xf32>
    %cst_160 = arith.constant dense<0.000000e+00> : vector<96x32xf32>
    %337 = tpu.matmul %334, %336, %cst_160 {dimension_numbers = #tpu.dot_dimension_numbers<[1], [0], [0], [1], [0, 0, 1, 1], [], []>} : vector<96x128xf32>, vector<128x32xf32>, vector<96x32xf32> -> vector<96x32xf32>
    %c1_161 = arith.constant 1 : index
    %c0_162 = arith.constant 0 : index
    %c0_163 = arith.constant 0 : index
    %338 = vector.load %arg23[%c1_161, %c0_162, %c0_163] : memref<2x1x32xf32, #tpu.memory_space<vmem>>, vector<1x1x32xf32>
    %339 = vector.shape_cast %338 : vector<1x1x32xf32> to vector<1x32xf32>
    %340 = vector.broadcast %339 : vector<1x32xf32> to vector<96x32xf32>
    %341 = arith.addf %337, %340 : vector<96x32xf32>
    %342 = arith.addf %290, %341 : vector<96x32xf32>
    %343 = vector.shape_cast %342 : vector<96x32xf32> to vector<4x24x32xf32>
    %344 = vector.extract_strided_slice %343 {offsets = [0, 0, 0], sizes = [4, 1, 32], strides = [1, 1, 1]} : vector<4x24x32xf32> to vector<4x1x32xf32>
    %345 = vector.shape_cast %344 : vector<4x1x32xf32> to vector<4x32xf32>
    %c0_164 = arith.constant 0 : index
    %c0_165 = arith.constant 0 : index
    %346 = vector.load %arg10[%c0_164, %c0_165] : memref<32x10xf32, #tpu.memory_space<vmem>>, vector<32x10xf32>
    %cst_166 = arith.constant dense<0.000000e+00> : vector<4x10xf32>
    %347 = tpu.matmul %345, %346, %cst_166 {dimension_numbers = #tpu.dot_dimension_numbers<[1], [0], [0], [1], [0, 0, 1, 1], [], []>} : vector<4x32xf32>, vector<32x10xf32>, vector<4x10xf32> -> vector<4x10xf32>
    %c0_167 = arith.constant 0 : index
    %c0_168 = arith.constant 0 : index
    %348 = vector.load %arg11[%c0_167, %c0_168] : memref<1x10xf32, #tpu.memory_space<vmem>>, vector<1x10xf32>
    %349 = vector.broadcast %348 : vector<1x10xf32> to vector<4x10xf32>
    %350 = arith.addf %347, %349 : vector<4x10xf32>
    %351 = vector.extract_strided_slice %350 {offsets = [0, 0], sizes = [2, 5], strides = [1, 1]} : vector<4x10xf32> to vector<2x5xf32>
    %cst_169 = arith.constant dense<0xFF800000> : vector<2xf32>
    %352 = vector.multi_reduction <maximumf>, %351, %cst_169 [1] : vector<2x5xf32> to vector<2xf32>
    %353 = vector.shape_cast %352 : vector<2xf32> to vector<2x1xf32>
    %354 = vector.broadcast %353 : vector<2x1xf32> to vector<2x5xf32>
    %355 = arith.subf %351, %354 : vector<2x5xf32>
    %356 = math.exp %355 : vector<2x5xf32>
    %cst_170 = arith.constant dense<0.000000e+00> : vector<2xf32>
    %357 = vector.multi_reduction <add>, %356, %cst_170 [1] : vector<2x5xf32> to vector<2xf32>
    %358 = vector.shape_cast %357 : vector<2xf32> to vector<2x1xf32>
    %359 = vector.broadcast %358 : vector<2x1xf32> to vector<2x5xf32>
    %360 = arith.divf %356, %359 : vector<2x5xf32>
    %361 = vector.extract_strided_slice %350 {offsets = [2, 5], sizes = [2, 5], strides = [1, 1]} : vector<4x10xf32> to vector<2x5xf32>
    %cst_171 = arith.constant dense<0xFF800000> : vector<2xf32>
    %362 = vector.multi_reduction <maximumf>, %361, %cst_171 [1] : vector<2x5xf32> to vector<2xf32>
    %363 = vector.shape_cast %362 : vector<2xf32> to vector<2x1xf32>
    %364 = vector.broadcast %363 : vector<2x1xf32> to vector<2x5xf32>
    %365 = arith.subf %361, %364 : vector<2x5xf32>
    %366 = math.exp %365 : vector<2x5xf32>
    %cst_172 = arith.constant dense<0.000000e+00> : vector<2xf32>
    %367 = vector.multi_reduction <add>, %366, %cst_172 [1] : vector<2x5xf32> to vector<2xf32>
    %368 = vector.shape_cast %367 : vector<2xf32> to vector<2x1xf32>
    %369 = vector.broadcast %368 : vector<2x1xf32> to vector<2x5xf32>
    %370 = arith.divf %366, %369 : vector<2x5xf32>
    %371 = vector.shape_cast %360 : vector<2x5xf32> to vector<2x1x5xf32>
    %c0_173 = arith.constant 0 : index
    %c0_174 = arith.constant 0 : index
    %c0_175 = arith.constant 0 : index
    %372 = vector.load %arg24[%c0_173, %c0_174, %c0_175] : memref<2x2x5xf32, #tpu.memory_space<vmem>>, vector<2x1x5xf32>
    tpu.vector_store %arg24[%c0_173, %c0_174, %c0_175], %371 {strides = array<i32>} : memref<2x2x5xf32, #tpu.memory_space<vmem>>, vector<2x1x5xf32>,
    %373 = vector.shape_cast %370 : vector<2x5xf32> to vector<2x1x5xf32>
    %c0_176 = arith.constant 0 : index
    %c1_177 = arith.constant 1 : index
    %c0_178 = arith.constant 0 : index
    %374 = vector.load %arg24[%c0_176, %c1_177, %c0_178] : memref<2x2x5xf32, #tpu.memory_space<vmem>>, vector<2x1x5xf32>
    tpu.vector_store %arg24[%c0_176, %c1_177, %c0_178], %373 {strides = array<i32>} : memref<2x2x5xf32, #tpu.memory_space<vmem>>, vector<2x1x5xf32>,
    return
  }
}

</mosaic_0001>

<llo_original>
// kernel: squeeze.1
$region0: #{squeeze.1}
  %s0 = inlined_call_operand.vmem [shape: f32[2,1,4,16,16], index: 0, kind: input, shape index: {}]
  %s1 = inlined_call_operand.vmem [shape: f32[2,4,4,4,4,4], index: 1, kind: output, shape index: {}]
  $region1: #{squeeze.1} parent=0
    #allocation0 [shape = 'u8[524288]{0}', space=vmem, size = 0x80000, scoped, tag = 'scoped mem for output reshape']
    %v2 = vld [vmem:[%s0] sm:$0xff]
    %vm3 = vcmask 31744
    %4 = vst.msk [vmem:[#allocation0] ss:$8 sm:$0xf] %vm3, %v2
    %5 = vst.msk [vmem:[#allocation0] ss:$8 sm:$0xf0] %vm3, %v2
    %s6 = scalar_lea.vmem %s0, 8
    %v7 = vld [vmem:[%s6] sm:$0xff]
    %vm8 = vcmask 31744
    %s9 = scalar_lea.vmem [#allocation0], 64
    %10 = vst.msk [vmem:[%s9] ss:$8 sm:$0xf] %vm8, %v7
    %s11 = scalar_lea.vmem [#allocation0], 64
    %12 = vst.msk [vmem:[%s11] ss:$8 sm:$0xf0] %vm8, %v7
    %s13 = scalar_lea.vmem %s0, 16
    %v14 = vld [vmem:[%s13] sm:$0xff]
    %vm15 = vcmask 31744
    %s16 = scalar_lea.vmem [#allocation0], 128
    %17 = vst.msk [vmem:[%s16] ss:$8 sm:$0xf] %vm15, %v14
    %s18 = scalar_lea.vmem [#allocation0], 128
    %19 = vst.msk [vmem:[%s18] ss:$8 sm:$0xf0] %vm15, %v14
    %s20 = scalar_lea.vmem %s0, 24
    %v21 = vld [vmem:[%s20] sm:$0xff]
    %vm22 = vcmask 31744
    %s23 = scalar_lea.vmem [#allocation0], 192
    %24 = vst.msk [vmem:[%s23] ss:$8 sm:$0xf] %vm22, %v21
    %s25 = scalar_lea.vmem [#allocation0], 192
    %26 = vst.msk [vmem:[%s25] ss:$8 sm:$0xf0] %vm22, %v21
    %s27 = scalar_lea.vmem %s0, 32
    %v28 = vld [vmem:[%s27] sm:$0xff]
    %vm29 = vcmask 31744
    %s30 = scalar_lea.vmem [#allocation0], 256
    %31 = vst.msk [vmem:[%s30] ss:$8 sm:$0xf] %vm29, %v28
    %s32 = scalar_lea.vmem [#allocation0], 256
    %33 = vst.msk [vmem:[%s32] ss:$8 sm:$0xf0] %vm29, %v28
    %s34 = scalar_lea.vmem %s0, 40
    %v35 = vld [vmem:[%s34] sm:$0xff]
    %vm36 = vcmask 31744
    %s37 = scalar_lea.vmem [#allocation0], 320
    %38 = vst.msk [vmem:[%s37] ss:$8 sm:$0xf] %vm36, %v35
    %s39 = scalar_lea.vmem [#allocation0], 320
    %40 = vst.msk [vmem:[%s39] ss:$8 sm:$0xf0] %vm36, %v35
    %s41 = scalar_lea.vmem %s0, 48
    %v42 = vld [vmem:[%s41] sm:$0xff]
    %vm43 = vcmask 31744
    %s44 = scalar_lea.vmem [#allocation0], 384
    %45 = vst.msk [vmem:[%s44] ss:$8 sm:$0xf] %vm43, %v42
    %s46 = scalar_lea.vmem [#allocation0], 384
    %47 = vst.msk [vmem:[%s46] ss:$8 sm:$0xf0] %vm43, %v42
    %s48 = scalar_lea.vmem %s0, 56
    %v49 = vld [vmem:[%s48] sm:$0xff]
    %vm50 = vcmask 31744
    %s51 = scalar_lea.vmem [#allocation0], 448
    %52 = vst.msk [vmem:[%s51] ss:$8 sm:$0xf] %vm50, %v49
    %s53 = scalar_lea.vmem [#allocation0], 448
    %54 = vst.msk [vmem:[%s53] ss:$8 sm:$0xf0] %vm50, %v49
    %s55 = scalar_lea.vmem %s0, 64
    %v56 = vld [vmem:[%s55] sm:$0xff]
    %vm57 = vcmask 31744
    %s58 = scalar_lea.vmem [#allocation0], 512
    %59 = vst.msk [vmem:[%s58] ss:$8 sm:$0xf] %vm57, %v56
    %s60 = scalar_lea.vmem [#allocation0], 512
    %61 = vst.msk [vmem:[%s60] ss:$8 sm:$0xf0] %vm57, %v56
    %s62 = scalar_lea.vmem %s0, 72
    %v63 = vld [vmem:[%s62] sm:$0xff]
    %vm64 = vcmask 31744
    %s65 = scalar_lea.vmem [#allocation0], 576
    %66 = vst.msk [vmem:[%s65] ss:$8 sm:$0xf] %vm64, %v63
    %s67 = scalar_lea.vmem [#allocation0], 576
    %68 = vst.msk [vmem:[%s67] ss:$8 sm:$0xf0] %vm64, %v63
    %s69 = scalar_lea.vmem %s0, 80
    %v70 = vld [vmem:[%s69] sm:$0xff]
    %vm71 = vcmask 31744
    %s72 = scalar_lea.vmem [#allocation0], 640
    %73 = vst.msk [vmem:[%s72] ss:$8 sm:$0xf] %vm71, %v70
    %s74 = scalar_lea.vmem [#allocation0], 640
    %75 = vst.msk [vmem:[%s74] ss:$8 sm:$0xf0] %vm71, %v70
    %s76 = scalar_lea.vmem %s0, 88
    %v77 = vld [vmem:[%s76] sm:$0xff]
    %vm78 = vcmask 31744
    %s79 = scalar_lea.vmem [#allocation0], 704
    %80 = vst.msk [vmem:[%s79] ss:$8 sm:$0xf] %vm78, %v77
    %s81 = scalar_lea.vmem [#allocation0], 704
    %82 = vst.msk [vmem:[%s81] ss:$8 sm:$0xf0] %vm78, %v77
    %s83 = scalar_lea.vmem %s0, 96
    %v84 = vld [vmem:[%s83] sm:$0xff]
    %vm85 = vcmask 31744
    %s86 = scalar_lea.vmem [#allocation0], 768
    %87 = vst.msk [vmem:[%s86] ss:$8 sm:$0xf] %vm85, %v84
    %s88 = scalar_lea.vmem [#allocation0], 768
    %89 = vst.msk [vmem:[%s88] ss:$8 sm:$0xf0] %vm85, %v84
    %s90 = scalar_lea.vmem %s0, 104
    %v91 = vld [vmem:[%s90] sm:$0xff]
    %vm92 = vcmask 31744
    %s93 = scalar_lea.vmem [#allocation0], 832
    %94 = vst.msk [vmem:[%s93] ss:$8 sm:$0xf] %vm92, %v91
    %s95 = scalar_lea.vmem [#allocation0], 832
    %96 = vst.msk [vmem:[%s95] ss:$8 sm:$0xf0] %vm92, %v91
    %s97 = scalar_lea.vmem %s0, 112
    %v98 = vld [vmem:[%s97] sm:$0xff]
    %vm99 = vcmask 31744
    %s100 = scalar_lea.vmem [#allocation0], 896
    %101 = vst.msk [vmem:[%s100] ss:$8 sm:$0xf] %vm99, %v98
    %s102 = scalar_lea.vmem [#allocation0], 896
    %103 = vst.msk [vmem:[%s102] ss:$8 sm:$0xf0] %vm99, %v98
    %s104 = scalar_lea.vmem %s0, 120
    %v105 = vld [vmem:[%s104] sm:$0xff]
    %vm106 = vcmask 31744
    %s107 = scalar_lea.vmem [#allocation0], 960
    %108 = vst.msk [vmem:[%s107] ss:$8 sm:$0xf] %vm106, %v105
    %s109 = scalar_lea.vmem [#allocation0], 960
    %110 = vst.msk [vmem:[%s109] ss:$8 sm:$0xf0] %vm106, %v105
    %v111 = vld [vmem:[%s0] sm:$0xff]
    %112 = vrot.lane.b32.xlu0 %v111, 124
    %v113 = vpop.permute.xlu0 %112
    %vm114 = vcmask 31744
    %s115 = scalar_lea.vmem [#allocation0], 1
    %116 = vst.msk [vmem:[%s115] ss:$8 sm:$0xf] %vm114, %v113
    %s117 = scalar_lea.vmem [#allocation0], 1
    %118 = vst.msk [vmem:[%s117] ss:$8 sm:$0xf0] %vm114, %v113
    %s119 = scalar_lea.vmem %s0, 8
    %v120 = vld [vmem:[%s119] sm:$0xff]
    %121 = vrot.lane.b32.xlu0 %v120, 124
    %v122 = vpop.permute.xlu0 %121
    %vm123 = vcmask 31744
    %s124 = scalar_lea.vmem [#allocation0], 65
    %125 = vst.msk [vmem:[%s124] ss:$8 sm:$0xf] %vm123, %v122
    %s126 = scalar_lea.vmem [#allocation0], 65
    %127 = vst.msk [vmem:[%s126] ss:$8 sm:$0xf0] %vm123, %v122
    %s128 = scalar_lea.vmem %s0, 16
    %v129 = vld [vmem:[%s128] sm:$0xff]
    %130 = vrot.lane.b32.xlu0 %v129, 124
    %v131 = vpop.permute.xlu0 %130
    %vm132 = vcmask 31744
    %s133 = scalar_lea.vmem [#allocation0], 129
    %134 = vst.msk [vmem:[%s133] ss:$8 sm:$0xf] %vm132, %v131
    %s135 = scalar_lea.vmem [#allocation0], 129
    %136 = vst.msk [vmem:[%s135] ss:$8 sm:$0xf0] %vm132, %v131
    %s137 = scalar_lea.vmem %s0, 24
    %v138 = vld [vmem:[%s137] sm:$0xff]
    %139 = vrot.lane.b32.xlu0 %v138, 124
    %v140 = vpop.permute.xlu0 %139
    %vm141 = vcmask 31744
    %s142 = scalar_lea.vmem [#allocation0], 193
    %143 = vst.msk [vmem:[%s142] ss:$8 sm:$0xf] %vm141, %v140
    %s144 = scalar_lea.vmem [#allocation0], 193
    %145 = vst.msk [vmem:[%s144] ss:$8 sm:$0xf0] %vm141, %v140
    %s146 = scalar_lea.vmem %s0, 32
    %v147 = vld [vmem:[%s146] sm:$0xff]
    %148 = vrot.lane.b32.xlu0 %v147, 124
    %v149 = vpop.permute.xlu0 %148
    %vm150 = vcmask 31744
    %s151 = scalar_lea.vmem [#allocation0], 257
    %152 = vst.msk [vmem:[%s151] ss:$8 sm:$0xf] %vm150, %v149
    %s153 = scalar_lea.vmem [#allocation0], 257
    %154 = vst.msk [vmem:[%s153] ss:$8 sm:$0xf0] %vm150, %v149
    %s155 = scalar_lea.vmem %s0, 40
    %v156 = vld [vmem:[%s155] sm:$0xff]
    %157 = vrot.lane.b32.xlu0 %v156, 124
    %v158 = vpop.permute.xlu0 %157
    %vm159 = vcmask 31744
    %s160 = scalar_lea.vmem [#allocation0], 321
    %161 = vst.msk [vmem:[%s160] ss:$8 sm:$0xf] %vm159, %v158
    %s162 = scalar_lea.vmem [#allocation0], 321
    %163 = vst.msk [vmem:[%s162] ss:$8 sm:$0xf0] %vm159, %v158
    %s164 = scalar_lea.vmem %s0, 48
    %v165 = vld [vmem:[%s164] sm:$0xff]
    %166 = vrot.lane.b32.xlu0 %v165, 124
    %v167 = vpop.permute.xlu0 %166
    %vm168 = vcmask 31744
    %s169 = scalar_lea.vmem [#allocation0], 385
    %170 = vst.msk [vmem:[%s169] ss:$8 sm:$0xf] %vm168, %v167
    %s171 = scalar_lea.vmem [#allocation0], 385
    %172 = vst.msk [vmem:[%s171] ss:$8 sm:$0xf0] %vm168, %v167
    %s173 = scalar_lea.vmem %s0, 56
    %v174 = vld [vmem:[%s173] sm:$0xff]
    %175 = vrot.lane.b32.xlu0 %v174, 124
    %v176 = vpop.permute.xlu0 %175
    %vm177 = vcmask 31744
    %s178 = scalar_lea.vmem [#allocation0], 449
    %179 = vst.msk [vmem:[%s178] ss:$8 sm:$0xf] %vm177, %v176
    %s180 = scalar_lea.vmem [#allocation0], 449
    %181 = vst.msk [vmem:[%s180] ss:$8 sm:$0xf0] %vm177, %v176
    %s182 = scalar_lea.vmem %s0, 64
    %v183 = vld [vmem:[%s182] sm:$0xff]
    %184 = vrot.lane.b32.xlu0 %v183, 124
    %v185 = vpop.permute.xlu0 %184
    %vm186 = vcmask 31744
    %s187 = scalar_lea.vmem [#allocation0], 513
    %188 = vst.msk [vmem:[%s187] ss:$8 sm:$0xf] %vm186, %v185
    %s189 = scalar_lea.vmem [#allocation0], 513
    %190 = vst.msk [vmem:[%s189] ss:$8 sm:$0xf0] %vm186, %v185
    %s191 = scalar_lea.vmem %s0, 72
    %v192 = vld [vmem:[%s191] sm:$0xff]
    %193 = vrot.lane.b32.xlu0 %v192, 124
    %v194 = vpop.permute.xlu0 %193
    %vm195 = vcmask 31744
    %s196 = scalar_lea.vmem [#allocation0], 577
    %197 = vst.msk [vmem:[%s196] ss:$8 sm:$0xf] %vm195, %v194
    %s198 = scalar_lea.vmem [#allocation0], 577
    %199 = vst.msk [vmem:[%s198] ss:$8 sm:$0xf0] %vm195, %v194
    %s200 = scalar_lea.vmem %s0, 80
    %v201 = vld [vmem:[%s200] sm:$0xff]
    %202 = vrot.lane.b32.xlu0 %v201, 124
    %v203 = vpop.permute.xlu0 %202
    %vm204 = vcmask 31744
    %s205 = scalar_lea.vmem [#allocation0], 641
    %206 = vst.msk [vmem:[%s205] ss:$8 sm:$0xf] %vm204, %v203
    %s207 = scalar_lea.vmem [#allocation0], 641
    %208 = vst.msk [vmem:[%s207] ss:$8 sm:$0xf0] %vm204, %v203
    %s209 = scalar_lea.vmem %s0, 88
    %v210 = vld [vmem:[%s209] sm:$0xff]
    %211 = vrot.lane.b32.xlu0 %v210, 124
    %v212 = vpop.permute.xlu0 %211
    %vm213 = vcmask 31744
    %s214 = scalar_lea.vmem [#allocation0], 705
    %215 = vst.msk [vmem:[%s214] ss:$8 sm:$0xf] %vm213, %v212
    %s216 = scalar_lea.vmem [#allocation0], 705
    %217 = vst.msk [vmem:[%s216] ss:$8 sm:$0xf0] %vm213, %v212
    %s218 = scalar_lea.vmem %s0, 96
    %v219 = vld [vmem:[%s218] sm:$0xff]
    %220 = vrot.lane.b32.xlu0 %v219, 124
    %v221 = vpop.permute.xlu0 %220
    %vm222 = vcmask 31744
    %s223 = scalar_lea.vmem [#allocation0], 769
    %224 = vst.msk [vmem:[%s223] ss:$8 sm:$0xf] %vm222, %v221
    %s225 = scalar_lea.vmem [#allocation0], 769
    %226 = vst.msk [vmem:[%s225] ss:$8 sm:$0xf0] %vm222, %v221
    %s227 = scalar_lea.vmem %s0, 104
    %v228 = vld [vmem:[%s227] sm:$0xff]
    %229 = vrot.lane.b32.xlu0 %v228, 124
    %v230 = vpop.permute.xlu0 %229
    %vm231 = vcmask 31744
    %s232 = scalar_lea.vmem [#allocation0], 833
    %233 = vst.msk [vmem:[%s232] ss:$8 sm:$0xf] %vm231, %v230
    %s234 = scalar_lea.vmem [#allocation0], 833
    %235 = vst.msk [vmem:[%s234] ss:$8 sm:$0xf0] %vm231, %v230
    %s236 = scalar_lea.vmem %s0, 112
    %v237 = vld [vmem:[%s236] sm:$0xff]
    %238 = vrot.lane.b32.xlu0 %v237, 124
    %v239 = vpop.permute.xlu0 %238
    %vm240 = vcmask 31744
    %s241 = scalar_lea.vmem [#allocation0], 897
    %242 = vst.msk [vmem:[%s241] ss:$8 sm:$0xf] %vm240, %v239
    %s243 = scalar_lea.vmem [#allocation0], 897
    %244 = vst.msk [vmem:[%s243] ss:$8 sm:$0xf0] %vm240, %v239
    %s245 = scalar_lea.vmem %s0, 120
    %v246 = vld [vmem:[%s245] sm:$0xff]
    %247 = vrot.lane.b32.xlu0 %v246, 124
    %v248 = vpop.permute.xlu0 %247
    %vm249 = vcmask 31744
    %s250 = scalar_lea.vmem [#allocation0], 961
    %251 = vst.msk [vmem:[%s250] ss:$8 sm:$0xf] %vm249, %v248
    %s252 = scalar_lea.vmem [#allocation0], 961
    %253 = vst.msk [vmem:[%s252] ss:$8 sm:$0xf0] %vm249, %v248
    %v254 = vld [vmem:[%s0] sm:$0xff]
    %255 = vrot.lane.b32.xlu0 %v254, 120
    %v256 = vpop.permute.xlu0 %255
    %vm257 = vcmask 31744
    %s258 = scalar_lea.vmem [#allocation0], 2
    %259 = vst.msk [vmem:[%s258] ss:$8 sm:$0xf] %vm257, %v256
    %s260 = scalar_lea.vmem [#allocation0], 2
    %261 = vst.msk [vmem:[%s260] ss:$8 sm:$0xf0] %vm257, %v256
    %s262 = scalar_lea.vmem %s0, 8
    %v263 = vld [vmem:[%s262] sm:$0xff]
    %264 = vrot.lane.b32.xlu0 %v263, 120
    %v265 = vpop.permute.xlu0 %264
    %vm266 = vcmask 31744
    %s267 = scalar_lea.vmem [#allocation0], 66
    %268 = vst.msk [vmem:[%s267] ss:$8 sm:$0xf] %vm266, %v265
    %s269 = scalar_lea.vmem [#allocation0], 66
    %270 = vst.msk [vmem:[%s269] ss:$8 sm:$0xf0] %vm266, %v265
    %s271 = scalar_lea.vmem %s0, 16
    %v272 = vld [vmem:[%s271] sm:$0xff]
    %273 = vrot.lane.b32.xlu0 %v272, 120
    %v274 = vpop.permute.xlu0 %273
    %vm275 = vcmask 31744
    %s276 = scalar_lea.vmem [#allocation0], 130
    %277 = vst.msk [vmem:[%s276] ss:$8 sm:$0xf] %vm275, %v274
    %s278 = scalar_lea.vmem [#allocation0], 130
    %279 = vst.msk [vmem:[%s278] ss:$8 sm:$0xf0] %vm275, %v274
    %s280 = scalar_lea.vmem %s0, 24
    %v281 = vld [vmem:[%s280] sm:$0xff]
    %282 = vrot.lane.b32.xlu0 %v281, 120
    %v283 = vpop.permute.xlu0 %282
    %vm284 = vcmask 31744
    %s285 = scalar_lea.vmem [#allocation0], 194
    %286 = vst.msk [vmem:[%s285] ss:$8 sm:$0xf] %vm284, %v283
    %s287 = scalar_lea.vmem [#allocation0], 194
    %288 = vst.msk [vmem:[%s287] ss:$8 sm:$0xf0] %vm284, %v283
    %s289 = scalar_lea.vmem %s0, 32
    %v290 = vld [vmem:[%s289] sm:$0xff]
    %291 = vrot.lane.b32.xlu0 %v290, 120
    %v292 = vpop.permute.xlu0 %291
    %vm293 = vcmask 31744
    %s294 = scalar_lea.vmem [#allocation0], 258
    %295 = vst.msk [vmem:[%s294] ss:$8 sm:$0xf] %vm293, %v292
    %s296 = scalar_lea.vmem [#allocation0], 258
    %297 = vst.msk [vmem:[%s296] ss:$8 sm:$0xf0] %vm293, %v292
    %s298 = scalar_lea.vmem %s0, 40
    %v299 = vld [vmem:[%s298] sm:$0xff]
    %300 = vrot.lane.b32.xlu0 %v299, 120
    %v301 = vpop.permute.xlu0 %300
    %vm302 = vcmask 31744
    %s303 = scalar_lea.vmem [#allocation0], 322
    %304 = vst.msk [vmem:[%s303] ss:$8 sm:$0xf] %vm302, %v301
    %s305 = scalar_lea.vmem [#allocation0], 322
    %306 = vst.msk [vmem:[%s305] ss:$8 sm:$0xf0] %vm302, %v301
    %s307 = scalar_lea.vmem %s0, 48
    %v308 = vld [vmem:[%s307] sm:$0xff]
    %309 = vrot.lane.b32.xlu0 %v308, 120
    %v310 = vpop.permute.xlu0 %309
    %vm311 = vcmask 31744
    %s312 = scalar_lea.vmem [#allocation0], 386
    %313 = vst.msk [vmem:[%s312] ss:$8 sm:$0xf] %vm311, %v310
    %s314 = scalar_lea.vmem [#allocation0], 386
    %315 = vst.msk [vmem:[%s314] ss:$8 sm:$0xf0] %vm311, %v310
    %s316 = scalar_lea.vmem %s0, 56
    %v317 = vld [vmem:[%s316] sm:$0xff]
    %318 = vrot.lane.b32.xlu0 %v317, 120
    %v319 = vpop.permute.xlu0 %318
    %vm320 = vcmask 31744
    %s321 = scalar_lea.vmem [#allocation0], 450
    %322 = vst.msk [vmem:[%s321] ss:$8 sm:$0xf] %vm320, %v319
    %s323 = scalar_lea.vmem [#allocation0], 450
    %324 = vst.msk [vmem:[%s323] ss:$8 sm:$0xf0] %vm320, %v319
    %s325 = scalar_lea.vmem %s0, 64
    %v326 = vld [vmem:[%s325] sm:$0xff]
    %327 = vrot.lane.b32.xlu0 %v326, 120
    %v328 = vpop.permute.xlu0 %327
    %vm329 = vcmask 31744
    %s330 = scalar_lea.vmem [#allocation0], 514
    %331 = vst.msk [vmem:[%s330] ss:$8 sm:$0xf] %vm329, %v328
    %s332 = scalar_lea.vmem [#allocation0], 514
    %333 = vst.msk [vmem:[%s332] ss:$8 sm:$0xf0] %vm329, %v328
    %s334 = scalar_lea.vmem %s0, 72
    %v335 = vld [vmem:[%s334] sm:$0xff]
    %336 = vrot.lane.b32.xlu0 %v335, 120
    %v337 = vpop.permute.xlu0 %336
    %vm338 = vcmask 31744
    %s339 = scalar_lea.vmem [#allocation0], 578
    %340 = vst.msk [vmem:[%s339] ss:$8 sm:$0xf] %vm338, %v337
    %s341 = scalar_lea.vmem [#allocation0], 578
    %342 = vst.msk [vmem:[%s341] ss:$8 sm:$0xf0] %vm338, %v337
    %s343 = scalar_lea.vmem %s0, 80
    %v344 = vld [vmem:[%s343] sm:$0xff]
    %345 = vrot.lane.b32.xlu0 %v344, 120
    %v346 = vpop.permute.xlu0 %345
    %vm347 = vcmask 31744
    %s348 = scalar_lea.vmem [#allocation0], 642
    %349 = vst.msk [vmem:[%s348] ss:$8 sm:$0xf] %vm347, %v346
    %s350 = scalar_lea.vmem [#allocation0], 642
    %351 = vst.msk [vmem:[%s350] ss:$8 sm:$0xf0] %vm347, %v346
    %s352 = scalar_lea.vmem %s0, 88
    %v353 = vld [vmem:[%s352] sm:$0xff]
    %354 = vrot.lane.b32.xlu0 %v353, 120
    %v355 = vpop.permute.xlu0 %354
    %vm356 = vcmask 31744
    %s357 = scalar_lea.vmem [#allocation0], 706
    %358 = vst.msk [vmem:[%s357] ss:$8 sm:$0xf] %vm356, %v355
    %s359 = scalar_lea.vmem [#allocation0], 706
    %360 = vst.msk [vmem:[%s359] ss:$8 sm:$0xf0] %vm356, %v355
    %s361 = scalar_lea.vmem %s0, 96
    %v362 = vld [vmem:[%s361] sm:$0xff]
    %363 = vrot.lane.b32.xlu0 %v362, 120
    %v364 = vpop.permute.xlu0 %363
    %vm365 = vcmask 31744
    %s366 = scalar_lea.vmem [#allocation0], 770
    %367 = vst.msk [vmem:[%s366] ss:$8 sm:$0xf] %vm365, %v364
    %s368 = scalar_lea.vmem [#allocation0], 770
    %369 = vst.msk [vmem:[%s368] ss:$8 sm:$0xf0] %vm365, %v364
    %s370 = scalar_lea.vmem %s0, 104
    %v371 = vld [vmem:[%s370] sm:$0xff]
    %372 = vrot.lane.b32.xlu0 %v371, 120
    %v373 = vpop.permute.xlu0 %372
    %vm374 = vcmask 31744
    %s375 = scalar_lea.vmem [#allocation0], 834
    %376 = vst.msk [vmem:[%s375] ss:$8 sm:$0xf] %vm374, %v373
    %s377 = scalar_lea.vmem [#allocation0], 834
    %378 = vst.msk [vmem:[%s377] ss:$8 sm:$0xf0] %vm374, %v373
    %s379 = scalar_lea.vmem %s0, 112
    %v380 = vld [vmem:[%s379] sm:$0xff]
    %381 = vrot.lane.b32.xlu0 %v380, 120
    %v382 = vpop.permute.xlu0 %381
    %vm383 = vcmask 31744
    %s384 = scalar_lea.vmem [#allocation0], 898
    %385 = vst.msk [vmem:[%s384] ss:$8 sm:$0xf] %vm383, %v382
    %s386 = scalar_lea.vmem [#allocation0], 898
    %387 = vst.msk [vmem:[%s386] ss:$8 sm:$0xf0] %vm383, %v382
    %s388 = scalar_lea.vmem %s0, 120
    %v389 = vld [vmem:[%s388] sm:$0xff]
    %390 = vrot.lane.b32.xlu0 %v389, 120
    %v391 = vpop.permute.xlu0 %390
    %vm392 = vcmask 31744
    %s393 = scalar_lea.vmem [#allocation0], 962
    %394 = vst.msk [vmem:[%s393] ss:$8 sm:$0xf] %vm392, %v391
    %s395 = scalar_lea.vmem [#allocation0], 962
    %396 = vst.msk [vmem:[%s395] ss:$8 sm:$0xf0] %vm392, %v391
    %v397 = vld [vmem:[%s0] sm:$0xff]
    %398 = vrot.lane.b32.xlu0 %v397, 116
    %v399 = vpop.permute.xlu0 %398
    %vm400 = vcmask 31744
    %s401 = scalar_lea.vmem [#allocation0], 3
    %402 = vst.msk [vmem:[%s401] ss:$8 sm:$0xf] %vm400, %v399
    %s403 = scalar_lea.vmem [#allocation0], 3
    %404 = vst.msk [vmem:[%s403] ss:$8 sm:$0xf0] %vm400, %v399
    %s405 = scalar_lea.vmem %s0, 8
    %v406 = vld [vmem:[%s405] sm:$0xff]
    %407 = vrot.lane.b32.xlu0 %v406, 116
    %v408 = vpop.permute.xlu0 %407
    %vm409 = vcmask 31744
    %s410 = scalar_lea.vmem [#allocation0], 67
    %411 = vst.msk [vmem:[%s410] ss:$8 sm:$0xf] %vm409, %v408
    %s412 = scalar_lea.vmem [#allocation0], 67
    %413 = vst.msk [vmem:[%s412] ss:$8 sm:$0xf0] %vm409, %v408
    %s414 = scalar_lea.vmem %s0, 16
    %v415 = vld [vmem:[%s414] sm:$0xff]
    %416 = vrot.lane.b32.xlu0 %v415, 116
    %v417 = vpop.permute.xlu0 %416
    %vm418 = vcmask 31744
    %s419 = scalar_lea.vmem [#allocation0], 131
    %420 = vst.msk [vmem:[%s419] ss:$8 sm:$0xf] %vm418, %v417
    %s421 = scalar_lea.vmem [#allocation0], 131
    %422 = vst.msk [vmem:[%s421] ss:$8 sm:$0xf0] %vm418, %v417
    %s423 = scalar_lea.vmem %s0, 24
    %v424 = vld [vmem:[%s423] sm:$0xff]
    %425 = vrot.lane.b32.xlu0 %v424, 116
    %v426 = vpop.permute.xlu0 %425
    %vm427 = vcmask 31744
    %s428 = scalar_lea.vmem [#allocation0], 195
    %429 = vst.msk [vmem:[%s428] ss:$8 sm:$0xf] %vm427, %v426
    %s430 = scalar_lea.vmem [#allocation0], 195
    %431 = vst.msk [vmem:[%s430] ss:$8 sm:$0xf0] %vm427, %v426
    %s432 = scalar_lea.vmem %s0, 32
    %v433 = vld [vmem:[%s432] sm:$0xff]
    %434 = vrot.lane.b32.xlu0 %v433, 116
    %v435 = vpop.permute.xlu0 %434
    %vm436 = vcmask 31744
    %s437 = scalar_lea.vmem [#allocation0], 259
    %438 = vst.msk [vmem:[%s437] ss:$8 sm:$0xf] %vm436, %v435
    %s439 = scalar_lea.vmem [#allocation0], 259
    %440 = vst.msk [vmem:[%s439] ss:$8 sm:$0xf0] %vm436, %v435
    %s441 = scalar_lea.vmem %s0, 40
    %v442 = vld [vmem:[%s441] sm:$0xff]
    %443 = vrot.lane.b32.xlu0 %v442, 116
    %v444 = vpop.permute.xlu0 %443
    %vm445 = vcmask 31744
    %s446 = scalar_lea.vmem [#allocation0], 323
    %447 = vst.msk [vmem:[%s446] ss:$8 sm:$0xf] %vm445, %v444
    %s448 = scalar_lea.vmem [#allocation0], 323
    %449 = vst.msk [vmem:[%s448] ss:$8 sm:$0xf0] %vm445, %v444
    %s450 = scalar_lea.vmem %s0, 48
    %v451 = vld [vmem:[%s450] sm:$0xff]
    %452 = vrot.lane.b32.xlu0 %v451, 116
    %v453 = vpop.permute.xlu0 %452
    %vm454 = vcmask 31744
    %s455 = scalar_lea.vmem [#allocation0], 387
    %456 = vst.msk [vmem:[%s455] ss:$8 sm:$0xf] %vm454, %v453
    %s457 = scalar_lea.vmem [#allocation0], 387
    %458 = vst.msk [vmem:[%s457] ss:$8 sm:$0xf0] %vm454, %v453
    %s459 = scalar_lea.vmem %s0, 56
    %v460 = vld [vmem:[%s459] sm:$0xff]
    %461 = vrot.lane.b32.xlu0 %v460, 116
    %v462 = vpop.permute.xlu0 %461
    %vm463 = vcmask 31744
    %s464 = scalar_lea.vmem [#allocation0], 451
    %465 = vst.msk [vmem:[%s464] ss:$8 sm:$0xf] %vm463, %v462
    %s466 = scalar_lea.vmem [#allocation0], 451
    %467 = vst.msk [vmem:[%s466] ss:$8 sm:$0xf0] %vm463, %v462
    %s468 = scalar_lea.vmem %s0, 64
    %v469 = vld [vmem:[%s468] sm:$0xff]
    %470 = vrot.lane.b32.xlu0 %v469, 116
    %v471 = vpop.permute.xlu0 %470
    %vm472 = vcmask 31744
    %s473 = scalar_lea.vmem [#allocation0], 515
    %474 = vst.msk [vmem:[%s473] ss:$8 sm:$0xf] %vm472, %v471
    %s475 = scalar_lea.vmem [#allocation0], 515
    %476 = vst.msk [vmem:[%s475] ss:$8 sm:$0xf0] %vm472, %v471
    %s477 = scalar_lea.vmem %s0, 72
    %v478 = vld [vmem:[%s477] sm:$0xff]
    %479 = vrot.lane.b32.xlu0 %v478, 116
    %v480 = vpop.permute.xlu0 %479
    %vm481 = vcmask 31744
    %s482 = scalar_lea.vmem [#allocation0], 579
    %483 = vst.msk [vmem:[%s482] ss:$8 sm:$0xf] %vm481, %v480
    %s484 = scalar_lea.vmem [#allocation0], 579
    %485 = vst.msk [vmem:[%s484] ss:$8 sm:$0xf0] %vm481, %v480
    %s486 = scalar_lea.vmem %s0, 80
    %v487 = vld [vmem:[%s486] sm:$0xff]
    %488 = vrot.lane.b32.xlu0 %v487, 116
    %v489 = vpop.permute.xlu0 %488
    %vm490 = vcmask 31744
    %s491 = scalar_lea.vmem [#allocation0], 643
    %492 = vst.msk [vmem:[%s491] ss:$8 sm:$0xf] %vm490, %v489
    %s493 = scalar_lea.vmem [#allocation0], 643
    %494 = vst.msk [vmem:[%s493] ss:$8 sm:$0xf0] %vm490, %v489
    %s495 = scalar_lea.vmem %s0, 88
    %v496 = vld [vmem:[%s495] sm:$0xff]
    %497 = vrot.lane.b32.xlu0 %v496, 116
    %v498 = vpop.permute.xlu0 %497
    %vm499 = vcmask 31744
    %s500 = scalar_lea.vmem [#allocation0], 707
    %501 = vst.msk [vmem:[%s500] ss:$8 sm:$0xf] %vm499, %v498
    %s502 = scalar_lea.vmem [#allocation0], 707
    %503 = vst.msk [vmem:[%s502] ss:$8 sm:$0xf0] %vm499, %v498
    %s504 = scalar_lea.vmem %s0, 96
    %v505 = vld [vmem:[%s504] sm:$0xff]
    %506 = vrot.lane.b32.xlu0 %v505, 116
    %v507 = vpop.permute.xlu0 %506
    %vm508 = vcmask 31744
    %s509 = scalar_lea.vmem [#allocation0], 771
    %510 = vst.msk [vmem:[%s509] ss:$8 sm:$0xf] %vm508, %v507
    %s511 = scalar_lea.vmem [#allocation0], 771
    %512 = vst.msk [vmem:[%s511] ss:$8 sm:$0xf0] %vm508, %v507
    %s513 = scalar_lea.vmem %s0, 104
    %v514 = vld [vmem:[%s513] sm:$0xff]
    %515 = vrot.lane.b32.xlu0 %v514, 116
    %v516 = vpop.permute.xlu0 %515
    %vm517 = vcmask 31744
    %s518 = scalar_lea.vmem [#allocation0], 835
    %519 = vst.msk [vmem:[%s518] ss:$8 sm:$0xf] %vm517, %v516
    %s520 = scalar_lea.vmem [#allocation0], 835
    %521 = vst.msk [vmem:[%s520] ss:$8 sm:$0xf0] %vm517, %v516
    %s522 = scalar_lea.vmem %s0, 112
    %v523 = vld [vmem:[%s522] sm:$0xff]
    %524 = vrot.lane.b32.xlu0 %v523, 116
    %v525 = vpop.permute.xlu0 %524
    %vm526 = vcmask 31744
    %s527 = scalar_lea.vmem [#allocation0], 899
    %528 = vst.msk [vmem:[%s527] ss:$8 sm:$0xf] %vm526, %v525
    %s529 = scalar_lea.vmem [#allocation0], 899
    %530 = vst.msk [vmem:[%s529] ss:$8 sm:$0xf0] %vm526, %v525
    %s531 = scalar_lea.vmem %s0, 120
    %v532 = vld [vmem:[%s531] sm:$0xff]
    %533 = vrot.lane.b32.xlu0 %v532, 116
    %v534 = vpop.permute.xlu0 %533
    %vm535 = vcmask 31744
    %s536 = scalar_lea.vmem [#allocation0], 963
    %537 = vst.msk [vmem:[%s536] ss:$8 sm:$0xf] %vm535, %v534
    %s538 = scalar_lea.vmem [#allocation0], 963
    %539 = vst.msk [vmem:[%s538] ss:$8 sm:$0xf0] %vm535, %v534
    %s541 = sshllo.u32 0, 4
    %v543 = vld [vmem:[#allocation0] sm:%s541]
    %s544 = sshllo.u32 0, 4
    %545 = vst [vmem:[%s1] sm:%s544] %v543
    %s546 = scalar_lea.vmem [#allocation0], 8
    %v547 = vld [vmem:[%s546] sm:%s541]
    %s548 = sshllo.u32 0, 4
    %s549 = scalar_lea.vmem %s1, 4
    %550 = vst [vmem:[%s549] sm:%s548] %v547
    %s551 = scalar_lea.vmem [#allocation0], 16
    %v552 = vld [vmem:[%s551] sm:%s541]
    %s553 = sshllo.u32 0, 4
    %s554 = smul.addr 4, 2
    %s555 = scalar_lea.vmem %s1, %s554
    %556 = vst [vmem:[%s555] sm:%s553] %v552
    %s557 = scalar_lea.vmem [#allocation0], 24
    %v558 = vld [vmem:[%s557] sm:%s541]
    %s559 = sshllo.u32 0, 4
    %s560 = smul.addr 4, 3
    %s561 = scalar_lea.vmem %s1, %s560
    %562 = vst [vmem:[%s561] sm:%s559] %v558
    %s563 = scalar_lea.vmem [#allocation0], 32
    %v564 = vld [vmem:[%s563] sm:%s541]
    %s565 = sshllo.u32 0, 4
    %s566 = smul.addr 4, 4
    %s567 = scalar_lea.vmem %s1, %s566
    %568 = vst [vmem:[%s567] sm:%s565] %v564
    %s569 = scalar_lea.vmem [#allocation0], 40
    %v570 = vld [vmem:[%s569] sm:%s541]
    %s571 = sshllo.u32 0, 4
    %s572 = smul.addr 4, 5
    %s573 = scalar_lea.vmem %s1, %s572
    %574 = vst [vmem:[%s573] sm:%s571] %v570
    %s575 = scalar_lea.vmem [#allocation0], 48
    %v576 = vld [vmem:[%s575] sm:%s541]
    %s577 = sshllo.u32 0, 4
    %s578 = smul.addr 4, 6
    %s579 = scalar_lea.vmem %s1, %s578
    %580 = vst [vmem:[%s579] sm:%s577] %v576
    %s581 = scalar_lea.vmem [#allocation0], 56
    %v582 = vld [vmem:[%s581] sm:%s541]
    %s583 = sshllo.u32 0, 4
    %s584 = smul.addr 4, 7
    %s585 = scalar_lea.vmem %s1, %s584
    %586 = vst [vmem:[%s585] sm:%s583] %v582
    %s587 = scalar_lea.vmem [#allocation0], 64
    %v588 = vld [vmem:[%s587] sm:%s541]
    %s589 = sshllo.u32 0, 4
    %s590 = smul.addr 4, 8
    %s591 = scalar_lea.vmem %s1, %s590
    %592 = vst [vmem:[%s591] sm:%s589] %v588
    %s593 = scalar_lea.vmem [#allocation0], 72
    %v594 = vld [vmem:[%s593] sm:%s541]
    %s595 = sshllo.u32 0, 4
    %s596 = smul.addr 4, 9
    %s597 = scalar_lea.vmem %s1, %s596
    %598 = vst [vmem:[%s597] sm:%s595] %v594
    %s599 = scalar_lea.vmem [#allocation0], 80
    %v600 = vld [vmem:[%s599] sm:%s541]
    %s601 = sshllo.u32 0, 4
    %s602 = smul.addr 4, 10
    %s603 = scalar_lea.vmem %s1, %s602
    %604 = vst [vmem:[%s603] sm:%s601] %v600
    %s605 = scalar_lea.vmem [#allocation0], 88
    %v606 = vld [vmem:[%s605] sm:%s541]
    %s607 = sshllo.u32 0, 4
    %s608 = smul.addr 4, 11
    %s609 = scalar_lea.vmem %s1, %s608
    %610 = vst [vmem:[%s609] sm:%s607] %v606
    %s611 = scalar_lea.vmem [#allocation0], 96
    %v612 = vld [vmem:[%s611] sm:%s541]
    %s613 = sshllo.u32 0, 4
    %s614 = smul.addr 4, 12
    %s615 = scalar_lea.vmem %s1, %s614
    %616 = vst [vmem:[%s615] sm:%s613] %v612
    %s617 = scalar_lea.vmem [#allocation0], 104
    %v618 = vld [vmem:[%s617] sm:%s541]
    %s619 = sshllo.u32 0, 4
    %s620 = smul.addr 4, 13
    %s621 = scalar_lea.vmem %s1, %s620
    %622 = vst [vmem:[%s621] sm:%s619] %v618
    %s623 = scalar_lea.vmem [#allocation0], 112
    %v624 = vld [vmem:[%s623] sm:%s541]
    %s625 = sshllo.u32 0, 4
    %s626 = smul.addr 4, 14
    %s627 = scalar_lea.vmem %s1, %s626
    %628 = vst [vmem:[%s627] sm:%s625] %v624
    %s629 = scalar_lea.vmem [#allocation0], 120
    %v630 = vld [vmem:[%s629] sm:%s541]
    %s631 = sshllo.u32 0, 4
    %s632 = smul.addr 4, 15
    %s633 = scalar_lea.vmem %s1, %s632
    %634 = vst [vmem:[%s633] sm:%s631] %v630
    %s635 = scalar_lea.vmem [#allocation0], 128
    %v636 = vld [vmem:[%s635] sm:%s541]
    %s637 = sshllo.u32 0, 4
    %s638 = smul.addr 4, 16
    %s639 = scalar_lea.vmem %s1, %s638
    %640 = vst [vmem:[%s639] sm:%s637] %v636
    %s641 = scalar_lea.vmem [#allocation0], 136
    %v642 = vld [vmem:[%s641] sm:%s541]
    %s643 = sshllo.u32 0, 4
    %s644 = smul.addr 4, 17
    %s645 = scalar_lea.vmem %s1, %s644
    %646 = vst [vmem:[%s645] sm:%s643] %v642
    %s647 = scalar_lea.vmem [#allocation0], 144
    %v648 = vld [vmem:[%s647] sm:%s541]
    %s649 = sshllo.u32 0, 4
    %s650 = smul.addr 4, 18
    %s651 = scalar_lea.vmem %s1, %s650
    %652 = vst [vmem:[%s651] sm:%s649] %v648
    %s653 = scalar_lea.vmem [#allocation0], 152
    %v654 = vld [vmem:[%s653] sm:%s541]
    %s655 = sshllo.u32 0, 4
    %s656 = smul.addr 4, 19
    %s657 = scalar_lea.vmem %s1, %s656
    %658 = vst [vmem:[%s657] sm:%s655] %v654
    %s659 = scalar_lea.vmem [#allocation0], 160
    %v660 = vld [vmem:[%s659] sm:%s541]
    %s661 = sshllo.u32 0, 4
    %s662 = smul.addr 4, 20
    %s663 = scalar_lea.vmem %s1, %s662
    %664 = vst [vmem:[%s663] sm:%s661] %v660
    %s665 = scalar_lea.vmem [#allocation0], 168
    %v666 = vld [vmem:[%s665] sm:%s541]
    %s667 = sshllo.u32 0, 4
    %s668 = smul.addr 4, 21
    %s669 = scalar_lea.vmem %s1, %s668
    %670 = vst [vmem:[%s669] sm:%s667] %v666
    %s671 = scalar_lea.vmem [#allocation0], 176
    %v672 = vld [vmem:[%s671] sm:%s541]
    %s673 = sshllo.u32 0, 4
    %s674 = smul.addr 4, 22
    %s675 = scalar_lea.vmem %s1, %s674
    %676 = vst [vmem:[%s675] sm:%s673] %v672
    %s677 = scalar_lea.vmem [#allocation0], 184
    %v678 = vld [vmem:[%s677] sm:%s541]
    %s679 = sshllo.u32 0, 4
    %s680 = smul.addr 4, 23
    %s681 = scalar_lea.vmem %s1, %s680
    %682 = vst [vmem:[%s681] sm:%s679] %v678
    %s683 = scalar_lea.vmem [#allocation0], 192
    %v684 = vld [vmem:[%s683] sm:%s541]
    %s685 = sshllo.u32 0, 4
    %s686 = smul.addr 4, 24
    %s687 = scalar_lea.vmem %s1, %s686
    %688 = vst [vmem:[%s687] sm:%s685] %v684
    %s689 = scalar_lea.vmem [#allocation0], 200
    %v690 = vld [vmem:[%s689] sm:%s541]
    %s691 = sshllo.u32 0, 4
    %s692 = smul.addr 4, 25
    %s693 = scalar_lea.vmem %s1, %s692
    %694 = vst [vmem:[%s693] sm:%s691] %v690
    %s695 = scalar_lea.vmem [#allocation0], 208
    %v696 = vld [vmem:[%s695] sm:%s541]
    %s697 = sshllo.u32 0, 4
    %s698 = smul.addr 4, 26
    %s699 = scalar_lea.vmem %s1, %s698
    %700 = vst [vmem:[%s699] sm:%s697] %v696
    %s701 = scalar_lea.vmem [#allocation0], 216
    %v702 = vld [vmem:[%s701] sm:%s541]
    %s703 = sshllo.u32 0, 4
    %s704 = smul.addr 4, 27
    %s705 = scalar_lea.vmem %s1, %s704
    %706 = vst [vmem:[%s705] sm:%s703] %v702
    %s707 = scalar_lea.vmem [#allocation0], 224
    %v708 = vld [vmem:[%s707] sm:%s541]
    %s709 = sshllo.u32 0, 4
    %s710 = smul.addr 4, 28
    %s711 = scalar_lea.vmem %s1, %s710
    %712 = vst [vmem:[%s711] sm:%s709] %v708
    %s713 = scalar_lea.vmem [#allocation0], 232
    %v714 = vld [vmem:[%s713] sm:%s541]
    %s715 = sshllo.u32 0, 4
    %s716 = smul.addr 4, 29
    %s717 = scalar_lea.vmem %s1, %s716
    %718 = vst [vmem:[%s717] sm:%s715] %v714
    %s719 = scalar_lea.vmem [#allocation0], 240
    %v720 = vld [vmem:[%s719] sm:%s541]
    %s721 = sshllo.u32 0, 4
    %s722 = smul.addr 4, 30
    %s723 = scalar_lea.vmem %s1, %s722
    %724 = vst [vmem:[%s723] sm:%s721] %v720
    %s725 = scalar_lea.vmem [#allocation0], 248
    %v726 = vld [vmem:[%s725] sm:%s541]
    %s727 = sshllo.u32 0, 4
    %s728 = smul.addr 4, 31
    %s729 = scalar_lea.vmem %s1, %s728
    %730 = vst [vmem:[%s729] sm:%s727] %v726
    %s731 = scalar_lea.vmem [#allocation0], 256
    %v732 = vld [vmem:[%s731] sm:%s541]
    %s733 = sshllo.u32 0, 4
    %s734 = smul.addr 4, 32
    %s735 = scalar_lea.vmem %s1, %s734
    %736 = vst [vmem:[%s735] sm:%s733] %v732
    %s737 = scalar_lea.vmem [#allocation0], 264
    %v738 = vld [vmem:[%s737] sm:%s541]
    %s739 = sshllo.u32 0, 4
    %s740 = smul.addr 4, 33
    %s741 = scalar_lea.vmem %s1, %s740
    %742 = vst [vmem:[%s741] sm:%s739] %v738
    %s743 = scalar_lea.vmem [#allocation0], 272
    %v744 = vld [vmem:[%s743] sm:%s541]
    %s745 = sshllo.u32 0, 4
    %s746 = smul.addr 4, 34
    %s747 = scalar_lea.vmem %s1, %s746
    %748 = vst [vmem:[%s747] sm:%s745] %v744
    %s749 = scalar_lea.vmem [#allocation0], 280
    %v750 = vld [vmem:[%s749] sm:%s541]
    %s751 = sshllo.u32 0, 4
    %s752 = smul.addr 4, 35
    %s753 = scalar_lea.vmem %s1, %s752
    %754 = vst [vmem:[%s753] sm:%s751] %v750
    %s755 = scalar_lea.vmem [#allocation0], 288
    %v756 = vld [vmem:[%s755] sm:%s541]
    %s757 = sshllo.u32 0, 4
    %s758 = smul.addr 4, 36
    %s759 = scalar_lea.vmem %s1, %s758
    %760 = vst [vmem:[%s759] sm:%s757] %v756
    %s761 = scalar_lea.vmem [#allocation0], 296
    %v762 = vld [vmem:[%s761] sm:%s541]
    %s763 = sshllo.u32 0, 4
    %s764 = smul.addr 4, 37
    %s765 = scalar_lea.vmem %s1, %s764
    %766 = vst [vmem:[%s765] sm:%s763] %v762
    %s767 = scalar_lea.vmem [#allocation0], 304
    %v768 = vld [vmem:[%s767] sm:%s541]
    %s769 = sshllo.u32 0, 4
    %s770 = smul.addr 4, 38
    %s771 = scalar_lea.vmem %s1, %s770
    %772 = vst [vmem:[%s771] sm:%s769] %v768
    %s773 = scalar_lea.vmem [#allocation0], 312
    %v774 = vld [vmem:[%s773] sm:%s541]
    %s775 = sshllo.u32 0, 4
    %s776 = smul.addr 4, 39
    %s777 = scalar_lea.vmem %s1, %s776
    %778 = vst [vmem:[%s777] sm:%s775] %v774
    %s779 = scalar_lea.vmem [#allocation0], 320
    %v780 = vld [vmem:[%s779] sm:%s541]
    %s781 = sshllo.u32 0, 4
    %s782 = smul.addr 4, 40
    %s783 = scalar_lea.vmem %s1, %s782
    %784 = vst [vmem:[%s783] sm:%s781] %v780
    %s785 = scalar_lea.vmem [#allocation0], 328
    %v786 = vld [vmem:[%s785] sm:%s541]
    %s787 = sshllo.u32 0, 4
    %s788 = smul.addr 4, 41
    %s789 = scalar_lea.vmem %s1, %s788
    %790 = vst [vmem:[%s789] sm:%s787] %v786
    %s791 = scalar_lea.vmem [#allocation0], 336
    %v792 = vld [vmem:[%s791] sm:%s541]
    %s793 = sshllo.u32 0, 4
    %s794 = smul.addr 4, 42
    %s795 = scalar_lea.vmem %s1, %s794
    %796 = vst [vmem:[%s795] sm:%s793] %v792
    %s797 = scalar_lea.vmem [#allocation0], 344
    %v798 = vld [vmem:[%s797] sm:%s541]
    %s799 = sshllo.u32 0, 4
    %s800 = smul.addr 4, 43
    %s801 = scalar_lea.vmem %s1, %s800
    %802 = vst [vmem:[%s801] sm:%s799] %v798
    %s803 = scalar_lea.vmem [#allocation0], 352
    %v804 = vld [vmem:[%s803] sm:%s541]
    %s805 = sshllo.u32 0, 4
    %s806 = smul.addr 4, 44
    %s807 = scalar_lea.vmem %s1, %s806
    %808 = vst [vmem:[%s807] sm:%s805] %v804
    %s809 = scalar_lea.vmem [#allocation0], 360
    %v810 = vld [vmem:[%s809] sm:%s541]
    %s811 = sshllo.u32 0, 4
    %s812 = smul.addr 4, 45
    %s813 = scalar_lea.vmem %s1, %s812
    %814 = vst [vmem:[%s813] sm:%s811] %v810
    %s815 = scalar_lea.vmem [#allocation0], 368
    %v816 = vld [vmem:[%s815] sm:%s541]
    %s817 = sshllo.u32 0, 4
    %s818 = smul.addr 4, 46
    %s819 = scalar_lea.vmem %s1, %s818
    %820 = vst [vmem:[%s819] sm:%s817] %v816
    %s821 = scalar_lea.vmem [#allocation0], 376
    %v822 = vld [vmem:[%s821] sm:%s541]
    %s823 = sshllo.u32 0, 4
    %s824 = smul.addr 4, 47
    %s825 = scalar_lea.vmem %s1, %s824
    %826 = vst [vmem:[%s825] sm:%s823] %v822
    %s827 = scalar_lea.vmem [#allocation0], 384
    %v828 = vld [vmem:[%s827] sm:%s541]
    %s829 = sshllo.u32 0, 4
    %s830 = smul.addr 4, 48
    %s831 = scalar_lea.vmem %s1, %s830
    %832 = vst [vmem:[%s831] sm:%s829] %v828
    %s833 = scalar_lea.vmem [#allocation0], 392
    %v834 = vld [vmem:[%s833] sm:%s541]
    %s835 = sshllo.u32 0, 4
    %s836 = smul.addr 4, 49
    %s837 = scalar_lea.vmem %s1, %s836
    %838 = vst [vmem:[%s837] sm:%s835] %v834
    %s839 = scalar_lea.vmem [#allocation0], 400
    %v840 = vld [vmem:[%s839] sm:%s541]
    %s841 = sshllo.u32 0, 4
    %s842 = smul.addr 4, 50
    %s843 = scalar_lea.vmem %s1, %s842
    %844 = vst [vmem:[%s843] sm:%s841] %v840
    %s845 = scalar_lea.vmem [#allocation0], 408
    %v846 = vld [vmem:[%s845] sm:%s541]
    %s847 = sshllo.u32 0, 4
    %s848 = smul.addr 4, 51
    %s849 = scalar_lea.vmem %s1, %s848
    %850 = vst [vmem:[%s849] sm:%s847] %v846
    %s851 = scalar_lea.vmem [#allocation0], 416
    %v852 = vld [vmem:[%s851] sm:%s541]
    %s853 = sshllo.u32 0, 4
    %s854 = smul.addr 4, 52
    %s855 = scalar_lea.vmem %s1, %s854
    %856 = vst [vmem:[%s855] sm:%s853] %v852
    %s857 = scalar_lea.vmem [#allocation0], 424
    %v858 = vld [vmem:[%s857] sm:%s541]
    %s859 = sshllo.u32 0, 4
    %s860 = smul.addr 4, 53
    %s861 = scalar_lea.vmem %s1, %s860
    %862 = vst [vmem:[%s861] sm:%s859] %v858
    %s863 = scalar_lea.vmem [#allocation0], 432
    %v864 = vld [vmem:[%s863] sm:%s541]
    %s865 = sshllo.u32 0, 4
    %s866 = smul.addr 4, 54
    %s867 = scalar_lea.vmem %s1, %s866
    %868 = vst [vmem:[%s867] sm:%s865] %v864
    %s869 = scalar_lea.vmem [#allocation0], 440
    %v870 = vld [vmem:[%s869] sm:%s541]
    %s871 = sshllo.u32 0, 4
    %s872 = smul.addr 4, 55
    %s873 = scalar_lea.vmem %s1, %s872
    %874 = vst [vmem:[%s873] sm:%s871] %v870
    %s875 = scalar_lea.vmem [#allocation0], 448
    %v876 = vld [vmem:[%s875] sm:%s541]
    %s877 = sshllo.u32 0, 4
    %s878 = smul.addr 4, 56
    %s879 = scalar_lea.vmem %s1, %s878
    %880 = vst [vmem:[%s879] sm:%s877] %v876
    %s881 = scalar_lea.vmem [#allocation0], 456
    %v882 = vld [vmem:[%s881] sm:%s541]
    %s883 = sshllo.u32 0, 4
    %s884 = smul.addr 4, 57
    %s885 = scalar_lea.vmem %s1, %s884
    %886 = vst [vmem:[%s885] sm:%s883] %v882
    %s887 = scalar_lea.vmem [#allocation0], 464
    %v888 = vld [vmem:[%s887] sm:%s541]
    %s889 = sshllo.u32 0, 4
    %s890 = smul.addr 4, 58
    %s891 = scalar_lea.vmem %s1, %s890
    %892 = vst [vmem:[%s891] sm:%s889] %v888
    %s893 = scalar_lea.vmem [#allocation0], 472
    %v894 = vld [vmem:[%s893] sm:%s541]
    %s895 = sshllo.u32 0, 4
    %s896 = smul.addr 4, 59
    %s897 = scalar_lea.vmem %s1, %s896
    %898 = vst [vmem:[%s897] sm:%s895] %v894
    %s899 = scalar_lea.vmem [#allocation0], 480
    %v900 = vld [vmem:[%s899] sm:%s541]
    %s901 = sshllo.u32 0, 4
    %s902 = smul.addr 4, 60
    %s903 = scalar_lea.vmem %s1, %s902
    %904 = vst [vmem:[%s903] sm:%s901] %v900
    %s905 = scalar_lea.vmem [#allocation0], 488
    %v906 = vld [vmem:[%s905] sm:%s541]
    %s907 = sshllo.u32 0, 4
    %s908 = smul.addr 4, 61
    %s909 = scalar_lea.vmem %s1, %s908
    %910 = vst [vmem:[%s909] sm:%s907] %v906
    %s911 = scalar_lea.vmem [#allocation0], 496
    %v912 = vld [vmem:[%s911] sm:%s541]
    %s913 = sshllo.u32 0, 4
    %s914 = smul.addr 4, 62
    %s915 = scalar_lea.vmem %s1, %s914
    %916 = vst [vmem:[%s915] sm:%s913] %v912
    %s917 = scalar_lea.vmem [#allocation0], 504
    %v918 = vld [vmem:[%s917] sm:%s541]
    %s919 = sshllo.u32 0, 4
    %s920 = smul.addr 4, 63
    %s921 = scalar_lea.vmem %s1, %s920
    %922 = vst [vmem:[%s921] sm:%s919] %v918
    %s923 = scalar_lea.vmem [#allocation0], 512
    %v924 = vld [vmem:[%s923] sm:%s541]
    %s925 = sshllo.u32 0, 4
    %s926 = smul.addr 4, 64
    %s927 = scalar_lea.vmem %s1, %s926
    %928 = vst [vmem:[%s927] sm:%s925] %v924
    %s929 = scalar_lea.vmem [#allocation0], 520
    %v930 = vld [vmem:[%s929] sm:%s541]
    %s931 = sshllo.u32 0, 4
    %s932 = smul.addr 4, 65
    %s933 = scalar_lea.vmem %s1, %s932
    %934 = vst [vmem:[%s933] sm:%s931] %v930
    %s935 = scalar_lea.vmem [#allocation0], 528
    %v936 = vld [vmem:[%s935] sm:%s541]
    %s937 = sshllo.u32 0, 4
    %s938 = smul.addr 4, 66
    %s939 = scalar_lea.vmem %s1, %s938
    %940 = vst [vmem:[%s939] sm:%s937] %v936
    %s941 = scalar_lea.vmem [#allocation0], 536
    %v942 = vld [vmem:[%s941] sm:%s541]
    %s943 = sshllo.u32 0, 4
    %s944 = smul.addr 4, 67
    %s945 = scalar_lea.vmem %s1, %s944
    %946 = vst [vmem:[%s945] sm:%s943] %v942
    %s947 = scalar_lea.vmem [#allocation0], 544
    %v948 = vld [vmem:[%s947] sm:%s541]
    %s949 = sshllo.u32 0, 4
    %s950 = smul.addr 4, 68
    %s951 = scalar_lea.vmem %s1, %s950
    %952 = vst [vmem:[%s951] sm:%s949] %v948
    %s953 = scalar_lea.vmem [#allocation0], 552
    %v954 = vld [vmem:[%s953] sm:%s541]
    %s955 = sshllo.u32 0, 4
    %s956 = smul.addr 4, 69
    %s957 = scalar_lea.vmem %s1, %s956
    %958 = vst [vmem:[%s957] sm:%s955] %v954
    %s959 = scalar_lea.vmem [#allocation0], 560
    %v960 = vld [vmem:[%s959] sm:%s541]
    %s961 = sshllo.u32 0, 4
    %s962 = smul.addr 4, 70
    %s963 = scalar_lea.vmem %s1, %s962
    %964 = vst [vmem:[%s963] sm:%s961] %v960
    %s965 = scalar_lea.vmem [#allocation0], 568
    %v966 = vld [vmem:[%s965] sm:%s541]
    %s967 = sshllo.u32 0, 4
    %s968 = smul.addr 4, 71
    %s969 = scalar_lea.vmem %s1, %s968
    %970 = vst [vmem:[%s969] sm:%s967] %v966
    %s971 = scalar_lea.vmem [#allocation0], 576
    %v972 = vld [vmem:[%s971] sm:%s541]
    %s973 = sshllo.u32 0, 4
    %s974 = smul.addr 4, 72
    %s975 = scalar_lea.vmem %s1, %s974
    %976 = vst [vmem:[%s975] sm:%s973] %v972
    %s977 = scalar_lea.vmem [#allocation0], 584
    %v978 = vld [vmem:[%s977] sm:%s541]
    %s979 = sshllo.u32 0, 4
    %s980 = smul.addr 4, 73
    %s981 = scalar_lea.vmem %s1, %s980
    %982 = vst [vmem:[%s981] sm:%s979] %v978
    %s983 = scalar_lea.vmem [#allocation0], 592
    %v984 = vld [vmem:[%s983] sm:%s541]
    %s985 = sshllo.u32 0, 4
    %s986 = smul.addr 4, 74
    %s987 = scalar_lea.vmem %s1, %s986
    %988 = vst [vmem:[%s987] sm:%s985] %v984
    %s989 = scalar_lea.vmem [#allocation0], 600
    %v990 = vld [vmem:[%s989] sm:%s541]
    %s991 = sshllo.u32 0, 4
    %s992 = smul.addr 4, 75
    %s993 = scalar_lea.vmem %s1, %s992
    %994 = vst [vmem:[%s993] sm:%s991] %v990
    %s995 = scalar_lea.vmem [#allocation0], 608
    %v996 = vld [vmem:[%s995] sm:%s541]
    %s997 = sshllo.u32 0, 4
    %s998 = smul.addr 4, 76
    %s999 = scalar_lea.vmem %s1, %s998
    %1000 = vst [vmem:[%s999] sm:%s997] %v996
    %s1001 = scalar_lea.vmem [#allocation0], 616
    %v1002 = vld [vmem:[%s1001] sm:%s541]
    %s1003 = sshllo.u32 0, 4
    %s1004 = smul.addr 4, 77
    %s1005 = scalar_lea.vmem %s1, %s1004
    %1006 = vst [vmem:[%s1005] sm:%s1003] %v1002
    %s1007 = scalar_lea.vmem [#allocation0], 624
    %v1008 = vld [vmem:[%s1007] sm:%s541]
    %s1009 = sshllo.u32 0, 4
    %s1010 = smul.addr 4, 78
    %s1011 = scalar_lea.vmem %s1, %s1010
    %1012 = vst [vmem:[%s1011] sm:%s1009] %v1008
    %s1013 = scalar_lea.vmem [#allocation0], 632
    %v1014 = vld [vmem:[%s1013] sm:%s541]
    %s1015 = sshllo.u32 0, 4
    %s1016 = smul.addr 4, 79
    %s1017 = scalar_lea.vmem %s1, %s1016
    %1018 = vst [vmem:[%s1017] sm:%s1015] %v1014
    %s1019 = scalar_lea.vmem [#allocation0], 640
    %v1020 = vld [vmem:[%s1019] sm:%s541]
    %s1021 = sshllo.u32 0, 4
    %s1022 = smul.addr 4, 80
    %s1023 = scalar_lea.vmem %s1, %s1022
    %1024 = vst [vmem:[%s1023] sm:%s1021] %v1020
    %s1025 = scalar_lea.vmem [#allocation0], 648
    %v1026 = vld [vmem:[%s1025] sm:%s541]
    %s1027 = sshllo.u32 0, 4
    %s1028 = smul.addr 4, 81
    %s1029 = scalar_lea.vmem %s1, %s1028
    %1030 = vst [vmem:[%s1029] sm:%s1027] %v1026
    %s1031 = scalar_lea.vmem [#allocation0], 656
    %v1032 = vld [vmem:[%s1031] sm:%s541]
    %s1033 = sshllo.u32 0, 4
    %s1034 = smul.addr 4, 82
    %s1035 = scalar_lea.vmem %s1, %s1034
    %1036 = vst [vmem:[%s1035] sm:%s1033] %v1032
    %s1037 = scalar_lea.vmem [#allocation0], 664
    %v1038 = vld [vmem:[%s1037] sm:%s541]
    %s1039 = sshllo.u32 0, 4
    %s1040 = smul.addr 4, 83
    %s1041 = scalar_lea.vmem %s1, %s1040
    %1042 = vst [vmem:[%s1041] sm:%s1039] %v1038
    %s1043 = scalar_lea.vmem [#allocation0], 672
    %v1044 = vld [vmem:[%s1043] sm:%s541]
    %s1045 = sshllo.u32 0, 4
    %s1046 = smul.addr 4, 84
    %s1047 = scalar_lea.vmem %s1, %s1046
    %1048 = vst [vmem:[%s1047] sm:%s1045] %v1044
    %s1049 = scalar_lea.vmem [#allocation0], 680
    %v1050 = vld [vmem:[%s1049] sm:%s541]
    %s1051 = sshllo.u32 0, 4
    %s1052 = smul.addr 4, 85
    %s1053 = scalar_lea.vmem %s1, %s1052
    %1054 = vst [vmem:[%s1053] sm:%s1051] %v1050
    %s1055 = scalar_lea.vmem [#allocation0], 688
    %v1056 = vld [vmem:[%s1055] sm:%s541]
    %s1057 = sshllo.u32 0, 4
    %s1058 = smul.addr 4, 86
    %s1059 = scalar_lea.vmem %s1, %s1058
    %1060 = vst [vmem:[%s1059] sm:%s1057] %v1056
    %s1061 = scalar_lea.vmem [#allocation0], 696
    %v1062 = vld [vmem:[%s1061] sm:%s541]
    %s1063 = sshllo.u32 0, 4
    %s1064 = smul.addr 4, 87
    %s1065 = scalar_lea.vmem %s1, %s1064
    %1066 = vst [vmem:[%s1065] sm:%s1063] %v1062
    %s1067 = scalar_lea.vmem [#allocation0], 704
    %v1068 = vld [vmem:[%s1067] sm:%s541]
    %s1069 = sshllo.u32 0, 4
    %s1070 = smul.addr 4, 88
    %s1071 = scalar_lea.vmem %s1, %s1070
    %1072 = vst [vmem:[%s1071] sm:%s1069] %v1068
    %s1073 = scalar_lea.vmem [#allocation0], 712
    %v1074 = vld [vmem:[%s1073] sm:%s541]
    %s1075 = sshllo.u32 0, 4
    %s1076 = smul.addr 4, 89
    %s1077 = scalar_lea.vmem %s1, %s1076
    %1078 = vst [vmem:[%s1077] sm:%s1075] %v1074
    %s1079 = scalar_lea.vmem [#allocation0], 720
    %v1080 = vld [vmem:[%s1079] sm:%s541]
    %s1081 = sshllo.u32 0, 4
    %s1082 = smul.addr 4, 90
    %s1083 = scalar_lea.vmem %s1, %s1082
    %1084 = vst [vmem:[%s1083] sm:%s1081] %v1080
    %s1085 = scalar_lea.vmem [#allocation0], 728
    %v1086 = vld [vmem:[%s1085] sm:%s541]
    %s1087 = sshllo.u32 0, 4
    %s1088 = smul.addr 4, 91
    %s1089 = scalar_lea.vmem %s1, %s1088
    %1090 = vst [vmem:[%s1089] sm:%s1087] %v1086
    %s1091 = scalar_lea.vmem [#allocation0], 736
    %v1092 = vld [vmem:[%s1091] sm:%s541]
    %s1093 = sshllo.u32 0, 4
    %s1094 = smul.addr 4, 92
    %s1095 = scalar_lea.vmem %s1, %s1094
    %1096 = vst [vmem:[%s1095] sm:%s1093] %v1092
    %s1097 = scalar_lea.vmem [#allocation0], 744
    %v1098 = vld [vmem:[%s1097] sm:%s541]
    %s1099 = sshllo.u32 0, 4
    %s1100 = smul.addr 4, 93
    %s1101 = scalar_lea.vmem %s1, %s1100
    %1102 = vst [vmem:[%s1101] sm:%s1099] %v1098
    %s1103 = scalar_lea.vmem [#allocation0], 752
    %v1104 = vld [vmem:[%s1103] sm:%s541]
    %s1105 = sshllo.u32 0, 4
    %s1106 = smul.addr 4, 94
    %s1107 = scalar_lea.vmem %s1, %s1106
    %1108 = vst [vmem:[%s1107] sm:%s1105] %v1104
    %s1109 = scalar_lea.vmem [#allocation0], 760
    %v1110 = vld [vmem:[%s1109] sm:%s541]
    %s1111 = sshllo.u32 0, 4
    %s1112 = smul.addr 4, 95
    %s1113 = scalar_lea.vmem %s1, %s1112
    %1114 = vst [vmem:[%s1113] sm:%s1111] %v1110
    %s1115 = scalar_lea.vmem [#allocation0], 768
    %v1116 = vld [vmem:[%s1115] sm:%s541]
    %s1117 = sshllo.u32 0, 4
    %s1118 = smul.addr 4, 96
    %s1119 = scalar_lea.vmem %s1, %s1118
    %1120 = vst [vmem:[%s1119] sm:%s1117] %v1116
    %s1121 = scalar_lea.vmem [#allocation0], 776
    %v1122 = vld [vmem:[%s1121] sm:%s541]
    %s1123 = sshllo.u32 0, 4
    %s1124 = smul.addr 4, 97
    %s1125 = scalar_lea.vmem %s1, %s1124
    %1126 = vst [vmem:[%s1125] sm:%s1123] %v1122
    %s1127 = scalar_lea.vmem [#allocation0], 784
    %v1128 = vld [vmem:[%s1127] sm:%s541]
    %s1129 = sshllo.u32 0, 4
    %s1130 = smul.addr 4, 98
    %s1131 = scalar_lea.vmem %s1, %s1130
    %1132 = vst [vmem:[%s1131] sm:%s1129] %v1128
    %s1133 = scalar_lea.vmem [#allocation0], 792
    %v1134 = vld [vmem:[%s1133] sm:%s541]
    %s1135 = sshllo.u32 0, 4
    %s1136 = smul.addr 4, 99
    %s1137 = scalar_lea.vmem %s1, %s1136
    %1138 = vst [vmem:[%s1137] sm:%s1135] %v1134
    %s1139 = scalar_lea.vmem [#allocation0], 800
    %v1140 = vld [vmem:[%s1139] sm:%s541]
    %s1141 = sshllo.u32 0, 4
    %s1142 = smul.addr 4, 100
    %s1143 = scalar_lea.vmem %s1, %s1142
    %1144 = vst [vmem:[%s1143] sm:%s1141] %v1140
    %s1145 = scalar_lea.vmem [#allocation0], 808
    %v1146 = vld [vmem:[%s1145] sm:%s541]
    %s1147 = sshllo.u32 0, 4
    %s1148 = smul.addr 4, 101
    %s1149 = scalar_lea.vmem %s1, %s1148
    %1150 = vst [vmem:[%s1149] sm:%s1147] %v1146
    %s1151 = scalar_lea.vmem [#allocation0], 816
    %v1152 = vld [vmem:[%s1151] sm:%s541]
    %s1153 = sshllo.u32 0, 4
    %s1154 = smul.addr 4, 102
    %s1155 = scalar_lea.vmem %s1, %s1154
    %1156 = vst [vmem:[%s1155] sm:%s1153] %v1152
    %s1157 = scalar_lea.vmem [#allocation0], 824
    %v1158 = vld [vmem:[%s1157] sm:%s541]
    %s1159 = sshllo.u32 0, 4
    %s1160 = smul.addr 4, 103
    %s1161 = scalar_lea.vmem %s1, %s1160
    %1162 = vst [vmem:[%s1161] sm:%s1159] %v1158
    %s1163 = scalar_lea.vmem [#allocation0], 832
    %v1164 = vld [vmem:[%s1163] sm:%s541]
    %s1165 = sshllo.u32 0, 4
    %s1166 = smul.addr 4, 104
    %s1167 = scalar_lea.vmem %s1, %s1166
    %1168 = vst [vmem:[%s1167] sm:%s1165] %v1164
    %s1169 = scalar_lea.vmem [#allocation0], 840
    %v1170 = vld [vmem:[%s1169] sm:%s541]
    %s1171 = sshllo.u32 0, 4
    %s1172 = smul.addr 4, 105
    %s1173 = scalar_lea.vmem %s1, %s1172
    %1174 = vst [vmem:[%s1173] sm:%s1171] %v1170
    %s1175 = scalar_lea.vmem [#allocation0], 848
    %v1176 = vld [vmem:[%s1175] sm:%s541]
    %s1177 = sshllo.u32 0, 4
    %s1178 = smul.addr 4, 106
    %s1179 = scalar_lea.vmem %s1, %s1178
    %1180 = vst [vmem:[%s1179] sm:%s1177] %v1176
    %s1181 = scalar_lea.vmem [#allocation0], 856
    %v1182 = vld [vmem:[%s1181] sm:%s541]
    %s1183 = sshllo.u32 0, 4
    %s1184 = smul.addr 4, 107
    %s1185 = scalar_lea.vmem %s1, %s1184
    %1186 = vst [vmem:[%s1185] sm:%s1183] %v1182
    %s1187 = scalar_lea.vmem [#allocation0], 864
    %v1188 = vld [vmem:[%s1187] sm:%s541]
    %s1189 = sshllo.u32 0, 4
    %s1190 = smul.addr 4, 108
    %s1191 = scalar_lea.vmem %s1, %s1190
    %1192 = vst [vmem:[%s1191] sm:%s1189] %v1188
    %s1193 = scalar_lea.vmem [#allocation0], 872
    %v1194 = vld [vmem:[%s1193] sm:%s541]
    %s1195 = sshllo.u32 0, 4
    %s1196 = smul.addr 4, 109
    %s1197 = scalar_lea.vmem %s1, %s1196
    %1198 = vst [vmem:[%s1197] sm:%s1195] %v1194
    %s1199 = scalar_lea.vmem [#allocation0], 880
    %v1200 = vld [vmem:[%s1199] sm:%s541]
    %s1201 = sshllo.u32 0, 4
    %s1202 = smul.addr 4, 110
    %s1203 = scalar_lea.vmem %s1, %s1202
    %1204 = vst [vmem:[%s1203] sm:%s1201] %v1200
    %s1205 = scalar_lea.vmem [#allocation0], 888
    %v1206 = vld [vmem:[%s1205] sm:%s541]
    %s1207 = sshllo.u32 0, 4
    %s1208 = smul.addr 4, 111
    %s1209 = scalar_lea.vmem %s1, %s1208
    %1210 = vst [vmem:[%s1209] sm:%s1207] %v1206
    %s1211 = scalar_lea.vmem [#allocation0], 896
    %v1212 = vld [vmem:[%s1211] sm:%s541]
    %s1213 = sshllo.u32 0, 4
    %s1214 = smul.addr 4, 112
    %s1215 = scalar_lea.vmem %s1, %s1214
    %1216 = vst [vmem:[%s1215] sm:%s1213] %v1212
    %s1217 = scalar_lea.vmem [#allocation0], 904
    %v1218 = vld [vmem:[%s1217] sm:%s541]
    %s1219 = sshllo.u32 0, 4
    %s1220 = smul.addr 4, 113
    %s1221 = scalar_lea.vmem %s1, %s1220
    %1222 = vst [vmem:[%s1221] sm:%s1219] %v1218
    %s1223 = scalar_lea.vmem [#allocation0], 912
    %v1224 = vld [vmem:[%s1223] sm:%s541]
    %s1225 = sshllo.u32 0, 4
    %s1226 = smul.addr 4, 114
    %s1227 = scalar_lea.vmem %s1, %s1226
    %1228 = vst [vmem:[%s1227] sm:%s1225] %v1224
    %s1229 = scalar_lea.vmem [#allocation0], 920
    %v1230 = vld [vmem:[%s1229] sm:%s541]
    %s1231 = sshllo.u32 0, 4
    %s1232 = smul.addr 4, 115
    %s1233 = scalar_lea.vmem %s1, %s1232
    %1234 = vst [vmem:[%s1233] sm:%s1231] %v1230
    %s1235 = scalar_lea.vmem [#allocation0], 928
    %v1236 = vld [vmem:[%s1235] sm:%s541]
    %s1237 = sshllo.u32 0, 4
    %s1238 = smul.addr 4, 116
    %s1239 = scalar_lea.vmem %s1, %s1238
    %1240 = vst [vmem:[%s1239] sm:%s1237] %v1236
    %s1241 = scalar_lea.vmem [#allocation0], 936
    %v1242 = vld [vmem:[%s1241] sm:%s541]
    %s1243 = sshllo.u32 0, 4
    %s1244 = smul.addr 4, 117
    %s1245 = scalar_lea.vmem %s1, %s1244
    %1246 = vst [vmem:[%s1245] sm:%s1243] %v1242
    %s1247 = scalar_lea.vmem [#allocation0], 944
    %v1248 = vld [vmem:[%s1247] sm:%s541]
    %s1249 = sshllo.u32 0, 4
    %s1250 = smul.addr 4, 118
    %s1251 = scalar_lea.vmem %s1, %s1250
    %1252 = vst [vmem:[%s1251] sm:%s1249] %v1248
    %s1253 = scalar_lea.vmem [#allocation0], 952
    %v1254 = vld [vmem:[%s1253] sm:%s541]
    %s1255 = sshllo.u32 0, 4
    %s1256 = smul.addr 4, 119
    %s1257 = scalar_lea.vmem %s1, %s1256
    %1258 = vst [vmem:[%s1257] sm:%s1255] %v1254
    %s1259 = scalar_lea.vmem [#allocation0], 960
    %v1260 = vld [vmem:[%s1259] sm:%s541]
    %s1261 = sshllo.u32 0, 4
    %s1262 = smul.addr 4, 120
    %s1263 = scalar_lea.vmem %s1, %s1262
    %1264 = vst [vmem:[%s1263] sm:%s1261] %v1260
    %s1265 = scalar_lea.vmem [#allocation0], 968
    %v1266 = vld [vmem:[%s1265] sm:%s541]
    %s1267 = sshllo.u32 0, 4
    %s1268 = smul.addr 4, 121
    %s1269 = scalar_lea.vmem %s1, %s1268
    %1270 = vst [vmem:[%s1269] sm:%s1267] %v1266
    %s1271 = scalar_lea.vmem [#allocation0], 976
    %v1272 = vld [vmem:[%s1271] sm:%s541]
    %s1273 = sshllo.u32 0, 4
    %s1274 = smul.addr 4, 122
    %s1275 = scalar_lea.vmem %s1, %s1274
    %1276 = vst [vmem:[%s1275] sm:%s1273] %v1272
    %s1277 = scalar_lea.vmem [#allocation0], 984
    %v1278 = vld [vmem:[%s1277] sm:%s541]
    %s1279 = sshllo.u32 0, 4
    %s1280 = smul.addr 4, 123
    %s1281 = scalar_lea.vmem %s1, %s1280
    %1282 = vst [vmem:[%s1281] sm:%s1279] %v1278
    %s1283 = scalar_lea.vmem [#allocation0], 992
    %v1284 = vld [vmem:[%s1283] sm:%s541]
    %s1285 = sshllo.u32 0, 4
    %s1286 = smul.addr 4, 124
    %s1287 = scalar_lea.vmem %s1, %s1286
    %1288 = vst [vmem:[%s1287] sm:%s1285] %v1284
    %s1289 = scalar_lea.vmem [#allocation0], 1000
    %v1290 = vld [vmem:[%s1289] sm:%s541]
    %s1291 = sshllo.u32 0, 4
    %s1292 = smul.addr 4, 125
    %s1293 = scalar_lea.vmem %s1, %s1292
    %1294 = vst [vmem:[%s1293] sm:%s1291] %v1290
    %s1295 = scalar_lea.vmem [#allocation0], 1008
    %v1296 = vld [vmem:[%s1295] sm:%s541]
    %s1297 = sshllo.u32 0, 4
    %s1298 = smul.addr 4, 126
    %s1299 = scalar_lea.vmem %s1, %s1298
    %1300 = vst [vmem:[%s1299] sm:%s1297] %v1296
    %s1301 = scalar_lea.vmem [#allocation0], 1016
    %v1302 = vld [vmem:[%s1301] sm:%s541]
    %s1303 = sshllo.u32 0, 4
    %s1304 = smul.addr 4, 127
    %s1305 = scalar_lea.vmem %s1, %s1304
    %1306 = vst [vmem:[%s1305] sm:%s1303] %v1302

// kernel: mixvit_forward.1
$region0: #{mixvit_forward.1}
  #allocation0 [shape = 'u32[]', space=smem, size = 0x4, offset = 0x4, fixed_abs, tag = 'smem constant byte address 0x4 - core index']
  #allocation1 [shape = 'u32[144,128]{1,0:T(1,128)}', space=vmem, size = 0x12000, scoped, tag = 'internal scratch']
  #allocation2 [shape = 'f32[4,24,32]{2,1,0:T(8,128)}', space=vmem, size = 0xc000, scoped, tag = 'scratch operand']
  %s0 = inlined_call_operand.vmem [shape: f32[32,64], index: 0, kind: input, shape index: {}]
  %s1 = inlined_call_operand.vmem [shape: f32[1,64], index: 1, kind: input, shape index: {}]
  %s2 = inlined_call_operand.vmem [shape: f32[1,64], index: 2, kind: input, shape index: {}]
  %s3 = inlined_call_operand.vmem [shape: f32[64,32], index: 3, kind: input, shape index: {}]
  %s4 = inlined_call_operand.vmem [shape: f32[1,32], index: 4, kind: input, shape index: {}]
  %s5 = inlined_call_operand.vmem [shape: f32[1,32], index: 5, kind: input, shape index: {}]
  %s6 = inlined_call_operand.vmem [shape: f32[1,32], index: 6, kind: input, shape index: {}]
  %s7 = inlined_call_operand.vmem [shape: f32[16,32], index: 7, kind: input, shape index: {}]
  %s8 = inlined_call_operand.vmem [shape: f32[2,32], index: 8, kind: input, shape index: {}]
  %s9 = inlined_call_operand.vmem [shape: f32[1,32], index: 9, kind: input, shape index: {}]
  %s10 = inlined_call_operand.vmem [shape: f32[32,10], index: 10, kind: input, shape index: {}]
  %s11 = inlined_call_operand.vmem [shape: f32[1,10], index: 11, kind: input, shape index: {}]
  %s12 = inlined_call_operand.vmem [shape: f32[2,1,32], index: 12, kind: input, shape index: {}]
  %s13 = inlined_call_operand.vmem [shape: f32[2,1,32], index: 13, kind: input, shape index: {}]
  %s14 = inlined_call_operand.vmem [shape: f32[2,32,96], index: 14, kind: input, shape index: {}]
  %s15 = inlined_call_operand.vmem [shape: f32[2,1,96], index: 15, kind: input, shape index: {}]
  %s16 = inlined_call_operand.vmem [shape: f32[2,32,32], index: 16, kind: input, shape index: {}]
  %s17 = inlined_call_operand.vmem [shape: f32[2,1,32], index: 17, kind: input, shape index: {}]
  %s18 = inlined_call_operand.vmem [shape: f32[2,1,32], index: 18, kind: input, shape index: {}]
  %s19 = inlined_call_operand.vmem [shape: f32[2,1,32], index: 19, kind: input, shape index: {}]
  %s20 = inlined_call_operand.vmem [shape: f32[2,32,128], index: 20, kind: input, shape index: {}]
  %s21 = inlined_call_operand.vmem [shape: f32[2,1,128], index: 21, kind: input, shape index: {}]
  %s22 = inlined_call_operand.vmem [shape: f32[2,128,32], index: 22, kind: input, shape index: {}]
  %s23 = inlined_call_operand.vmem [shape: f32[2,1,32], index: 23, kind: input, shape index: {}]
  %s24 = inlined_call_operand.hbm [shape: f32[2,2,5], index: 24, kind: output, shape index: {}]
  %s25 = sld [smem:[#allocation0]]
  $region106: #{mixvit_forward.1} parent=0
    _
  %s27 = ssub.s32 1, %s25
  %s28 = scalar_select 0, %s27, %s25
  $region1: #{mixvit_forward.1} parent=0
    #allocation3 [shape = 'u8[2048]{0}', space=vmem, size = 0x800, scoped, tag = 'output window, operand 0, single buffered']
    #allocation4 [shape = 's32[1]{0}', space=sflag, size = 0x4, scoped, tag = 'scoped memory for mixvit_forward.1']
    %29 = vsyncpa [#allocation4], 0
    // Predicated region
    $region2: #{mixvit_forward.1} parent=1 // pred_check
      _
    $region3: #{mixvit_forward.1} parent=1 // pred_check_branch
      %31 = sbr.rel (0) target = $region5
    $region4: #{mixvit_forward.1} parent=1 // pred_region
      _
    $region5: #{mixvit_forward.1} parent=1 // pred_fallthru
      _
    // Predicated region
    $region6: #{mixvit_forward.1} parent=1 // pred_check
      _
    $region7: #{mixvit_forward.1} parent=1 // pred_check_branch
      %33 = sbr.rel (0) target = $region9
    $region8: #{mixvit_forward.1} parent=1 // pred_region
      _
    $region9: #{mixvit_forward.1} parent=1 // pred_fallthru
      _
    // Predicated region
    $region10: #{mixvit_forward.1} parent=1 // pred_check
      _
    $region11: #{mixvit_forward.1} parent=1 // pred_check_branch
      %35 = sbr.rel (0) target = $region13
    $region12: #{mixvit_forward.1} parent=1 // pred_region
      _
    $region13: #{mixvit_forward.1} parent=1 // pred_fallthru
      _
    // Predicated region
    $region14: #{mixvit_forward.1} parent=1 // pred_check
      _
    $region15: #{mixvit_forward.1} parent=1 // pred_check_branch
      %37 = sbr.rel (0) target = $region17
    $region16: #{mixvit_forward.1} parent=1 // pred_region
      _
    $region17: #{mixvit_forward.1} parent=1 // pred_fallthru
      _
    // Predicated region
    $region18: #{mixvit_forward.1} parent=1 // pred_check
      _
    $region19: #{mixvit_forward.1} parent=1 // pred_check_branch
      %39 = sbr.rel (0) target = $region21
    $region20: #{mixvit_forward.1} parent=1 // pred_region
      _
    $region21: #{mixvit_forward.1} parent=1 // pred_fallthru
      _
    // Predicated region
    $region22: #{mixvit_forward.1} parent=1 // pred_check
      _
    $region23: #{mixvit_forward.1} parent=1 // pred_check_branch
      %41 = sbr.rel (0) target = $region25
    $region24: #{mixvit_forward.1} parent=1 // pred_region
      _
    $region25: #{mixvit_forward.1} parent=1 // pred_fallthru
      _
    // Predicated region
    $region26: #{mixvit_forward.1} parent=1 // pred_check
      _
    $region27: #{mixvit_forward.1} parent=1 // pred_check_branch
      %43 = sbr.rel (0) target = $region29
    $region28: #{mixvit_forward.1} parent=1 // pred_region
      _
    $region29: #{mixvit_forward.1} parent=1 // pred_fallthru
      _
    // Predicated region
    $region30: #{mixvit_forward.1} parent=1 // pred_check
      _
    $region31: #{mixvit_forward.1} parent=1 // pred_check_branch
      %45 = sbr.rel (0) target = $region33
    $region32: #{mixvit_forward.1} parent=1 // pred_region
      _
    $region33: #{mixvit_forward.1} parent=1 // pred_fallthru
      _
    // Predicated region
    $region34: #{mixvit_forward.1} parent=1 // pred_check
      _
    $region35: #{mixvit_forward.1} parent=1 // pred_check_branch
      %47 = sbr.rel (0) target = $region37
    $region36: #{mixvit_forward.1} parent=1 // pred_region
      _
    $region37: #{mixvit_forward.1} parent=1 // pred_fallthru
      _
    // Predicated region
    $region38: #{mixvit_forward.1} parent=1 // pred_check
      _
    $region39: #{mixvit_forward.1} parent=1 // pred_check_branch
      %49 = sbr.rel (0) target = $region41
    $region40: #{mixvit_forward.1} parent=1 // pred_region
      _
    $region41: #{mixvit_forward.1} parent=1 // pred_fallthru
      _
    // Predicated region
    $region42: #{mixvit_forward.1} parent=1 // pred_check
      _
    $region43: #{mixvit_forward.1} parent=1 // pred_check_branch
      %51 = sbr.rel (0) target = $region45
    $region44: #{mixvit_forward.1} parent=1 // pred_region
      _
    $region45: #{mixvit_forward.1} parent=1 // pred_fallthru
      _
    // Predicated region
    $region46: #{mixvit_forward.1} parent=1 // pred_check
      _
    $region47: #{mixvit_forward.1} parent=1 // pred_check_branch
      %53 = sbr.rel (0) target = $region49
    $region48: #{mixvit_forward.1} parent=1 // pred_region
      _
    $region49: #{mixvit_forward.1} parent=1 // pred_fallthru
      _
    // Predicated region
    $region50: #{mixvit_forward.1} parent=1 // pred_check
      _
    $region51: #{mixvit_forward.1} parent=1 // pred_check_branch
      %55 = sbr.rel (0) target = $region53
    $region52: #{mixvit_forward.1} parent=1 // pred_region
      _
    $region53: #{mixvit_forward.1} parent=1 // pred_fallthru
      _
    // Predicated region
    $region54: #{mixvit_forward.1} parent=1 // pred_check
      _
    $region55: #{mixvit_forward.1} parent=1 // pred_check_branch
      %57 = sbr.rel (0) target = $region57
    $region56: #{mixvit_forward.1} parent=1 // pred_region
      _
    $region57: #{mixvit_forward.1} parent=1 // pred_fallthru
      _
    // Predicated region
    $region58: #{mixvit_forward.1} parent=1 // pred_check
      _
    $region59: #{mixvit_forward.1} parent=1 // pred_check_branch
      %59 = sbr.rel (0) target = $region61
    $region60: #{mixvit_forward.1} parent=1 // pred_region
      _
    $region61: #{mixvit_forward.1} parent=1 // pred_fallthru
      _
    // Predicated region
    $region62: #{mixvit_forward.1} parent=1 // pred_check
      _
    $region63: #{mixvit_forward.1} parent=1 // pred_check_branch
      %61 = sbr.rel (0) target = $region65
    $region64: #{mixvit_forward.1} parent=1 // pred_region
      _
    $region65: #{mixvit_forward.1} parent=1 // pred_fallthru
      _
    // Predicated region
    $region66: #{mixvit_forward.1} parent=1 // pred_check
      _
    $region67: #{mixvit_forward.1} parent=1 // pred_check_branch
      %63 = sbr.rel (0) target = $region69
    $region68: #{mixvit_forward.1} parent=1 // pred_region
      _
    $region69: #{mixvit_forward.1} parent=1 // pred_fallthru
      _
    // Predicated region
    $region70: #{mixvit_forward.1} parent=1 // pred_check
      _
    $region71: #{mixvit_forward.1} parent=1 // pred_check_branch
      %65 = sbr.rel (0) target = $region73
    $region72: #{mixvit_forward.1} parent=1 // pred_region
      _
    $region73: #{mixvit_forward.1} parent=1 // pred_fallthru
      _
    // Predicated region
    $region74: #{mixvit_forward.1} parent=1 // pred_check
      _
    $region75: #{mixvit_forward.1} parent=1 // pred_check_branch
      %67 = sbr.rel (0) target = $region77
    $region76: #{mixvit_forward.1} parent=1 // pred_region
      _
    $region77: #{mixvit_forward.1} parent=1 // pred_fallthru
      _
    // Predicated region
    $region78: #{mixvit_forward.1} parent=1 // pred_check
      _
    $region79: #{mixvit_forward.1} parent=1 // pred_check_branch
      %69 = sbr.rel (0) target = $region81
    $region80: #{mixvit_forward.1} parent=1 // pred_region
      _
    $region81: #{mixvit_forward.1} parent=1 // pred_fallthru
      _
    // Predicated region
    $region82: #{mixvit_forward.1} parent=1 // pred_check
      _
    $region83: #{mixvit_forward.1} parent=1 // pred_check_branch
      %71 = sbr.rel (0) target = $region85
    $region84: #{mixvit_forward.1} parent=1 // pred_region
      _
    $region85: #{mixvit_forward.1} parent=1 // pred_fallthru
      _
    // Predicated region
    $region86: #{mixvit_forward.1} parent=1 // pred_check
      _
    $region87: #{mixvit_forward.1} parent=1 // pred_check_branch
      %73 = sbr.rel (0) target = $region89
    $region88: #{mixvit_forward.1} parent=1 // pred_region
      _
    $region89: #{mixvit_forward.1} parent=1 // pred_fallthru
      _
    // Predicated region
    $region90: #{mixvit_forward.1} parent=1 // pred_check
      _
    $region91: #{mixvit_forward.1} parent=1 // pred_check_branch
      %75 = sbr.rel (0) target = $region93
    $region92: #{mixvit_forward.1} parent=1 // pred_region
      _
    $region93: #{mixvit_forward.1} parent=1 // pred_fallthru
      _
    // Predicated region
    $region94: #{mixvit_forward.1} parent=1 // pred_check
      _
    $region95: #{mixvit_forward.1} parent=1 // pred_check_branch
      %77 = sbr.rel (0) target = $region97
    $region96: #{mixvit_forward.1} parent=1 // pred_region
      _
    $region97: #{mixvit_forward.1} parent=1 // pred_fallthru
      _
    %v78 = vld [vmem:[%s0] sm:$0xff]
    %v79 = vld [vmem:[%s0 + $0x8] sm:$0xff]
    %v80 = vld [vmem:[%s0 + $0x10] sm:$0xff]
    %v81 = vld [vmem:[%s0 + $0x18] sm:$0xff]
    %v82 = vld [vmem:[%s1] sm:$0x1]
    %v83 = vld [vmem:[%s2] sm:$0x1]
    %vm84 = vcmask 523264
    %v85 = vsel %vm84, %v78, 0.0
    %86 = vadd.xlane.f32.xlu0 %v85
    %v87 = vpop.xlane.xlu0 %86
    %v88 = vsel %vm84, %v79, 0.0
    %89 = vadd.xlane.f32.xlu0 %v88
    %v90 = vpop.xlane.xlu0 %89
    %v91 = vsel %vm84, %v80, 0.0
    %92 = vadd.xlane.f32.xlu0 %v91
    %v93 = vpop.xlane.xlu0 %92
    %v94 = vsel %vm84, %v81, 0.0
    %95 = vadd.xlane.f32.xlu0 %v94
    %v96 = vpop.xlane.xlu0 %95
    %v97 = vrcp.pop 64.0
    %v98 = vmul.f32 %v87, %v97
    %v99 = vmul.f32 %v90, %v97
    %v100 = vmul.f32 %v93, %v97
    %v101 = vmul.f32 %v96, %v97
    %v102 = vsub.f32 %v78, %v98
    %v103 = vsub.f32 %v79, %v99
    %v104 = vsub.f32 %v80, %v100
    %v105 = vsub.f32 %v81, %v101
    %v106 = vmul.f32 %v102, %v102
    %v107 = vmul.f32 %v103, %v103
    %v108 = vmul.f32 %v104, %v104
    %v109 = vmul.f32 %v105, %v105
    %v110 = vsel %vm84, %v106, 0.0
    %111 = vadd.xlane.f32.xlu0 %v110
    %v112 = vpop.xlane.xlu0 %111
    %v113 = vsel %vm84, %v107, 0.0
    %114 = vadd.xlane.f32.xlu0 %v113
    %v115 = vpop.xlane.xlu0 %114
    %v116 = vsel %vm84, %v108, 0.0
    %117 = vadd.xlane.f32.xlu0 %v116
    %v118 = vpop.xlane.xlu0 %117
    %v119 = vsel %vm84, %v109, 0.0
    %120 = vadd.xlane.f32.xlu0 %v119
    %v121 = vpop.xlane.xlu0 %120
    %v122 = vmul.f32 %v112, %v97
    %v123 = vmul.f32 %v115, %v97
    %v124 = vmul.f32 %v118, %v97
    %v125 = vmul.f32 %v121, %v97
    %v126 = vadd.f32 %v122, 1e-05
    %v127 = vadd.f32 %v123, 1e-05
    %v128 = vadd.f32 %v124, 1e-05
    %v129 = vadd.f32 %v125, 1e-05
    %v130 = vrsqrt.pop %v126
    %v131 = vrsqrt.pop %v127
    %v132 = vrsqrt.pop %v128
    %v133 = vrsqrt.pop %v129
    %v134 = vmul.f32 %v102, %v130
    %v135 = vmul.f32 %v103, %v131
    %v136 = vmul.f32 %v104, %v132
    %v137 = vmul.f32 %v105, %v133
    %v139 = vlaneseq
    %v140 = vshrl.u32 %v139, 7
    %v141 = vsub.s32 0, %v140
    %v142 = vrot.slane %v82, %v141
    %v144 = vmul.f32 %v134, %v142
    %v145 = vmul.f32 %v135, %v142
    %v146 = vmul.f32 %v136, %v142
    %v147 = vmul.f32 %v137, %v142
    %v149 = vlaneseq
    %v150 = vshrl.u32 %v149, 7
    %v151 = vsub.s32 0, %v150
    %v152 = vrot.slane %v83, %v151
    %v154 = vadd.f32 %v144, %v152
    %v155 = vadd.f32 %v145, %v152
    %v156 = vadd.f32 %v146, %v152
    %v157 = vadd.f32 %v147, %v152
    %v158 = vld [vmem:[%s3] sm:$0xff]
    %v159 = vld [vmem:[%s3 + $0x8] sm:$0xff]
    %v160 = vld [vmem:[%s3 + $0x10] sm:$0xff]
    %v161 = vld [vmem:[%s3 + $0x18] sm:$0xff]
    %v162 = vld [vmem:[%s3 + $0x20] sm:$0xff]
    %v163 = vld [vmem:[%s3 + $0x28] sm:$0xff]
    %v164 = vld [vmem:[%s3 + $0x30] sm:$0xff]
    %v165 = vld [vmem:[%s3 + $0x38] sm:$0xff]
    %v166 = vld [vmem:[%s4] sm:$0x1]
    %v168 = vlaneseq
    %v169 = vshrl.u32 %v168, 7
    %v170 = vsub.s32 0, %v169
    %v171 = vrot.slane %v166, %v170
    %v174 = vsel %vm84, %v154, 0
    %v177 = vsel %vm84, %v155, 0
    %v180 = vsel %vm84, %v156, 0
    %v183 = vsel %vm84, %v157, 0
    %185 = vmatprep.subr.mxu0 0.0
    %186 = vmatpush1.msra.mxu0 %v158
    %187 = vmatprep.subr.mxu0 0.0
    %188 = vmatpush1.msra.mxu0 %v159
    %189 = vmatprep.subr.mxu0 0.0
    %190 = vmatpush1.msra.mxu0 %v160
    %191 = vmatprep.subr.mxu0 0.0
    %192 = vmatpush1.msra.mxu0 %v161
    %193 = vmatprep.subr.mxu0 0.0
    %194 = vmatpush1.msra.mxu0 %v162
    %195 = vmatprep.subr.mxu0 0.0
    %196 = vmatpush1.msra.mxu0 %v163
    %197 = vmatprep.subr.mxu0 0.0
    %198 = vmatpush1.msra.mxu0 %v164
    %199 = vmatprep.subr.mxu0 0.0
    %200 = vmatpush1.msra.mxu0 %v165
    %201 = vmatprep.subr.mxu0 0.0
    %202 = vmatpush1.msra.mxu0 0.0
    %203 = vmatprep.subr.mxu0 0.0
    %204 = vmatpush1.msra.mxu0 0.0
    %205 = vmatprep.subr.mxu0 0.0
    %206 = vmatpush1.msra.mxu0 0.0
    %207 = vmatprep.subr.mxu0 0.0
    %208 = vmatpush1.msra.mxu0 0.0
    %209 = vmatprep.subr.mxu0 0.0
    %210 = vmatpush1.msra.mxu0 0.0
    %211 = vmatprep.subr.mxu0 0.0
    %212 = vmatpush1.msra.mxu0 0.0
    %213 = vmatprep.subr.mxu0 0.0
    %214 = vmatpush1.msra.mxu0 0.0
    %215 = vmatprep.subr.mxu0 0.0
    %216 = vmatpush1.msra.mxu0 0.0
    %217 = vmatprep.subr.mxu0 0.0
    %218 = vmatpush1.msra.mxu0 0.0
    %219 = vmatprep.subr.mxu0 0.0
    %220 = vmatpush1.msra.mxu0 0.0
    %221 = vmatprep.subr.mxu0 0.0
    %222 = vmatpush1.msra.mxu0 0.0
    %223 = vmatprep.subr.mxu0 0.0
    %224 = vmatpush1.msra.mxu0 0.0
    %225 = vmatprep.subr.mxu0 0.0
    %226 = vmatpush1.msra.mxu0 0.0
    %227 = vmatprep.subr.mxu0 0.0
    %228 = vmatpush1.msra.mxu0 0.0
    %229 = vmatprep.subr.mxu0 0.0
    %230 = vmatpush1.msra.mxu0 0.0
    %231 = vmatprep.subr.mxu0 0.0
    %232 = vmatpush1.msra.mxu0 0.0
    %233 = vmatprep.subr.mxu0 0.0
    %234 = vmatpush1.msra.mxu0 0.0
    %235 = vmatprep.subr.mxu0 0.0
    %236 = vmatpush1.msra.mxu0 0.0
    %237 = vmatprep.subr.mxu0 0.0
    %238 = vmatpush1.msra.mxu0 0.0
    %239 = vmatprep.subr.mxu0 0.0
    %240 = vmatpush1.msra.mxu0 0.0
    %241 = vmatprep.subr.mxu0 0.0
    %242 = vmatpush1.msra.mxu0 0.0
    %243 = vmatprep.subr.mxu0 0.0
    %244 = vmatpush1.msra.mxu0 0.0
    %245 = vmatprep.subr.mxu0 0.0
    %246 = vmatpush1.msra.mxu0 0.0
    %247 = vmatprep.subr.mxu0 0.0
    %248 = vmatpush1.msra.mxu0 0.0
    %249 = vmatprep.mubr.f32.mxu0 0.0
    %250 = vmatmul.mubr.f32.gmra.mrb[0].mxu0 %v174
    %v251 = vpop.f32.mrb[0].mxu0
    %v252 = vadd.f32 %v171, %v251
    %v253 = vpop.f32.mrb[0].mxu0
    %254 = vmatprep.mubr.f32.mxu0 0.0
    %255 = vmatmul.mubr.f32.gmra.mrb[0].mxu0 %v177
    %v256 = vpop.f32.mrb[0].mxu0
    %v257 = vadd.f32 %v171, %v256
    %v258 = vpop.f32.mrb[0].mxu0
    %259 = vmatprep.mubr.f32.mxu0 0.0
    %260 = vmatmul.mubr.f32.gmra.mrb[0].mxu0 %v180
    %v261 = vpop.f32.mrb[0].mxu0
    %v262 = vadd.f32 %v171, %v261
    %v263 = vpop.f32.mrb[0].mxu0
    %264 = vmatprep.mubr.f32.mxu0 0.0
    %265 = vmatmul.mubr.f32.gmra.mrb[0].mxu0 %v183
    %v266 = vpop.f32.mrb[0].mxu0
    %v267 = vadd.f32 %v171, %v266
    %v268 = vpop.f32.mrb[0].mxu0
    %269 = vdwg.mxu0
    %v270 = vld [vmem:[%s5] sm:$0x1]
    %v271 = vld [vmem:[%s6] sm:$0x1]
    %vm272 = vcmask 261120
    %v273 = vsel %vm272, %v252, 0.0
    %274 = vadd.xlane.f32.xlu0 %v273
    %v275 = vpop.xlane.xlu0 %274
    %v276 = vsel %vm272, %v257, 0.0
    %277 = vadd.xlane.f32.xlu0 %v276
    %v278 = vpop.xlane.xlu0 %277
    %v279 = vsel %vm272, %v262, 0.0
    %280 = vadd.xlane.f32.xlu0 %v279
    %v281 = vpop.xlane.xlu0 %280
    %v282 = vsel %vm272, %v267, 0.0
    %283 = vadd.xlane.f32.xlu0 %v282
    %v284 = vpop.xlane.xlu0 %283
    %v285 = vrcp.pop 32.0
    %v286 = vmul.f32 %v275, %v285
    %v287 = vmul.f32 %v278, %v285
    %v288 = vmul.f32 %v281, %v285
    %v289 = vmul.f32 %v284, %v285
    %v290 = vsub.f32 %v252, %v286
    %v291 = vsub.f32 %v257, %v287
    %v292 = vsub.f32 %v262, %v288
    %v293 = vsub.f32 %v267, %v289
    %v294 = vmul.f32 %v290, %v290
    %v295 = vmul.f32 %v291, %v291
    %v296 = vmul.f32 %v292, %v292
    %v297 = vmul.f32 %v293, %v293
    %v298 = vsel %vm272, %v294, 0.0
    %299 = vadd.xlane.f32.xlu0 %v298
    %v300 = vpop.xlane.xlu0 %299
    %v301 = vsel %vm272, %v295, 0.0
    %302 = vadd.xlane.f32.xlu0 %v301
    %v303 = vpop.xlane.xlu0 %302
    %v304 = vsel %vm272, %v296, 0.0
    %305 = vadd.xlane.f32.xlu0 %v304
    %v306 = vpop.xlane.xlu0 %305
    %v307 = vsel %vm272, %v297, 0.0
    %308 = vadd.xlane.f32.xlu0 %v307
    %v309 = vpop.xlane.xlu0 %308
    %v310 = vmul.f32 %v300, %v285
    %v311 = vmul.f32 %v303, %v285
    %v312 = vmul.f32 %v306, %v285
    %v313 = vmul.f32 %v309, %v285
    %v314 = vadd.f32 %v310, 1e-05
    %v315 = vadd.f32 %v311, 1e-05
    %v316 = vadd.f32 %v312, 1e-05
    %v317 = vadd.f32 %v313, 1e-05
    %v318 = vrsqrt.pop %v314
    %v319 = vrsqrt.pop %v315
    %v320 = vrsqrt.pop %v316
    %v321 = vrsqrt.pop %v317
    %v322 = vmul.f32 %v290, %v318
    %v323 = vmul.f32 %v291, %v319
    %v324 = vmul.f32 %v292, %v320
    %v325 = vmul.f32 %v293, %v321
    %v327 = vlaneseq
    %v328 = vshrl.u32 %v327, 7
    %v329 = vsub.s32 0, %v328
    %v330 = vrot.slane %v270, %v329
    %v332 = vmul.f32 %v322, %v330
    %v333 = vmul.f32 %v323, %v330
    %v334 = vmul.f32 %v324, %v330
    %v335 = vmul.f32 %v325, %v330
    %v337 = vlaneseq
    %v338 = vshrl.u32 %v337, 7
    %v339 = vsub.s32 0, %v338
    %v340 = vrot.slane %v271, %v339
    %v342 = vadd.f32 %v332, %v340
    %v343 = vadd.f32 %v333, %v340
    %v344 = vadd.f32 %v334, %v340
    %v345 = vadd.f32 %v335, %v340
    %v346 = vld [vmem:[%s7] sm:$0xff]
    %v347 = vld [vmem:[%s7 + $0x8] sm:$0xff]
    %v348 = vadd.f32 %v342, %v346
    %v349 = vadd.f32 %v343, %v347
    %v350 = vadd.f32 %v344, %v346
    %v351 = vadd.f32 %v345, %v347
    %v352 = vld [vmem:[%s12] sm:$0x1]
    %v353 = vld [vmem:[%s13] sm:$0x1]
    %v354 = vsel %vm272, %v348, 0.0
    %355 = vadd.xlane.f32.xlu0 %v354
    %v356 = vpop.xlane.xlu0 %355
    %v357 = vsel %vm272, %v349, 0.0
    %358 = vadd.xlane.f32.xlu0 %v357
    %v359 = vpop.xlane.xlu0 %358
    %v360 = vsel %vm272, %v350, 0.0
    %361 = vadd.xlane.f32.xlu0 %v360
    %v362 = vpop.xlane.xlu0 %361
    %v363 = vsel %vm272, %v351, 0.0
    %364 = vadd.xlane.f32.xlu0 %v363
    %v365 = vpop.xlane.xlu0 %364
    %v366 = vmul.f32 %v356, %v285
    %v367 = vmul.f32 %v359, %v285
    %v368 = vmul.f32 %v362, %v285
    %v369 = vmul.f32 %v365, %v285
    %v370 = vsub.f32 %v348, %v366
    %v371 = vsub.f32 %v349, %v367
    %v372 = vsub.f32 %v350, %v368
    %v373 = vsub.f32 %v351, %v369
    %v374 = vmul.f32 %v370, %v370
    %v375 = vmul.f32 %v371, %v371
    %v376 = vmul.f32 %v372, %v372
    %v377 = vmul.f32 %v373, %v373
    %v378 = vsel %vm272, %v374, 0.0
    %379 = vadd.xlane.f32.xlu0 %v378
    %v380 = vpop.xlane.xlu0 %379
    %v381 = vsel %vm272, %v375, 0.0
    %382 = vadd.xlane.f32.xlu0 %v381
    %v383 = vpop.xlane.xlu0 %382
    %v384 = vsel %vm272, %v376, 0.0
    %385 = vadd.xlane.f32.xlu0 %v384
    %v386 = vpop.xlane.xlu0 %385
    %v387 = vsel %vm272, %v377, 0.0
    %388 = vadd.xlane.f32.xlu0 %v387
    %v389 = vpop.xlane.xlu0 %388
    %v390 = vmul.f32 %v380, %v285
    %v391 = vmul.f32 %v383, %v285
    %v392 = vmul.f32 %v386, %v285
    %v393 = vmul.f32 %v389, %v285
    %v394 = vadd.f32 %v390, 1e-05
    %v395 = vadd.f32 %v391, 1e-05
    %v396 = vadd.f32 %v392, 1e-05
    %v397 = vadd.f32 %v393, 1e-05
    %v398 = vrsqrt.pop %v394
    %v399 = vrsqrt.pop %v395
    %v400 = vrsqrt.pop %v396
    %v401 = vrsqrt.pop %v397
    %v402 = vmul.f32 %v370, %v398
    %v403 = vmul.f32 %v371, %v399
    %v404 = vmul.f32 %v372, %v400
    %v405 = vmul.f32 %v373, %v401
    %v407 = vlaneseq
    %v408 = vshrl.u32 %v407, 7
    %v409 = vsub.s32 0, %v408
    %v410 = vrot.slane %v352, %v409
    %v412 = vmul.f32 %v402, %v410
    %v413 = vmul.f32 %v403, %v410
    %v414 = vmul.f32 %v404, %v410
    %v415 = vmul.f32 %v405, %v410
    %v417 = vlaneseq
    %v418 = vshrl.u32 %v417, 7
    %v419 = vsub.s32 0, %v418
    %v420 = vrot.slane %v353, %v419
    %v422 = vadd.f32 %v412, %v420
    %v423 = vadd.f32 %v413, %v420
    %v424 = vadd.f32 %v414, %v420
    %v425 = vadd.f32 %v415, %v420
    %v426 = vld [vmem:[%s14] sm:$0xff]
    %v427 = vld [vmem:[%s14 + $0x8] sm:$0xff]
    %v428 = vld [vmem:[%s14 + $0x10] sm:$0xff]
    %v429 = vld [vmem:[%s14 + $0x18] sm:$0xff]
    %v430 = vld [vmem:[%s15] sm:$0x1]
    %v432 = vlaneseq
    %v433 = vshrl.u32 %v432, 7
    %v434 = vsub.s32 0, %v433
    %v435 = vrot.slane %v430, %v434
    %v438 = vsel %vm272, %v422, 0
    %v441 = vsel %vm272, %v423, 0
    %v444 = vsel %vm272, %v424, 0
    %v447 = vsel %vm272, %v425, 0
    %449 = vmatprep.subr.mxu0 0.0
    %450 = vmatpush1.msra.mxu0 %v426
    %451 = vmatprep.subr.mxu0 0.0
    %452 = vmatpush1.msra.mxu0 %v427
    %453 = vmatprep.subr.mxu0 0.0
    %454 = vmatpush1.msra.mxu0 %v428
    %455 = vmatprep.subr.mxu0 0.0
    %456 = vmatpush1.msra.mxu0 %v429
    %457 = vmatprep.subr.mxu0 0.0
    %458 = vmatpush1.msra.mxu0 0.0
    %459 = vmatprep.subr.mxu0 0.0
    %460 = vmatpush1.msra.mxu0 0.0
    %461 = vmatprep.subr.mxu0 0.0
    %462 = vmatpush1.msra.mxu0 0.0
    %463 = vmatprep.subr.mxu0 0.0
    %464 = vmatpush1.msra.mxu0 0.0
    %465 = vmatprep.subr.mxu0 0.0
    %466 = vmatpush1.msra.mxu0 0.0
    %467 = vmatprep.subr.mxu0 0.0
    %468 = vmatpush1.msra.mxu0 0.0
    %469 = vmatprep.subr.mxu0 0.0
    %470 = vmatpush1.msra.mxu0 0.0
    %471 = vmatprep.subr.mxu0 0.0
    %472 = vmatpush1.msra.mxu0 0.0
    %473 = vmatprep.subr.mxu0 0.0
    %474 = vmatpush1.msra.mxu0 0.0
    %475 = vmatprep.subr.mxu0 0.0
    %476 = vmatpush1.msra.mxu0 0.0
    %477 = vmatprep.subr.mxu0 0.0
    %478 = vmatpush1.msra.mxu0 0.0
    %479 = vmatprep.subr.mxu0 0.0
    %480 = vmatpush1.msra.mxu0 0.0
    %481 = vmatprep.subr.mxu0 0.0
    %482 = vmatpush1.msra.mxu0 0.0
    %483 = vmatprep.subr.mxu0 0.0
    %484 = vmatpush1.msra.mxu0 0.0
    %485 = vmatprep.subr.mxu0 0.0
    %486 = vmatpush1.msra.mxu0 0.0
    %487 = vmatprep.subr.mxu0 0.0
    %488 = vmatpush1.msra.mxu0 0.0
    %489 = vmatprep.subr.mxu0 0.0
    %490 = vmatpush1.msra.mxu0 0.0
    %491 = vmatprep.subr.mxu0 0.0
    %492 = vmatpush1.msra.mxu0 0.0
    %493 = vmatprep.subr.mxu0 0.0
    %494 = vmatpush1.msra.mxu0 0.0
    %495 = vmatprep.subr.mxu0 0.0
    %496 = vmatpush1.msra.mxu0 0.0
    %497 = vmatprep.subr.mxu0 0.0
    %498 = vmatpush1.msra.mxu0 0.0
    %499 = vmatprep.subr.mxu0 0.0
    %500 = vmatpush1.msra.mxu0 0.0
    %501 = vmatprep.subr.mxu0 0.0
    %502 = vmatpush1.msra.mxu0 0.0
    %503 = vmatprep.subr.mxu0 0.0
    %504 = vmatpush1.msra.mxu0 0.0
    %505 = vmatprep.subr.mxu0 0.0
    %506 = vmatpush1.msra.mxu0 0.0
    %507 = vmatprep.subr.mxu0 0.0
    %508 = vmatpush1.msra.mxu0 0.0
    %509 = vmatprep.subr.mxu0 0.0
    %510 = vmatpush1.msra.mxu0 0.0
    %511 = vmatprep.subr.mxu0 0.0
    %512 = vmatpush1.msra.mxu0 0.0
    %513 = vmatprep.mubr.f32.mxu0 0.0
    %514 = vmatmul.mubr.f32.gmra.mrb[0].mxu0 %v438
    %v515 = vpop.f32.mrb[0].mxu0
    %v516 = vadd.f32 %v435, %v515
    %v517 = vpop.f32.mrb[0].mxu0
    %518 = vmatprep.mubr.f32.mxu0 0.0
    %519 = vmatmul.mubr.f32.gmra.mrb[0].mxu0 %v441
    %v520 = vpop.f32.mrb[0].mxu0
    %v521 = vadd.f32 %v435, %v520
    %v522 = vpop.f32.mrb[0].mxu0
    %523 = vmatprep.mubr.f32.mxu0 0.0
    %524 = vmatmul.mubr.f32.gmra.mrb[0].mxu0 %v444
    %v525 = vpop.f32.mrb[0].mxu0
    %v526 = vadd.f32 %v435, %v525
    %v527 = vpop.f32.mrb[0].mxu0
    %528 = vmatprep.mubr.f32.mxu0 0.0
    %529 = vmatmul.mubr.f32.gmra.mrb[0].mxu0 %v447
    %v530 = vpop.f32.mrb[0].mxu0
    %v531 = vadd.f32 %v435, %v530
    %v532 = vpop.f32.mrb[0].mxu0
    %533 = vdwg.mxu0
    %538 = vrot.lane.b32.xlu0 %v516, 120
    %v539 = vpop.permute.xlu0 %538
    %540 = vrot.lane.b32.xlu0 %v521, 120
    %v541 = vpop.permute.xlu0 %540
    %542 = vrot.lane.b32.xlu0 %v526, 120
    %v543 = vpop.permute.xlu0 %542
    %544 = vrot.lane.b32.xlu0 %v531, 120
    %v545 = vpop.permute.xlu0 %544
    %546 = vrot.lane.b32.xlu0 %v516, 112
    %v547 = vpop.permute.xlu0 %546
    %548 = vrot.lane.b32.xlu0 %v521, 112
    %v549 = vpop.permute.xlu0 %548
    %550 = vrot.lane.b32.xlu0 %v526, 112
    %v551 = vpop.permute.xlu0 %550
    %552 = vrot.lane.b32.xlu0 %v531, 112
    %v553 = vpop.permute.xlu0 %552
    %554 = vrot.lane.b32.xlu0 %v516, 104
    %v555 = vpop.permute.xlu0 %554
    %556 = vrot.lane.b32.xlu0 %v521, 104
    %v557 = vpop.permute.xlu0 %556
    %558 = vrot.lane.b32.xlu0 %v526, 104
    %v559 = vpop.permute.xlu0 %558
    %560 = vrot.lane.b32.xlu0 %v531, 104
    %v561 = vpop.permute.xlu0 %560
    %562 = vrot.lane.b32.xlu0 %v516, 96
    %v563 = vpop.permute.xlu0 %562
    %564 = vrot.lane.b32.xlu0 %v521, 96
    %v565 = vpop.permute.xlu0 %564
    %vm566 = vcmask 64512
    %v567 = vsel %vm566, %v516, 0
    %v569 = vsel %vm566, %v521, 0
    %v571 = vsel %vm566, %v563, 0
    %v573 = vsel %vm566, %v565, 0
    %575 = vmatprep.subr.mxu0 0.0
    %576 = vmatpush1.xpose.msra.mxu0 %v571
    %577 = vmatprep.subr.mxu0 0.0
    %578 = vmatpush1.xpose.msra.mxu0 %v573
    %579 = vmatprep.subr.mxu0 0.0
    %580 = vmatpush1.xpose.msra.mxu0 0.0
    %581 = vmatprep.subr.mxu0 0.0
    %582 = vmatpush1.xpose.msra.mxu0 0.0
    %583 = vmatprep.subr.mxu0 0.0
    %584 = vmatpush1.xpose.msra.mxu0 0.0
    %585 = vmatprep.subr.mxu0 0.0
    %586 = vmatpush1.xpose.msra.mxu0 0.0
    %587 = vmatprep.subr.mxu0 0.0
    %588 = vmatpush1.xpose.msra.mxu0 0.0
    %589 = vmatprep.subr.mxu0 0.0
    %590 = vmatpush1.xpose.msra.mxu0 0.0
    %591 = vmatprep.subr.mxu0 0.0
    %592 = vmatpush1.xpose.msra.mxu0 0.0
    %593 = vmatprep.subr.mxu0 0.0
    %594 = vmatpush1.xpose.msra.mxu0 0.0
    %595 = vmatprep.subr.mxu0 0.0
    %596 = vmatpush1.xpose.msra.mxu0 0.0
    %597 = vmatprep.subr.mxu0 0.0
    %598 = vmatpush1.xpose.msra.mxu0 0.0
    %599 = vmatprep.subr.mxu0 0.0
    %600 = vmatpush1.xpose.msra.mxu0 0.0
    %601 = vmatprep.subr.mxu0 0.0
    %602 = vmatpush1.xpose.msra.mxu0 0.0
    %603 = vmatprep.subr.mxu0 0.0
    %604 = vmatpush1.xpose.msra.mxu0 0.0
    %605 = vmatprep.subr.mxu0 0.0
    %606 = vmatpush1.xpose.msra.mxu0 0.0
    %607 = vmatprep.subr.mxu0 0.0
    %608 = vmatpush1.xpose.msra.mxu0 0.0
    %609 = vmatprep.subr.mxu0 0.0
    %610 = vmatpush1.xpose.msra.mxu0 0.0
    %611 = vmatprep.subr.mxu0 0.0
    %612 = vmatpush1.xpose.msra.mxu0 0.0
    %613 = vmatprep.subr.mxu0 0.0
    %614 = vmatpush1.xpose.msra.mxu0 0.0
    %615 = vmatprep.subr.mxu0 0.0
    %616 = vmatpush1.xpose.msra.mxu0 0.0
    %617 = vmatprep.subr.mxu0 0.0
    %618 = vmatpush1.xpose.msra.mxu0 0.0
    %619 = vmatprep.subr.mxu0 0.0
    %620 = vmatpush1.xpose.msra.mxu0 0.0
    %621 = vmatprep.subr.mxu0 0.0
    %622 = vmatpush1.xpose.msra.mxu0 0.0
    %623 = vmatprep.subr.mxu0 0.0
    %624 = vmatpush1.xpose.msra.mxu0 0.0
    %625 = vmatprep.subr.mxu0 0.0
    %626 = vmatpush1.xpose.msra.mxu0 0.0
    %627 = vmatprep.subr.mxu0 0.0
    %628 = vmatpush1.xpose.msra.mxu0 0.0
    %629 = vmatprep.subr.mxu0 0.0
    %630 = vmatpush1.xpose.msra.mxu0 0.0
    %631 = vmatprep.subr.mxu0 0.0
    %632 = vmatpush1.xpose.msra.mxu0 0.0
    %633 = vmatprep.subr.mxu0 0.0
    %634 = vmatpush1.xpose.msra.mxu0 0.0
    %635 = vmatprep.subr.mxu0 0.0
    %636 = vmatpush1.xpose.msra.mxu0 0.0
    %637 = vmatprep.subr.mxu0 0.0
    %638 = vmatpush1.xpose.msra.mxu0 0.0
    %639 = vmatprep.mubr.f32.mxu0 0.0
    %640 = vmatmul.mubr.f32.gmra.mrb[0].mxu0 %v567
    %v641 = vpop.f32.mrb[0].mxu0
    %v642 = vadd.f32 0.0, %v641
    %v643 = vpop.f32.mrb[0].mxu0
    %644 = vmatprep.mubr.f32.mxu0 0.0
    %645 = vmatmul.mubr.f32.gmra.mrb[0].mxu0 %v569
    %v646 = vpop.f32.mrb[0].mxu0
    %v647 = vadd.f32 0.0, %v646
    %v648 = vpop.f32.mrb[0].mxu0
    %649 = vdwg.mxu0
    %650 = vrot.lane.b32.xlu0 %v526, 96
    %v651 = vpop.permute.xlu0 %650
    %652 = vrot.lane.b32.xlu0 %v531, 96
    %v653 = vpop.permute.xlu0 %652
    %v654 = vsel %vm566, %v526, 0
    %v656 = vsel %vm566, %v531, 0
    %v658 = vsel %vm566, %v651, 0
    %v660 = vsel %vm566, %v653, 0
    %662 = vmatprep.subr.mxu0 0.0
    %663 = vmatpush1.xpose.msra.mxu0 %v658
    %664 = vmatprep.subr.mxu0 0.0
    %665 = vmatpush1.xpose.msra.mxu0 %v660
    %666 = vmatprep.subr.mxu0 0.0
    %667 = vmatpush1.xpose.msra.mxu0 0.0
    %668 = vmatprep.subr.mxu0 0.0
    %669 = vmatpush1.xpose.msra.mxu0 0.0
    %670 = vmatprep.subr.mxu0 0.0
    %671 = vmatpush1.xpose.msra.mxu0 0.0
    %672 = vmatprep.subr.mxu0 0.0
    %673 = vmatpush1.xpose.msra.mxu0 0.0
    %674 = vmatprep.subr.mxu0 0.0
    %675 = vmatpush1.xpose.msra.mxu0 0.0
    %676 = vmatprep.subr.mxu0 0.0
    %677 = vmatpush1.xpose.msra.mxu0 0.0
    %678 = vmatprep.subr.mxu0 0.0
    %679 = vmatpush1.xpose.msra.mxu0 0.0
    %680 = vmatprep.subr.mxu0 0.0
    %681 = vmatpush1.xpose.msra.mxu0 0.0
    %682 = vmatprep.subr.mxu0 0.0
    %683 = vmatpush1.xpose.msra.mxu0 0.0
    %684 = vmatprep.subr.mxu0 0.0
    %685 = vmatpush1.xpose.msra.mxu0 0.0
    %686 = vmatprep.subr.mxu0 0.0
    %687 = vmatpush1.xpose.msra.mxu0 0.0
    %688 = vmatprep.subr.mxu0 0.0
    %689 = vmatpush1.xpose.msra.mxu0 0.0
    %690 = vmatprep.subr.mxu0 0.0
    %691 = vmatpush1.xpose.msra.mxu0 0.0
    %692 = vmatprep.subr.mxu0 0.0
    %693 = vmatpush1.xpose.msra.mxu0 0.0
    %694 = vmatprep.subr.mxu0 0.0
    %695 = vmatpush1.xpose.msra.mxu0 0.0
    %696 = vmatprep.subr.mxu0 0.0
    %697 = vmatpush1.xpose.msra.mxu0 0.0
    %698 = vmatprep.subr.mxu0 0.0
    %699 = vmatpush1.xpose.msra.mxu0 0.0
    %700 = vmatprep.subr.mxu0 0.0
    %701 = vmatpush1.xpose.msra.mxu0 0.0
    %702 = vmatprep.subr.mxu0 0.0
    %703 = vmatpush1.xpose.msra.mxu0 0.0
    %704 = vmatprep.subr.mxu0 0.0
    %705 = vmatpush1.xpose.msra.mxu0 0.0
    %706 = vmatprep.subr.mxu0 0.0
    %707 = vmatpush1.xpose.msra.mxu0 0.0
    %708 = vmatprep.subr.mxu0 0.0
    %709 = vmatpush1.xpose.msra.mxu0 0.0
    %710 = vmatprep.subr.mxu0 0.0
    %711 = vmatpush1.xpose.msra.mxu0 0.0
    %712 = vmatprep.subr.mxu0 0.0
    %713 = vmatpush1.xpose.msra.mxu0 0.0
    %714 = vmatprep.subr.mxu0 0.0
    %715 = vmatpush1.xpose.msra.mxu0 0.0
    %716 = vmatprep.subr.mxu0 0.0
    %717 = vmatpush1.xpose.msra.mxu0 0.0
    %718 = vmatprep.subr.mxu0 0.0
    %719 = vmatpush1.xpose.msra.mxu0 0.0
    %720 = vmatprep.subr.mxu0 0.0
    %721 = vmatpush1.xpose.msra.mxu0 0.0
    %722 = vmatprep.subr.mxu0 0.0
    %723 = vmatpush1.xpose.msra.mxu0 0.0
    %724 = vmatprep.subr.mxu0 0.0
    %725 = vmatpush1.xpose.msra.mxu0 0.0
    %726 = vmatprep.mubr.f32.mxu0 0.0
    %727 = vmatmul.mubr.f32.gmra.mrb[0].mxu0 %v654
    %v728 = vpop.f32.mrb[0].mxu0
    %v729 = vadd.f32 0.0, %v728
    %v730 = vpop.f32.mrb[0].mxu0
    %731 = vmatprep.mubr.f32.mxu0 0.0
    %732 = vmatmul.mubr.f32.gmra.mrb[0].mxu0 %v656
    %v733 = vpop.f32.mrb[0].mxu0
    %v734 = vadd.f32 0.0, %v733
    %v735 = vpop.f32.mrb[0].mxu0
    %736 = vdwg.mxu0
    %737 = vrot.lane.b32.xlu0 %v539, 96
    %v738 = vpop.permute.xlu0 %737
    %739 = vrot.lane.b32.xlu0 %v541, 96
    %v740 = vpop.permute.xlu0 %739
    %v741 = vsel %vm566, %v539, 0
    %v743 = vsel %vm566, %v541, 0
    %v745 = vsel %vm566, %v738, 0
    %v747 = vsel %vm566, %v740, 0
    %749 = vmatprep.subr.mxu0 0.0
    %750 = vmatpush1.xpose.msra.mxu0 %v745
    %751 = vmatprep.subr.mxu0 0.0
    %752 = vmatpush1.xpose.msra.mxu0 %v747
    %753 = vmatprep.subr.mxu0 0.0
    %754 = vmatpush1.xpose.msra.mxu0 0.0
    %755 = vmatprep.subr.mxu0 0.0
    %756 = vmatpush1.xpose.msra.mxu0 0.0
    %757 = vmatprep.subr.mxu0 0.0
    %758 = vmatpush1.xpose.msra.mxu0 0.0
    %759 = vmatprep.subr.mxu0 0.0
    %760 = vmatpush1.xpose.msra.mxu0 0.0
    %761 = vmatprep.subr.mxu0 0.0
    %762 = vmatpush1.xpose.msra.mxu0 0.0
    %763 = vmatprep.subr.mxu0 0.0
    %764 = vmatpush1.xpose.msra.mxu0 0.0
    %765 = vmatprep.subr.mxu0 0.0
    %766 = vmatpush1.xpose.msra.mxu0 0.0
    %767 = vmatprep.subr.mxu0 0.0
    %768 = vmatpush1.xpose.msra.mxu0 0.0
    %769 = vmatprep.subr.mxu0 0.0
    %770 = vmatpush1.xpose.msra.mxu0 0.0
    %771 = vmatprep.subr.mxu0 0.0
    %772 = vmatpush1.xpose.msra.mxu0 0.0
    %773 = vmatprep.subr.mxu0 0.0
    %774 = vmatpush1.xpose.msra.mxu0 0.0
    %775 = vmatprep.subr.mxu0 0.0
    %776 = vmatpush1.xpose.msra.mxu0 0.0
    %777 = vmatprep.subr.mxu0 0.0
    %778 = vmatpush1.xpose.msra.mxu0 0.0
    %779 = vmatprep.subr.mxu0 0.0
    %780 = vmatpush1.xpose.msra.mxu0 0.0
    %781 = vmatprep.subr.mxu0 0.0
    %782 = vmatpush1.xpose.msra.mxu0 0.0
    %783 = vmatprep.subr.mxu0 0.0
    %784 = vmatpush1.xpose.msra.mxu0 0.0
    %785 = vmatprep.subr.mxu0 0.0
    %786 = vmatpush1.xpose.msra.mxu0 0.0
    %787 = vmatprep.subr.mxu0 0.0
    %788 = vmatpush1.xpose.msra.mxu0 0.0
    %789 = vmatprep.subr.mxu0 0.0
    %790 = vmatpush1.xpose.msra.mxu0 0.0
    %791 = vmatprep.subr.mxu0 0.0
    %792 = vmatpush1.xpose.msra.mxu0 0.0
    %793 = vmatprep.subr.mxu0 0.0
    %794 = vmatpush1.xpose.msra.mxu0 0.0
    %795 = vmatprep.subr.mxu0 0.0
    %796 = vmatpush1.xpose.msra.mxu0 0.0
    %797 = vmatprep.subr.mxu0 0.0
    %798 = vmatpush1.xpose.msra.mxu0 0.0
    %799 = vmatprep.subr.mxu0 0.0
    %800 = vmatpush1.xpose.msra.mxu0 0.0
    %801 = vmatprep.subr.mxu0 0.0
    %802 = vmatpush1.xpose.msra.mxu0 0.0
    %803 = vmatprep.subr.mxu0 0.0
    %804 = vmatpush1.xpose.msra.mxu0 0.0
    %805 = vmatprep.subr.mxu0 0.0
    %806 = vmatpush1.xpose.msra.mxu0 0.0
    %807 = vmatprep.subr.mxu0 0.0
    %808 = vmatpush1.xpose.msra.mxu0 0.0
    %809 = vmatprep.subr.mxu0 0.0
    %810 = vmatpush1.xpose.msra.mxu0 0.0
    %811 = vmatprep.subr.mxu0 0.0
    %812 = vmatpush1.xpose.msra.mxu0 0.0
    %813 = vmatprep.mubr.f32.mxu0 0.0
    %814 = vmatmul.mubr.f32.gmra.mrb[0].mxu0 %v741
    %v815 = vpop.f32.mrb[0].mxu0
    %v816 = vadd.f32 0.0, %v815
    %v817 = vpop.f32.mrb[0].mxu0
    %818 = vmatprep.mubr.f32.mxu0 0.0
    %819 = vmatmul.mubr.f32.gmra.mrb[0].mxu0 %v743
    %v820 = vpop.f32.mrb[0].mxu0
    %v821 = vadd.f32 0.0, %v820
    %v822 = vpop.f32.mrb[0].mxu0
    %823 = vdwg.mxu0
    %824 = vrot.lane.b32.xlu0 %v543, 96
    %v825 = vpop.permute.xlu0 %824
    %826 = vrot.lane.b32.xlu0 %v545, 96
    %v827 = vpop.permute.xlu0 %826
    %v828 = vsel %vm566, %v543, 0
    %v830 = vsel %vm566, %v545, 0
    %v832 = vsel %vm566, %v825, 0
    %v834 = vsel %vm566, %v827, 0
    %836 = vmatprep.subr.mxu0 0.0
    %837 = vmatpush1.xpose.msra.mxu0 %v832
    %838 = vmatprep.subr.mxu0 0.0
    %839 = vmatpush1.xpose.msra.mxu0 %v834
    %840 = vmatprep.subr.mxu0 0.0
    %841 = vmatpush1.xpose.msra.mxu0 0.0
    %842 = vmatprep.subr.mxu0 0.0
    %843 = vmatpush1.xpose.msra.mxu0 0.0
    %844 = vmatprep.subr.mxu0 0.0
    %845 = vmatpush1.xpose.msra.mxu0 0.0
    %846 = vmatprep.subr.mxu0 0.0
    %847 = vmatpush1.xpose.msra.mxu0 0.0
    %848 = vmatprep.subr.mxu0 0.0
    %849 = vmatpush1.xpose.msra.mxu0 0.0
    %850 = vmatprep.subr.mxu0 0.0
    %851 = vmatpush1.xpose.msra.mxu0 0.0
    %852 = vmatprep.subr.mxu0 0.0
    %853 = vmatpush1.xpose.msra.mxu0 0.0
    %854 = vmatprep.subr.mxu0 0.0
    %855 = vmatpush1.xpose.msra.mxu0 0.0
    %856 = vmatprep.subr.mxu0 0.0
    %857 = vmatpush1.xpose.msra.mxu0 0.0
    %858 = vmatprep.subr.mxu0 0.0
    %859 = vmatpush1.xpose.msra.mxu0 0.0
    %860 = vmatprep.subr.mxu0 0.0
    %861 = vmatpush1.xpose.msra.mxu0 0.0
    %862 = vmatprep.subr.mxu0 0.0
    %863 = vmatpush1.xpose.msra.mxu0 0.0
    %864 = vmatprep.subr.mxu0 0.0
    %865 = vmatpush1.xpose.msra.mxu0 0.0
    %866 = vmatprep.subr.mxu0 0.0
    %867 = vmatpush1.xpose.msra.mxu0 0.0
    %868 = vmatprep.subr.mxu0 0.0
    %869 = vmatpush1.xpose.msra.mxu0 0.0
    %870 = vmatprep.subr.mxu0 0.0
    %871 = vmatpush1.xpose.msra.mxu0 0.0
    %872 = vmatprep.subr.mxu0 0.0
    %873 = vmatpush1.xpose.msra.mxu0 0.0
    %874 = vmatprep.subr.mxu0 0.0
    %875 = vmatpush1.xpose.msra.mxu0 0.0
    %876 = vmatprep.subr.mxu0 0.0
    %877 = vmatpush1.xpose.msra.mxu0 0.0
    %878 = vmatprep.subr.mxu0 0.0
    %879 = vmatpush1.xpose.msra.mxu0 0.0
    %880 = vmatprep.subr.mxu0 0.0
    %881 = vmatpush1.xpose.msra.mxu0 0.0
    %882 = vmatprep.subr.mxu0 0.0
    %883 = vmatpush1.xpose.msra.mxu0 0.0
    %884 = vmatprep.subr.mxu0 0.0
    %885 = vmatpush1.xpose.msra.mxu0 0.0
    %886 = vmatprep.subr.mxu0 0.0
    %887 = vmatpush1.xpose.msra.mxu0 0.0
    %888 = vmatprep.subr.mxu0 0.0
    %889 = vmatpush1.xpose.msra.mxu0 0.0
    %890 = vmatprep.subr.mxu0 0.0
    %891 = vmatpush1.xpose.msra.mxu0 0.0
    %892 = vmatprep.subr.mxu0 0.0
    %893 = vmatpush1.xpose.msra.mxu0 0.0
    %894 = vmatprep.subr.mxu0 0.0
    %895 = vmatpush1.xpose.msra.mxu0 0.0
    %896 = vmatprep.subr.mxu0 0.0
    %897 = vmatpush1.xpose.msra.mxu0 0.0
    %898 = vmatprep.subr.mxu0 0.0
    %899 = vmatpush1.xpose.msra.mxu0 0.0
    %900 = vmatprep.mubr.f32.mxu0 0.0
    %901 = vmatmul.mubr.f32.gmra.mrb[0].mxu0 %v828
    %v902 = vpop.f32.mrb[0].mxu0
    %v903 = vadd.f32 0.0, %v902
    %v904 = vpop.f32.mrb[0].mxu0
    %905 = vmatprep.mubr.f32.mxu0 0.0
    %906 = vmatmul.mubr.f32.gmra.mrb[0].mxu0 %v830
    %v907 = vpop.f32.mrb[0].mxu0
    %v908 = vadd.f32 0.0, %v907
    %v909 = vpop.f32.mrb[0].mxu0
    %910 = vdwg.mxu0
    %911 = vrot.lane.b32.xlu0 %v547, 96
    %v912 = vpop.permute.xlu0 %911
    %913 = vrot.lane.b32.xlu0 %v549, 96
    %v914 = vpop.permute.xlu0 %913
    %v915 = vsel %vm566, %v547, 0
    %v917 = vsel %vm566, %v549, 0
    %v919 = vsel %vm566, %v912, 0
    %v921 = vsel %vm566, %v914, 0
    %923 = vmatprep.subr.mxu0 0.0
    %924 = vmatpush1.xpose.msra.mxu0 %v919
    %925 = vmatprep.subr.mxu0 0.0
    %926 = vmatpush1.xpose.msra.mxu0 %v921
    %927 = vmatprep.subr.mxu0 0.0
    %928 = vmatpush1.xpose.msra.mxu0 0.0
    %929 = vmatprep.subr.mxu0 0.0
    %930 = vmatpush1.xpose.msra.mxu0 0.0
    %931 = vmatprep.subr.mxu0 0.0
    %932 = vmatpush1.xpose.msra.mxu0 0.0
    %933 = vmatprep.subr.mxu0 0.0
    %934 = vmatpush1.xpose.msra.mxu0 0.0
    %935 = vmatprep.subr.mxu0 0.0
    %936 = vmatpush1.xpose.msra.mxu0 0.0
    %937 = vmatprep.subr.mxu0 0.0
    %938 = vmatpush1.xpose.msra.mxu0 0.0
    %939 = vmatprep.subr.mxu0 0.0
    %940 = vmatpush1.xpose.msra.mxu0 0.0
    %941 = vmatprep.subr.mxu0 0.0
    %942 = vmatpush1.xpose.msra.mxu0 0.0
    %943 = vmatprep.subr.mxu0 0.0
    %944 = vmatpush1.xpose.msra.mxu0 0.0
    %945 = vmatprep.subr.mxu0 0.0
    %946 = vmatpush1.xpose.msra.mxu0 0.0
    %947 = vmatprep.subr.mxu0 0.0
    %948 = vmatpush1.xpose.msra.mxu0 0.0
    %949 = vmatprep.subr.mxu0 0.0
    %950 = vmatpush1.xpose.msra.mxu0 0.0
    %951 = vmatprep.subr.mxu0 0.0
    %952 = vmatpush1.xpose.msra.mxu0 0.0
    %953 = vmatprep.subr.mxu0 0.0
    %954 = vmatpush1.xpose.msra.mxu0 0.0
    %955 = vmatprep.subr.mxu0 0.0
    %956 = vmatpush1.xpose.msra.mxu0 0.0
    %957 = vmatprep.subr.mxu0 0.0
    %958 = vmatpush1.xpose.msra.mxu0 0.0
    %959 = vmatprep.subr.mxu0 0.0
    %960 = vmatpush1.xpose.msra.mxu0 0.0
    %961 = vmatprep.subr.mxu0 0.0
    %962 = vmatpush1.xpose.msra.mxu0 0.0
    %963 = vmatprep.subr.mxu0 0.0
    %964 = vmatpush1.xpose.msra.mxu0 0.0
    %965 = vmatprep.subr.mxu0 0.0
    %966 = vmatpush1.xpose.msra.mxu0 0.0
    %967 = vmatprep.subr.mxu0 0.0
    %968 = vmatpush1.xpose.msra.mxu0 0.0
    %969 = vmatprep.subr.mxu0 0.0
    %970 = vmatpush1.xpose.msra.mxu0 0.0
    %971 = vmatprep.subr.mxu0 0.0
    %972 = vmatpush1.xpose.msra.mxu0 0.0
    %973 = vmatprep.subr.mxu0 0.0
    %974 = vmatpush1.xpose.msra.mxu0 0.0
    %975 = vmatprep.subr.mxu0 0.0
    %976 = vmatpush1.xpose.msra.mxu0 0.0
    %977 = vmatprep.subr.mxu0 0.0
    %978 = vmatpush1.xpose.msra.mxu0 0.0
    %979 = vmatprep.subr.mxu0 0.0
    %980 = vmatpush1.xpose.msra.mxu0 0.0
    %981 = vmatprep.subr.mxu0 0.0
    %982 = vmatpush1.xpose.msra.mxu0 0.0
    %983 = vmatprep.subr.mxu0 0.0
    %984 = vmatpush1.xpose.msra.mxu0 0.0
    %985 = vmatprep.subr.mxu0 0.0
    %986 = vmatpush1.xpose.msra.mxu0 0.0
    %987 = vmatprep.mubr.f32.mxu0 0.0
    %988 = vmatmul.mubr.f32.gmra.mrb[0].mxu0 %v915
    %v989 = vpop.f32.mrb[0].mxu0
    %v990 = vadd.f32 0.0, %v989
    %v991 = vpop.f32.mrb[0].mxu0
    %992 = vmatprep.mubr.f32.mxu0 0.0
    %993 = vmatmul.mubr.f32.gmra.mrb[0].mxu0 %v917
    %v994 = vpop.f32.mrb[0].mxu0
    %v995 = vadd.f32 0.0, %v994
    %v996 = vpop.f32.mrb[0].mxu0
    %997 = vdwg.mxu0
    %998 = vrot.lane.b32.xlu0 %v551, 96
    %v999 = vpop.permute.xlu0 %998
    %1000 = vrot.lane.b32.xlu0 %v553, 96
    %v1001 = vpop.permute.xlu0 %1000
    %v1002 = vsel %vm566, %v551, 0
    %v1004 = vsel %vm566, %v553, 0
    %v1006 = vsel %vm566, %v999, 0
    %v1008 = vsel %vm566, %v1001, 0
    %1010 = vmatprep.subr.mxu0 0.0
    %1011 = vmatpush1.xpose.msra.mxu0 %v1006
    %1012 = vmatprep.subr.mxu0 0.0
    %1013 = vmatpush1.xpose.msra.mxu0 %v1008
    %1014 = vmatprep.subr.mxu0 0.0
    %1015 = vmatpush1.xpose.msra.mxu0 0.0
    %1016 = vmatprep.subr.mxu0 0.0
    %1017 = vmatpush1.xpose.msra.mxu0 0.0
    %1018 = vmatprep.subr.mxu0 0.0
    %1019 = vmatpush1.xpose.msra.mxu0 0.0
    %1020 = vmatprep.subr.mxu0 0.0
    %1021 = vmatpush1.xpose.msra.mxu0 0.0
    %1022 = vmatprep.subr.mxu0 0.0
    %1023 = vmatpush1.xpose.msra.mxu0 0.0
    %1024 = vmatprep.subr.mxu0 0.0
    %1025 = vmatpush1.xpose.msra.mxu0 0.0
    %1026 = vmatprep.subr.mxu0 0.0
    %1027 = vmatpush1.xpose.msra.mxu0 0.0
    %1028 = vmatprep.subr.mxu0 0.0
    %1029 = vmatpush1.xpose.msra.mxu0 0.0
    %1030 = vmatprep.subr.mxu0 0.0
    %1031 = vmatpush1.xpose.msra.mxu0 0.0
    %1032 = vmatprep.subr.mxu0 0.0
    %1033 = vmatpush1.xpose.msra.mxu0 0.0
    %1034 = vmatprep.subr.mxu0 0.0
    %1035 = vmatpush1.xpose.msra.mxu0 0.0
    %1036 = vmatprep.subr.mxu0 0.0
    %1037 = vmatpush1.xpose.msra.mxu0 0.0
    %1038 = vmatprep.subr.mxu0 0.0
    %1039 = vmatpush1.xpose.msra.mxu0 0.0
    %1040 = vmatprep.subr.mxu0 0.0
    %1041 = vmatpush1.xpose.msra.mxu0 0.0
    %1042 = vmatprep.subr.mxu0 0.0
    %1043 = vmatpush1.xpose.msra.mxu0 0.0
    %1044 = vmatprep.subr.mxu0 0.0
    %1045 = vmatpush1.xpose.msra.mxu0 0.0
    %1046 = vmatprep.subr.mxu0 0.0
    %1047 = vmatpush1.xpose.msra.mxu0 0.0
    %1048 = vmatprep.subr.mxu0 0.0
    %1049 = vmatpush1.xpose.msra.mxu0 0.0
    %1050 = vmatprep.subr.mxu0 0.0
    %1051 = vmatpush1.xpose.msra.mxu0 0.0
    %1052 = vmatprep.subr.mxu0 0.0
    %1053 = vmatpush1.xpose.msra.mxu0 0.0
    %1054 = vmatprep.subr.mxu0 0.0
    %1055 = vmatpush1.xpose.msra.mxu0 0.0
    %1056 = vmatprep.subr.mxu0 0.0
    %1057 = vmatpush1.xpose.msra.mxu0 0.0
    %1058 = vmatprep.subr.mxu0 0.0
    %1059 = vmatpush1.xpose.msra.mxu0 0.0
    %1060 = vmatprep.subr.mxu0 0.0
    %1061 = vmatpush1.xpose.msra.mxu0 0.0
    %1062 = vmatprep.subr.mxu0 0.0
    %1063 = vmatpush1.xpose.msra.mxu0 0.0
    %1064 = vmatprep.subr.mxu0 0.0
    %1065 = vmatpush1.xpose.msra.mxu0 0.0
    %1066 = vmatprep.subr.mxu0 0.0
    %1067 = vmatpush1.xpose.msra.mxu0 0.0
    %1068 = vmatprep.subr.mxu0 0.0
    %1069 = vmatpush1.xpose.msra.mxu0 0.0
    %1070 = vmatprep.subr.mxu0 0.0
    %1071 = vmatpush1.xpose.msra.mxu0 0.0
    %1072 = vmatprep.subr.mxu0 0.0
    %1073 = vmatpush1.xpose.msra.mxu0 0.0
    %1074 = vmatprep.mubr.f32.mxu0 0.0
    %1075 = vmatmul.mubr.f32.gmra.mrb[0].mxu0 %v1002
    %v1076 = vpop.f32.mrb[0].mxu0
    %v1077 = vadd.f32 0.0, %v1076
    %v1078 = vpop.f32.mrb[0].mxu0
    %1079 = vmatprep.mubr.f32.mxu0 0.0
    %1080 = vmatmul.mubr.f32.gmra.mrb[0].mxu0 %v1004
    %v1081 = vpop.f32.mrb[0].mxu0
    %v1082 = vadd.f32 0.0, %v1081
    %v1083 = vpop.f32.mrb[0].mxu0
    %1084 = vdwg.mxu0
    %1085 = vrot.lane.b32.xlu0 %v555, 96
    %v1086 = vpop.permute.xlu0 %1085
    %1087 = vrot.lane.b32.xlu0 %v557, 96
    %v1088 = vpop.permute.xlu0 %1087
    %v1089 = vsel %vm566, %v555, 0
    %v1091 = vsel %vm566, %v557, 0
    %v1093 = vsel %vm566, %v1086, 0
    %v1095 = vsel %vm566, %v1088, 0
    %1097 = vmatprep.subr.mxu0 0.0
    %1098 = vmatpush1.xpose.msra.mxu0 %v1093
    %1099 = vmatprep.subr.mxu0 0.0
    %1100 = vmatpush1.xpose.msra.mxu0 %v1095
    %1101 = vmatprep.subr.mxu0 0.0
    %1102 = vmatpush1.xpose.msra.mxu0 0.0
    %1103 = vmatprep.subr.mxu0 0.0
    %1104 = vmatpush1.xpose.msra.mxu0 0.0
    %1105 = vmatprep.subr.mxu0 0.0
    %1106 = vmatpush1.xpose.msra.mxu0 0.0
    %1107 = vmatprep.subr.mxu0 0.0
    %1108 = vmatpush1.xpose.msra.mxu0 0.0
    %1109 = vmatprep.subr.mxu0 0.0
    %1110 = vmatpush1.xpose.msra.mxu0 0.0
    %1111 = vmatprep.subr.mxu0 0.0
    %1112 = vmatpush1.xpose.msra.mxu0 0.0
    %1113 = vmatprep.subr.mxu0 0.0
    %1114 = vmatpush1.xpose.msra.mxu0 0.0
    %1115 = vmatprep.subr.mxu0 0.0
    %1116 = vmatpush1.xpose.msra.mxu0 0.0
    %1117 = vmatprep.subr.mxu0 0.0
    %1118 = vmatpush1.xpose.msra.mxu0 0.0
    %1119 = vmatprep.subr.mxu0 0.0
    %1120 = vmatpush1.xpose.msra.mxu0 0.0
    %1121 = vmatprep.subr.mxu0 0.0
    %1122 = vmatpush1.xpose.msra.mxu0 0.0
    %1123 = vmatprep.subr.mxu0 0.0
    %1124 = vmatpush1.xpose.msra.mxu0 0.0
    %1125 = vmatprep.subr.mxu0 0.0
    %1126 = vmatpush1.xpose.msra.mxu0 0.0
    %1127 = vmatprep.subr.mxu0 0.0
    %1128 = vmatpush1.xpose.msra.mxu0 0.0
    %1129 = vmatprep.subr.mxu0 0.0
    %1130 = vmatpush1.xpose.msra.mxu0 0.0
    %1131 = vmatprep.subr.mxu0 0.0
    %1132 = vmatpush1.xpose.msra.mxu0 0.0
    %1133 = vmatprep.subr.mxu0 0.0
    %1134 = vmatpush1.xpose.msra.mxu0 0.0
    %1135 = vmatprep.subr.mxu0 0.0
    %1136 = vmatpush1.xpose.msra.mxu0 0.0
    %1137 = vmatprep.subr.mxu0 0.0
    %1138 = vmatpush1.xpose.msra.mxu0 0.0
    %1139 = vmatprep.subr.mxu0 0.0
    %1140 = vmatpush1.xpose.msra.mxu0 0.0
    %1141 = vmatprep.subr.mxu0 0.0
    %1142 = vmatpush1.xpose.msra.mxu0 0.0
    %1143 = vmatprep.subr.mxu0 0.0
    %1144 = vmatpush1.xpose.msra.mxu0 0.0
    %1145 = vmatprep.subr.mxu0 0.0
    %1146 = vmatpush1.xpose.msra.mxu0 0.0
    %1147 = vmatprep.subr.mxu0 0.0
    %1148 = vmatpush1.xpose.msra.mxu0 0.0
    %1149 = vmatprep.subr.mxu0 0.0
    %1150 = vmatpush1.xpose.msra.mxu0 0.0
    %1151 = vmatprep.subr.mxu0 0.0
    %1152 = vmatpush1.xpose.msra.mxu0 0.0
    %1153 = vmatprep.subr.mxu0 0.0
    %1154 = vmatpush1.xpose.msra.mxu0 0.0
    %1155 = vmatprep.subr.mxu0 0.0
    %1156 = vmatpush1.xpose.msra.mxu0 0.0
    %1157 = vmatprep.subr.mxu0 0.0
    %1158 = vmatpush1.xpose.msra.mxu0 0.0
    %1159 = vmatprep.subr.mxu0 0.0
    %1160 = vmatpush1.xpose.msra.mxu0 0.0
    %1161 = vmatprep.mubr.f32.mxu0 0.0
    %1162 = vmatmul.mubr.f32.gmra.mrb[0].mxu0 %v1089
    %v1163 = vpop.f32.mrb[0].mxu0
    %v1164 = vadd.f32 0.0, %v1163
    %v1165 = vpop.f32.mrb[0].mxu0
    %1166 = vmatprep.mubr.f32.mxu0 0.0
    %1167 = vmatmul.mubr.f32.gmra.mrb[0].mxu0 %v1091
    %v1168 = vpop.f32.mrb[0].mxu0
    %v1169 = vadd.f32 0.0, %v1168
    %v1170 = vpop.f32.mrb[0].mxu0
    %1171 = vdwg.mxu0
    %1172 = vrot.lane.b32.xlu0 %v559, 96
    %v1173 = vpop.permute.xlu0 %1172
    %1174 = vrot.lane.b32.xlu0 %v561, 96
    %v1175 = vpop.permute.xlu0 %1174
    %v1176 = vsel %vm566, %v559, 0
    %v1178 = vsel %vm566, %v561, 0
    %v1180 = vsel %vm566, %v1173, 0
    %v1182 = vsel %vm566, %v1175, 0
    %1184 = vmatprep.subr.mxu0 0.0
    %1185 = vmatpush1.xpose.msra.mxu0 %v1180
    %1186 = vmatprep.subr.mxu0 0.0
    %1187 = vmatpush1.xpose.msra.mxu0 %v1182
    %1188 = vmatprep.subr.mxu0 0.0
    %1189 = vmatpush1.xpose.msra.mxu0 0.0
    %1190 = vmatprep.subr.mxu0 0.0
    %1191 = vmatpush1.xpose.msra.mxu0 0.0
    %1192 = vmatprep.subr.mxu0 0.0
    %1193 = vmatpush1.xpose.msra.mxu0 0.0
    %1194 = vmatprep.subr.mxu0 0.0
    %1195 = vmatpush1.xpose.msra.mxu0 0.0
    %1196 = vmatprep.subr.mxu0 0.0
    %1197 = vmatpush1.xpose.msra.mxu0 0.0
    %1198 = vmatprep.subr.mxu0 0.0
    %1199 = vmatpush1.xpose.msra.mxu0 0.0
    %1200 = vmatprep.subr.mxu0 0.0
    %1201 = vmatpush1.xpose.msra.mxu0 0.0
    %1202 = vmatprep.subr.mxu0 0.0
    %1203 = vmatpush1.xpose.msra.mxu0 0.0
    %1204 = vmatprep.subr.mxu0 0.0
    %1205 = vmatpush1.xpose.msra.mxu0 0.0
    %1206 = vmatprep.subr.mxu0 0.0
    %1207 = vmatpush1.xpose.msra.mxu0 0.0
    %1208 = vmatprep.subr.mxu0 0.0
    %1209 = vmatpush1.xpose.msra.mxu0 0.0
    %1210 = vmatprep.subr.mxu0 0.0
    %1211 = vmatpush1.xpose.msra.mxu0 0.0
    %1212 = vmatprep.subr.mxu0 0.0
    %1213 = vmatpush1.xpose.msra.mxu0 0.0
    %1214 = vmatprep.subr.mxu0 0.0
    %1215 = vmatpush1.xpose.msra.mxu0 0.0
    %1216 = vmatprep.subr.mxu0 0.0
    %1217 = vmatpush1.xpose.msra.mxu0 0.0
    %1218 = vmatprep.subr.mxu0 0.0
    %1219 = vmatpush1.xpose.msra.mxu0 0.0
    %1220 = vmatprep.subr.mxu0 0.0
    %1221 = vmatpush1.xpose.msra.mxu0 0.0
    %1222 = vmatprep.subr.mxu0 0.0
    %1223 = vmatpush1.xpose.msra.mxu0 0.0
    %1224 = vmatprep.subr.mxu0 0.0
    %1225 = vmatpush1.xpose.msra.mxu0 0.0
    %1226 = vmatprep.subr.mxu0 0.0
    %1227 = vmatpush1.xpose.msra.mxu0 0.0
    %1228 = vmatprep.subr.mxu0 0.0
    %1229 = vmatpush1.xpose.msra.mxu0 0.0
    %1230 = vmatprep.subr.mxu0 0.0
    %1231 = vmatpush1.xpose.msra.mxu0 0.0
    %1232 = vmatprep.subr.mxu0 0.0
    %1233 = vmatpush1.xpose.msra.mxu0 0.0
    %1234 = vmatprep.subr.mxu0 0.0
    %1235 = vmatpush1.xpose.msra.mxu0 0.0
    %1236 = vmatprep.subr.mxu0 0.0
    %1237 = vmatpush1.xpose.msra.mxu0 0.0
    %1238 = vmatprep.subr.mxu0 0.0
    %1239 = vmatpush1.xpose.msra.mxu0 0.0
    %1240 = vmatprep.subr.mxu0 0.0
    %1241 = vmatpush1.xpose.msra.mxu0 0.0
    %1242 = vmatprep.subr.mxu0 0.0
    %1243 = vmatpush1.xpose.msra.mxu0 0.0
    %1244 = vmatprep.subr.mxu0 0.0
    %1245 = vmatpush1.xpose.msra.mxu0 0.0
    %1246 = vmatprep.subr.mxu0 0.0
    %1247 = vmatpush1.xpose.msra.mxu0 0.0
    %1248 = vmatprep.mubr.f32.mxu0 0.0
    %1249 = vmatmul.mubr.f32.gmra.mrb[0].mxu0 %v1176
    %v1250 = vpop.f32.mrb[0].mxu0
    %v1251 = vadd.f32 0.0, %v1250
    %v1252 = vpop.f32.mrb[0].mxu0
    %1253 = vmatprep.mubr.f32.mxu0 0.0
    %1254 = vmatmul.mubr.f32.gmra.mrb[0].mxu0 %v1178
    %v1255 = vpop.f32.mrb[0].mxu0
    %v1256 = vadd.f32 0.0, %v1255
    %v1257 = vpop.f32.mrb[0].mxu0
    %1258 = vdwg.mxu0
    %v1259 = vmul.f32 %v642, 0.35355338
    %v1260 = vmul.f32 %v647, 0.35355338
    %v1261 = vmul.f32 %v729, 0.35355338
    %v1262 = vmul.f32 %v734, 0.35355338
    %v1263 = vmul.f32 %v816, 0.35355338
    %v1264 = vmul.f32 %v821, 0.35355338
    %v1265 = vmul.f32 %v903, 0.35355338
    %v1266 = vmul.f32 %v908, 0.35355338
    %v1267 = vmul.f32 %v990, 0.35355338
    %v1268 = vmul.f32 %v995, 0.35355338
    %v1269 = vmul.f32 %v1077, 0.35355338
    %v1270 = vmul.f32 %v1082, 0.35355338
    %v1271 = vmul.f32 %v1164, 0.35355338
    %v1272 = vmul.f32 %v1169, 0.35355338
    %v1273 = vmul.f32 %v1251, 0.35355338
    %v1274 = vmul.f32 %v1256, 0.35355338
    %vm1275 = vcmask 130048
    %v1276 = vsel %vm1275, %v1259, -inf
    %1277 = vmax.xlane.f32.xlu0 %v1276
    %v1278 = vpop.xlane.xlu0 %1277
    %v1279 = vsel %vm1275, %v1260, -inf
    %1280 = vmax.xlane.f32.xlu0 %v1279
    %v1281 = vpop.xlane.xlu0 %1280
    %v1282 = vsel %vm1275, %v1261, -inf
    %1283 = vmax.xlane.f32.xlu0 %v1282
    %v1284 = vpop.xlane.xlu0 %1283
    %v1285 = vsel %vm1275, %v1262, -inf
    %1286 = vmax.xlane.f32.xlu0 %v1285
    %v1287 = vpop.xlane.xlu0 %1286
    %v1288 = vsel %vm1275, %v1263, -inf
    %1289 = vmax.xlane.f32.xlu0 %v1288
    %v1290 = vpop.xlane.xlu0 %1289
    %v1291 = vsel %vm1275, %v1264, -inf
    %1292 = vmax.xlane.f32.xlu0 %v1291
    %v1293 = vpop.xlane.xlu0 %1292
    %v1294 = vsel %vm1275, %v1265, -inf
    %1295 = vmax.xlane.f32.xlu0 %v1294
    %v1296 = vpop.xlane.xlu0 %1295
    %v1297 = vsel %vm1275, %v1266, -inf
    %1298 = vmax.xlane.f32.xlu0 %v1297
    %v1299 = vpop.xlane.xlu0 %1298
    %v1300 = vsel %vm1275, %v1267, -inf
    %1301 = vmax.xlane.f32.xlu0 %v1300
    %v1302 = vpop.xlane.xlu0 %1301
    %v1303 = vsel %vm1275, %v1268, -inf
    %1304 = vmax.xlane.f32.xlu0 %v1303
    %v1305 = vpop.xlane.xlu0 %1304
    %v1306 = vsel %vm1275, %v1269, -inf
    %1307 = vmax.xlane.f32.xlu0 %v1306
    %v1308 = vpop.xlane.xlu0 %1307
    %v1309 = vsel %vm1275, %v1270, -inf
    %1310 = vmax.xlane.f32.xlu0 %v1309
    %v1311 = vpop.xlane.xlu0 %1310
    %v1312 = vsel %vm1275, %v1271, -inf
    %1313 = vmax.xlane.f32.xlu0 %v1312
    %v1314 = vpop.xlane.xlu0 %1313
    %v1315 = vsel %vm1275, %v1272, -inf
    %1316 = vmax.xlane.f32.xlu0 %v1315
    %v1317 = vpop.xlane.xlu0 %1316
    %v1318 = vsel %vm1275, %v1273, -inf
    %1319 = vmax.xlane.f32.xlu0 %v1318
    %v1320 = vpop.xlane.xlu0 %1319
    %v1321 = vsel %vm1275, %v1274, -inf
    %1322 = vmax.xlane.f32.xlu0 %v1321
    %v1323 = vpop.xlane.xlu0 %1322
    %v1324 = vsub.f32 %v1259, %v1278
    %v1325 = vsub.f32 %v1260, %v1281
    %v1326 = vsub.f32 %v1261, %v1284
    %v1327 = vsub.f32 %v1262, %v1287
    %v1328 = vsub.f32 %v1263, %v1290
    %v1329 = vsub.f32 %v1264, %v1293
    %v1330 = vsub.f32 %v1265, %v1296
    %v1331 = vsub.f32 %v1266, %v1299
    %v1332 = vsub.f32 %v1267, %v1302
    %v1333 = vsub.f32 %v1268, %v1305
    %v1334 = vsub.f32 %v1269, %v1308
    %v1335 = vsub.f32 %v1270, %v1311
    %v1336 = vsub.f32 %v1271, %v1314
    %v1337 = vsub.f32 %v1272, %v1317
    %v1338 = vsub.f32 %v1273, %v1320
    %v1339 = vsub.f32 %v1274, %v1323
    %v1340 = vmul.f32 %v1324, 1.442695
    %v1341 = vpow.pop %v1340
    %v1342 = vmul.f32 %v1325, 1.442695
    %v1343 = vpow.pop %v1342
    %v1344 = vmul.f32 %v1326, 1.442695
    %v1345 = vpow.pop %v1344
    %v1346 = vmul.f32 %v1327, 1.442695
    %v1347 = vpow.pop %v1346
    %v1348 = vmul.f32 %v1328, 1.442695
    %v1349 = vpow.pop %v1348
    %v1350 = vmul.f32 %v1329, 1.442695
    %v1351 = vpow.pop %v1350
    %v1352 = vmul.f32 %v1330, 1.442695
    %v1353 = vpow.pop %v1352
    %v1354 = vmul.f32 %v1331, 1.442695
    %v1355 = vpow.pop %v1354
    %v1356 = vmul.f32 %v1332, 1.442695
    %v1357 = vpow.pop %v1356
    %v1358 = vmul.f32 %v1333, 1.442695
    %v1359 = vpow.pop %v1358
    %v1360 = vmul.f32 %v1334, 1.442695
    %v1361 = vpow.pop %v1360
    %v1362 = vmul.f32 %v1335, 1.442695
    %v1363 = vpow.pop %v1362
    %v1364 = vmul.f32 %v1336, 1.442695
    %v1365 = vpow.pop %v1364
    %v1366 = vmul.f32 %v1337, 1.442695
    %v1367 = vpow.pop %v1366
    %v1368 = vmul.f32 %v1338, 1.442695
    %v1369 = vpow.pop %v1368
    %v1370 = vmul.f32 %v1339, 1.442695
    %v1371 = vpow.pop %v1370
    %v1372 = vsel %vm1275, %v1341, 0.0
    %1373 = vadd.xlane.f32.xlu0 %v1372
    %v1374 = vpop.xlane.xlu0 %1373
    %v1375 = vsel %vm1275, %v1343, 0.0
    %1376 = vadd.xlane.f32.xlu0 %v1375
    %v1377 = vpop.xlane.xlu0 %1376
    %v1378 = vsel %vm1275, %v1345, 0.0
    %1379 = vadd.xlane.f32.xlu0 %v1378
    %v1380 = vpop.xlane.xlu0 %1379
    %v1381 = vsel %vm1275, %v1347, 0.0
    %1382 = vadd.xlane.f32.xlu0 %v1381
    %v1383 = vpop.xlane.xlu0 %1382
    %v1384 = vsel %vm1275, %v1349, 0.0
    %1385 = vadd.xlane.f32.xlu0 %v1384
    %v1386 = vpop.xlane.xlu0 %1385
    %v1387 = vsel %vm1275, %v1351, 0.0
    %1388 = vadd.xlane.f32.xlu0 %v1387
    %v1389 = vpop.xlane.xlu0 %1388
    %v1390 = vsel %vm1275, %v1353, 0.0
    %1391 = vadd.xlane.f32.xlu0 %v1390
    %v1392 = vpop.xlane.xlu0 %1391
    %v1393 = vsel %vm1275, %v1355, 0.0
    %1394 = vadd.xlane.f32.xlu0 %v1393
    %v1395 = vpop.xlane.xlu0 %1394
    %v1396 = vsel %vm1275, %v1357, 0.0
    %1397 = vadd.xlane.f32.xlu0 %v1396
    %v1398 = vpop.xlane.xlu0 %1397
    %v1399 = vsel %vm1275, %v1359, 0.0
    %1400 = vadd.xlane.f32.xlu0 %v1399
    %v1401 = vpop.xlane.xlu0 %1400
    %v1402 = vsel %vm1275, %v1361, 0.0
    %1403 = vadd.xlane.f32.xlu0 %v1402
    %v1404 = vpop.xlane.xlu0 %1403
    %v1405 = vsel %vm1275, %v1363, 0.0
    %1406 = vadd.xlane.f32.xlu0 %v1405
    %v1407 = vpop.xlane.xlu0 %1406
    %v1408 = vsel %vm1275, %v1365, 0.0
    %1409 = vadd.xlane.f32.xlu0 %v1408
    %v1410 = vpop.xlane.xlu0 %1409
    %v1411 = vsel %vm1275, %v1367, 0.0
    %1412 = vadd.xlane.f32.xlu0 %v1411
    %v1413 = vpop.xlane.xlu0 %1412
    %v1414 = vsel %vm1275, %v1369, 0.0
    %1415 = vadd.xlane.f32.xlu0 %v1414
    %v1416 = vpop.xlane.xlu0 %1415
    %v1417 = vsel %vm1275, %v1371, 0.0
    %1418 = vadd.xlane.f32.xlu0 %v1417
    %v1419 = vpop.xlane.xlu0 %1418
    %v1420 = vrcp.pop %v1374
    %v1421 = vrcp.pop %v1377
    %v1422 = vrcp.pop %v1380
    %v1423 = vrcp.pop %v1383
    %v1424 = vrcp.pop %v1386
    %v1425 = vrcp.pop %v1389
    %v1426 = vrcp.pop %v1392
    %v1427 = vrcp.pop %v1395
    %v1428 = vrcp.pop %v1398
    %v1429 = vrcp.pop %v1401
    %v1430 = vrcp.pop %v1404
    %v1431 = vrcp.pop %v1407
    %v1432 = vrcp.pop %v1410
    %v1433 = vrcp.pop %v1413
    %v1434 = vrcp.pop %v1416
    %v1435 = vrcp.pop %v1419
    %v1436 = vmul.f32 %v1341, %v1420
    %v1437 = vmul.f32 %v1343, %v1421
    %v1438 = vmul.f32 %v1345, %v1422
    %v1439 = vmul.f32 %v1347, %v1423
    %v1440 = vmul.f32 %v1349, %v1424
    %v1441 = vmul.f32 %v1351, %v1425
    %v1442 = vmul.f32 %v1353, %v1426
    %v1443 = vmul.f32 %v1355, %v1427
    %v1444 = vmul.f32 %v1357, %v1428
    %v1445 = vmul.f32 %v1359, %v1429
    %v1446 = vmul.f32 %v1361, %v1430
    %v1447 = vmul.f32 %v1363, %v1431
    %v1448 = vmul.f32 %v1365, %v1432
    %v1449 = vmul.f32 %v1367, %v1433
    %v1450 = vmul.f32 %v1369, %v1434
    %v1451 = vmul.f32 %v1371, %v1435
    %1452 = vrot.lane.b32.xlu0 %v516, 64
    %v1453 = vpop.permute.xlu0 %1452
    %1454 = vrot.lane.b32.xlu0 %v521, 64
    %v1455 = vpop.permute.xlu0 %1454
    %v1459 = vsel %vm1275, %v1436, 0
    %v1462 = vsel %vm1275, %v1437, 0
    %1464 = vmatprep.subr.mxu0 0.0
    %1465 = vmatpush1.msra.mxu0 %v1453
    %1466 = vmatprep.subr.mxu0 0.0
    %1467 = vmatpush1.msra.mxu0 %v1455
    %1468 = vmatprep.subr.mxu0 0.0
    %1469 = vmatpush1.msra.mxu0 0.0
    %1470 = vmatprep.subr.mxu0 0.0
    %1471 = vmatpush1.msra.mxu0 0.0
    %1472 = vmatprep.subr.mxu0 0.0
    %1473 = vmatpush1.msra.mxu0 0.0
    %1474 = vmatprep.subr.mxu0 0.0
    %1475 = vmatpush1.msra.mxu0 0.0
    %1476 = vmatprep.subr.mxu0 0.0
    %1477 = vmatpush1.msra.mxu0 0.0
    %1478 = vmatprep.subr.mxu0 0.0
    %1479 = vmatpush1.msra.mxu0 0.0
    %1480 = vmatprep.subr.mxu0 0.0
    %1481 = vmatpush1.msra.mxu0 0.0
    %1482 = vmatprep.subr.mxu0 0.0
    %1483 = vmatpush1.msra.mxu0 0.0
    %1484 = vmatprep.subr.mxu0 0.0
    %1485 = vmatpush1.msra.mxu0 0.0
    %1486 = vmatprep.subr.mxu0 0.0
    %1487 = vmatpush1.msra.mxu0 0.0
    %1488 = vmatprep.subr.mxu0 0.0
    %1489 = vmatpush1.msra.mxu0 0.0
    %1490 = vmatprep.subr.mxu0 0.0
    %1491 = vmatpush1.msra.mxu0 0.0
    %1492 = vmatprep.subr.mxu0 0.0
    %1493 = vmatpush1.msra.mxu0 0.0
    %1494 = vmatprep.subr.mxu0 0.0
    %1495 = vmatpush1.msra.mxu0 0.0
    %1496 = vmatprep.subr.mxu0 0.0
    %1497 = vmatpush1.msra.mxu0 0.0
    %1498 = vmatprep.subr.mxu0 0.0
    %1499 = vmatpush1.msra.mxu0 0.0
    %1500 = vmatprep.subr.mxu0 0.0
    %1501 = vmatpush1.msra.mxu0 0.0
    %1502 = vmatprep.subr.mxu0 0.0
    %1503 = vmatpush1.msra.mxu0 0.0
    %1504 = vmatprep.subr.mxu0 0.0
    %1505 = vmatpush1.msra.mxu0 0.0
    %1506 = vmatprep.subr.mxu0 0.0
    %1507 = vmatpush1.msra.mxu0 0.0
    %1508 = vmatprep.subr.mxu0 0.0
    %1509 = vmatpush1.msra.mxu0 0.0
    %1510 = vmatprep.subr.mxu0 0.0
    %1511 = vmatpush1.msra.mxu0 0.0
    %1512 = vmatprep.subr.mxu0 0.0
    %1513 = vmatpush1.msra.mxu0 0.0
    %1514 = vmatprep.subr.mxu0 0.0
    %1515 = vmatpush1.msra.mxu0 0.0
    %1516 = vmatprep.subr.mxu0 0.0
    %1517 = vmatpush1.msra.mxu0 0.0
    %1518 = vmatprep.subr.mxu0 0.0
    %1519 = vmatpush1.msra.mxu0 0.0
    %1520 = vmatprep.subr.mxu0 0.0
    %1521 = vmatpush1.msra.mxu0 0.0
    %1522 = vmatprep.subr.mxu0 0.0
    %1523 = vmatpush1.msra.mxu0 0.0
    %1524 = vmatprep.subr.mxu0 0.0
    %1525 = vmatpush1.msra.mxu0 0.0
    %1526 = vmatprep.subr.mxu0 0.0
    %1527 = vmatpush1.msra.mxu0 0.0
    %1528 = vmatprep.mubr.f32.mxu0 0.0
    %1529 = vmatmul.mubr.f32.gmra.mrb[0].mxu0 %v1459
    %v1530 = vpop.f32.mrb[0].mxu0
    %v1531 = vadd.f32 0.0, %v1530
    %v1532 = vpop.f32.mrb[0].mxu0
    %1533 = vmatprep.mubr.f32.mxu0 0.0
    %1534 = vmatmul.mubr.f32.gmra.mrb[0].mxu0 %v1462
    %v1535 = vpop.f32.mrb[0].mxu0
    %v1536 = vadd.f32 0.0, %v1535
    %v1537 = vpop.f32.mrb[0].mxu0
    %1538 = vdwg.mxu0
    %1539 = vrot.lane.b32.xlu0 %v526, 64
    %v1540 = vpop.permute.xlu0 %1539
    %1541 = vrot.lane.b32.xlu0 %v531, 64
    %v1542 = vpop.permute.xlu0 %1541
    %v1546 = vsel %vm1275, %v1438, 0
    %v1549 = vsel %vm1275, %v1439, 0
    %1551 = vmatprep.subr.mxu0 0.0
    %1552 = vmatpush1.msra.mxu0 %v1540
    %1553 = vmatprep.subr.mxu0 0.0
    %1554 = vmatpush1.msra.mxu0 %v1542
    %1555 = vmatprep.subr.mxu0 0.0
    %1556 = vmatpush1.msra.mxu0 0.0
    %1557 = vmatprep.subr.mxu0 0.0
    %1558 = vmatpush1.msra.mxu0 0.0
    %1559 = vmatprep.subr.mxu0 0.0
    %1560 = vmatpush1.msra.mxu0 0.0
    %1561 = vmatprep.subr.mxu0 0.0
    %1562 = vmatpush1.msra.mxu0 0.0
    %1563 = vmatprep.subr.mxu0 0.0
    %1564 = vmatpush1.msra.mxu0 0.0
    %1565 = vmatprep.subr.mxu0 0.0
    %1566 = vmatpush1.msra.mxu0 0.0
    %1567 = vmatprep.subr.mxu0 0.0
    %1568 = vmatpush1.msra.mxu0 0.0
    %1569 = vmatprep.subr.mxu0 0.0
    %1570 = vmatpush1.msra.mxu0 0.0
    %1571 = vmatprep.subr.mxu0 0.0
    %1572 = vmatpush1.msra.mxu0 0.0
    %1573 = vmatprep.subr.mxu0 0.0
    %1574 = vmatpush1.msra.mxu0 0.0
    %1575 = vmatprep.subr.mxu0 0.0
    %1576 = vmatpush1.msra.mxu0 0.0
    %1577 = vmatprep.subr.mxu0 0.0
    %1578 = vmatpush1.msra.mxu0 0.0
    %1579 = vmatprep.subr.mxu0 0.0
    %1580 = vmatpush1.msra.mxu0 0.0
    %1581 = vmatprep.subr.mxu0 0.0
    %1582 = vmatpush1.msra.mxu0 0.0
    %1583 = vmatprep.subr.mxu0 0.0
    %1584 = vmatpush1.msra.mxu0 0.0
    %1585 = vmatprep.subr.mxu0 0.0
    %1586 = vmatpush1.msra.mxu0 0.0
    %1587 = vmatprep.subr.mxu0 0.0
    %1588 = vmatpush1.msra.mxu0 0.0
    %1589 = vmatprep.subr.mxu0 0.0
    %1590 = vmatpush1.msra.mxu0 0.0
    %1591 = vmatprep.subr.mxu0 0.0
    %1592 = vmatpush1.msra.mxu0 0.0
    %1593 = vmatprep.subr.mxu0 0.0
    %1594 = vmatpush1.msra.mxu0 0.0
    %1595 = vmatprep.subr.mxu0 0.0
    %1596 = vmatpush1.msra.mxu0 0.0
    %1597 = vmatprep.subr.mxu0 0.0
    %1598 = vmatpush1.msra.mxu0 0.0
    %1599 = vmatprep.subr.mxu0 0.0
    %1600 = vmatpush1.msra.mxu0 0.0
    %1601 = vmatprep.subr.mxu0 0.0
    %1602 = vmatpush1.msra.mxu0 0.0
    %1603 = vmatprep.subr.mxu0 0.0
    %1604 = vmatpush1.msra.mxu0 0.0
    %1605 = vmatprep.subr.mxu0 0.0
    %1606 = vmatpush1.msra.mxu0 0.0
    %1607 = vmatprep.subr.mxu0 0.0
    %1608 = vmatpush1.msra.mxu0 0.0
    %1609 = vmatprep.subr.mxu0 0.0
    %1610 = vmatpush1.msra.mxu0 0.0
    %1611 = vmatprep.subr.mxu0 0.0
    %1612 = vmatpush1.msra.mxu0 0.0
    %1613 = vmatprep.subr.mxu0 0.0
    %1614 = vmatpush1.msra.mxu0 0.0
    %1615 = vmatprep.mubr.f32.mxu0 0.0
    %1616 = vmatmul.mubr.f32.gmra.mrb[0].mxu0 %v1546
    %v1617 = vpop.f32.mrb[0].mxu0
    %v1618 = vadd.f32 0.0, %v1617
    %v1619 = vpop.f32.mrb[0].mxu0
    %1620 = vmatprep.mubr.f32.mxu0 0.0
    %1621 = vmatmul.mubr.f32.gmra.mrb[0].mxu0 %v1549
    %v1622 = vpop.f32.mrb[0].mxu0
    %v1623 = vadd.f32 0.0, %v1622
    %v1624 = vpop.f32.mrb[0].mxu0
    %1625 = vdwg.mxu0
    %1626 = vrot.lane.b32.xlu0 %v539, 64
    %v1627 = vpop.permute.xlu0 %1626
    %1628 = vrot.lane.b32.xlu0 %v541, 64
    %v1629 = vpop.permute.xlu0 %1628
    %v1633 = vsel %vm1275, %v1440, 0
    %v1636 = vsel %vm1275, %v1441, 0
    %1638 = vmatprep.subr.mxu0 0.0
    %1639 = vmatpush1.msra.mxu0 %v1627
    %1640 = vmatprep.subr.mxu0 0.0
    %1641 = vmatpush1.msra.mxu0 %v1629
    %1642 = vmatprep.subr.mxu0 0.0
    %1643 = vmatpush1.msra.mxu0 0.0
    %1644 = vmatprep.subr.mxu0 0.0
    %1645 = vmatpush1.msra.mxu0 0.0
    %1646 = vmatprep.subr.mxu0 0.0
    %1647 = vmatpush1.msra.mxu0 0.0
    %1648 = vmatprep.subr.mxu0 0.0
    %1649 = vmatpush1.msra.mxu0 0.0
    %1650 = vmatprep.subr.mxu0 0.0
    %1651 = vmatpush1.msra.mxu0 0.0
    %1652 = vmatprep.subr.mxu0 0.0
    %1653 = vmatpush1.msra.mxu0 0.0
    %1654 = vmatprep.subr.mxu0 0.0
    %1655 = vmatpush1.msra.mxu0 0.0
    %1656 = vmatprep.subr.mxu0 0.0
    %1657 = vmatpush1.msra.mxu0 0.0
    %1658 = vmatprep.subr.mxu0 0.0
    %1659 = vmatpush1.msra.mxu0 0.0
    %1660 = vmatprep.subr.mxu0 0.0
    %1661 = vmatpush1.msra.mxu0 0.0
    %1662 = vmatprep.subr.mxu0 0.0
    %1663 = vmatpush1.msra.mxu0 0.0
    %1664 = vmatprep.subr.mxu0 0.0
    %1665 = vmatpush1.msra.mxu0 0.0
    %1666 = vmatprep.subr.mxu0 0.0
    %1667 = vmatpush1.msra.mxu0 0.0
    %1668 = vmatprep.subr.mxu0 0.0
    %1669 = vmatpush1.msra.mxu0 0.0
    %1670 = vmatprep.subr.mxu0 0.0
    %1671 = vmatpush1.msra.mxu0 0.0
    %1672 = vmatprep.subr.mxu0 0.0
    %1673 = vmatpush1.msra.mxu0 0.0
    %1674 = vmatprep.subr.mxu0 0.0
    %1675 = vmatpush1.msra.mxu0 0.0
    %1676 = vmatprep.subr.mxu0 0.0
    %1677 = vmatpush1.msra.mxu0 0.0
    %1678 = vmatprep.subr.mxu0 0.0
    %1679 = vmatpush1.msra.mxu0 0.0
    %1680 = vmatprep.subr.mxu0 0.0
    %1681 = vmatpush1.msra.mxu0 0.0
    %1682 = vmatprep.subr.mxu0 0.0
    %1683 = vmatpush1.msra.mxu0 0.0
    %1684 = vmatprep.subr.mxu0 0.0
    %1685 = vmatpush1.msra.mxu0 0.0
    %1686 = vmatprep.subr.mxu0 0.0
    %1687 = vmatpush1.msra.mxu0 0.0
    %1688 = vmatprep.subr.mxu0 0.0
    %1689 = vmatpush1.msra.mxu0 0.0
    %1690 = vmatprep.subr.mxu0 0.0
    %1691 = vmatpush1.msra.mxu0 0.0
    %1692 = vmatprep.subr.mxu0 0.0
    %1693 = vmatpush1.msra.mxu0 0.0
    %1694 = vmatprep.subr.mxu0 0.0
    %1695 = vmatpush1.msra.mxu0 0.0
    %1696 = vmatprep.subr.mxu0 0.0
    %1697 = vmatpush1.msra.mxu0 0.0
    %1698 = vmatprep.subr.mxu0 0.0
    %1699 = vmatpush1.msra.mxu0 0.0
    %1700 = vmatprep.subr.mxu0 0.0
    %1701 = vmatpush1.msra.mxu0 0.0
    %1702 = vmatprep.mubr.f32.mxu0 0.0
    %1703 = vmatmul.mubr.f32.gmra.mrb[0].mxu0 %v1633
    %v1704 = vpop.f32.mrb[0].mxu0
    %v1705 = vadd.f32 0.0, %v1704
    %v1706 = vpop.f32.mrb[0].mxu0
    %1707 = vmatprep.mubr.f32.mxu0 0.0
    %1708 = vmatmul.mubr.f32.gmra.mrb[0].mxu0 %v1636
    %v1709 = vpop.f32.mrb[0].mxu0
    %v1710 = vadd.f32 0.0, %v1709
    %v1711 = vpop.f32.mrb[0].mxu0
    %1712 = vdwg.mxu0
    %1713 = vrot.lane.b32.xlu0 %v543, 64
    %v1714 = vpop.permute.xlu0 %1713
    %1715 = vrot.lane.b32.xlu0 %v545, 64
    %v1716 = vpop.permute.xlu0 %1715
    %v1720 = vsel %vm1275, %v1442, 0
    %v1723 = vsel %vm1275, %v1443, 0
    %1725 = vmatprep.subr.mxu0 0.0
    %1726 = vmatpush1.msra.mxu0 %v1714
    %1727 = vmatprep.subr.mxu0 0.0
    %1728 = vmatpush1.msra.mxu0 %v1716
    %1729 = vmatprep.subr.mxu0 0.0
    %1730 = vmatpush1.msra.mxu0 0.0
    %1731 = vmatprep.subr.mxu0 0.0
    %1732 = vmatpush1.msra.mxu0 0.0
    %1733 = vmatprep.subr.mxu0 0.0
    %1734 = vmatpush1.msra.mxu0 0.0
    %1735 = vmatprep.subr.mxu0 0.0
    %1736 = vmatpush1.msra.mxu0 0.0
    %1737 = vmatprep.subr.mxu0 0.0
    %1738 = vmatpush1.msra.mxu0 0.0
    %1739 = vmatprep.subr.mxu0 0.0
    %1740 = vmatpush1.msra.mxu0 0.0
    %1741 = vmatprep.subr.mxu0 0.0
    %1742 = vmatpush1.msra.mxu0 0.0
    %1743 = vmatprep.subr.mxu0 0.0
    %1744 = vmatpush1.msra.mxu0 0.0
    %1745 = vmatprep.subr.mxu0 0.0
    %1746 = vmatpush1.msra.mxu0 0.0
    %1747 = vmatprep.subr.mxu0 0.0
    %1748 = vmatpush1.msra.mxu0 0.0
    %1749 = vmatprep.subr.mxu0 0.0
    %1750 = vmatpush1.msra.mxu0 0.0
    %1751 = vmatprep.subr.mxu0 0.0
    %1752 = vmatpush1.msra.mxu0 0.0
    %1753 = vmatprep.subr.mxu0 0.0
    %1754 = vmatpush1.msra.mxu0 0.0
    %1755 = vmatprep.subr.mxu0 0.0
    %1756 = vmatpush1.msra.mxu0 0.0
    %1757 = vmatprep.subr.mxu0 0.0
    %1758 = vmatpush1.msra.mxu0 0.0
    %1759 = vmatprep.subr.mxu0 0.0
    %1760 = vmatpush1.msra.mxu0 0.0
    %1761 = vmatprep.subr.mxu0 0.0
    %1762 = vmatpush1.msra.mxu0 0.0
    %1763 = vmatprep.subr.mxu0 0.0
    %1764 = vmatpush1.msra.mxu0 0.0
    %1765 = vmatprep.subr.mxu0 0.0
    %1766 = vmatpush1.msra.mxu0 0.0
    %1767 = vmatprep.subr.mxu0 0.0
    %1768 = vmatpush1.msra.mxu0 0.0
    %1769 = vmatprep.subr.mxu0 0.0
    %1770 = vmatpush1.msra.mxu0 0.0
    %1771 = vmatprep.subr.mxu0 0.0
    %1772 = vmatpush1.msra.mxu0 0.0
    %1773 = vmatprep.subr.mxu0 0.0
    %1774 = vmatpush1.msra.mxu0 0.0
    %1775 = vmatprep.subr.mxu0 0.0
    %1776 = vmatpush1.msra.mxu0 0.0
    %1777 = vmatprep.subr.mxu0 0.0
    %1778 = vmatpush1.msra.mxu0 0.0
    %1779 = vmatprep.subr.mxu0 0.0
    %1780 = vmatpush1.msra.mxu0 0.0
    %1781 = vmatprep.subr.mxu0 0.0
    %1782 = vmatpush1.msra.mxu0 0.0
    %1783 = vmatprep.subr.mxu0 0.0
    %1784 = vmatpush1.msra.mxu0 0.0
    %1785 = vmatprep.subr.mxu0 0.0
    %1786 = vmatpush1.msra.mxu0 0.0
    %1787 = vmatprep.subr.mxu0 0.0
    %1788 = vmatpush1.msra.mxu0 0.0
    %1789 = vmatprep.mubr.f32.mxu0 0.0
    %1790 = vmatmul.mubr.f32.gmra.mrb[0].mxu0 %v1720
    %v1791 = vpop.f32.mrb[0].mxu0
    %v1792 = vadd.f32 0.0, %v1791
    %v1793 = vpop.f32.mrb[0].mxu0
    %1794 = vmatprep.mubr.f32.mxu0 0.0
    %1795 = vmatmul.mubr.f32.gmra.mrb[0].mxu0 %v1723
    %v1796 = vpop.f32.mrb[0].mxu0
    %v1797 = vadd.f32 0.0, %v1796
    %v1798 = vpop.f32.mrb[0].mxu0
    %1799 = vdwg.mxu0
    %1800 = vrot.lane.b32.xlu0 %v547, 64
    %v1801 = vpop.permute.xlu0 %1800
    %1802 = vrot.lane.b32.xlu0 %v549, 64
    %v1803 = vpop.permute.xlu0 %1802
    %v1807 = vsel %vm1275, %v1444, 0
    %v1810 = vsel %vm1275, %v1445, 0
    %1812 = vmatprep.subr.mxu0 0.0
    %1813 = vmatpush1.msra.mxu0 %v1801
    %1814 = vmatprep.subr.mxu0 0.0
    %1815 = vmatpush1.msra.mxu0 %v1803
    %1816 = vmatprep.subr.mxu0 0.0
    %1817 = vmatpush1.msra.mxu0 0.0
    %1818 = vmatprep.subr.mxu0 0.0
    %1819 = vmatpush1.msra.mxu0 0.0
    %1820 = vmatprep.subr.mxu0 0.0
    %1821 = vmatpush1.msra.mxu0 0.0
    %1822 = vmatprep.subr.mxu0 0.0
    %1823 = vmatpush1.msra.mxu0 0.0
    %1824 = vmatprep.subr.mxu0 0.0
    %1825 = vmatpush1.msra.mxu0 0.0
    %1826 = vmatprep.subr.mxu0 0.0
    %1827 = vmatpush1.msra.mxu0 0.0
    %1828 = vmatprep.subr.mxu0 0.0
    %1829 = vmatpush1.msra.mxu0 0.0
    %1830 = vmatprep.subr.mxu0 0.0
    %1831 = vmatpush1.msra.mxu0 0.0
    %1832 = vmatprep.subr.mxu0 0.0
    %1833 = vmatpush1.msra.mxu0 0.0
    %1834 = vmatprep.subr.mxu0 0.0
    %1835 = vmatpush1.msra.mxu0 0.0
    %1836 = vmatprep.subr.mxu0 0.0
    %1837 = vmatpush1.msra.mxu0 0.0
    %1838 = vmatprep.subr.mxu0 0.0
    %1839 = vmatpush1.msra.mxu0 0.0
    %1840 = vmatprep.subr.mxu0 0.0
    %1841 = vmatpush1.msra.mxu0 0.0
    %1842 = vmatprep.subr.mxu0 0.0
    %1843 = vmatpush1.msra.mxu0 0.0
    %1844 = vmatprep.subr.mxu0 0.0
    %1845 = vmatpush1.msra.mxu0 0.0
    %1846 = vmatprep.subr.mxu0 0.0
    %1847 = vmatpush1.msra.mxu0 0.0
    %1848 = vmatprep.subr.mxu0 0.0
    %1849 = vmatpush1.msra.mxu0 0.0
    %1850 = vmatprep.subr.mxu0 0.0
    %1851 = vmatpush1.msra.mxu0 0.0
    %1852 = vmatprep.subr.mxu0 0.0
    %1853 = vmatpush1.msra.mxu0 0.0
    %1854 = vmatprep.subr.mxu0 0.0
    %1855 = vmatpush1.msra.mxu0 0.0
    %1856 = vmatprep.subr.mxu0 0.0
    %1857 = vmatpush1.msra.mxu0 0.0
    %1858 = vmatprep.subr.mxu0 0.0
    %1859 = vmatpush1.msra.mxu0 0.0
    %1860 = vmatprep.subr.mxu0 0.0
    %1861 = vmatpush1.msra.mxu0 0.0
    %1862 = vmatprep.subr.mxu0 0.0
    %1863 = vmatpush1.msra.mxu0 0.0
    %1864 = vmatprep.subr.mxu0 0.0
    %1865 = vmatpush1.msra.mxu0 0.0
    %1866 = vmatprep.subr.mxu0 0.0
    %1867 = vmatpush1.msra.mxu0 0.0
    %1868 = vmatprep.subr.mxu0 0.0
    %1869 = vmatpush1.msra.mxu0 0.0
    %1870 = vmatprep.subr.mxu0 0.0
    %1871 = vmatpush1.msra.mxu0 0.0
    %1872 = vmatprep.subr.mxu0 0.0
    %1873 = vmatpush1.msra.mxu0 0.0
    %1874 = vmatprep.subr.mxu0 0.0
    %1875 = vmatpush1.msra.mxu0 0.0
    %1876 = vmatprep.mubr.f32.mxu0 0.0
    %1877 = vmatmul.mubr.f32.gmra.mrb[0].mxu0 %v1807
    %v1878 = vpop.f32.mrb[0].mxu0
    %v1879 = vadd.f32 0.0, %v1878
    %v1880 = vpop.f32.mrb[0].mxu0
    %1881 = vmatprep.mubr.f32.mxu0 0.0
    %1882 = vmatmul.mubr.f32.gmra.mrb[0].mxu0 %v1810
    %v1883 = vpop.f32.mrb[0].mxu0
    %v1884 = vadd.f32 0.0, %v1883
    %v1885 = vpop.f32.mrb[0].mxu0
    %1886 = vdwg.mxu0
    %1887 = vrot.lane.b32.xlu0 %v551, 64
    %v1888 = vpop.permute.xlu0 %1887
    %1889 = vrot.lane.b32.xlu0 %v553, 64
    %v1890 = vpop.permute.xlu0 %1889
    %v1894 = vsel %vm1275, %v1446, 0
    %v1897 = vsel %vm1275, %v1447, 0
    %1899 = vmatprep.subr.mxu0 0.0
    %1900 = vmatpush1.msra.mxu0 %v1888
    %1901 = vmatprep.subr.mxu0 0.0
    %1902 = vmatpush1.msra.mxu0 %v1890
    %1903 = vmatprep.subr.mxu0 0.0
    %1904 = vmatpush1.msra.mxu0 0.0
    %1905 = vmatprep.subr.mxu0 0.0
    %1906 = vmatpush1.msra.mxu0 0.0
    %1907 = vmatprep.subr.mxu0 0.0
    %1908 = vmatpush1.msra.mxu0 0.0
    %1909 = vmatprep.subr.mxu0 0.0
    %1910 = vmatpush1.msra.mxu0 0.0
    %1911 = vmatprep.subr.mxu0 0.0
    %1912 = vmatpush1.msra.mxu0 0.0
    %1913 = vmatprep.subr.mxu0 0.0
    %1914 = vmatpush1.msra.mxu0 0.0
    %1915 = vmatprep.subr.mxu0 0.0
    %1916 = vmatpush1.msra.mxu0 0.0
    %1917 = vmatprep.subr.mxu0 0.0
    %1918 = vmatpush1.msra.mxu0 0.0
    %1919 = vmatprep.subr.mxu0 0.0
    %1920 = vmatpush1.msra.mxu0 0.0
    %1921 = vmatprep.subr.mxu0 0.0
    %1922 = vmatpush1.msra.mxu0 0.0
    %1923 = vmatprep.subr.mxu0 0.0
    %1924 = vmatpush1.msra.mxu0 0.0
    %1925 = vmatprep.subr.mxu0 0.0
    %1926 = vmatpush1.msra.mxu0 0.0
    %1927 = vmatprep.subr.mxu0 0.0
    %1928 = vmatpush1.msra.mxu0 0.0
    %1929 = vmatprep.subr.mxu0 0.0
    %1930 = vmatpush1.msra.mxu0 0.0
    %1931 = vmatprep.subr.mxu0 0.0
    %1932 = vmatpush1.msra.mxu0 0.0
    %1933 = vmatprep.subr.mxu0 0.0
    %1934 = vmatpush1.msra.mxu0 0.0
    %1935 = vmatprep.subr.mxu0 0.0
    %1936 = vmatpush1.msra.mxu0 0.0
    %1937 = vmatprep.subr.mxu0 0.0
    %1938 = vmatpush1.msra.mxu0 0.0
    %1939 = vmatprep.subr.mxu0 0.0
    %1940 = vmatpush1.msra.mxu0 0.0
    %1941 = vmatprep.subr.mxu0 0.0
    %1942 = vmatpush1.msra.mxu0 0.0
    %1943 = vmatprep.subr.mxu0 0.0
    %1944 = vmatpush1.msra.mxu0 0.0
    %1945 = vmatprep.subr.mxu0 0.0
    %1946 = vmatpush1.msra.mxu0 0.0
    %1947 = vmatprep.subr.mxu0 0.0
    %1948 = vmatpush1.msra.mxu0 0.0
    %1949 = vmatprep.subr.mxu0 0.0
    %1950 = vmatpush1.msra.mxu0 0.0
    %1951 = vmatprep.subr.mxu0 0.0
    %1952 = vmatpush1.msra.mxu0 0.0
    %1953 = vmatprep.subr.mxu0 0.0
    %1954 = vmatpush1.msra.mxu0 0.0
    %1955 = vmatprep.subr.mxu0 0.0
    %1956 = vmatpush1.msra.mxu0 0.0
    %1957 = vmatprep.subr.mxu0 0.0
    %1958 = vmatpush1.msra.mxu0 0.0
    %1959 = vmatprep.subr.mxu0 0.0
    %1960 = vmatpush1.msra.mxu0 0.0
    %1961 = vmatprep.subr.mxu0 0.0
    %1962 = vmatpush1.msra.mxu0 0.0
    %1963 = vmatprep.mubr.f32.mxu0 0.0
    %1964 = vmatmul.mubr.f32.gmra.mrb[0].mxu0 %v1894
    %v1965 = vpop.f32.mrb[0].mxu0
    %v1966 = vadd.f32 0.0, %v1965
    %v1967 = vpop.f32.mrb[0].mxu0
    %1968 = vmatprep.mubr.f32.mxu0 0.0
    %1969 = vmatmul.mubr.f32.gmra.mrb[0].mxu0 %v1897
    %v1970 = vpop.f32.mrb[0].mxu0
    %v1971 = vadd.f32 0.0, %v1970
    %v1972 = vpop.f32.mrb[0].mxu0
    %1973 = vdwg.mxu0
    %1974 = vrot.lane.b32.xlu0 %v555, 64
    %v1975 = vpop.permute.xlu0 %1974
    %1976 = vrot.lane.b32.xlu0 %v557, 64
    %v1977 = vpop.permute.xlu0 %1976
    %v1981 = vsel %vm1275, %v1448, 0
    %v1984 = vsel %vm1275, %v1449, 0
    %1986 = vmatprep.subr.mxu0 0.0
    %1987 = vmatpush1.msra.mxu0 %v1975
    %1988 = vmatprep.subr.mxu0 0.0
    %1989 = vmatpush1.msra.mxu0 %v1977
    %1990 = vmatprep.subr.mxu0 0.0
    %1991 = vmatpush1.msra.mxu0 0.0
    %1992 = vmatprep.subr.mxu0 0.0
    %1993 = vmatpush1.msra.mxu0 0.0
    %1994 = vmatprep.subr.mxu0 0.0
    %1995 = vmatpush1.msra.mxu0 0.0
    %1996 = vmatprep.subr.mxu0 0.0
    %1997 = vmatpush1.msra.mxu0 0.0
    %1998 = vmatprep.subr.mxu0 0.0
    %1999 = vmatpush1.msra.mxu0 0.0
    %2000 = vmatprep.subr.mxu0 0.0
    %2001 = vmatpush1.msra.mxu0 0.0
    %2002 = vmatprep.subr.mxu0 0.0
    %2003 = vmatpush1.msra.mxu0 0.0
    %2004 = vmatprep.subr.mxu0 0.0
    %2005 = vmatpush1.msra.mxu0 0.0
    %2006 = vmatprep.subr.mxu0 0.0
    %2007 = vmatpush1.msra.mxu0 0.0
    %2008 = vmatprep.subr.mxu0 0.0
    %2009 = vmatpush1.msra.mxu0 0.0
    %2010 = vmatprep.subr.mxu0 0.0
    %2011 = vmatpush1.msra.mxu0 0.0
    %2012 = vmatprep.subr.mxu0 0.0
    %2013 = vmatpush1.msra.mxu0 0.0
    %2014 = vmatprep.subr.mxu0 0.0
    %2015 = vmatpush1.msra.mxu0 0.0
    %2016 = vmatprep.subr.mxu0 0.0
    %2017 = vmatpush1.msra.mxu0 0.0
    %2018 = vmatprep.subr.mxu0 0.0
    %2019 = vmatpush1.msra.mxu0 0.0
    %2020 = vmatprep.subr.mxu0 0.0
    %2021 = vmatpush1.msra.mxu0 0.0
    %2022 = vmatprep.subr.mxu0 0.0
    %2023 = vmatpush1.msra.mxu0 0.0
    %2024 = vmatprep.subr.mxu0 0.0
    %2025 = vmatpush1.msra.mxu0 0.0
    %2026 = vmatprep.subr.mxu0 0.0
    %2027 = vmatpush1.msra.mxu0 0.0
    %2028 = vmatprep.subr.mxu0 0.0
    %2029 = vmatpush1.msra.mxu0 0.0
    %2030 = vmatprep.subr.mxu0 0.0
    %2031 = vmatpush1.msra.mxu0 0.0
    %2032 = vmatprep.subr.mxu0 0.0
    %2033 = vmatpush1.msra.mxu0 0.0
    %2034 = vmatprep.subr.mxu0 0.0
    %2035 = vmatpush1.msra.mxu0 0.0
    %2036 = vmatprep.subr.mxu0 0.0
    %2037 = vmatpush1.msra.mxu0 0.0
    %2038 = vmatprep.subr.mxu0 0.0
    %2039 = vmatpush1.msra.mxu0 0.0
    %2040 = vmatprep.subr.mxu0 0.0
    %2041 = vmatpush1.msra.mxu0 0.0
    %2042 = vmatprep.subr.mxu0 0.0
    %2043 = vmatpush1.msra.mxu0 0.0
    %2044 = vmatprep.subr.mxu0 0.0
    %2045 = vmatpush1.msra.mxu0 0.0
    %2046 = vmatprep.subr.mxu0 0.0
    %2047 = vmatpush1.msra.mxu0 0.0
    %2048 = vmatprep.subr.mxu0 0.0
    %2049 = vmatpush1.msra.mxu0 0.0
    %2050 = vmatprep.mubr.f32.mxu0 0.0
    %2051 = vmatmul.mubr.f32.gmra.mrb[0].mxu0 %v1981
    %v2052 = vpop.f32.mrb[0].mxu0
    %v2053 = vadd.f32 0.0, %v2052
    %v2054 = vpop.f32.mrb[0].mxu0
    %2055 = vmatprep.mubr.f32.mxu0 0.0
    %2056 = vmatmul.mubr.f32.gmra.mrb[0].mxu0 %v1984
    %v2057 = vpop.f32.mrb[0].mxu0
    %v2058 = vadd.f32 0.0, %v2057
    %v2059 = vpop.f32.mrb[0].mxu0
    %2060 = vdwg.mxu0
    %2061 = vrot.lane.b32.xlu0 %v559, 64
    %v2062 = vpop.permute.xlu0 %2061
    %2063 = vrot.lane.b32.xlu0 %v561, 64
    %v2064 = vpop.permute.xlu0 %2063
    %v2068 = vsel %vm1275, %v1450, 0
    %v2071 = vsel %vm1275, %v1451, 0
    %2073 = vmatprep.subr.mxu0 0.0
    %2074 = vmatpush1.msra.mxu0 %v2062
    %2075 = vmatprep.subr.mxu0 0.0
    %2076 = vmatpush1.msra.mxu0 %v2064
    %2077 = vmatprep.subr.mxu0 0.0
    %2078 = vmatpush1.msra.mxu0 0.0
    %2079 = vmatprep.subr.mxu0 0.0
    %2080 = vmatpush1.msra.mxu0 0.0
    %2081 = vmatprep.subr.mxu0 0.0
    %2082 = vmatpush1.msra.mxu0 0.0
    %2083 = vmatprep.subr.mxu0 0.0
    %2084 = vmatpush1.msra.mxu0 0.0
    %2085 = vmatprep.subr.mxu0 0.0
    %2086 = vmatpush1.msra.mxu0 0.0
    %2087 = vmatprep.subr.mxu0 0.0
    %2088 = vmatpush1.msra.mxu0 0.0
    %2089 = vmatprep.subr.mxu0 0.0
    %2090 = vmatpush1.msra.mxu0 0.0
    %2091 = vmatprep.subr.mxu0 0.0
    %2092 = vmatpush1.msra.mxu0 0.0
    %2093 = vmatprep.subr.mxu0 0.0
    %2094 = vmatpush1.msra.mxu0 0.0
    %2095 = vmatprep.subr.mxu0 0.0
    %2096 = vmatpush1.msra.mxu0 0.0
    %2097 = vmatprep.subr.mxu0 0.0
    %2098 = vmatpush1.msra.mxu0 0.0
    %2099 = vmatprep.subr.mxu0 0.0
    %2100 = vmatpush1.msra.mxu0 0.0
    %2101 = vmatprep.subr.mxu0 0.0
    %2102 = vmatpush1.msra.mxu0 0.0
    %2103 = vmatprep.subr.mxu0 0.0
    %2104 = vmatpush1.msra.mxu0 0.0
    %2105 = vmatprep.subr.mxu0 0.0
    %2106 = vmatpush1.msra.mxu0 0.0
    %2107 = vmatprep.subr.mxu0 0.0
    %2108 = vmatpush1.msra.mxu0 0.0
    %2109 = vmatprep.subr.mxu0 0.0
    %2110 = vmatpush1.msra.mxu0 0.0
    %2111 = vmatprep.subr.mxu0 0.0
    %2112 = vmatpush1.msra.mxu0 0.0
    %2113 = vmatprep.subr.mxu0 0.0
    %2114 = vmatpush1.msra.mxu0 0.0
    %2115 = vmatprep.subr.mxu0 0.0
    %2116 = vmatpush1.msra.mxu0 0.0
    %2117 = vmatprep.subr.mxu0 0.0
    %2118 = vmatpush1.msra.mxu0 0.0
    %2119 = vmatprep.subr.mxu0 0.0
    %2120 = vmatpush1.msra.mxu0 0.0
    %2121 = vmatprep.subr.mxu0 0.0
    %2122 = vmatpush1.msra.mxu0 0.0
    %2123 = vmatprep.subr.mxu0 0.0
    %2124 = vmatpush1.msra.mxu0 0.0
    %2125 = vmatprep.subr.mxu0 0.0
    %2126 = vmatpush1.msra.mxu0 0.0
    %2127 = vmatprep.subr.mxu0 0.0
    %2128 = vmatpush1.msra.mxu0 0.0
    %2129 = vmatprep.subr.mxu0 0.0
    %2130 = vmatpush1.msra.mxu0 0.0
    %2131 = vmatprep.subr.mxu0 0.0
    %2132 = vmatpush1.msra.mxu0 0.0
    %2133 = vmatprep.subr.mxu0 0.0
    %2134 = vmatpush1.msra.mxu0 0.0
    %2135 = vmatprep.subr.mxu0 0.0
    %2136 = vmatpush1.msra.mxu0 0.0
    %2137 = vmatprep.mubr.f32.mxu0 0.0
    %2138 = vmatmul.mubr.f32.gmra.mrb[0].mxu0 %v2068
    %v2139 = vpop.f32.mrb[0].mxu0
    %v2140 = vadd.f32 0.0, %v2139
    %v2141 = vpop.f32.mrb[0].mxu0
    %2142 = vmatprep.mubr.f32.mxu0 0.0
    %2143 = vmatmul.mubr.f32.gmra.mrb[0].mxu0 %v2071
    %v2144 = vpop.f32.mrb[0].mxu0
    %v2145 = vadd.f32 0.0, %v2144
    %v2146 = vpop.f32.mrb[0].mxu0
    %2147 = vdwg.mxu0
    %2152 = vrot.lane.b32.xlu0 %v1705, 8
    %v2153 = vpop.permute.xlu0 %2152
    %2154 = vrot.lane.b32.xlu0 %v1710, 8
    %v2155 = vpop.permute.xlu0 %2154
    %2156 = vrot.lane.b32.xlu0 %v1792, 8
    %v2157 = vpop.permute.xlu0 %2156
    %2158 = vrot.lane.b32.xlu0 %v1797, 8
    %v2159 = vpop.permute.xlu0 %2158
    %2168 = vrot.lane.b32.xlu0 %v1879, 16
    %v2169 = vpop.permute.xlu0 %2168
    %2170 = vrot.lane.b32.xlu0 %v1884, 16
    %v2171 = vpop.permute.xlu0 %2170
    %2172 = vrot.lane.b32.xlu0 %v1966, 16
    %v2173 = vpop.permute.xlu0 %2172
    %2174 = vrot.lane.b32.xlu0 %v1971, 16
    %v2175 = vpop.permute.xlu0 %2174
    %2184 = vrot.lane.b32.xlu0 %v2053, 24
    %v2185 = vpop.permute.xlu0 %2184
    %2186 = vrot.lane.b32.xlu0 %v2058, 24
    %v2187 = vpop.permute.xlu0 %2186
    %2188 = vrot.lane.b32.xlu0 %v2140, 24
    %v2189 = vpop.permute.xlu0 %2188
    %2190 = vrot.lane.b32.xlu0 %v2145, 24
    %v2191 = vpop.permute.xlu0 %2190
    %v2196 = vsel %vm566, %v1531, %v2153
    %v2197 = vsel %vm566, %v1536, %v2155
    %v2198 = vsel %vm566, %v1618, %v2157
    %v2199 = vsel %vm566, %v1623, %v2159
    %v2200 = vsel %vm1275, %v2196, %v2169
    %v2201 = vsel %vm1275, %v2197, %v2171
    %v2202 = vsel %vm1275, %v2198, %v2173
    %v2203 = vsel %vm1275, %v2199, %v2175
    %vm2204 = vcmask 195584
    %v2205 = vsel %vm2204, %v2200, %v2185
    %v2206 = vsel %vm2204, %v2201, %v2187
    %v2207 = vsel %vm2204, %v2202, %v2189
    %v2208 = vsel %vm2204, %v2203, %v2191
    %v2209 = vld [vmem:[%s16] sm:$0xff]
    %v2210 = vld [vmem:[%s16 + $0x8] sm:$0xff]
    %v2211 = vld [vmem:[%s16 + $0x10] sm:$0xff]
    %v2212 = vld [vmem:[%s16 + $0x18] sm:$0xff]
    %v2214 = vsel %vm272, %v2205, 0
    %v2217 = vsel %vm272, %v2206, 0
    %v2220 = vsel %vm272, %v2207, 0
    %v2223 = vsel %vm272, %v2208, 0
    %2225 = vmatprep.subr.mxu0 0.0
    %2226 = vmatpush1.msra.mxu0 %v2209
    %2227 = vmatprep.subr.mxu0 0.0
    %2228 = vmatpush1.msra.mxu0 %v2210
    %2229 = vmatprep.subr.mxu0 0.0
    %2230 = vmatpush1.msra.mxu0 %v2211
    %2231 = vmatprep.subr.mxu0 0.0
    %2232 = vmatpush1.msra.mxu0 %v2212
    %2233 = vmatprep.subr.mxu0 0.0
    %2234 = vmatpush1.msra.mxu0 0.0
    %2235 = vmatprep.subr.mxu0 0.0
    %2236 = vmatpush1.msra.mxu0 0.0
    %2237 = vmatprep.subr.mxu0 0.0
    %2238 = vmatpush1.msra.mxu0 0.0
    %2239 = vmatprep.subr.mxu0 0.0
    %2240 = vmatpush1.msra.mxu0 0.0
    %2241 = vmatprep.subr.mxu0 0.0
    %2242 = vmatpush1.msra.mxu0 0.0
    %2243 = vmatprep.subr.mxu0 0.0
    %2244 = vmatpush1.msra.mxu0 0.0
    %2245 = vmatprep.subr.mxu0 0.0
    %2246 = vmatpush1.msra.mxu0 0.0
    %2247 = vmatprep.subr.mxu0 0.0
    %2248 = vmatpush1.msra.mxu0 0.0
    %2249 = vmatprep.subr.mxu0 0.0
    %2250 = vmatpush1.msra.mxu0 0.0
    %2251 = vmatprep.subr.mxu0 0.0
    %2252 = vmatpush1.msra.mxu0 0.0
    %2253 = vmatprep.subr.mxu0 0.0
    %2254 = vmatpush1.msra.mxu0 0.0
    %2255 = vmatprep.subr.mxu0 0.0
    %2256 = vmatpush1.msra.mxu0 0.0
    %2257 = vmatprep.subr.mxu0 0.0
    %2258 = vmatpush1.msra.mxu0 0.0
    %2259 = vmatprep.subr.mxu0 0.0
    %2260 = vmatpush1.msra.mxu0 0.0
    %2261 = vmatprep.subr.mxu0 0.0
    %2262 = vmatpush1.msra.mxu0 0.0
    %2263 = vmatprep.subr.mxu0 0.0
    %2264 = vmatpush1.msra.mxu0 0.0
    %2265 = vmatprep.subr.mxu0 0.0
    %2266 = vmatpush1.msra.mxu0 0.0
    %2267 = vmatprep.subr.mxu0 0.0
    %2268 = vmatpush1.msra.mxu0 0.0
    %2269 = vmatprep.subr.mxu0 0.0
    %2270 = vmatpush1.msra.mxu0 0.0
    %2271 = vmatprep.subr.mxu0 0.0
    %2272 = vmatpush1.msra.mxu0 0.0
    %2273 = vmatprep.subr.mxu0 0.0
    %2274 = vmatpush1.msra.mxu0 0.0
    %2275 = vmatprep.subr.mxu0 0.0
    %2276 = vmatpush1.msra.mxu0 0.0
    %2277 = vmatprep.subr.mxu0 0.0
    %2278 = vmatpush1.msra.mxu0 0.0
    %2279 = vmatprep.subr.mxu0 0.0
    %2280 = vmatpush1.msra.mxu0 0.0
    %2281 = vmatprep.subr.mxu0 0.0
    %2282 = vmatpush1.msra.mxu0 0.0
    %2283 = vmatprep.subr.mxu0 0.0
    %2284 = vmatpush1.msra.mxu0 0.0
    %2285 = vmatprep.subr.mxu0 0.0
    %2286 = vmatpush1.msra.mxu0 0.0
    %2287 = vmatprep.subr.mxu0 0.0
    %2288 = vmatpush1.msra.mxu0 0.0
    %2289 = vmatprep.mubr.f32.mxu0 0.0
    %2290 = vmatmul.mubr.f32.gmra.mrb[0].mxu0 %v2214
    %v2291 = vpop.f32.mrb[0].mxu0
    %v2292 = vadd.f32 0.0, %v2291
    %v2293 = vpop.f32.mrb[0].mxu0
    %2294 = vmatprep.mubr.f32.mxu0 0.0
    %2295 = vmatmul.mubr.f32.gmra.mrb[0].mxu0 %v2217
    %v2296 = vpop.f32.mrb[0].mxu0
    %v2297 = vadd.f32 0.0, %v2296
    %v2298 = vpop.f32.mrb[0].mxu0
    %2299 = vmatprep.mubr.f32.mxu0 0.0
    %2300 = vmatmul.mubr.f32.gmra.mrb[0].mxu0 %v2220
    %v2301 = vpop.f32.mrb[0].mxu0
    %v2302 = vadd.f32 0.0, %v2301
    %v2303 = vpop.f32.mrb[0].mxu0
    %2304 = vmatprep.mubr.f32.mxu0 0.0
    %2305 = vmatmul.mubr.f32.gmra.mrb[0].mxu0 %v2223
    %v2306 = vpop.f32.mrb[0].mxu0
    %v2307 = vadd.f32 0.0, %v2306
    %v2308 = vpop.f32.mrb[0].mxu0
    %2309 = vdwg.mxu0
    %v2310 = vadd.f32 %v348, %v2292
    %v2311 = vadd.f32 %v349, %v2297
    %v2312 = vadd.f32 %v350, %v2302
    %v2313 = vadd.f32 %v351, %v2307
    %v2314 = vld [vmem:[%s17] sm:$0x1]
    %v2316 = vlaneseq
    %v2317 = vshrl.u32 %v2316, 7
    %v2318 = vsub.s32 0, %v2317
    %v2319 = vrot.slane %v2314, %v2318
    %v2321 = vadd.f32 %v2310, %v2319
    %v2322 = vadd.f32 %v2311, %v2319
    %v2323 = vadd.f32 %v2312, %v2319
    %v2324 = vadd.f32 %v2313, %v2319
    %v2325 = vld [vmem:[%s18] sm:$0x1]
    %v2326 = vld [vmem:[%s19] sm:$0x1]
    %v2327 = vsel %vm272, %v2321, 0.0
    %2328 = vadd.xlane.f32.xlu0 %v2327
    %v2329 = vpop.xlane.xlu0 %2328
    %v2330 = vsel %vm272, %v2322, 0.0
    %2331 = vadd.xlane.f32.xlu0 %v2330
    %v2332 = vpop.xlane.xlu0 %2331
    %v2333 = vsel %vm272, %v2323, 0.0
    %2334 = vadd.xlane.f32.xlu0 %v2333
    %v2335 = vpop.xlane.xlu0 %2334
    %v2336 = vsel %vm272, %v2324, 0.0
    %2337 = vadd.xlane.f32.xlu0 %v2336
    %v2338 = vpop.xlane.xlu0 %2337
    %v2339 = vmul.f32 %v2329, %v285
    %v2340 = vmul.f32 %v2332, %v285
    %v2341 = vmul.f32 %v2335, %v285
    %v2342 = vmul.f32 %v2338, %v285
    %v2343 = vsub.f32 %v2321, %v2339
    %v2344 = vsub.f32 %v2322, %v2340
    %v2345 = vsub.f32 %v2323, %v2341
    %v2346 = vsub.f32 %v2324, %v2342
    %v2347 = vmul.f32 %v2343, %v2343
    %v2348 = vmul.f32 %v2344, %v2344
    %v2349 = vmul.f32 %v2345, %v2345
    %v2350 = vmul.f32 %v2346, %v2346
    %v2351 = vsel %vm272, %v2347, 0.0
    %2352 = vadd.xlane.f32.xlu0 %v2351
    %v2353 = vpop.xlane.xlu0 %2352
    %v2354 = vsel %vm272, %v2348, 0.0
    %2355 = vadd.xlane.f32.xlu0 %v2354
    %v2356 = vpop.xlane.xlu0 %2355
    %v2357 = vsel %vm272, %v2349, 0.0
    %2358 = vadd.xlane.f32.xlu0 %v2357
    %v2359 = vpop.xlane.xlu0 %2358
    %v2360 = vsel %vm272, %v2350, 0.0
    %2361 = vadd.xlane.f32.xlu0 %v2360
    %v2362 = vpop.xlane.xlu0 %2361
    %v2363 = vmul.f32 %v2353, %v285
    %v2364 = vmul.f32 %v2356, %v285
    %v2365 = vmul.f32 %v2359, %v285
    %v2366 = vmul.f32 %v2362, %v285
    %v2367 = vadd.f32 %v2363, 1e-05
    %v2368 = vadd.f32 %v2364, 1e-05
    %v2369 = vadd.f32 %v2365, 1e-05
    %v2370 = vadd.f32 %v2366, 1e-05
    %v2371 = vrsqrt.pop %v2367
    %v2372 = vrsqrt.pop %v2368
    %v2373 = vrsqrt.pop %v2369
    %v2374 = vrsqrt.pop %v2370
    %v2375 = vmul.f32 %v2343, %v2371
    %v2376 = vmul.f32 %v2344, %v2372
    %v2377 = vmul.f32 %v2345, %v2373
    %v2378 = vmul.f32 %v2346, %v2374
    %v2380 = vlaneseq
    %v2381 = vshrl.u32 %v2380, 7
    %v2382 = vsub.s32 0, %v2381
    %v2383 = vrot.slane %v2325, %v2382
    %v2385 = vmul.f32 %v2375, %v2383
    %v2386 = vmul.f32 %v2376, %v2383
    %v2387 = vmul.f32 %v2377, %v2383
    %v2388 = vmul.f32 %v2378, %v2383
    %v2390 = vlaneseq
    %v2391 = vshrl.u32 %v2390, 7
    %v2392 = vsub.s32 0, %v2391
    %v2393 = vrot.slane %v2326, %v2392
    %v2395 = vadd.f32 %v2385, %v2393
    %v2396 = vadd.f32 %v2386, %v2393
    %v2397 = vadd.f32 %v2387, %v2393
    %v2398 = vadd.f32 %v2388, %v2393
    %v2399 = vld [vmem:[%s20] sm:$0xff]
    %v2400 = vld [vmem:[%s20 + $0x8] sm:$0xff]
    %v2401 = vld [vmem:[%s20 + $0x10] sm:$0xff]
    %v2402 = vld [vmem:[%s20 + $0x18] sm:$0xff]
    %v2403 = vld [vmem:[%s21] sm:$0x1]
    %v2405 = vlaneseq
    %v2406 = vshrl.u32 %v2405, 7
    %v2407 = vsub.s32 0, %v2406
    %v2408 = vrot.slane %v2403, %v2407
    %v2411 = vsel %vm272, %v2395, 0
    %v2414 = vsel %vm272, %v2396, 0
    %v2417 = vsel %vm272, %v2397, 0
    %v2420 = vsel %vm272, %v2398, 0
    %2422 = vmatprep.subr.mxu0 0.0
    %2423 = vmatpush1.msra.mxu0 %v2399
    %2424 = vmatprep.subr.mxu0 0.0
    %2425 = vmatpush1.msra.mxu0 %v2400
    %2426 = vmatprep.subr.mxu0 0.0
    %2427 = vmatpush1.msra.mxu0 %v2401
    %2428 = vmatprep.subr.mxu0 0.0
    %2429 = vmatpush1.msra.mxu0 %v2402
    %2430 = vmatprep.subr.mxu0 0.0
    %2431 = vmatpush1.msra.mxu0 0.0
    %2432 = vmatprep.subr.mxu0 0.0
    %2433 = vmatpush1.msra.mxu0 0.0
    %2434 = vmatprep.subr.mxu0 0.0
    %2435 = vmatpush1.msra.mxu0 0.0
    %2436 = vmatprep.subr.mxu0 0.0
    %2437 = vmatpush1.msra.mxu0 0.0
    %2438 = vmatprep.subr.mxu0 0.0
    %2439 = vmatpush1.msra.mxu0 0.0
    %2440 = vmatprep.subr.mxu0 0.0
    %2441 = vmatpush1.msra.mxu0 0.0
    %2442 = vmatprep.subr.mxu0 0.0
    %2443 = vmatpush1.msra.mxu0 0.0
    %2444 = vmatprep.subr.mxu0 0.0
    %2445 = vmatpush1.msra.mxu0 0.0
    %2446 = vmatprep.subr.mxu0 0.0
    %2447 = vmatpush1.msra.mxu0 0.0
    %2448 = vmatprep.subr.mxu0 0.0
    %2449 = vmatpush1.msra.mxu0 0.0
    %2450 = vmatprep.subr.mxu0 0.0
    %2451 = vmatpush1.msra.mxu0 0.0
    %2452 = vmatprep.subr.mxu0 0.0
    %2453 = vmatpush1.msra.mxu0 0.0
    %2454 = vmatprep.subr.mxu0 0.0
    %2455 = vmatpush1.msra.mxu0 0.0
    %2456 = vmatprep.subr.mxu0 0.0
    %2457 = vmatpush1.msra.mxu0 0.0
    %2458 = vmatprep.subr.mxu0 0.0
    %2459 = vmatpush1.msra.mxu0 0.0
    %2460 = vmatprep.subr.mxu0 0.0
    %2461 = vmatpush1.msra.mxu0 0.0
    %2462 = vmatprep.subr.mxu0 0.0
    %2463 = vmatpush1.msra.mxu0 0.0
    %2464 = vmatprep.subr.mxu0 0.0
    %2465 = vmatpush1.msra.mxu0 0.0
    %2466 = vmatprep.subr.mxu0 0.0
    %2467 = vmatpush1.msra.mxu0 0.0
    %2468 = vmatprep.subr.mxu0 0.0
    %2469 = vmatpush1.msra.mxu0 0.0
    %2470 = vmatprep.subr.mxu0 0.0
    %2471 = vmatpush1.msra.mxu0 0.0
    %2472 = vmatprep.subr.mxu0 0.0
    %2473 = vmatpush1.msra.mxu0 0.0
    %2474 = vmatprep.subr.mxu0 0.0
    %2475 = vmatpush1.msra.mxu0 0.0
    %2476 = vmatprep.subr.mxu0 0.0
    %2477 = vmatpush1.msra.mxu0 0.0
    %2478 = vmatprep.subr.mxu0 0.0
    %2479 = vmatpush1.msra.mxu0 0.0
    %2480 = vmatprep.subr.mxu0 0.0
    %2481 = vmatpush1.msra.mxu0 0.0
    %2482 = vmatprep.subr.mxu0 0.0
    %2483 = vmatpush1.msra.mxu0 0.0
    %2484 = vmatprep.subr.mxu0 0.0
    %2485 = vmatpush1.msra.mxu0 0.0
    %2486 = vmatprep.mubr.f32.mxu0 0.0
    %2487 = vmatmul.mubr.f32.gmra.mrb[0].mxu0 %v2411
    %v2488 = vpop.f32.mrb[0].mxu0
    %v2489 = vadd.f32 %v2408, %v2488
    %v2490 = vpop.f32.mrb[0].mxu0
    %2491 = vmatprep.mubr.f32.mxu0 0.0
    %2492 = vmatmul.mubr.f32.gmra.mrb[0].mxu0 %v2414
    %v2493 = vpop.f32.mrb[0].mxu0
    %v2494 = vadd.f32 %v2408, %v2493
    %v2495 = vpop.f32.mrb[0].mxu0
    %2496 = vmatprep.mubr.f32.mxu0 0.0
    %2497 = vmatmul.mubr.f32.gmra.mrb[0].mxu0 %v2417
    %v2498 = vpop.f32.mrb[0].mxu0
    %v2499 = vadd.f32 %v2408, %v2498
    %v2500 = vpop.f32.mrb[0].mxu0
    %2501 = vmatprep.mubr.f32.mxu0 0.0
    %2502 = vmatmul.mubr.f32.gmra.mrb[0].mxu0 %v2420
    %v2503 = vpop.f32.mrb[0].mxu0
    %v2504 = vadd.f32 %v2408, %v2503
    %v2505 = vpop.f32.mrb[0].mxu0
    %2506 = vdwg.mxu0
    %v2507 = vmul.f32 %v2489, %v2489
    %v2508 = vmul.f32 %v2494, %v2494
    %v2509 = vmul.f32 %v2499, %v2499
    %v2510 = vmul.f32 %v2504, %v2504
    %v2511 = vmul.f32 %v2489, %v2507
    %v2512 = vmul.f32 %v2494, %v2508
    %v2513 = vmul.f32 %v2499, %v2509
    %v2514 = vmul.f32 %v2504, %v2510
    %v2515 = vmul.f32 %v2511, 0.044715
    %v2516 = vmul.f32 %v2512, 0.044715
    %v2517 = vmul.f32 %v2513, 0.044715
    %v2518 = vmul.f32 %v2514, 0.044715
    %v2519 = vadd.f32 %v2489, %v2515
    %v2520 = vadd.f32 %v2494, %v2516
    %v2521 = vadd.f32 %v2499, %v2517
    %v2522 = vadd.f32 %v2504, %v2518
    %v2523 = vmul.f32 %v2519, 0.7978846
    %v2524 = vmul.f32 %v2520, 0.7978846
    %v2525 = vmul.f32 %v2521, 0.7978846
    %v2526 = vmul.f32 %v2522, 0.7978846
    %v2527 = vtanh.pop %v2523
    %v2528 = vtanh.pop %v2524
    %v2529 = vtanh.pop %v2525
    %v2530 = vtanh.pop %v2526
    %v2531 = vadd.f32 %v2527, 1.0
    %v2532 = vadd.f32 %v2528, 1.0
    %v2533 = vadd.f32 %v2529, 1.0
    %v2534 = vadd.f32 %v2530, 1.0
    %v2535 = vmul.f32 %v2531, 0.5
    %v2536 = vmul.f32 %v2532, 0.5
    %v2537 = vmul.f32 %v2533, 0.5
    %v2538 = vmul.f32 %v2534, 0.5
    %v2539 = vmul.f32 %v2489, %v2535
    %v2540 = vmul.f32 %v2494, %v2536
    %v2541 = vmul.f32 %v2499, %v2537
    %v2542 = vmul.f32 %v2504, %v2538
    %v2543 = vld [vmem:[%s22] sm:$0xff]
    %v2544 = vld [vmem:[%s22 + $0x8] sm:$0xff]
    %v2545 = vld [vmem:[%s22 + $0x10] sm:$0xff]
    %v2546 = vld [vmem:[%s22 + $0x18] sm:$0xff]
    %v2547 = vld [vmem:[%s22 + $0x20] sm:$0xff]
    %v2548 = vld [vmem:[%s22 + $0x28] sm:$0xff]
    %v2549 = vld [vmem:[%s22 + $0x30] sm:$0xff]
    %v2550 = vld [vmem:[%s22 + $0x38] sm:$0xff]
    %v2551 = vld [vmem:[%s22 + $0x40] sm:$0xff]
    %v2552 = vld [vmem:[%s22 + $0x48] sm:$0xff]
    %v2553 = vld [vmem:[%s22 + $0x50] sm:$0xff]
    %v2554 = vld [vmem:[%s22 + $0x58] sm:$0xff]
    %v2555 = vld [vmem:[%s22 + $0x60] sm:$0xff]
    %v2556 = vld [vmem:[%s22 + $0x68] sm:$0xff]
    %v2557 = vld [vmem:[%s22 + $0x70] sm:$0xff]
    %v2558 = vld [vmem:[%s22 + $0x78] sm:$0xff]
    %v2559 = vld [vmem:[%s23] sm:$0x1]
    %v2561 = vlaneseq
    %v2562 = vshrl.u32 %v2561, 7
    %v2563 = vsub.s32 0, %v2562
    %v2564 = vrot.slane %v2559, %v2563
    %2566 = vmatprep.subr.mxu0 0.0
    %2567 = vmatpush1.msra.mxu0 %v2543
    %2568 = vmatprep.subr.mxu0 0.0
    %2569 = vmatpush1.msra.mxu0 %v2544
    %2570 = vmatprep.subr.mxu0 0.0
    %2571 = vmatpush1.msra.mxu0 %v2545
    %2572 = vmatprep.subr.mxu0 0.0
    %2573 = vmatpush1.msra.mxu0 %v2546
    %2574 = vmatprep.subr.mxu0 0.0
    %2575 = vmatpush1.msra.mxu0 %v2547
    %2576 = vmatprep.subr.mxu0 0.0
    %2577 = vmatpush1.msra.mxu0 %v2548
    %2578 = vmatprep.subr.mxu0 0.0
    %2579 = vmatpush1.msra.mxu0 %v2549
    %2580 = vmatprep.subr.mxu0 0.0
    %2581 = vmatpush1.msra.mxu0 %v2550
    %2582 = vmatprep.subr.mxu0 0.0
    %2583 = vmatpush1.msra.mxu0 %v2551
    %2584 = vmatprep.subr.mxu0 0.0
    %2585 = vmatpush1.msra.mxu0 %v2552
    %2586 = vmatprep.subr.mxu0 0.0
    %2587 = vmatpush1.msra.mxu0 %v2553
    %2588 = vmatprep.subr.mxu0 0.0
    %2589 = vmatpush1.msra.mxu0 %v2554
    %2590 = vmatprep.subr.mxu0 0.0
    %2591 = vmatpush1.msra.mxu0 %v2555
    %2592 = vmatprep.subr.mxu0 0.0
    %2593 = vmatpush1.msra.mxu0 %v2556
    %2594 = vmatprep.subr.mxu0 0.0
    %2595 = vmatpush1.msra.mxu0 %v2557
    %2596 = vmatprep.subr.mxu0 0.0
    %2597 = vmatpush1.msra.mxu0 %v2558
    %2598 = vmatprep.subr.mxu0 0.0
    %2599 = vmatpush1.msra.mxu0 0.0
    %2600 = vmatprep.subr.mxu0 0.0
    %2601 = vmatpush1.msra.mxu0 0.0
    %2602 = vmatprep.subr.mxu0 0.0
    %2603 = vmatpush1.msra.mxu0 0.0
    %2604 = vmatprep.subr.mxu0 0.0
    %2605 = vmatpush1.msra.mxu0 0.0
    %2606 = vmatprep.subr.mxu0 0.0
    %2607 = vmatpush1.msra.mxu0 0.0
    %2608 = vmatprep.subr.mxu0 0.0
    %2609 = vmatpush1.msra.mxu0 0.0
    %2610 = vmatprep.subr.mxu0 0.0
    %2611 = vmatpush1.msra.mxu0 0.0
    %2612 = vmatprep.subr.mxu0 0.0
    %2613 = vmatpush1.msra.mxu0 0.0
    %2614 = vmatprep.subr.mxu0 0.0
    %2615 = vmatpush1.msra.mxu0 0.0
    %2616 = vmatprep.subr.mxu0 0.0
    %2617 = vmatpush1.msra.mxu0 0.0
    %2618 = vmatprep.subr.mxu0 0.0
    %2619 = vmatpush1.msra.mxu0 0.0
    %2620 = vmatprep.subr.mxu0 0.0
    %2621 = vmatpush1.msra.mxu0 0.0
    %2622 = vmatprep.subr.mxu0 0.0
    %2623 = vmatpush1.msra.mxu0 0.0
    %2624 = vmatprep.subr.mxu0 0.0
    %2625 = vmatpush1.msra.mxu0 0.0
    %2626 = vmatprep.subr.mxu0 0.0
    %2627 = vmatpush1.msra.mxu0 0.0
    %2628 = vmatprep.subr.mxu0 0.0
    %2629 = vmatpush1.msra.mxu0 0.0
    %2630 = vmatprep.mubr.f32.mxu0 0.0
    %2631 = vmatmul.mubr.f32.gmra.mrb[0].mxu0 %v2539
    %v2632 = vpop.f32.mrb[0].mxu0
    %v2633 = vadd.f32 %v2564, %v2632
    %v2634 = vpop.f32.mrb[0].mxu0
    %2635 = vmatprep.mubr.f32.mxu0 0.0
    %2636 = vmatmul.mubr.f32.gmra.mrb[0].mxu0 %v2540
    %v2637 = vpop.f32.mrb[0].mxu0
    %v2638 = vadd.f32 %v2564, %v2637
    %v2639 = vpop.f32.mrb[0].mxu0
    %2640 = vmatprep.mubr.f32.mxu0 0.0
    %2641 = vmatmul.mubr.f32.gmra.mrb[0].mxu0 %v2541
    %v2642 = vpop.f32.mrb[0].mxu0
    %v2643 = vadd.f32 %v2564, %v2642
    %v2644 = vpop.f32.mrb[0].mxu0
    %2645 = vmatprep.mubr.f32.mxu0 0.0
    %2646 = vmatmul.mubr.f32.gmra.mrb[0].mxu0 %v2542
    %v2647 = vpop.f32.mrb[0].mxu0
    %v2648 = vadd.f32 %v2564, %v2647
    %v2649 = vpop.f32.mrb[0].mxu0
    %2650 = vdwg.mxu0
    %v2651 = vadd.f32 %v2321, %v2633
    %v2652 = vadd.f32 %v2322, %v2638
    %v2653 = vadd.f32 %v2323, %v2643
    %v2654 = vadd.f32 %v2324, %v2648
    %2655 = vst.msk [vmem:[#allocation2] sm:$0xff] %vm272, 0.0
    %2656 = vst.msk [vmem:[#allocation2 + $0x8] sm:$0xff] %vm272, 0.0
    %2657 = vst.msk [vmem:[#allocation2 + $0x10] sm:$0xff] %vm272, 0.0
    %2658 = vst.msk [vmem:[#allocation2 + $0x18] sm:$0xff] %vm272, 0.0
    %2659 = vst.msk [vmem:[#allocation2 + $0x20] sm:$0xff] %vm272, 0.0
    %2660 = vst.msk [vmem:[#allocation2 + $0x28] sm:$0xff] %vm272, 0.0
    %2661 = vst.msk [vmem:[#allocation2 + $0x30] sm:$0xff] %vm272, 0.0
    %2662 = vst.msk [vmem:[#allocation2 + $0x38] sm:$0xff] %vm272, 0.0
    %2663 = vst.msk [vmem:[#allocation2 + $0x40] sm:$0xff] %vm272, 0.0
    %2664 = vst.msk [vmem:[#allocation2 + $0x48] sm:$0xff] %vm272, 0.0
    %2665 = vst.msk [vmem:[#allocation2 + $0x50] sm:$0xff] %vm272, 0.0
    %2666 = vst.msk [vmem:[#allocation2 + $0x58] sm:$0xff] %vm272, 0.0
    %v2667 = vld [vmem:[%s9] sm:$0x1]
    %vm2668 = vcmask 253952
    %2669 = vst.msk [vmem:[#allocation2] sm:$0x1] %vm2668, %v2667
    %2670 = vst.msk [vmem:[#allocation2 + $0x18] sm:$0x1] %vm2668, %v2667
    %2671 = vst.msk [vmem:[#allocation2 + $0x30] sm:$0x1] %vm2668, %v2667
    %2672 = vst.msk [vmem:[#allocation2 + $0x48] sm:$0x1] %vm2668, %v2667
    %v2673 = vld [vmem:[%s8] sm:$0x1]
    %v2674 = vlaneseq
    %v2675 = vshrl.u32 %v2674, 7
    %v2676 = vsub.s32 0, %v2675
    %v2677 = vrot.slane %v2673, %v2676
    %v2678 = vadd.f32 %v2651, %v2677
    %v2679 = vadd.f32 %v2652, %v2677
    %v2680 = vadd.f32 %v2653, %v2677
    %v2681 = vadd.f32 %v2654, %v2677
    %2682 = vst.msk [vmem:[#allocation2 + $0x1] sm:$0xff] %vm272, %v2678
    %2683 = vst.msk [vmem:[#allocation2 + $0x9] sm:$0xff] %vm272, %v2679
    %2684 = vst.msk [vmem:[#allocation2 + $0x19] sm:$0xff] %vm272, %v2680
    %2685 = vst.msk [vmem:[#allocation2 + $0x21] sm:$0xff] %vm272, %v2681
    %v2686 = vld [vmem:[%s8 + $0x1] sm:$0x1]
    %v2687 = vlaneseq
    %v2688 = vshrl.u32 %v2687, 7
    %v2689 = vsub.s32 0, %v2688
    %v2690 = vrot.slane %v2686, %v2689
    %v2691 = vadd.f32 %v2651, %v2690
    %v2692 = vadd.f32 %v2652, %v2690
    %v2693 = vadd.f32 %v2653, %v2690
    %v2694 = vadd.f32 %v2654, %v2690
    %s2695 = scalar_lea.vmem [#allocation2], 48
    %2696 = vst.msk [vmem:[%s2695 + $0x1] sm:$0xff] %vm272, %v2691
    %2697 = vst.msk [vmem:[%s2695 + $0x9] sm:$0xff] %vm272, %v2692
    %2698 = vst.msk [vmem:[%s2695 + $0x19] sm:$0xff] %vm272, %v2693
    %2699 = vst.msk [vmem:[%s2695 + $0x21] sm:$0xff] %vm272, %v2694
    %v2700 = vld [vmem:[#allocation2] sm:$0xff]
    %v2701 = vld [vmem:[#allocation2 + $0x8] sm:$0xff]
    %v2702 = vld [vmem:[#allocation2 + $0x10] sm:$0xff]
    %v2703 = vld [vmem:[#allocation2 + $0x18] sm:$0xff]
    %v2704 = vld [vmem:[#allocation2 + $0x20] sm:$0xff]
    %v2705 = vld [vmem:[#allocation2 + $0x28] sm:$0xff]
    %v2706 = vld [vmem:[#allocation2 + $0x30] sm:$0xff]
    %v2707 = vld [vmem:[#allocation2 + $0x38] sm:$0xff]
    %v2708 = vld [vmem:[#allocation2 + $0x40] sm:$0xff]
    %v2709 = vld [vmem:[#allocation2 + $0x48] sm:$0xff]
    %v2710 = vld [vmem:[#allocation2 + $0x50] sm:$0xff]
    %v2711 = vld [vmem:[#allocation2 + $0x58] sm:$0xff]
    %s2712 = scalar_lea.vmem %s12, 1
    %v2713 = vld [vmem:[%s2712] sm:$0x1]
    %s2714 = scalar_lea.vmem %s13, 1
    %v2715 = vld [vmem:[%s2714] sm:$0x1]
    %v2716 = vsel %vm272, %v2700, 0.0
    %2717 = vadd.xlane.f32.xlu0 %v2716
    %v2718 = vpop.xlane.xlu0 %2717
    %v2719 = vsel %vm272, %v2701, 0.0
    %2720 = vadd.xlane.f32.xlu0 %v2719
    %v2721 = vpop.xlane.xlu0 %2720
    %v2722 = vsel %vm272, %v2702, 0.0
    %2723 = vadd.xlane.f32.xlu0 %v2722
    %v2724 = vpop.xlane.xlu0 %2723
    %v2725 = vsel %vm272, %v2703, 0.0
    %2726 = vadd.xlane.f32.xlu0 %v2725
    %v2727 = vpop.xlane.xlu0 %2726
    %v2728 = vsel %vm272, %v2704, 0.0
    %2729 = vadd.xlane.f32.xlu0 %v2728
    %v2730 = vpop.xlane.xlu0 %2729
    %v2731 = vsel %vm272, %v2705, 0.0
    %2732 = vadd.xlane.f32.xlu0 %v2731
    %v2733 = vpop.xlane.xlu0 %2732
    %v2734 = vsel %vm272, %v2706, 0.0
    %2735 = vadd.xlane.f32.xlu0 %v2734
    %v2736 = vpop.xlane.xlu0 %2735
    %v2737 = vsel %vm272, %v2707, 0.0
    %2738 = vadd.xlane.f32.xlu0 %v2737
    %v2739 = vpop.xlane.xlu0 %2738
    %v2740 = vsel %vm272, %v2708, 0.0
    %2741 = vadd.xlane.f32.xlu0 %v2740
    %v2742 = vpop.xlane.xlu0 %2741
    %v2743 = vsel %vm272, %v2709, 0.0
    %2744 = vadd.xlane.f32.xlu0 %v2743
    %v2745 = vpop.xlane.xlu0 %2744
    %v2746 = vsel %vm272, %v2710, 0.0
    %2747 = vadd.xlane.f32.xlu0 %v2746
    %v2748 = vpop.xlane.xlu0 %2747
    %v2749 = vsel %vm272, %v2711, 0.0
    %2750 = vadd.xlane.f32.xlu0 %v2749
    %v2751 = vpop.xlane.xlu0 %2750
    %v2752 = vmul.f32 %v2718, %v285
    %v2753 = vmul.f32 %v2721, %v285
    %v2754 = vmul.f32 %v2724, %v285
    %v2755 = vmul.f32 %v2727, %v285
    %v2756 = vmul.f32 %v2730, %v285
    %v2757 = vmul.f32 %v2733, %v285
    %v2758 = vmul.f32 %v2736, %v285
    %v2759 = vmul.f32 %v2739, %v285
    %v2760 = vmul.f32 %v2742, %v285
    %v2761 = vmul.f32 %v2745, %v285
    %v2762 = vmul.f32 %v2748, %v285
    %v2763 = vmul.f32 %v2751, %v285
    %v2764 = vsub.f32 %v2700, %v2752
    %v2765 = vsub.f32 %v2701, %v2753
    %v2766 = vsub.f32 %v2702, %v2754
    %v2767 = vsub.f32 %v2703, %v2755
    %v2768 = vsub.f32 %v2704, %v2756
    %v2769 = vsub.f32 %v2705, %v2757
    %v2770 = vsub.f32 %v2706, %v2758
    %v2771 = vsub.f32 %v2707, %v2759
    %v2772 = vsub.f32 %v2708, %v2760
    %v2773 = vsub.f32 %v2709, %v2761
    %v2774 = vsub.f32 %v2710, %v2762
    %v2775 = vsub.f32 %v2711, %v2763
    %v2776 = vmul.f32 %v2764, %v2764
    %v2777 = vmul.f32 %v2765, %v2765
    %v2778 = vmul.f32 %v2766, %v2766
    %v2779 = vmul.f32 %v2767, %v2767
    %v2780 = vmul.f32 %v2768, %v2768
    %v2781 = vmul.f32 %v2769, %v2769
    %v2782 = vmul.f32 %v2770, %v2770
    %v2783 = vmul.f32 %v2771, %v2771
    %v2784 = vmul.f32 %v2772, %v2772
    %v2785 = vmul.f32 %v2773, %v2773
    %v2786 = vmul.f32 %v2774, %v2774
    %v2787 = vmul.f32 %v2775, %v2775
    %v2788 = vsel %vm272, %v2776, 0.0
    %2789 = vadd.xlane.f32.xlu0 %v2788
    %v2790 = vpop.xlane.xlu0 %2789
    %v2791 = vsel %vm272, %v2777, 0.0
    %2792 = vadd.xlane.f32.xlu0 %v2791
    %v2793 = vpop.xlane.xlu0 %2792
    %v2794 = vsel %vm272, %v2778, 0.0
    %2795 = vadd.xlane.f32.xlu0 %v2794
    %v2796 = vpop.xlane.xlu0 %2795
    %v2797 = vsel %vm272, %v2779, 0.0
    %2798 = vadd.xlane.f32.xlu0 %v2797
    %v2799 = vpop.xlane.xlu0 %2798
    %v2800 = vsel %vm272, %v2780, 0.0
    %2801 = vadd.xlane.f32.xlu0 %v2800
    %v2802 = vpop.xlane.xlu0 %2801
    %v2803 = vsel %vm272, %v2781, 0.0
    %2804 = vadd.xlane.f32.xlu0 %v2803
    %v2805 = vpop.xlane.xlu0 %2804
    %v2806 = vsel %vm272, %v2782, 0.0
    %2807 = vadd.xlane.f32.xlu0 %v2806
    %v2808 = vpop.xlane.xlu0 %2807
    %v2809 = vsel %vm272, %v2783, 0.0
    %2810 = vadd.xlane.f32.xlu0 %v2809
    %v2811 = vpop.xlane.xlu0 %2810
    %v2812 = vsel %vm272, %v2784, 0.0
    %2813 = vadd.xlane.f32.xlu0 %v2812
    %v2814 = vpop.xlane.xlu0 %2813
    %v2815 = vsel %vm272, %v2785, 0.0
    %2816 = vadd.xlane.f32.xlu0 %v2815
    %v2817 = vpop.xlane.xlu0 %2816
    %v2818 = vsel %vm272, %v2786, 0.0
    %2819 = vadd.xlane.f32.xlu0 %v2818
    %v2820 = vpop.xlane.xlu0 %2819
    %v2821 = vsel %vm272, %v2787, 0.0
    %2822 = vadd.xlane.f32.xlu0 %v2821
    %v2823 = vpop.xlane.xlu0 %2822
    %v2824 = vmul.f32 %v2790, %v285
    %v2825 = vmul.f32 %v2793, %v285
    %v2826 = vmul.f32 %v2796, %v285
    %v2827 = vmul.f32 %v2799, %v285
    %v2828 = vmul.f32 %v2802, %v285
    %v2829 = vmul.f32 %v2805, %v285
    %v2830 = vmul.f32 %v2808, %v285
    %v2831 = vmul.f32 %v2811, %v285
    %v2832 = vmul.f32 %v2814, %v285
    %v2833 = vmul.f32 %v2817, %v285
    %v2834 = vmul.f32 %v2820, %v285
    %v2835 = vmul.f32 %v2823, %v285
    %v2836 = vadd.f32 %v2824, 1e-05
    %v2837 = vadd.f32 %v2825, 1e-05
    %v2838 = vadd.f32 %v2826, 1e-05
    %v2839 = vadd.f32 %v2827, 1e-05
    %v2840 = vadd.f32 %v2828, 1e-05
    %v2841 = vadd.f32 %v2829, 1e-05
    %v2842 = vadd.f32 %v2830, 1e-05
    %v2843 = vadd.f32 %v2831, 1e-05
    %v2844 = vadd.f32 %v2832, 1e-05
    %v2845 = vadd.f32 %v2833, 1e-05
    %v2846 = vadd.f32 %v2834, 1e-05
    %v2847 = vadd.f32 %v2835, 1e-05
    %v2848 = vrsqrt.pop %v2836
    %v2849 = vrsqrt.pop %v2837
    %v2850 = vrsqrt.pop %v2838
    %v2851 = vrsqrt.pop %v2839
    %v2852 = vrsqrt.pop %v2840
    %v2853 = vrsqrt.pop %v2841
    %v2854 = vrsqrt.pop %v2842
    %v2855 = vrsqrt.pop %v2843
    %v2856 = vrsqrt.pop %v2844
    %v2857 = vrsqrt.pop %v2845
    %v2858 = vrsqrt.pop %v2846
    %v2859 = vrsqrt.pop %v2847
    %v2860 = vmul.f32 %v2764, %v2848
    %v2861 = vmul.f32 %v2765, %v2849
    %v2862 = vmul.f32 %v2766, %v2850
    %v2863 = vmul.f32 %v2767, %v2851
    %v2864 = vmul.f32 %v2768, %v2852
    %v2865 = vmul.f32 %v2769, %v2853
    %v2866 = vmul.f32 %v2770, %v2854
    %v2867 = vmul.f32 %v2771, %v2855
    %v2868 = vmul.f32 %v2772, %v2856
    %v2869 = vmul.f32 %v2773, %v2857
    %v2870 = vmul.f32 %v2774, %v2858
    %v2871 = vmul.f32 %v2775, %v2859
    %v2873 = vlaneseq
    %v2874 = vshrl.u32 %v2873, 7
    %v2875 = vsub.s32 0, %v2874
    %v2876 = vrot.slane %v2713, %v2875
    %v2878 = vmul.f32 %v2860, %v2876
    %v2879 = vmul.f32 %v2861, %v2876
    %v2880 = vmul.f32 %v2862, %v2876
    %v2881 = vmul.f32 %v2863, %v2876
    %v2882 = vmul.f32 %v2864, %v2876
    %v2883 = vmul.f32 %v2865, %v2876
    %v2884 = vmul.f32 %v2866, %v2876
    %v2885 = vmul.f32 %v2867, %v2876
    %v2886 = vmul.f32 %v2868, %v2876
    %v2887 = vmul.f32 %v2869, %v2876
    %v2888 = vmul.f32 %v2870, %v2876
    %v2889 = vmul.f32 %v2871, %v2876
    %v2891 = vlaneseq
    %v2892 = vshrl.u32 %v2891, 7
    %v2893 = vsub.s32 0, %v2892
    %v2894 = vrot.slane %v2715, %v2893
    %v2896 = vadd.f32 %v2878, %v2894
    %v2897 = vadd.f32 %v2879, %v2894
    %v2898 = vadd.f32 %v2880, %v2894
    %v2899 = vadd.f32 %v2881, %v2894
    %v2900 = vadd.f32 %v2882, %v2894
    %v2901 = vadd.f32 %v2883, %v2894
    %v2902 = vadd.f32 %v2884, %v2894
    %v2903 = vadd.f32 %v2885, %v2894
    %v2904 = vadd.f32 %v2886, %v2894
    %v2905 = vadd.f32 %v2887, %v2894
    %v2906 = vadd.f32 %v2888, %v2894
    %v2907 = vadd.f32 %v2889, %v2894
    %s2908 = scalar_lea.vmem %s14, 32
    %v2909 = vld [vmem:[%s2908] sm:$0xff]
    %v2910 = vld [vmem:[%s2908 + $0x8] sm:$0xff]
    %v2911 = vld [vmem:[%s2908 + $0x10] sm:$0xff]
    %v2912 = vld [vmem:[%s2908 + $0x18] sm:$0xff]
    %s2913 = scalar_lea.vmem %s15, 1
    %v2914 = vld [vmem:[%s2913] sm:$0x1]
    %v2916 = vlaneseq
    %v2917 = vshrl.u32 %v2916, 7
    %v2918 = vsub.s32 0, %v2917
    %v2919 = vrot.slane %v2914, %v2918
    %v2922 = vsel %vm272, %v2896, 0
    %v2925 = vsel %vm272, %v2897, 0
    %v2928 = vsel %vm272, %v2898, 0
    %v2931 = vsel %vm272, %v2899, 0
    %v2934 = vsel %vm272, %v2900, 0
    %v2937 = vsel %vm272, %v2901, 0
    %v2940 = vsel %vm272, %v2902, 0
    %v2943 = vsel %vm272, %v2903, 0
    %v2946 = vsel %vm272, %v2904, 0
    %v2949 = vsel %vm272, %v2905, 0
    %v2952 = vsel %vm272, %v2906, 0
    %v2955 = vsel %vm272, %v2907, 0
    %2957 = vmatprep.subr.mxu0 0.0
    %2958 = vmatpush1.msra.mxu0 %v2909
    %2959 = vmatprep.subr.mxu0 0.0
    %2960 = vmatpush1.msra.mxu0 %v2910
    %2961 = vmatprep.subr.mxu0 0.0
    %2962 = vmatpush1.msra.mxu0 %v2911
    %2963 = vmatprep.subr.mxu0 0.0
    %2964 = vmatpush1.msra.mxu0 %v2912
    %2965 = vmatprep.subr.mxu0 0.0
    %2966 = vmatpush1.msra.mxu0 0.0
    %2967 = vmatprep.subr.mxu0 0.0
    %2968 = vmatpush1.msra.mxu0 0.0
    %2969 = vmatprep.subr.mxu0 0.0
    %2970 = vmatpush1.msra.mxu0 0.0
    %2971 = vmatprep.subr.mxu0 0.0
    %2972 = vmatpush1.msra.mxu0 0.0
    %2973 = vmatprep.subr.mxu0 0.0
    %2974 = vmatpush1.msra.mxu0 0.0
    %2975 = vmatprep.subr.mxu0 0.0
    %2976 = vmatpush1.msra.mxu0 0.0
    %2977 = vmatprep.subr.mxu0 0.0
    %2978 = vmatpush1.msra.mxu0 0.0
    %2979 = vmatprep.subr.mxu0 0.0
    %2980 = vmatpush1.msra.mxu0 0.0
    %2981 = vmatprep.subr.mxu0 0.0
    %2982 = vmatpush1.msra.mxu0 0.0
    %2983 = vmatprep.subr.mxu0 0.0
    %2984 = vmatpush1.msra.mxu0 0.0
    %2985 = vmatprep.subr.mxu0 0.0
    %2986 = vmatpush1.msra.mxu0 0.0
    %2987 = vmatprep.subr.mxu0 0.0
    %2988 = vmatpush1.msra.mxu0 0.0
    %2989 = vmatprep.subr.mxu0 0.0
    %2990 = vmatpush1.msra.mxu0 0.0
    %2991 = vmatprep.subr.mxu0 0.0
    %2992 = vmatpush1.msra.mxu0 0.0
    %2993 = vmatprep.subr.mxu0 0.0
    %2994 = vmatpush1.msra.mxu0 0.0
    %2995 = vmatprep.subr.mxu0 0.0
    %2996 = vmatpush1.msra.mxu0 0.0
    %2997 = vmatprep.subr.mxu0 0.0
    %2998 = vmatpush1.msra.mxu0 0.0
    %2999 = vmatprep.subr.mxu0 0.0
    %3000 = vmatpush1.msra.mxu0 0.0
    %3001 = vmatprep.subr.mxu0 0.0
    %3002 = vmatpush1.msra.mxu0 0.0
    %3003 = vmatprep.subr.mxu0 0.0
    %3004 = vmatpush1.msra.mxu0 0.0
    %3005 = vmatprep.subr.mxu0 0.0
    %3006 = vmatpush1.msra.mxu0 0.0
    %3007 = vmatprep.subr.mxu0 0.0
    %3008 = vmatpush1.msra.mxu0 0.0
    %3009 = vmatprep.subr.mxu0 0.0
    %3010 = vmatpush1.msra.mxu0 0.0
    %3011 = vmatprep.subr.mxu0 0.0
    %3012 = vmatpush1.msra.mxu0 0.0
    %3013 = vmatprep.subr.mxu0 0.0
    %3014 = vmatpush1.msra.mxu0 0.0
    %3015 = vmatprep.subr.mxu0 0.0
    %3016 = vmatpush1.msra.mxu0 0.0
    %3017 = vmatprep.subr.mxu0 0.0
    %3018 = vmatpush1.msra.mxu0 0.0
    %3019 = vmatprep.subr.mxu0 0.0
    %3020 = vmatpush1.msra.mxu0 0.0
    %3021 = vmatprep.mubr.f32.mxu0 0.0
    %3022 = vmatmul.mubr.f32.gmra.mrb[0].mxu0 %v2922
    %v3023 = vpop.f32.mrb[0].mxu0
    %v3024 = vadd.f32 %v2919, %v3023
    %v3025 = vpop.f32.mrb[0].mxu0
    %3026 = vmatprep.mubr.f32.mxu0 0.0
    %3027 = vmatmul.mubr.f32.gmra.mrb[0].mxu0 %v2925
    %v3028 = vpop.f32.mrb[0].mxu0
    %v3029 = vadd.f32 %v2919, %v3028
    %v3030 = vpop.f32.mrb[0].mxu0
    %3031 = vmatprep.mubr.f32.mxu0 0.0
    %3032 = vmatmul.mubr.f32.gmra.mrb[0].mxu0 %v2928
    %v3033 = vpop.f32.mrb[0].mxu0
    %v3034 = vadd.f32 %v2919, %v3033
    %v3035 = vpop.f32.mrb[0].mxu0
    %3036 = vmatprep.mubr.f32.mxu0 0.0
    %3037 = vmatmul.mubr.f32.gmra.mrb[0].mxu0 %v2931
    %v3038 = vpop.f32.mrb[0].mxu0
    %v3039 = vadd.f32 %v2919, %v3038
    %v3040 = vpop.f32.mrb[0].mxu0
    %3041 = vmatprep.mubr.f32.mxu0 0.0
    %3042 = vmatmul.mubr.f32.gmra.mrb[0].mxu0 %v2934
    %v3043 = vpop.f32.mrb[0].mxu0
    %v3044 = vadd.f32 %v2919, %v3043
    %v3045 = vpop.f32.mrb[0].mxu0
    %3046 = vmatprep.mubr.f32.mxu0 0.0
    %3047 = vmatmul.mubr.f32.gmra.mrb[0].mxu0 %v2937
    %v3048 = vpop.f32.mrb[0].mxu0
    %v3049 = vadd.f32 %v2919, %v3048
    %v3050 = vpop.f32.mrb[0].mxu0
    %3051 = vmatprep.mubr.f32.mxu0 0.0
    %3052 = vmatmul.mubr.f32.gmra.mrb[0].mxu0 %v2940
    %v3053 = vpop.f32.mrb[0].mxu0
    %v3054 = vadd.f32 %v2919, %v3053
    %v3055 = vpop.f32.mrb[0].mxu0
    %3056 = vmatprep.mubr.f32.mxu0 0.0
    %3057 = vmatmul.mubr.f32.gmra.mrb[0].mxu0 %v2943
    %v3058 = vpop.f32.mrb[0].mxu0
    %v3059 = vadd.f32 %v2919, %v3058
    %v3060 = vpop.f32.mrb[0].mxu0
    %3061 = vmatprep.mubr.f32.mxu0 0.0
    %3062 = vmatmul.mubr.f32.gmra.mrb[0].mxu0 %v2946
    %v3063 = vpop.f32.mrb[0].mxu0
    %v3064 = vadd.f32 %v2919, %v3063
    %v3065 = vpop.f32.mrb[0].mxu0
    %3066 = vmatprep.mubr.f32.mxu0 0.0
    %3067 = vmatmul.mubr.f32.gmra.mrb[0].mxu0 %v2949
    %v3068 = vpop.f32.mrb[0].mxu0
    %v3069 = vadd.f32 %v2919, %v3068
    %v3070 = vpop.f32.mrb[0].mxu0
    %3071 = vmatprep.mubr.f32.mxu0 0.0
    %3072 = vmatmul.mubr.f32.gmra.mrb[0].mxu0 %v2952
    %v3073 = vpop.f32.mrb[0].mxu0
    %v3074 = vadd.f32 %v2919, %v3073
    %v3075 = vpop.f32.mrb[0].mxu0
    %3076 = vmatprep.mubr.f32.mxu0 0.0
    %3077 = vmatmul.mubr.f32.gmra.mrb[0].mxu0 %v2955
    %v3078 = vpop.f32.mrb[0].mxu0
    %v3079 = vadd.f32 %v2919, %v3078
    %v3080 = vpop.f32.mrb[0].mxu0
    %3081 = vdwg.mxu0
    %3094 = vrot.lane.b32.xlu0 %v3024, 120
    %v3095 = vpop.permute.xlu0 %3094
    %3096 = vrot.lane.b32.xlu0 %v3029, 120
    %v3097 = vpop.permute.xlu0 %3096
    %3098 = vrot.lane.b32.xlu0 %v3034, 120
    %v3099 = vpop.permute.xlu0 %3098
    %3100 = vrot.lane.b32.xlu0 %v3039, 120
    %v3101 = vpop.permute.xlu0 %3100
    %3102 = vrot.lane.b32.xlu0 %v3044, 120
    %v3103 = vpop.permute.xlu0 %3102
    %3104 = vrot.lane.b32.xlu0 %v3049, 120
    %v3105 = vpop.permute.xlu0 %3104
    %3106 = vrot.lane.b32.xlu0 %v3054, 120
    %v3107 = vpop.permute.xlu0 %3106
    %3108 = vrot.lane.b32.xlu0 %v3059, 120
    %v3109 = vpop.permute.xlu0 %3108
    %3110 = vrot.lane.b32.xlu0 %v3064, 120
    %v3111 = vpop.permute.xlu0 %3110
    %3112 = vrot.lane.b32.xlu0 %v3069, 120
    %v3113 = vpop.permute.xlu0 %3112
    %3114 = vrot.lane.b32.xlu0 %v3074, 120
    %v3115 = vpop.permute.xlu0 %3114
    %3116 = vrot.lane.b32.xlu0 %v3079, 120
    %v3117 = vpop.permute.xlu0 %3116
    %3118 = vrot.lane.b32.xlu0 %v3024, 112
    %v3119 = vpop.permute.xlu0 %3118
    %3120 = vrot.lane.b32.xlu0 %v3029, 112
    %v3121 = vpop.permute.xlu0 %3120
    %3122 = vrot.lane.b32.xlu0 %v3034, 112
    %v3123 = vpop.permute.xlu0 %3122
    %3124 = vrot.lane.b32.xlu0 %v3039, 112
    %v3125 = vpop.permute.xlu0 %3124
    %3126 = vrot.lane.b32.xlu0 %v3044, 112
    %v3127 = vpop.permute.xlu0 %3126
    %3128 = vrot.lane.b32.xlu0 %v3049, 112
    %v3129 = vpop.permute.xlu0 %3128
    %3130 = vrot.lane.b32.xlu0 %v3054, 112
    %v3131 = vpop.permute.xlu0 %3130
    %3132 = vrot.lane.b32.xlu0 %v3059, 112
    %v3133 = vpop.permute.xlu0 %3132
    %3134 = vrot.lane.b32.xlu0 %v3064, 112
    %v3135 = vpop.permute.xlu0 %3134
    %3136 = vrot.lane.b32.xlu0 %v3069, 112
    %v3137 = vpop.permute.xlu0 %3136
    %3138 = vrot.lane.b32.xlu0 %v3074, 112
    %v3139 = vpop.permute.xlu0 %3138
    %3140 = vrot.lane.b32.xlu0 %v3079, 112
    %v3141 = vpop.permute.xlu0 %3140
    %3142 = vrot.lane.b32.xlu0 %v3024, 104
    %v3143 = vpop.permute.xlu0 %3142
    %3144 = vrot.lane.b32.xlu0 %v3029, 104
    %v3145 = vpop.permute.xlu0 %3144
    %3146 = vrot.lane.b32.xlu0 %v3034, 104
    %v3147 = vpop.permute.xlu0 %3146
    %3148 = vrot.lane.b32.xlu0 %v3039, 104
    %v3149 = vpop.permute.xlu0 %3148
    %3150 = vrot.lane.b32.xlu0 %v3044, 104
    %v3151 = vpop.permute.xlu0 %3150
    %3152 = vrot.lane.b32.xlu0 %v3049, 104
    %v3153 = vpop.permute.xlu0 %3152
    %3154 = vrot.lane.b32.xlu0 %v3054, 104
    %v3155 = vpop.permute.xlu0 %3154
    %3156 = vrot.lane.b32.xlu0 %v3059, 104
    %v3157 = vpop.permute.xlu0 %3156
    %3158 = vrot.lane.b32.xlu0 %v3064, 104
    %v3159 = vpop.permute.xlu0 %3158
    %3160 = vrot.lane.b32.xlu0 %v3069, 104
    %v3161 = vpop.permute.xlu0 %3160
    %3162 = vrot.lane.b32.xlu0 %v3074, 104
    %v3163 = vpop.permute.xlu0 %3162
    %3164 = vrot.lane.b32.xlu0 %v3079, 104
    %v3165 = vpop.permute.xlu0 %3164
    %3166 = vrot.lane.b32.xlu0 %v3024, 96
    %v3167 = vpop.permute.xlu0 %3166
    %3168 = vrot.lane.b32.xlu0 %v3029, 96
    %v3169 = vpop.permute.xlu0 %3168
    %3170 = vrot.lane.b32.xlu0 %v3034, 96
    %v3171 = vpop.permute.xlu0 %3170
    %v3172 = vsel %vm566, %v3024, 0
    %v3174 = vsel %vm566, %v3029, 0
    %v3176 = vsel %vm566, %v3034, 0
    %v3178 = vsel %vm566, %v3167, 0
    %v3180 = vsel %vm566, %v3169, 0
    %v3182 = vsel %vm566, %v3171, 0
    %3184 = vmatprep.subr.mxu0 0.0
    %3185 = vmatpush1.xpose.msra.mxu0 %v3178
    %3186 = vmatprep.subr.mxu0 0.0
    %3187 = vmatpush1.xpose.msra.mxu0 %v3180
    %3188 = vmatprep.subr.mxu0 0.0
    %3189 = vmatpush1.xpose.msra.mxu0 %v3182
    %3190 = vmatprep.subr.mxu0 0.0
    %3191 = vmatpush1.xpose.msra.mxu0 0.0
    %3192 = vmatprep.subr.mxu0 0.0
    %3193 = vmatpush1.xpose.msra.mxu0 0.0
    %3194 = vmatprep.subr.mxu0 0.0
    %3195 = vmatpush1.xpose.msra.mxu0 0.0
    %3196 = vmatprep.subr.mxu0 0.0
    %3197 = vmatpush1.xpose.msra.mxu0 0.0
    %3198 = vmatprep.subr.mxu0 0.0
    %3199 = vmatpush1.xpose.msra.mxu0 0.0
    %3200 = vmatprep.subr.mxu0 0.0
    %3201 = vmatpush1.xpose.msra.mxu0 0.0
    %3202 = vmatprep.subr.mxu0 0.0
    %3203 = vmatpush1.xpose.msra.mxu0 0.0
    %3204 = vmatprep.subr.mxu0 0.0
    %3205 = vmatpush1.xpose.msra.mxu0 0.0
    %3206 = vmatprep.subr.mxu0 0.0
    %3207 = vmatpush1.xpose.msra.mxu0 0.0
    %3208 = vmatprep.subr.mxu0 0.0
    %3209 = vmatpush1.xpose.msra.mxu0 0.0
    %3210 = vmatprep.subr.mxu0 0.0
    %3211 = vmatpush1.xpose.msra.mxu0 0.0
    %3212 = vmatprep.subr.mxu0 0.0
    %3213 = vmatpush1.xpose.msra.mxu0 0.0
    %3214 = vmatprep.subr.mxu0 0.0
    %3215 = vmatpush1.xpose.msra.mxu0 0.0
    %3216 = vmatprep.subr.mxu0 0.0
    %3217 = vmatpush1.xpose.msra.mxu0 0.0
    %3218 = vmatprep.subr.mxu0 0.0
    %3219 = vmatpush1.xpose.msra.mxu0 0.0
    %3220 = vmatprep.subr.mxu0 0.0
    %3221 = vmatpush1.xpose.msra.mxu0 0.0
    %3222 = vmatprep.subr.mxu0 0.0
    %3223 = vmatpush1.xpose.msra.mxu0 0.0
    %3224 = vmatprep.subr.mxu0 0.0
    %3225 = vmatpush1.xpose.msra.mxu0 0.0
    %3226 = vmatprep.subr.mxu0 0.0
    %3227 = vmatpush1.xpose.msra.mxu0 0.0
    %3228 = vmatprep.subr.mxu0 0.0
    %3229 = vmatpush1.xpose.msra.mxu0 0.0
    %3230 = vmatprep.subr.mxu0 0.0
    %3231 = vmatpush1.xpose.msra.mxu0 0.0
    %3232 = vmatprep.subr.mxu0 0.0
    %3233 = vmatpush1.xpose.msra.mxu0 0.0
    %3234 = vmatprep.subr.mxu0 0.0
    %3235 = vmatpush1.xpose.msra.mxu0 0.0
    %3236 = vmatprep.subr.mxu0 0.0
    %3237 = vmatpush1.xpose.msra.mxu0 0.0
    %3238 = vmatprep.subr.mxu0 0.0
    %3239 = vmatpush1.xpose.msra.mxu0 0.0
    %3240 = vmatprep.subr.mxu0 0.0
    %3241 = vmatpush1.xpose.msra.mxu0 0.0
    %3242 = vmatprep.subr.mxu0 0.0
    %3243 = vmatpush1.xpose.msra.mxu0 0.0
    %3244 = vmatprep.subr.mxu0 0.0
    %3245 = vmatpush1.xpose.msra.mxu0 0.0
    %3246 = vmatprep.subr.mxu0 0.0
    %3247 = vmatpush1.xpose.msra.mxu0 0.0
    %3248 = vmatprep.mubr.f32.mxu0 0.0
    %3249 = vmatmul.mubr.f32.gmra.mrb[0].mxu0 %v3172
    %v3250 = vpop.f32.mrb[0].mxu0
    %v3251 = vadd.f32 0.0, %v3250
    %v3252 = vpop.f32.mrb[0].mxu0
    %3253 = vmatprep.mubr.f32.mxu0 0.0
    %3254 = vmatmul.mubr.f32.gmra.mrb[0].mxu0 %v3174
    %v3255 = vpop.f32.mrb[0].mxu0
    %v3256 = vadd.f32 0.0, %v3255
    %v3257 = vpop.f32.mrb[0].mxu0
    %3258 = vmatprep.mubr.f32.mxu0 0.0
    %3259 = vmatmul.mubr.f32.gmra.mrb[0].mxu0 %v3176
    %v3260 = vpop.f32.mrb[0].mxu0
    %v3261 = vadd.f32 0.0, %v3260
    %v3262 = vpop.f32.mrb[0].mxu0
    %3263 = vdwg.mxu0
    %3264 = vrot.lane.b32.xlu0 %v3039, 96
    %v3265 = vpop.permute.xlu0 %3264
    %3266 = vrot.lane.b32.xlu0 %v3044, 96
    %v3267 = vpop.permute.xlu0 %3266
    %3268 = vrot.lane.b32.xlu0 %v3049, 96
    %v3269 = vpop.permute.xlu0 %3268
    %v3270 = vsel %vm566, %v3039, 0
    %v3272 = vsel %vm566, %v3044, 0
    %v3274 = vsel %vm566, %v3049, 0
    %v3276 = vsel %vm566, %v3265, 0
    %v3278 = vsel %vm566, %v3267, 0
    %v3280 = vsel %vm566, %v3269, 0
    %3282 = vmatprep.subr.mxu0 0.0
    %3283 = vmatpush1.xpose.msra.mxu0 %v3276
    %3284 = vmatprep.subr.mxu0 0.0
    %3285 = vmatpush1.xpose.msra.mxu0 %v3278
    %3286 = vmatprep.subr.mxu0 0.0
    %3287 = vmatpush1.xpose.msra.mxu0 %v3280
    %3288 = vmatprep.subr.mxu0 0.0
    %3289 = vmatpush1.xpose.msra.mxu0 0.0
    %3290 = vmatprep.subr.mxu0 0.0
    %3291 = vmatpush1.xpose.msra.mxu0 0.0
    %3292 = vmatprep.subr.mxu0 0.0
    %3293 = vmatpush1.xpose.msra.mxu0 0.0
    %3294 = vmatprep.subr.mxu0 0.0
    %3295 = vmatpush1.xpose.msra.mxu0 0.0
    %3296 = vmatprep.subr.mxu0 0.0
    %3297 = vmatpush1.xpose.msra.mxu0 0.0
    %3298 = vmatprep.subr.mxu0 0.0
    %3299 = vmatpush1.xpose.msra.mxu0 0.0
    %3300 = vmatprep.subr.mxu0 0.0
    %3301 = vmatpush1.xpose.msra.mxu0 0.0
    %3302 = vmatprep.subr.mxu0 0.0
    %3303 = vmatpush1.xpose.msra.mxu0 0.0
    %3304 = vmatprep.subr.mxu0 0.0
    %3305 = vmatpush1.xpose.msra.mxu0 0.0
    %3306 = vmatprep.subr.mxu0 0.0
    %3307 = vmatpush1.xpose.msra.mxu0 0.0
    %3308 = vmatprep.subr.mxu0 0.0
    %3309 = vmatpush1.xpose.msra.mxu0 0.0
    %3310 = vmatprep.subr.mxu0 0.0
    %3311 = vmatpush1.xpose.msra.mxu0 0.0
    %3312 = vmatprep.subr.mxu0 0.0
    %3313 = vmatpush1.xpose.msra.mxu0 0.0
    %3314 = vmatprep.subr.mxu0 0.0
    %3315 = vmatpush1.xpose.msra.mxu0 0.0
    %3316 = vmatprep.subr.mxu0 0.0
    %3317 = vmatpush1.xpose.msra.mxu0 0.0
    %3318 = vmatprep.subr.mxu0 0.0
    %3319 = vmatpush1.xpose.msra.mxu0 0.0
    %3320 = vmatprep.subr.mxu0 0.0
    %3321 = vmatpush1.xpose.msra.mxu0 0.0
    %3322 = vmatprep.subr.mxu0 0.0
    %3323 = vmatpush1.xpose.msra.mxu0 0.0
    %3324 = vmatprep.subr.mxu0 0.0
    %3325 = vmatpush1.xpose.msra.mxu0 0.0
    %3326 = vmatprep.subr.mxu0 0.0
    %3327 = vmatpush1.xpose.msra.mxu0 0.0
    %3328 = vmatprep.subr.mxu0 0.0
    %3329 = vmatpush1.xpose.msra.mxu0 0.0
    %3330 = vmatprep.subr.mxu0 0.0
    %3331 = vmatpush1.xpose.msra.mxu0 0.0
    %3332 = vmatprep.subr.mxu0 0.0
    %3333 = vmatpush1.xpose.msra.mxu0 0.0
    %3334 = vmatprep.subr.mxu0 0.0
    %3335 = vmatpush1.xpose.msra.mxu0 0.0
    %3336 = vmatprep.subr.mxu0 0.0
    %3337 = vmatpush1.xpose.msra.mxu0 0.0
    %3338 = vmatprep.subr.mxu0 0.0
    %3339 = vmatpush1.xpose.msra.mxu0 0.0
    %3340 = vmatprep.subr.mxu0 0.0
    %3341 = vmatpush1.xpose.msra.mxu0 0.0
    %3342 = vmatprep.subr.mxu0 0.0
    %3343 = vmatpush1.xpose.msra.mxu0 0.0
    %3344 = vmatprep.subr.mxu0 0.0
    %3345 = vmatpush1.xpose.msra.mxu0 0.0
    %3346 = vmatprep.mubr.f32.mxu0 0.0
    %3347 = vmatmul.mubr.f32.gmra.mrb[0].mxu0 %v3270
    %v3348 = vpop.f32.mrb[0].mxu0
    %v3349 = vadd.f32 0.0, %v3348
    %v3350 = vpop.f32.mrb[0].mxu0
    %3351 = vmatprep.mubr.f32.mxu0 0.0
    %3352 = vmatmul.mubr.f32.gmra.mrb[0].mxu0 %v3272
    %v3353 = vpop.f32.mrb[0].mxu0
    %v3354 = vadd.f32 0.0, %v3353
    %v3355 = vpop.f32.mrb[0].mxu0
    %3356 = vmatprep.mubr.f32.mxu0 0.0
    %3357 = vmatmul.mubr.f32.gmra.mrb[0].mxu0 %v3274
    %v3358 = vpop.f32.mrb[0].mxu0
    %v3359 = vadd.f32 0.0, %v3358
    %v3360 = vpop.f32.mrb[0].mxu0
    %3361 = vdwg.mxu0
    %3362 = vrot.lane.b32.xlu0 %v3054, 96
    %v3363 = vpop.permute.xlu0 %3362
    %3364 = vrot.lane.b32.xlu0 %v3059, 96
    %v3365 = vpop.permute.xlu0 %3364
    %3366 = vrot.lane.b32.xlu0 %v3064, 96
    %v3367 = vpop.permute.xlu0 %3366
    %v3368 = vsel %vm566, %v3054, 0
    %v3370 = vsel %vm566, %v3059, 0
    %v3372 = vsel %vm566, %v3064, 0
    %v3374 = vsel %vm566, %v3363, 0
    %v3376 = vsel %vm566, %v3365, 0
    %v3378 = vsel %vm566, %v3367, 0
    %3380 = vmatprep.subr.mxu0 0.0
    %3381 = vmatpush1.xpose.msra.mxu0 %v3374
    %3382 = vmatprep.subr.mxu0 0.0
    %3383 = vmatpush1.xpose.msra.mxu0 %v3376
    %3384 = vmatprep.subr.mxu0 0.0
    %3385 = vmatpush1.xpose.msra.mxu0 %v3378
    %3386 = vmatprep.subr.mxu0 0.0
    %3387 = vmatpush1.xpose.msra.mxu0 0.0
    %3388 = vmatprep.subr.mxu0 0.0
    %3389 = vmatpush1.xpose.msra.mxu0 0.0
    %3390 = vmatprep.subr.mxu0 0.0
    %3391 = vmatpush1.xpose.msra.mxu0 0.0
    %3392 = vmatprep.subr.mxu0 0.0
    %3393 = vmatpush1.xpose.msra.mxu0 0.0
    %3394 = vmatprep.subr.mxu0 0.0
    %3395 = vmatpush1.xpose.msra.mxu0 0.0
    %3396 = vmatprep.subr.mxu0 0.0
    %3397 = vmatpush1.xpose.msra.mxu0 0.0
    %3398 = vmatprep.subr.mxu0 0.0
    %3399 = vmatpush1.xpose.msra.mxu0 0.0
    %3400 = vmatprep.subr.mxu0 0.0
    %3401 = vmatpush1.xpose.msra.mxu0 0.0
    %3402 = vmatprep.subr.mxu0 0.0
    %3403 = vmatpush1.xpose.msra.mxu0 0.0
    %3404 = vmatprep.subr.mxu0 0.0
    %3405 = vmatpush1.xpose.msra.mxu0 0.0
    %3406 = vmatprep.subr.mxu0 0.0
    %3407 = vmatpush1.xpose.msra.mxu0 0.0
    %3408 = vmatprep.subr.mxu0 0.0
    %3409 = vmatpush1.xpose.msra.mxu0 0.0
    %3410 = vmatprep.subr.mxu0 0.0
    %3411 = vmatpush1.xpose.msra.mxu0 0.0
    %3412 = vmatprep.subr.mxu0 0.0
    %3413 = vmatpush1.xpose.msra.mxu0 0.0
    %3414 = vmatprep.subr.mxu0 0.0
    %3415 = vmatpush1.xpose.msra.mxu0 0.0
    %3416 = vmatprep.subr.mxu0 0.0
    %3417 = vmatpush1.xpose.msra.mxu0 0.0
    %3418 = vmatprep.subr.mxu0 0.0
    %3419 = vmatpush1.xpose.msra.mxu0 0.0
    %3420 = vmatprep.subr.mxu0 0.0
    %3421 = vmatpush1.xpose.msra.mxu0 0.0
    %3422 = vmatprep.subr.mxu0 0.0
    %3423 = vmatpush1.xpose.msra.mxu0 0.0
    %3424 = vmatprep.subr.mxu0 0.0
    %3425 = vmatpush1.xpose.msra.mxu0 0.0
    %3426 = vmatprep.subr.mxu0 0.0
    %3427 = vmatpush1.xpose.msra.mxu0 0.0
    %3428 = vmatprep.subr.mxu0 0.0
    %3429 = vmatpush1.xpose.msra.mxu0 0.0
    %3430 = vmatprep.subr.mxu0 0.0
    %3431 = vmatpush1.xpose.msra.mxu0 0.0
    %3432 = vmatprep.subr.mxu0 0.0
    %3433 = vmatpush1.xpose.msra.mxu0 0.0
    %3434 = vmatprep.subr.mxu0 0.0
    %3435 = vmatpush1.xpose.msra.mxu0 0.0
    %3436 = vmatprep.subr.mxu0 0.0
    %3437 = vmatpush1.xpose.msra.mxu0 0.0
    %3438 = vmatprep.subr.mxu0 0.0
    %3439 = vmatpush1.xpose.msra.mxu0 0.0
    %3440 = vmatprep.subr.mxu0 0.0
    %3441 = vmatpush1.xpose.msra.mxu0 0.0
    %3442 = vmatprep.subr.mxu0 0.0
    %3443 = vmatpush1.xpose.msra.mxu0 0.0
    %3444 = vmatprep.mubr.f32.mxu0 0.0
    %3445 = vmatmul.mubr.f32.gmra.mrb[0].mxu0 %v3368
    %v3446 = vpop.f32.mrb[0].mxu0
    %v3447 = vadd.f32 0.0, %v3446
    %v3448 = vpop.f32.mrb[0].mxu0
    %3449 = vmatprep.mubr.f32.mxu0 0.0
    %3450 = vmatmul.mubr.f32.gmra.mrb[0].mxu0 %v3370
    %v3451 = vpop.f32.mrb[0].mxu0
    %v3452 = vadd.f32 0.0, %v3451
    %v3453 = vpop.f32.mrb[0].mxu0
    %3454 = vmatprep.mubr.f32.mxu0 0.0
    %3455 = vmatmul.mubr.f32.gmra.mrb[0].mxu0 %v3372
    %v3456 = vpop.f32.mrb[0].mxu0
    %v3457 = vadd.f32 0.0, %v3456
    %v3458 = vpop.f32.mrb[0].mxu0
    %3459 = vdwg.mxu0
    %3460 = vrot.lane.b32.xlu0 %v3069, 96
    %v3461 = vpop.permute.xlu0 %3460
    %3462 = vrot.lane.b32.xlu0 %v3074, 96
    %v3463 = vpop.permute.xlu0 %3462
    %3464 = vrot.lane.b32.xlu0 %v3079, 96
    %v3465 = vpop.permute.xlu0 %3464
    %v3466 = vsel %vm566, %v3069, 0
    %v3468 = vsel %vm566, %v3074, 0
    %v3470 = vsel %vm566, %v3079, 0
    %v3472 = vsel %vm566, %v3461, 0
    %v3474 = vsel %vm566, %v3463, 0
    %v3476 = vsel %vm566, %v3465, 0
    %3478 = vmatprep.subr.mxu0 0.0
    %3479 = vmatpush1.xpose.msra.mxu0 %v3472
    %3480 = vmatprep.subr.mxu0 0.0
    %3481 = vmatpush1.xpose.msra.mxu0 %v3474
    %3482 = vmatprep.subr.mxu0 0.0
    %3483 = vmatpush1.xpose.msra.mxu0 %v3476
    %3484 = vmatprep.subr.mxu0 0.0
    %3485 = vmatpush1.xpose.msra.mxu0 0.0
    %3486 = vmatprep.subr.mxu0 0.0
    %3487 = vmatpush1.xpose.msra.mxu0 0.0
    %3488 = vmatprep.subr.mxu0 0.0
    %3489 = vmatpush1.xpose.msra.mxu0 0.0
    %3490 = vmatprep.subr.mxu0 0.0
    %3491 = vmatpush1.xpose.msra.mxu0 0.0
    %3492 = vmatprep.subr.mxu0 0.0
    %3493 = vmatpush1.xpose.msra.mxu0 0.0
    %3494 = vmatprep.subr.mxu0 0.0
    %3495 = vmatpush1.xpose.msra.mxu0 0.0
    %3496 = vmatprep.subr.mxu0 0.0
    %3497 = vmatpush1.xpose.msra.mxu0 0.0
    %3498 = vmatprep.subr.mxu0 0.0
    %3499 = vmatpush1.xpose.msra.mxu0 0.0
    %3500 = vmatprep.subr.mxu0 0.0
    %3501 = vmatpush1.xpose.msra.mxu0 0.0
    %3502 = vmatprep.subr.mxu0 0.0
    %3503 = vmatpush1.xpose.msra.mxu0 0.0
    %3504 = vmatprep.subr.mxu0 0.0
    %3505 = vmatpush1.xpose.msra.mxu0 0.0
    %3506 = vmatprep.subr.mxu0 0.0
    %3507 = vmatpush1.xpose.msra.mxu0 0.0
    %3508 = vmatprep.subr.mxu0 0.0
    %3509 = vmatpush1.xpose.msra.mxu0 0.0
    %3510 = vmatprep.subr.mxu0 0.0
    %3511 = vmatpush1.xpose.msra.mxu0 0.0
    %3512 = vmatprep.subr.mxu0 0.0
    %3513 = vmatpush1.xpose.msra.mxu0 0.0
    %3514 = vmatprep.subr.mxu0 0.0
    %3515 = vmatpush1.xpose.msra.mxu0 0.0
    %3516 = vmatprep.subr.mxu0 0.0
    %3517 = vmatpush1.xpose.msra.mxu0 0.0
    %3518 = vmatprep.subr.mxu0 0.0
    %3519 = vmatpush1.xpose.msra.mxu0 0.0
    %3520 = vmatprep.subr.mxu0 0.0
    %3521 = vmatpush1.xpose.msra.mxu0 0.0
    %3522 = vmatprep.subr.mxu0 0.0
    %3523 = vmatpush1.xpose.msra.mxu0 0.0
    %3524 = vmatprep.subr.mxu0 0.0
    %3525 = vmatpush1.xpose.msra.mxu0 0.0
    %3526 = vmatprep.subr.mxu0 0.0
    %3527 = vmatpush1.xpose.msra.mxu0 0.0
    %3528 = vmatprep.subr.mxu0 0.0
    %3529 = vmatpush1.xpose.msra.mxu0 0.0
    %3530 = vmatprep.subr.mxu0 0.0
    %3531 = vmatpush1.xpose.msra.mxu0 0.0
    %3532 = vmatprep.subr.mxu0 0.0
    %3533 = vmatpush1.xpose.msra.mxu0 0.0
    %3534 = vmatprep.subr.mxu0 0.0
    %3535 = vmatpush1.xpose.msra.mxu0 0.0
    %3536 = vmatprep.subr.mxu0 0.0
    %3537 = vmatpush1.xpose.msra.mxu0 0.0
    %3538 = vmatprep.subr.mxu0 0.0
    %3539 = vmatpush1.xpose.msra.mxu0 0.0
    %3540 = vmatprep.subr.mxu0 0.0
    %3541 = vmatpush1.xpose.msra.mxu0 0.0
    %3542 = vmatprep.mubr.f32.mxu0 0.0
    %3543 = vmatmul.mubr.f32.gmra.mrb[0].mxu0 %v3466
    %v3544 = vpop.f32.mrb[0].mxu0
    %v3545 = vadd.f32 0.0, %v3544
    %v3546 = vpop.f32.mrb[0].mxu0
    %3547 = vmatprep.mubr.f32.mxu0 0.0
    %3548 = vmatmul.mubr.f32.gmra.mrb[0].mxu0 %v3468
    %v3549 = vpop.f32.mrb[0].mxu0
    %v3550 = vadd.f32 0.0, %v3549
    %v3551 = vpop.f32.mrb[0].mxu0
    %3552 = vmatprep.mubr.f32.mxu0 0.0
    %3553 = vmatmul.mubr.f32.gmra.mrb[0].mxu0 %v3470
    %v3554 = vpop.f32.mrb[0].mxu0
    %v3555 = vadd.f32 0.0, %v3554
    %v3556 = vpop.f32.mrb[0].mxu0
    %3557 = vdwg.mxu0
    %3558 = vrot.lane.b32.xlu0 %v3095, 96
    %v3559 = vpop.permute.xlu0 %3558
    %3560 = vrot.lane.b32.xlu0 %v3097, 96
    %v3561 = vpop.permute.xlu0 %3560
    %3562 = vrot.lane.b32.xlu0 %v3099, 96
    %v3563 = vpop.permute.xlu0 %3562
    %v3564 = vsel %vm566, %v3095, 0
    %v3566 = vsel %vm566, %v3097, 0
    %v3568 = vsel %vm566, %v3099, 0
    %v3570 = vsel %vm566, %v3559, 0
    %v3572 = vsel %vm566, %v3561, 0
    %v3574 = vsel %vm566, %v3563, 0
    %3576 = vmatprep.subr.mxu0 0.0
    %3577 = vmatpush1.xpose.msra.mxu0 %v3570
    %3578 = vmatprep.subr.mxu0 0.0
    %3579 = vmatpush1.xpose.msra.mxu0 %v3572
    %3580 = vmatprep.subr.mxu0 0.0
    %3581 = vmatpush1.xpose.msra.mxu0 %v3574
    %3582 = vmatprep.subr.mxu0 0.0
    %3583 = vmatpush1.xpose.msra.mxu0 0.0
    %3584 = vmatprep.subr.mxu0 0.0
    %3585 = vmatpush1.xpose.msra.mxu0 0.0
    %3586 = vmatprep.subr.mxu0 0.0
    %3587 = vmatpush1.xpose.msra.mxu0 0.0
    %3588 = vmatprep.subr.mxu0 0.0
    %3589 = vmatpush1.xpose.msra.mxu0 0.0
    %3590 = vmatprep.subr.mxu0 0.0
    %3591 = vmatpush1.xpose.msra.mxu0 0.0
    %3592 = vmatprep.subr.mxu0 0.0
    %3593 = vmatpush1.xpose.msra.mxu0 0.0
    %3594 = vmatprep.subr.mxu0 0.0
    %3595 = vmatpush1.xpose.msra.mxu0 0.0
    %3596 = vmatprep.subr.mxu0 0.0
    %3597 = vmatpush1.xpose.msra.mxu0 0.0
    %3598 = vmatprep.subr.mxu0 0.0
    %3599 = vmatpush1.xpose.msra.mxu0 0.0
    %3600 = vmatprep.subr.mxu0 0.0
    %3601 = vmatpush1.xpose.msra.mxu0 0.0
    %3602 = vmatprep.subr.mxu0 0.0
    %3603 = vmatpush1.xpose.msra.mxu0 0.0
    %3604 = vmatprep.subr.mxu0 0.0
    %3605 = vmatpush1.xpose.msra.mxu0 0.0
    %3606 = vmatprep.subr.mxu0 0.0
    %3607 = vmatpush1.xpose.msra.mxu0 0.0
    %3608 = vmatprep.subr.mxu0 0.0
    %3609 = vmatpush1.xpose.msra.mxu0 0.0
    %3610 = vmatprep.subr.mxu0 0.0
    %3611 = vmatpush1.xpose.msra.mxu0 0.0
    %3612 = vmatprep.subr.mxu0 0.0
    %3613 = vmatpush1.xpose.msra.mxu0 0.0
    %3614 = vmatprep.subr.mxu0 0.0
    %3615 = vmatpush1.xpose.msra.mxu0 0.0
    %3616 = vmatprep.subr.mxu0 0.0
    %3617 = vmatpush1.xpose.msra.mxu0 0.0
    %3618 = vmatprep.subr.mxu0 0.0
    %3619 = vmatpush1.xpose.msra.mxu0 0.0
    %3620 = vmatprep.subr.mxu0 0.0
    %3621 = vmatpush1.xpose.msra.mxu0 0.0
    %3622 = vmatprep.subr.mxu0 0.0
    %3623 = vmatpush1.xpose.msra.mxu0 0.0
    %3624 = vmatprep.subr.mxu0 0.0
    %3625 = vmatpush1.xpose.msra.mxu0 0.0
    %3626 = vmatprep.subr.mxu0 0.0
    %3627 = vmatpush1.xpose.msra.mxu0 0.0
    %3628 = vmatprep.subr.mxu0 0.0
    %3629 = vmatpush1.xpose.msra.mxu0 0.0
    %3630 = vmatprep.subr.mxu0 0.0
    %3631 = vmatpush1.xpose.msra.mxu0 0.0
    %3632 = vmatprep.subr.mxu0 0.0
    %3633 = vmatpush1.xpose.msra.mxu0 0.0
    %3634 = vmatprep.subr.mxu0 0.0
    %3635 = vmatpush1.xpose.msra.mxu0 0.0
    %3636 = vmatprep.subr.mxu0 0.0
    %3637 = vmatpush1.xpose.msra.mxu0 0.0
    %3638 = vmatprep.subr.mxu0 0.0
    %3639 = vmatpush1.xpose.msra.mxu0 0.0
    %3640 = vmatprep.mubr.f32.mxu0 0.0
    %3641 = vmatmul.mubr.f32.gmra.mrb[0].mxu0 %v3564
    %v3642 = vpop.f32.mrb[0].mxu0
    %v3643 = vadd.f32 0.0, %v3642
    %v3644 = vpop.f32.mrb[0].mxu0
    %3645 = vmatprep.mubr.f32.mxu0 0.0
    %3646 = vmatmul.mubr.f32.gmra.mrb[0].mxu0 %v3566
    %v3647 = vpop.f32.mrb[0].mxu0
    %v3648 = vadd.f32 0.0, %v3647
    %v3649 = vpop.f32.mrb[0].mxu0
    %3650 = vmatprep.mubr.f32.mxu0 0.0
    %3651 = vmatmul.mubr.f32.gmra.mrb[0].mxu0 %v3568
    %v3652 = vpop.f32.mrb[0].mxu0
    %v3653 = vadd.f32 0.0, %v3652
    %v3654 = vpop.f32.mrb[0].mxu0
    %3655 = vdwg.mxu0
    %3656 = vrot.lane.b32.xlu0 %v3101, 96
    %v3657 = vpop.permute.xlu0 %3656
    %3658 = vrot.lane.b32.xlu0 %v3103, 96
    %v3659 = vpop.permute.xlu0 %3658
    %3660 = vrot.lane.b32.xlu0 %v3105, 96
    %v3661 = vpop.permute.xlu0 %3660
    %v3662 = vsel %vm566, %v3101, 0
    %v3664 = vsel %vm566, %v3103, 0
    %v3666 = vsel %vm566, %v3105, 0
    %v3668 = vsel %vm566, %v3657, 0
    %v3670 = vsel %vm566, %v3659, 0
    %v3672 = vsel %vm566, %v3661, 0
    %3674 = vmatprep.subr.mxu0 0.0
    %3675 = vmatpush1.xpose.msra.mxu0 %v3668
    %3676 = vmatprep.subr.mxu0 0.0
    %3677 = vmatpush1.xpose.msra.mxu0 %v3670
    %3678 = vmatprep.subr.mxu0 0.0
    %3679 = vmatpush1.xpose.msra.mxu0 %v3672
    %3680 = vmatprep.subr.mxu0 0.0
    %3681 = vmatpush1.xpose.msra.mxu0 0.0
    %3682 = vmatprep.subr.mxu0 0.0
    %3683 = vmatpush1.xpose.msra.mxu0 0.0
    %3684 = vmatprep.subr.mxu0 0.0
    %3685 = vmatpush1.xpose.msra.mxu0 0.0
    %3686 = vmatprep.subr.mxu0 0.0
    %3687 = vmatpush1.xpose.msra.mxu0 0.0
    %3688 = vmatprep.subr.mxu0 0.0
    %3689 = vmatpush1.xpose.msra.mxu0 0.0
    %3690 = vmatprep.subr.mxu0 0.0
    %3691 = vmatpush1.xpose.msra.mxu0 0.0
    %3692 = vmatprep.subr.mxu0 0.0
    %3693 = vmatpush1.xpose.msra.mxu0 0.0
    %3694 = vmatprep.subr.mxu0 0.0
    %3695 = vmatpush1.xpose.msra.mxu0 0.0
    %3696 = vmatprep.subr.mxu0 0.0
    %3697 = vmatpush1.xpose.msra.mxu0 0.0
    %3698 = vmatprep.subr.mxu0 0.0
    %3699 = vmatpush1.xpose.msra.mxu0 0.0
    %3700 = vmatprep.subr.mxu0 0.0
    %3701 = vmatpush1.xpose.msra.mxu0 0.0
    %3702 = vmatprep.subr.mxu0 0.0
    %3703 = vmatpush1.xpose.msra.mxu0 0.0
    %3704 = vmatprep.subr.mxu0 0.0
    %3705 = vmatpush1.xpose.msra.mxu0 0.0
    %3706 = vmatprep.subr.mxu0 0.0
    %3707 = vmatpush1.xpose.msra.mxu0 0.0
    %3708 = vmatprep.subr.mxu0 0.0
    %3709 = vmatpush1.xpose.msra.mxu0 0.0
    %3710 = vmatprep.subr.mxu0 0.0
    %3711 = vmatpush1.xpose.msra.mxu0 0.0
    %3712 = vmatprep.subr.mxu0 0.0
    %3713 = vmatpush1.xpose.msra.mxu0 0.0
    %3714 = vmatprep.subr.mxu0 0.0
    %3715 = vmatpush1.xpose.msra.mxu0 0.0
    %3716 = vmatprep.subr.mxu0 0.0
    %3717 = vmatpush1.xpose.msra.mxu0 0.0
    %3718 = vmatprep.subr.mxu0 0.0
    %3719 = vmatpush1.xpose.msra.mxu0 0.0
    %3720 = vmatprep.subr.mxu0 0.0
    %3721 = vmatpush1.xpose.msra.mxu0 0.0
    %3722 = vmatprep.subr.mxu0 0.0
    %3723 = vmatpush1.xpose.msra.mxu0 0.0
    %3724 = vmatprep.subr.mxu0 0.0
    %3725 = vmatpush1.xpose.msra.mxu0 0.0
    %3726 = vmatprep.subr.mxu0 0.0
    %3727 = vmatpush1.xpose.msra.mxu0 0.0
    %3728 = vmatprep.subr.mxu0 0.0
    %3729 = vmatpush1.xpose.msra.mxu0 0.0
    %3730 = vmatprep.subr.mxu0 0.0
    %3731 = vmatpush1.xpose.msra.mxu0 0.0
    %3732 = vmatprep.subr.mxu0 0.0
    %3733 = vmatpush1.xpose.msra.mxu0 0.0
    %3734 = vmatprep.subr.mxu0 0.0
    %3735 = vmatpush1.xpose.msra.mxu0 0.0
    %3736 = vmatprep.subr.mxu0 0.0
    %3737 = vmatpush1.xpose.msra.mxu0 0.0
    %3738 = vmatprep.mubr.f32.mxu0 0.0
    %3739 = vmatmul.mubr.f32.gmra.mrb[0].mxu0 %v3662
    %v3740 = vpop.f32.mrb[0].mxu0
    %v3741 = vadd.f32 0.0, %v3740
    %v3742 = vpop.f32.mrb[0].mxu0
    %3743 = vmatprep.mubr.f32.mxu0 0.0
    %3744 = vmatmul.mubr.f32.gmra.mrb[0].mxu0 %v3664
    %v3745 = vpop.f32.mrb[0].mxu0
    %v3746 = vadd.f32 0.0, %v3745
    %v3747 = vpop.f32.mrb[0].mxu0
    %3748 = vmatprep.mubr.f32.mxu0 0.0
    %3749 = vmatmul.mubr.f32.gmra.mrb[0].mxu0 %v3666
    %v3750 = vpop.f32.mrb[0].mxu0
    %v3751 = vadd.f32 0.0, %v3750
    %v3752 = vpop.f32.mrb[0].mxu0
    %3753 = vdwg.mxu0
    %3754 = vrot.lane.b32.xlu0 %v3107, 96
    %v3755 = vpop.permute.xlu0 %3754
    %3756 = vrot.lane.b32.xlu0 %v3109, 96
    %v3757 = vpop.permute.xlu0 %3756
    %3758 = vrot.lane.b32.xlu0 %v3111, 96
    %v3759 = vpop.permute.xlu0 %3758
    %v3760 = vsel %vm566, %v3107, 0
    %v3762 = vsel %vm566, %v3109, 0
    %v3764 = vsel %vm566, %v3111, 0
    %v3766 = vsel %vm566, %v3755, 0
    %v3768 = vsel %vm566, %v3757, 0
    %v3770 = vsel %vm566, %v3759, 0
    %3772 = vmatprep.subr.mxu0 0.0
    %3773 = vmatpush1.xpose.msra.mxu0 %v3766
    %3774 = vmatprep.subr.mxu0 0.0
    %3775 = vmatpush1.xpose.msra.mxu0 %v3768
    %3776 = vmatprep.subr.mxu0 0.0
    %3777 = vmatpush1.xpose.msra.mxu0 %v3770
    %3778 = vmatprep.subr.mxu0 0.0
    %3779 = vmatpush1.xpose.msra.mxu0 0.0
    %3780 = vmatprep.subr.mxu0 0.0
    %3781 = vmatpush1.xpose.msra.mxu0 0.0
    %3782 = vmatprep.subr.mxu0 0.0
    %3783 = vmatpush1.xpose.msra.mxu0 0.0
    %3784 = vmatprep.subr.mxu0 0.0
    %3785 = vmatpush1.xpose.msra.mxu0 0.0
    %3786 = vmatprep.subr.mxu0 0.0
    %3787 = vmatpush1.xpose.msra.mxu0 0.0
    %3788 = vmatprep.subr.mxu0 0.0
    %3789 = vmatpush1.xpose.msra.mxu0 0.0
    %3790 = vmatprep.subr.mxu0 0.0
    %3791 = vmatpush1.xpose.msra.mxu0 0.0
    %3792 = vmatprep.subr.mxu0 0.0
    %3793 = vmatpush1.xpose.msra.mxu0 0.0
    %3794 = vmatprep.subr.mxu0 0.0
    %3795 = vmatpush1.xpose.msra.mxu0 0.0
    %3796 = vmatprep.subr.mxu0 0.0
    %3797 = vmatpush1.xpose.msra.mxu0 0.0
    %3798 = vmatprep.subr.mxu0 0.0
    %3799 = vmatpush1.xpose.msra.mxu0 0.0
    %3800 = vmatprep.subr.mxu0 0.0
    %3801 = vmatpush1.xpose.msra.mxu0 0.0
    %3802 = vmatprep.subr.mxu0 0.0
    %3803 = vmatpush1.xpose.msra.mxu0 0.0
    %3804 = vmatprep.subr.mxu0 0.0
    %3805 = vmatpush1.xpose.msra.mxu0 0.0
    %3806 = vmatprep.subr.mxu0 0.0
    %3807 = vmatpush1.xpose.msra.mxu0 0.0
    %3808 = vmatprep.subr.mxu0 0.0
    %3809 = vmatpush1.xpose.msra.mxu0 0.0
    %3810 = vmatprep.subr.mxu0 0.0
    %3811 = vmatpush1.xpose.msra.mxu0 0.0
    %3812 = vmatprep.subr.mxu0 0.0
    %3813 = vmatpush1.xpose.msra.mxu0 0.0
    %3814 = vmatprep.subr.mxu0 0.0
    %3815 = vmatpush1.xpose.msra.mxu0 0.0
    %3816 = vmatprep.subr.mxu0 0.0
    %3817 = vmatpush1.xpose.msra.mxu0 0.0
    %3818 = vmatprep.subr.mxu0 0.0
    %3819 = vmatpush1.xpose.msra.mxu0 0.0
    %3820 = vmatprep.subr.mxu0 0.0
    %3821 = vmatpush1.xpose.msra.mxu0 0.0
    %3822 = vmatprep.subr.mxu0 0.0
    %3823 = vmatpush1.xpose.msra.mxu0 0.0
    %3824 = vmatprep.subr.mxu0 0.0
    %3825 = vmatpush1.xpose.msra.mxu0 0.0
    %3826 = vmatprep.subr.mxu0 0.0
    %3827 = vmatpush1.xpose.msra.mxu0 0.0
    %3828 = vmatprep.subr.mxu0 0.0
    %3829 = vmatpush1.xpose.msra.mxu0 0.0
    %3830 = vmatprep.subr.mxu0 0.0
    %3831 = vmatpush1.xpose.msra.mxu0 0.0
    %3832 = vmatprep.subr.mxu0 0.0
    %3833 = vmatpush1.xpose.msra.mxu0 0.0
    %3834 = vmatprep.subr.mxu0 0.0
    %3835 = vmatpush1.xpose.msra.mxu0 0.0
    %3836 = vmatprep.mubr.f32.mxu0 0.0
    %3837 = vmatmul.mubr.f32.gmra.mrb[0].mxu0 %v3760
    %v3838 = vpop.f32.mrb[0].mxu0
    %v3839 = vadd.f32 0.0, %v3838
    %v3840 = vpop.f32.mrb[0].mxu0
    %3841 = vmatprep.mubr.f32.mxu0 0.0
    %3842 = vmatmul.mubr.f32.gmra.mrb[0].mxu0 %v3762
    %v3843 = vpop.f32.mrb[0].mxu0
    %v3844 = vadd.f32 0.0, %v3843
    %v3845 = vpop.f32.mrb[0].mxu0
    %3846 = vmatprep.mubr.f32.mxu0 0.0
    %3847 = vmatmul.mubr.f32.gmra.mrb[0].mxu0 %v3764
    %v3848 = vpop.f32.mrb[0].mxu0
    %v3849 = vadd.f32 0.0, %v3848
    %v3850 = vpop.f32.mrb[0].mxu0
    %3851 = vdwg.mxu0
    %3852 = vrot.lane.b32.xlu0 %v3113, 96
    %v3853 = vpop.permute.xlu0 %3852
    %3854 = vrot.lane.b32.xlu0 %v3115, 96
    %v3855 = vpop.permute.xlu0 %3854
    %3856 = vrot.lane.b32.xlu0 %v3117, 96
    %v3857 = vpop.permute.xlu0 %3856
    %v3858 = vsel %vm566, %v3113, 0
    %v3860 = vsel %vm566, %v3115, 0
    %v3862 = vsel %vm566, %v3117, 0
    %v3864 = vsel %vm566, %v3853, 0
    %v3866 = vsel %vm566, %v3855, 0
    %v3868 = vsel %vm566, %v3857, 0
    %3870 = vmatprep.subr.mxu0 0.0
    %3871 = vmatpush1.xpose.msra.mxu0 %v3864
    %3872 = vmatprep.subr.mxu0 0.0
    %3873 = vmatpush1.xpose.msra.mxu0 %v3866
    %3874 = vmatprep.subr.mxu0 0.0
    %3875 = vmatpush1.xpose.msra.mxu0 %v3868
    %3876 = vmatprep.subr.mxu0 0.0
    %3877 = vmatpush1.xpose.msra.mxu0 0.0
    %3878 = vmatprep.subr.mxu0 0.0
    %3879 = vmatpush1.xpose.msra.mxu0 0.0
    %3880 = vmatprep.subr.mxu0 0.0
    %3881 = vmatpush1.xpose.msra.mxu0 0.0
    %3882 = vmatprep.subr.mxu0 0.0
    %3883 = vmatpush1.xpose.msra.mxu0 0.0
    %3884 = vmatprep.subr.mxu0 0.0
    %3885 = vmatpush1.xpose.msra.mxu0 0.0
    %3886 = vmatprep.subr.mxu0 0.0
    %3887 = vmatpush1.xpose.msra.mxu0 0.0
    %3888 = vmatprep.subr.mxu0 0.0
    %3889 = vmatpush1.xpose.msra.mxu0 0.0
    %3890 = vmatprep.subr.mxu0 0.0
    %3891 = vmatpush1.xpose.msra.mxu0 0.0
    %3892 = vmatprep.subr.mxu0 0.0
    %3893 = vmatpush1.xpose.msra.mxu0 0.0
    %3894 = vmatprep.subr.mxu0 0.0
    %3895 = vmatpush1.xpose.msra.mxu0 0.0
    %3896 = vmatprep.subr.mxu0 0.0
    %3897 = vmatpush1.xpose.msra.mxu0 0.0
    %3898 = vmatprep.subr.mxu0 0.0
    %3899 = vmatpush1.xpose.msra.mxu0 0.0
    %3900 = vmatprep.subr.mxu0 0.0
    %3901 = vmatpush1.xpose.msra.mxu0 0.0
    %3902 = vmatprep.subr.mxu0 0.0
    %3903 = vmatpush1.xpose.msra.mxu0 0.0
    %3904 = vmatprep.subr.mxu0 0.0
    %3905 = vmatpush1.xpose.msra.mxu0 0.0
    %3906 = vmatprep.subr.mxu0 0.0
    %3907 = vmatpush1.xpose.msra.mxu0 0.0
    %3908 = vmatprep.subr.mxu0 0.0
    %3909 = vmatpush1.xpose.msra.mxu0 0.0
    %3910 = vmatprep.subr.mxu0 0.0
    %3911 = vmatpush1.xpose.msra.mxu0 0.0
    %3912 = vmatprep.subr.mxu0 0.0
    %3913 = vmatpush1.xpose.msra.mxu0 0.0
    %3914 = vmatprep.subr.mxu0 0.0
    %3915 = vmatpush1.xpose.msra.mxu0 0.0
    %3916 = vmatprep.subr.mxu0 0.0
    %3917 = vmatpush1.xpose.msra.mxu0 0.0
    %3918 = vmatprep.subr.mxu0 0.0
    %3919 = vmatpush1.xpose.msra.mxu0 0.0
    %3920 = vmatprep.subr.mxu0 0.0
    %3921 = vmatpush1.xpose.msra.mxu0 0.0
    %3922 = vmatprep.subr.mxu0 0.0
    %3923 = vmatpush1.xpose.msra.mxu0 0.0
    %3924 = vmatprep.subr.mxu0 0.0
    %3925 = vmatpush1.xpose.msra.mxu0 0.0
    %3926 = vmatprep.subr.mxu0 0.0
    %3927 = vmatpush1.xpose.msra.mxu0 0.0
    %3928 = vmatprep.subr.mxu0 0.0
    %3929 = vmatpush1.xpose.msra.mxu0 0.0
    %3930 = vmatprep.subr.mxu0 0.0
    %3931 = vmatpush1.xpose.msra.mxu0 0.0
    %3932 = vmatprep.subr.mxu0 0.0
    %3933 = vmatpush1.xpose.msra.mxu0 0.0
    %3934 = vmatprep.mubr.f32.mxu0 0.0
    %3935 = vmatmul.mubr.f32.gmra.mrb[0].mxu0 %v3858
    %v3936 = vpop.f32.mrb[0].mxu0
    %v3937 = vadd.f32 0.0, %v3936
    %v3938 = vpop.f32.mrb[0].mxu0
    %3939 = vmatprep.mubr.f32.mxu0 0.0
    %3940 = vmatmul.mubr.f32.gmra.mrb[0].mxu0 %v3860
    %v3941 = vpop.f32.mrb[0].mxu0
    %v3942 = vadd.f32 0.0, %v3941
    %v3943 = vpop.f32.mrb[0].mxu0
    %3944 = vmatprep.mubr.f32.mxu0 0.0
    %3945 = vmatmul.mubr.f32.gmra.mrb[0].mxu0 %v3862
    %v3946 = vpop.f32.mrb[0].mxu0
    %v3947 = vadd.f32 0.0, %v3946
    %v3948 = vpop.f32.mrb[0].mxu0
    %3949 = vdwg.mxu0
    %3950 = vrot.lane.b32.xlu0 %v3119, 96
    %v3951 = vpop.permute.xlu0 %3950
    %3952 = vrot.lane.b32.xlu0 %v3121, 96
    %v3953 = vpop.permute.xlu0 %3952
    %3954 = vrot.lane.b32.xlu0 %v3123, 96
    %v3955 = vpop.permute.xlu0 %3954
    %v3956 = vsel %vm566, %v3119, 0
    %v3958 = vsel %vm566, %v3121, 0
    %v3960 = vsel %vm566, %v3123, 0
    %v3962 = vsel %vm566, %v3951, 0
    %v3964 = vsel %vm566, %v3953, 0
    %v3966 = vsel %vm566, %v3955, 0
    %3968 = vmatprep.subr.mxu0 0.0
    %3969 = vmatpush1.xpose.msra.mxu0 %v3962
    %3970 = vmatprep.subr.mxu0 0.0
    %3971 = vmatpush1.xpose.msra.mxu0 %v3964
    %3972 = vmatprep.subr.mxu0 0.0
    %3973 = vmatpush1.xpose.msra.mxu0 %v3966
    %3974 = vmatprep.subr.mxu0 0.0
    %3975 = vmatpush1.xpose.msra.mxu0 0.0
    %3976 = vmatprep.subr.mxu0 0.0
    %3977 = vmatpush1.xpose.msra.mxu0 0.0
    %3978 = vmatprep.subr.mxu0 0.0
    %3979 = vmatpush1.xpose.msra.mxu0 0.0
    %3980 = vmatprep.subr.mxu0 0.0
    %3981 = vmatpush1.xpose.msra.mxu0 0.0
    %3982 = vmatprep.subr.mxu0 0.0
    %3983 = vmatpush1.xpose.msra.mxu0 0.0
    %3984 = vmatprep.subr.mxu0 0.0
    %3985 = vmatpush1.xpose.msra.mxu0 0.0
    %3986 = vmatprep.subr.mxu0 0.0
    %3987 = vmatpush1.xpose.msra.mxu0 0.0
    %3988 = vmatprep.subr.mxu0 0.0
    %3989 = vmatpush1.xpose.msra.mxu0 0.0
    %3990 = vmatprep.subr.mxu0 0.0
    %3991 = vmatpush1.xpose.msra.mxu0 0.0
    %3992 = vmatprep.subr.mxu0 0.0
    %3993 = vmatpush1.xpose.msra.mxu0 0.0
    %3994 = vmatprep.subr.mxu0 0.0
    %3995 = vmatpush1.xpose.msra.mxu0 0.0
    %3996 = vmatprep.subr.mxu0 0.0
    %3997 = vmatpush1.xpose.msra.mxu0 0.0
    %3998 = vmatprep.subr.mxu0 0.0
    %3999 = vmatpush1.xpose.msra.mxu0 0.0
    %4000 = vmatprep.subr.mxu0 0.0
    %4001 = vmatpush1.xpose.msra.mxu0 0.0
    %4002 = vmatprep.subr.mxu0 0.0
    %4003 = vmatpush1.xpose.msra.mxu0 0.0
    %4004 = vmatprep.subr.mxu0 0.0
    %4005 = vmatpush1.xpose.msra.mxu0 0.0
    %4006 = vmatprep.subr.mxu0 0.0
    %4007 = vmatpush1.xpose.msra.mxu0 0.0
    %4008 = vmatprep.subr.mxu0 0.0
    %4009 = vmatpush1.xpose.msra.mxu0 0.0
    %4010 = vmatprep.subr.mxu0 0.0
    %4011 = vmatpush1.xpose.msra.mxu0 0.0
    %4012 = vmatprep.subr.mxu0 0.0
    %4013 = vmatpush1.xpose.msra.mxu0 0.0
    %4014 = vmatprep.subr.mxu0 0.0
    %4015 = vmatpush1.xpose.msra.mxu0 0.0
    %4016 = vmatprep.subr.mxu0 0.0
    %4017 = vmatpush1.xpose.msra.mxu0 0.0
    %4018 = vmatprep.subr.mxu0 0.0
    %4019 = vmatpush1.xpose.msra.mxu0 0.0
    %4020 = vmatprep.subr.mxu0 0.0
    %4021 = vmatpush1.xpose.msra.mxu0 0.0
    %4022 = vmatprep.subr.mxu0 0.0
    %4023 = vmatpush1.xpose.msra.mxu0 0.0
    %4024 = vmatprep.subr.mxu0 0.0
    %4025 = vmatpush1.xpose.msra.mxu0 0.0
    %4026 = vmatprep.subr.mxu0 0.0
    %4027 = vmatpush1.xpose.msra.mxu0 0.0
    %4028 = vmatprep.subr.mxu0 0.0
    %4029 = vmatpush1.xpose.msra.mxu0 0.0
    %4030 = vmatprep.subr.mxu0 0.0
    %4031 = vmatpush1.xpose.msra.mxu0 0.0
    %4032 = vmatprep.mubr.f32.mxu0 0.0
    %4033 = vmatmul.mubr.f32.gmra.mrb[0].mxu0 %v3956
    %v4034 = vpop.f32.mrb[0].mxu0
    %v4035 = vadd.f32 0.0, %v4034
    %v4036 = vpop.f32.mrb[0].mxu0
    %4037 = vmatprep.mubr.f32.mxu0 0.0
    %4038 = vmatmul.mubr.f32.gmra.mrb[0].mxu0 %v3958
    %v4039 = vpop.f32.mrb[0].mxu0
    %v4040 = vadd.f32 0.0, %v4039
    %v4041 = vpop.f32.mrb[0].mxu0
    %4042 = vmatprep.mubr.f32.mxu0 0.0
    %4043 = vmatmul.mubr.f32.gmra.mrb[0].mxu0 %v3960
    %v4044 = vpop.f32.mrb[0].mxu0
    %v4045 = vadd.f32 0.0, %v4044
    %v4046 = vpop.f32.mrb[0].mxu0
    %4047 = vdwg.mxu0
    %4048 = vrot.lane.b32.xlu0 %v3125, 96
    %v4049 = vpop.permute.xlu0 %4048
    %4050 = vrot.lane.b32.xlu0 %v3127, 96
    %v4051 = vpop.permute.xlu0 %4050
    %4052 = vrot.lane.b32.xlu0 %v3129, 96
    %v4053 = vpop.permute.xlu0 %4052
    %v4054 = vsel %vm566, %v3125, 0
    %v4056 = vsel %vm566, %v3127, 0
    %v4058 = vsel %vm566, %v3129, 0
    %v4060 = vsel %vm566, %v4049, 0
    %v4062 = vsel %vm566, %v4051, 0
    %v4064 = vsel %vm566, %v4053, 0
    %4066 = vmatprep.subr.mxu0 0.0
    %4067 = vmatpush1.xpose.msra.mxu0 %v4060
    %4068 = vmatprep.subr.mxu0 0.0
    %4069 = vmatpush1.xpose.msra.mxu0 %v4062
    %4070 = vmatprep.subr.mxu0 0.0
    %4071 = vmatpush1.xpose.msra.mxu0 %v4064
    %4072 = vmatprep.subr.mxu0 0.0
    %4073 = vmatpush1.xpose.msra.mxu0 0.0
    %4074 = vmatprep.subr.mxu0 0.0
    %4075 = vmatpush1.xpose.msra.mxu0 0.0
    %4076 = vmatprep.subr.mxu0 0.0
    %4077 = vmatpush1.xpose.msra.mxu0 0.0
    %4078 = vmatprep.subr.mxu0 0.0
    %4079 = vmatpush1.xpose.msra.mxu0 0.0
    %4080 = vmatprep.subr.mxu0 0.0
    %4081 = vmatpush1.xpose.msra.mxu0 0.0
    %4082 = vmatprep.subr.mxu0 0.0
    %4083 = vmatpush1.xpose.msra.mxu0 0.0
    %4084 = vmatprep.subr.mxu0 0.0
    %4085 = vmatpush1.xpose.msra.mxu0 0.0
    %4086 = vmatprep.subr.mxu0 0.0
    %4087 = vmatpush1.xpose.msra.mxu0 0.0
    %4088 = vmatprep.subr.mxu0 0.0
    %4089 = vmatpush1.xpose.msra.mxu0 0.0
    %4090 = vmatprep.subr.mxu0 0.0
    %4091 = vmatpush1.xpose.msra.mxu0 0.0
    %4092 = vmatprep.subr.mxu0 0.0
    %4093 = vmatpush1.xpose.msra.mxu0 0.0
    %4094 = vmatprep.subr.mxu0 0.0
    %4095 = vmatpush1.xpose.msra.mxu0 0.0
    %4096 = vmatprep.subr.mxu0 0.0
    %4097 = vmatpush1.xpose.msra.mxu0 0.0
    %4098 = vmatprep.subr.mxu0 0.0
    %4099 = vmatpush1.xpose.msra.mxu0 0.0
    %4100 = vmatprep.subr.mxu0 0.0
    %4101 = vmatpush1.xpose.msra.mxu0 0.0
    %4102 = vmatprep.subr.mxu0 0.0
    %4103 = vmatpush1.xpose.msra.mxu0 0.0
    %4104 = vmatprep.subr.mxu0 0.0
    %4105 = vmatpush1.xpose.msra.mxu0 0.0
    %4106 = vmatprep.subr.mxu0 0.0
    %4107 = vmatpush1.xpose.msra.mxu0 0.0
    %4108 = vmatprep.subr.mxu0 0.0
    %4109 = vmatpush1.xpose.msra.mxu0 0.0
    %4110 = vmatprep.subr.mxu0 0.0
    %4111 = vmatpush1.xpose.msra.mxu0 0.0
    %4112 = vmatprep.subr.mxu0 0.0
    %4113 = vmatpush1.xpose.msra.mxu0 0.0
    %4114 = vmatprep.subr.mxu0 0.0
    %4115 = vmatpush1.xpose.msra.mxu0 0.0
    %4116 = vmatprep.subr.mxu0 0.0
    %4117 = vmatpush1.xpose.msra.mxu0 0.0
    %4118 = vmatprep.subr.mxu0 0.0
    %4119 = vmatpush1.xpose.msra.mxu0 0.0
    %4120 = vmatprep.subr.mxu0 0.0
    %4121 = vmatpush1.xpose.msra.mxu0 0.0
    %4122 = vmatprep.subr.mxu0 0.0
    %4123 = vmatpush1.xpose.msra.mxu0 0.0
    %4124 = vmatprep.subr.mxu0 0.0
    %4125 = vmatpush1.xpose.msra.mxu0 0.0
    %4126 = vmatprep.subr.mxu0 0.0
    %4127 = vmatpush1.xpose.msra.mxu0 0.0
    %4128 = vmatprep.subr.mxu0 0.0
    %4129 = vmatpush1.xpose.msra.mxu0 0.0
    %4130 = vmatprep.mubr.f32.mxu0 0.0
    %4131 = vmatmul.mubr.f32.gmra.mrb[0].mxu0 %v4054
    %v4132 = vpop.f32.mrb[0].mxu0
    %v4133 = vadd.f32 0.0, %v4132
    %v4134 = vpop.f32.mrb[0].mxu0
    %4135 = vmatprep.mubr.f32.mxu0 0.0
    %4136 = vmatmul.mubr.f32.gmra.mrb[0].mxu0 %v4056
    %v4137 = vpop.f32.mrb[0].mxu0
    %v4138 = vadd.f32 0.0, %v4137
    %v4139 = vpop.f32.mrb[0].mxu0
    %4140 = vmatprep.mubr.f32.mxu0 0.0
    %4141 = vmatmul.mubr.f32.gmra.mrb[0].mxu0 %v4058
    %v4142 = vpop.f32.mrb[0].mxu0
    %v4143 = vadd.f32 0.0, %v4142
    %v4144 = vpop.f32.mrb[0].mxu0
    %4145 = vdwg.mxu0
    %4146 = vrot.lane.b32.xlu0 %v3131, 96
    %v4147 = vpop.permute.xlu0 %4146
    %4148 = vrot.lane.b32.xlu0 %v3133, 96
    %v4149 = vpop.permute.xlu0 %4148
    %4150 = vrot.lane.b32.xlu0 %v3135, 96
    %v4151 = vpop.permute.xlu0 %4150
    %v4152 = vsel %vm566, %v3131, 0
    %v4154 = vsel %vm566, %v3133, 0
    %v4156 = vsel %vm566, %v3135, 0
    %v4158 = vsel %vm566, %v4147, 0
    %v4160 = vsel %vm566, %v4149, 0
    %v4162 = vsel %vm566, %v4151, 0
    %4164 = vmatprep.subr.mxu0 0.0
    %4165 = vmatpush1.xpose.msra.mxu0 %v4158
    %4166 = vmatprep.subr.mxu0 0.0
    %4167 = vmatpush1.xpose.msra.mxu0 %v4160
    %4168 = vmatprep.subr.mxu0 0.0
    %4169 = vmatpush1.xpose.msra.mxu0 %v4162
    %4170 = vmatprep.subr.mxu0 0.0
    %4171 = vmatpush1.xpose.msra.mxu0 0.0
    %4172 = vmatprep.subr.mxu0 0.0
    %4173 = vmatpush1.xpose.msra.mxu0 0.0
    %4174 = vmatprep.subr.mxu0 0.0
    %4175 = vmatpush1.xpose.msra.mxu0 0.0
    %4176 = vmatprep.subr.mxu0 0.0
    %4177 = vmatpush1.xpose.msra.mxu0 0.0
    %4178 = vmatprep.subr.mxu0 0.0
    %4179 = vmatpush1.xpose.msra.mxu0 0.0
    %4180 = vmatprep.subr.mxu0 0.0
    %4181 = vmatpush1.xpose.msra.mxu0 0.0
    %4182 = vmatprep.subr.mxu0 0.0
    %4183 = vmatpush1.xpose.msra.mxu0 0.0
    %4184 = vmatprep.subr.mxu0 0.0
    %4185 = vmatpush1.xpose.msra.mxu0 0.0
    %4186 = vmatprep.subr.mxu0 0.0
    %4187 = vmatpush1.xpose.msra.mxu0 0.0
    %4188 = vmatprep.subr.mxu0 0.0
    %4189 = vmatpush1.xpose.msra.mxu0 0.0
    %4190 = vmatprep.subr.mxu0 0.0
    %4191 = vmatpush1.xpose.msra.mxu0 0.0
    %4192 = vmatprep.subr.mxu0 0.0
    %4193 = vmatpush1.xpose.msra.mxu0 0.0
    %4194 = vmatprep.subr.mxu0 0.0
    %4195 = vmatpush1.xpose.msra.mxu0 0.0
    %4196 = vmatprep.subr.mxu0 0.0
    %4197 = vmatpush1.xpose.msra.mxu0 0.0
    %4198 = vmatprep.subr.mxu0 0.0
    %4199 = vmatpush1.xpose.msra.mxu0 0.0
    %4200 = vmatprep.subr.mxu0 0.0
    %4201 = vmatpush1.xpose.msra.mxu0 0.0
    %4202 = vmatprep.subr.mxu0 0.0
    %4203 = vmatpush1.xpose.msra.mxu0 0.0
    %4204 = vmatprep.subr.mxu0 0.0
    %4205 = vmatpush1.xpose.msra.mxu0 0.0
    %4206 = vmatprep.subr.mxu0 0.0
    %4207 = vmatpush1.xpose.msra.mxu0 0.0
    %4208 = vmatprep.subr.mxu0 0.0
    %4209 = vmatpush1.xpose.msra.mxu0 0.0
    %4210 = vmatprep.subr.mxu0 0.0
    %4211 = vmatpush1.xpose.msra.mxu0 0.0
    %4212 = vmatprep.subr.mxu0 0.0
    %4213 = vmatpush1.xpose.msra.mxu0 0.0
    %4214 = vmatprep.subr.mxu0 0.0
    %4215 = vmatpush1.xpose.msra.mxu0 0.0
    %4216 = vmatprep.subr.mxu0 0.0
    %4217 = vmatpush1.xpose.msra.mxu0 0.0
    %4218 = vmatprep.subr.mxu0 0.0
    %4219 = vmatpush1.xpose.msra.mxu0 0.0
    %4220 = vmatprep.subr.mxu0 0.0
    %4221 = vmatpush1.xpose.msra.mxu0 0.0
    %4222 = vmatprep.subr.mxu0 0.0
    %4223 = vmatpush1.xpose.msra.mxu0 0.0
    %4224 = vmatprep.subr.mxu0 0.0
    %4225 = vmatpush1.xpose.msra.mxu0 0.0
    %4226 = vmatprep.subr.mxu0 0.0
    %4227 = vmatpush1.xpose.msra.mxu0 0.0
    %4228 = vmatprep.mubr.f32.mxu0 0.0
    %4229 = vmatmul.mubr.f32.gmra.mrb[0].mxu0 %v4152
    %v4230 = vpop.f32.mrb[0].mxu0
    %v4231 = vadd.f32 0.0, %v4230
    %v4232 = vpop.f32.mrb[0].mxu0
    %4233 = vmatprep.mubr.f32.mxu0 0.0
    %4234 = vmatmul.mubr.f32.gmra.mrb[0].mxu0 %v4154
    %v4235 = vpop.f32.mrb[0].mxu0
    %v4236 = vadd.f32 0.0, %v4235
    %v4237 = vpop.f32.mrb[0].mxu0
    %4238 = vmatprep.mubr.f32.mxu0 0.0
    %4239 = vmatmul.mubr.f32.gmra.mrb[0].mxu0 %v4156
    %v4240 = vpop.f32.mrb[0].mxu0
    %v4241 = vadd.f32 0.0, %v4240
    %v4242 = vpop.f32.mrb[0].mxu0
    %4243 = vdwg.mxu0
    %4244 = vrot.lane.b32.xlu0 %v3137, 96
    %v4245 = vpop.permute.xlu0 %4244
    %4246 = vrot.lane.b32.xlu0 %v3139, 96
    %v4247 = vpop.permute.xlu0 %4246
    %4248 = vrot.lane.b32.xlu0 %v3141, 96
    %v4249 = vpop.permute.xlu0 %4248
    %v4250 = vsel %vm566, %v3137, 0
    %v4252 = vsel %vm566, %v3139, 0
    %v4254 = vsel %vm566, %v3141, 0
    %v4256 = vsel %vm566, %v4245, 0
    %v4258 = vsel %vm566, %v4247, 0
    %v4260 = vsel %vm566, %v4249, 0
    %4262 = vmatprep.subr.mxu0 0.0
    %4263 = vmatpush1.xpose.msra.mxu0 %v4256
    %4264 = vmatprep.subr.mxu0 0.0
    %4265 = vmatpush1.xpose.msra.mxu0 %v4258
    %4266 = vmatprep.subr.mxu0 0.0
    %4267 = vmatpush1.xpose.msra.mxu0 %v4260
    %4268 = vmatprep.subr.mxu0 0.0
    %4269 = vmatpush1.xpose.msra.mxu0 0.0
    %4270 = vmatprep.subr.mxu0 0.0
    %4271 = vmatpush1.xpose.msra.mxu0 0.0
    %4272 = vmatprep.subr.mxu0 0.0
    %4273 = vmatpush1.xpose.msra.mxu0 0.0
    %4274 = vmatprep.subr.mxu0 0.0
    %4275 = vmatpush1.xpose.msra.mxu0 0.0
    %4276 = vmatprep.subr.mxu0 0.0
    %4277 = vmatpush1.xpose.msra.mxu0 0.0
    %4278 = vmatprep.subr.mxu0 0.0
    %4279 = vmatpush1.xpose.msra.mxu0 0.0
    %4280 = vmatprep.subr.mxu0 0.0
    %4281 = vmatpush1.xpose.msra.mxu0 0.0
    %4282 = vmatprep.subr.mxu0 0.0
    %4283 = vmatpush1.xpose.msra.mxu0 0.0
    %4284 = vmatprep.subr.mxu0 0.0
    %4285 = vmatpush1.xpose.msra.mxu0 0.0
    %4286 = vmatprep.subr.mxu0 0.0
    %4287 = vmatpush1.xpose.msra.mxu0 0.0
    %4288 = vmatprep.subr.mxu0 0.0
    %4289 = vmatpush1.xpose.msra.mxu0 0.0
    %4290 = vmatprep.subr.mxu0 0.0
    %4291 = vmatpush1.xpose.msra.mxu0 0.0
    %4292 = vmatprep.subr.mxu0 0.0
    %4293 = vmatpush1.xpose.msra.mxu0 0.0
    %4294 = vmatprep.subr.mxu0 0.0
    %4295 = vmatpush1.xpose.msra.mxu0 0.0
    %4296 = vmatprep.subr.mxu0 0.0
    %4297 = vmatpush1.xpose.msra.mxu0 0.0
    %4298 = vmatprep.subr.mxu0 0.0
    %4299 = vmatpush1.xpose.msra.mxu0 0.0
    %4300 = vmatprep.subr.mxu0 0.0
    %4301 = vmatpush1.xpose.msra.mxu0 0.0
    %4302 = vmatprep.subr.mxu0 0.0
    %4303 = vmatpush1.xpose.msra.mxu0 0.0
    %4304 = vmatprep.subr.mxu0 0.0
    %4305 = vmatpush1.xpose.msra.mxu0 0.0
    %4306 = vmatprep.subr.mxu0 0.0
    %4307 = vmatpush1.xpose.msra.mxu0 0.0
    %4308 = vmatprep.subr.mxu0 0.0
    %4309 = vmatpush1.xpose.msra.mxu0 0.0
    %4310 = vmatprep.subr.mxu0 0.0
    %4311 = vmatpush1.xpose.msra.mxu0 0.0
    %4312 = vmatprep.subr.mxu0 0.0
    %4313 = vmatpush1.xpose.msra.mxu0 0.0
    %4314 = vmatprep.subr.mxu0 0.0
    %4315 = vmatpush1.xpose.msra.mxu0 0.0
    %4316 = vmatprep.subr.mxu0 0.0
    %4317 = vmatpush1.xpose.msra.mxu0 0.0
    %4318 = vmatprep.subr.mxu0 0.0
    %4319 = vmatpush1.xpose.msra.mxu0 0.0
    %4320 = vmatprep.subr.mxu0 0.0
    %4321 = vmatpush1.xpose.msra.mxu0 0.0
    %4322 = vmatprep.subr.mxu0 0.0
    %4323 = vmatpush1.xpose.msra.mxu0 0.0
    %4324 = vmatprep.subr.mxu0 0.0
    %4325 = vmatpush1.xpose.msra.mxu0 0.0
    %4326 = vmatprep.mubr.f32.mxu0 0.0
    %4327 = vmatmul.mubr.f32.gmra.mrb[0].mxu0 %v4250
    %v4328 = vpop.f32.mrb[0].mxu0
    %v4329 = vadd.f32 0.0, %v4328
    %v4330 = vpop.f32.mrb[0].mxu0
    %4331 = vmatprep.mubr.f32.mxu0 0.0
    %4332 = vmatmul.mubr.f32.gmra.mrb[0].mxu0 %v4252
    %v4333 = vpop.f32.mrb[0].mxu0
    %v4334 = vadd.f32 0.0, %v4333
    %v4335 = vpop.f32.mrb[0].mxu0
    %4336 = vmatprep.mubr.f32.mxu0 0.0
    %4337 = vmatmul.mubr.f32.gmra.mrb[0].mxu0 %v4254
    %v4338 = vpop.f32.mrb[0].mxu0
    %v4339 = vadd.f32 0.0, %v4338
    %v4340 = vpop.f32.mrb[0].mxu0
    %4341 = vdwg.mxu0
    %4342 = vrot.lane.b32.xlu0 %v3143, 96
    %v4343 = vpop.permute.xlu0 %4342
    %4344 = vrot.lane.b32.xlu0 %v3145, 96
    %v4345 = vpop.permute.xlu0 %4344
    %4346 = vrot.lane.b32.xlu0 %v3147, 96
    %v4347 = vpop.permute.xlu0 %4346
    %v4348 = vsel %vm566, %v3143, 0
    %v4350 = vsel %vm566, %v3145, 0
    %v4352 = vsel %vm566, %v3147, 0
    %v4354 = vsel %vm566, %v4343, 0
    %v4356 = vsel %vm566, %v4345, 0
    %v4358 = vsel %vm566, %v4347, 0
    %4360 = vmatprep.subr.mxu0 0.0
    %4361 = vmatpush1.xpose.msra.mxu0 %v4354
    %4362 = vmatprep.subr.mxu0 0.0
    %4363 = vmatpush1.xpose.msra.mxu0 %v4356
    %4364 = vmatprep.subr.mxu0 0.0
    %4365 = vmatpush1.xpose.msra.mxu0 %v4358
    %4366 = vmatprep.subr.mxu0 0.0
    %4367 = vmatpush1.xpose.msra.mxu0 0.0
    %4368 = vmatprep.subr.mxu0 0.0
    %4369 = vmatpush1.xpose.msra.mxu0 0.0
    %4370 = vmatprep.subr.mxu0 0.0
    %4371 = vmatpush1.xpose.msra.mxu0 0.0
    %4372 = vmatprep.subr.mxu0 0.0
    %4373 = vmatpush1.xpose.msra.mxu0 0.0
    %4374 = vmatprep.subr.mxu0 0.0
    %4375 = vmatpush1.xpose.msra.mxu0 0.0
    %4376 = vmatprep.subr.mxu0 0.0
    %4377 = vmatpush1.xpose.msra.mxu0 0.0
    %4378 = vmatprep.subr.mxu0 0.0
    %4379 = vmatpush1.xpose.msra.mxu0 0.0
    %4380 = vmatprep.subr.mxu0 0.0
    %4381 = vmatpush1.xpose.msra.mxu0 0.0
    %4382 = vmatprep.subr.mxu0 0.0
    %4383 = vmatpush1.xpose.msra.mxu0 0.0
    %4384 = vmatprep.subr.mxu0 0.0
    %4385 = vmatpush1.xpose.msra.mxu0 0.0
    %4386 = vmatprep.subr.mxu0 0.0
    %4387 = vmatpush1.xpose.msra.mxu0 0.0
    %4388 = vmatprep.subr.mxu0 0.0
    %4389 = vmatpush1.xpose.msra.mxu0 0.0
    %4390 = vmatprep.subr.mxu0 0.0
    %4391 = vmatpush1.xpose.msra.mxu0 0.0
    %4392 = vmatprep.subr.mxu0 0.0
    %4393 = vmatpush1.xpose.msra.mxu0 0.0
    %4394 = vmatprep.subr.mxu0 0.0
    %4395 = vmatpush1.xpose.msra.mxu0 0.0
    %4396 = vmatprep.subr.mxu0 0.0
    %4397 = vmatpush1.xpose.msra.mxu0 0.0
    %4398 = vmatprep.subr.mxu0 0.0
    %4399 = vmatpush1.xpose.msra.mxu0 0.0
    %4400 = vmatprep.subr.mxu0 0.0
    %4401 = vmatpush1.xpose.msra.mxu0 0.0
    %4402 = vmatprep.subr.mxu0 0.0
    %4403 = vmatpush1.xpose.msra.mxu0 0.0
    %4404 = vmatprep.subr.mxu0 0.0
    %4405 = vmatpush1.xpose.msra.mxu0 0.0
    %4406 = vmatprep.subr.mxu0 0.0
    %4407 = vmatpush1.xpose.msra.mxu0 0.0
    %4408 = vmatprep.subr.mxu0 0.0
    %4409 = vmatpush1.xpose.msra.mxu0 0.0
    %4410 = vmatprep.subr.mxu0 0.0
    %4411 = vmatpush1.xpose.msra.mxu0 0.0
    %4412 = vmatprep.subr.mxu0 0.0
    %4413 = vmatpush1.xpose.msra.mxu0 0.0
    %4414 = vmatprep.subr.mxu0 0.0
    %4415 = vmatpush1.xpose.msra.mxu0 0.0
    %4416 = vmatprep.subr.mxu0 0.0
    %4417 = vmatpush1.xpose.msra.mxu0 0.0
    %4418 = vmatprep.subr.mxu0 0.0
    %4419 = vmatpush1.xpose.msra.mxu0 0.0
    %4420 = vmatprep.subr.mxu0 0.0
    %4421 = vmatpush1.xpose.msra.mxu0 0.0
    %4422 = vmatprep.subr.mxu0 0.0
    %4423 = vmatpush1.xpose.msra.mxu0 0.0
    %4424 = vmatprep.mubr.f32.mxu0 0.0
    %4425 = vmatmul.mubr.f32.gmra.mrb[0].mxu0 %v4348
    %v4426 = vpop.f32.mrb[0].mxu0
    %v4427 = vadd.f32 0.0, %v4426
    %v4428 = vpop.f32.mrb[0].mxu0
    %4429 = vmatprep.mubr.f32.mxu0 0.0
    %4430 = vmatmul.mubr.f32.gmra.mrb[0].mxu0 %v4350
    %v4431 = vpop.f32.mrb[0].mxu0
    %v4432 = vadd.f32 0.0, %v4431
    %v4433 = vpop.f32.mrb[0].mxu0
    %4434 = vmatprep.mubr.f32.mxu0 0.0
    %4435 = vmatmul.mubr.f32.gmra.mrb[0].mxu0 %v4352
    %v4436 = vpop.f32.mrb[0].mxu0
    %v4437 = vadd.f32 0.0, %v4436
    %v4438 = vpop.f32.mrb[0].mxu0
    %4439 = vdwg.mxu0
    %4440 = vrot.lane.b32.xlu0 %v3149, 96
    %v4441 = vpop.permute.xlu0 %4440
    %4442 = vrot.lane.b32.xlu0 %v3151, 96
    %v4443 = vpop.permute.xlu0 %4442
    %4444 = vrot.lane.b32.xlu0 %v3153, 96
    %v4445 = vpop.permute.xlu0 %4444
    %v4446 = vsel %vm566, %v3149, 0
    %v4448 = vsel %vm566, %v3151, 0
    %v4450 = vsel %vm566, %v3153, 0
    %v4452 = vsel %vm566, %v4441, 0
    %v4454 = vsel %vm566, %v4443, 0
    %v4456 = vsel %vm566, %v4445, 0
    %4458 = vmatprep.subr.mxu0 0.0
    %4459 = vmatpush1.xpose.msra.mxu0 %v4452
    %4460 = vmatprep.subr.mxu0 0.0
    %4461 = vmatpush1.xpose.msra.mxu0 %v4454
    %4462 = vmatprep.subr.mxu0 0.0
    %4463 = vmatpush1.xpose.msra.mxu0 %v4456
    %4464 = vmatprep.subr.mxu0 0.0
    %4465 = vmatpush1.xpose.msra.mxu0 0.0
    %4466 = vmatprep.subr.mxu0 0.0
    %4467 = vmatpush1.xpose.msra.mxu0 0.0
    %4468 = vmatprep.subr.mxu0 0.0
    %4469 = vmatpush1.xpose.msra.mxu0 0.0
    %4470 = vmatprep.subr.mxu0 0.0
    %4471 = vmatpush1.xpose.msra.mxu0 0.0
    %4472 = vmatprep.subr.mxu0 0.0
    %4473 = vmatpush1.xpose.msra.mxu0 0.0
    %4474 = vmatprep.subr.mxu0 0.0
    %4475 = vmatpush1.xpose.msra.mxu0 0.0
    %4476 = vmatprep.subr.mxu0 0.0
    %4477 = vmatpush1.xpose.msra.mxu0 0.0
    %4478 = vmatprep.subr.mxu0 0.0
    %4479 = vmatpush1.xpose.msra.mxu0 0.0
    %4480 = vmatprep.subr.mxu0 0.0
    %4481 = vmatpush1.xpose.msra.mxu0 0.0
    %4482 = vmatprep.subr.mxu0 0.0
    %4483 = vmatpush1.xpose.msra.mxu0 0.0
    %4484 = vmatprep.subr.mxu0 0.0
    %4485 = vmatpush1.xpose.msra.mxu0 0.0
    %4486 = vmatprep.subr.mxu0 0.0
    %4487 = vmatpush1.xpose.msra.mxu0 0.0
    %4488 = vmatprep.subr.mxu0 0.0
    %4489 = vmatpush1.xpose.msra.mxu0 0.0
    %4490 = vmatprep.subr.mxu0 0.0
    %4491 = vmatpush1.xpose.msra.mxu0 0.0
    %4492 = vmatprep.subr.mxu0 0.0
    %4493 = vmatpush1.xpose.msra.mxu0 0.0
    %4494 = vmatprep.subr.mxu0 0.0
    %4495 = vmatpush1.xpose.msra.mxu0 0.0
    %4496 = vmatprep.subr.mxu0 0.0
    %4497 = vmatpush1.xpose.msra.mxu0 0.0
    %4498 = vmatprep.subr.mxu0 0.0
    %4499 = vmatpush1.xpose.msra.mxu0 0.0
    %4500 = vmatprep.subr.mxu0 0.0
    %4501 = vmatpush1.xpose.msra.mxu0 0.0
    %4502 = vmatprep.subr.mxu0 0.0
    %4503 = vmatpush1.xpose.msra.mxu0 0.0
    %4504 = vmatprep.subr.mxu0 0.0
    %4505 = vmatpush1.xpose.msra.mxu0 0.0
    %4506 = vmatprep.subr.mxu0 0.0
    %4507 = vmatpush1.xpose.msra.mxu0 0.0
    %4508 = vmatprep.subr.mxu0 0.0
    %4509 = vmatpush1.xpose.msra.mxu0 0.0
    %4510 = vmatprep.subr.mxu0 0.0
    %4511 = vmatpush1.xpose.msra.mxu0 0.0
    %4512 = vmatprep.subr.mxu0 0.0
    %4513 = vmatpush1.xpose.msra.mxu0 0.0
    %4514 = vmatprep.subr.mxu0 0.0
    %4515 = vmatpush1.xpose.msra.mxu0 0.0
    %4516 = vmatprep.subr.mxu0 0.0
    %4517 = vmatpush1.xpose.msra.mxu0 0.0
    %4518 = vmatprep.subr.mxu0 0.0
    %4519 = vmatpush1.xpose.msra.mxu0 0.0
    %4520 = vmatprep.subr.mxu0 0.0
    %4521 = vmatpush1.xpose.msra.mxu0 0.0
    %4522 = vmatprep.mubr.f32.mxu0 0.0
    %4523 = vmatmul.mubr.f32.gmra.mrb[0].mxu0 %v4446
    %v4524 = vpop.f32.mrb[0].mxu0
    %v4525 = vadd.f32 0.0, %v4524
    %v4526 = vpop.f32.mrb[0].mxu0
    %4527 = vmatprep.mubr.f32.mxu0 0.0
    %4528 = vmatmul.mubr.f32.gmra.mrb[0].mxu0 %v4448
    %v4529 = vpop.f32.mrb[0].mxu0
    %v4530 = vadd.f32 0.0, %v4529
    %v4531 = vpop.f32.mrb[0].mxu0
    %4532 = vmatprep.mubr.f32.mxu0 0.0
    %4533 = vmatmul.mubr.f32.gmra.mrb[0].mxu0 %v4450
    %v4534 = vpop.f32.mrb[0].mxu0
    %v4535 = vadd.f32 0.0, %v4534
    %v4536 = vpop.f32.mrb[0].mxu0
    %4537 = vdwg.mxu0
    %4538 = vrot.lane.b32.xlu0 %v3155, 96
    %v4539 = vpop.permute.xlu0 %4538
    %4540 = vrot.lane.b32.xlu0 %v3157, 96
    %v4541 = vpop.permute.xlu0 %4540
    %4542 = vrot.lane.b32.xlu0 %v3159, 96
    %v4543 = vpop.permute.xlu0 %4542
    %v4544 = vsel %vm566, %v3155, 0
    %v4546 = vsel %vm566, %v3157, 0
    %v4548 = vsel %vm566, %v3159, 0
    %v4550 = vsel %vm566, %v4539, 0
    %v4552 = vsel %vm566, %v4541, 0
    %v4554 = vsel %vm566, %v4543, 0
    %4556 = vmatprep.subr.mxu0 0.0
    %4557 = vmatpush1.xpose.msra.mxu0 %v4550
    %4558 = vmatprep.subr.mxu0 0.0
    %4559 = vmatpush1.xpose.msra.mxu0 %v4552
    %4560 = vmatprep.subr.mxu0 0.0
    %4561 = vmatpush1.xpose.msra.mxu0 %v4554
    %4562 = vmatprep.subr.mxu0 0.0
    %4563 = vmatpush1.xpose.msra.mxu0 0.0
    %4564 = vmatprep.subr.mxu0 0.0
    %4565 = vmatpush1.xpose.msra.mxu0 0.0
    %4566 = vmatprep.subr.mxu0 0.0
    %4567 = vmatpush1.xpose.msra.mxu0 0.0
    %4568 = vmatprep.subr.mxu0 0.0
    %4569 = vmatpush1.xpose.msra.mxu0 0.0
    %4570 = vmatprep.subr.mxu0 0.0
    %4571 = vmatpush1.xpose.msra.mxu0 0.0
    %4572 = vmatprep.subr.mxu0 0.0
    %4573 = vmatpush1.xpose.msra.mxu0 0.0
    %4574 = vmatprep.subr.mxu0 0.0
    %4575 = vmatpush1.xpose.msra.mxu0 0.0
    %4576 = vmatprep.subr.mxu0 0.0
    %4577 = vmatpush1.xpose.msra.mxu0 0.0
    %4578 = vmatprep.subr.mxu0 0.0
    %4579 = vmatpush1.xpose.msra.mxu0 0.0
    %4580 = vmatprep.subr.mxu0 0.0
    %4581 = vmatpush1.xpose.msra.mxu0 0.0
    %4582 = vmatprep.subr.mxu0 0.0
    %4583 = vmatpush1.xpose.msra.mxu0 0.0
    %4584 = vmatprep.subr.mxu0 0.0
    %4585 = vmatpush1.xpose.msra.mxu0 0.0
    %4586 = vmatprep.subr.mxu0 0.0
    %4587 = vmatpush1.xpose.msra.mxu0 0.0
    %4588 = vmatprep.subr.mxu0 0.0
    %4589 = vmatpush1.xpose.msra.mxu0 0.0
    %4590 = vmatprep.subr.mxu0 0.0
    %4591 = vmatpush1.xpose.msra.mxu0 0.0
    %4592 = vmatprep.subr.mxu0 0.0
    %4593 = vmatpush1.xpose.msra.mxu0 0.0
    %4594 = vmatprep.subr.mxu0 0.0
    %4595 = vmatpush1.xpose.msra.mxu0 0.0
    %4596 = vmatprep.subr.mxu0 0.0
    %4597 = vmatpush1.xpose.msra.mxu0 0.0
    %4598 = vmatprep.subr.mxu0 0.0
    %4599 = vmatpush1.xpose.msra.mxu0 0.0
    %4600 = vmatprep.subr.mxu0 0.0
    %4601 = vmatpush1.xpose.msra.mxu0 0.0
    %4602 = vmatprep.subr.mxu0 0.0
    %4603 = vmatpush1.xpose.msra.mxu0 0.0
    %4604 = vmatprep.subr.mxu0 0.0
    %4605 = vmatpush1.xpose.msra.mxu0 0.0
    %4606 = vmatprep.subr.mxu0 0.0
    %4607 = vmatpush1.xpose.msra.mxu0 0.0
    %4608 = vmatprep.subr.mxu0 0.0
    %4609 = vmatpush1.xpose.msra.mxu0 0.0
    %4610 = vmatprep.subr.mxu0 0.0
    %4611 = vmatpush1.xpose.msra.mxu0 0.0
    %4612 = vmatprep.subr.mxu0 0.0
    %4613 = vmatpush1.xpose.msra.mxu0 0.0
    %4614 = vmatprep.subr.mxu0 0.0
    %4615 = vmatpush1.xpose.msra.mxu0 0.0
    %4616 = vmatprep.subr.mxu0 0.0
    %4617 = vmatpush1.xpose.msra.mxu0 0.0
    %4618 = vmatprep.subr.mxu0 0.0
    %4619 = vmatpush1.xpose.msra.mxu0 0.0
    %4620 = vmatprep.mubr.f32.mxu0 0.0
    %4621 = vmatmul.mubr.f32.gmra.mrb[0].mxu0 %v4544
    %v4622 = vpop.f32.mrb[0].mxu0
    %v4623 = vadd.f32 0.0, %v4622
    %v4624 = vpop.f32.mrb[0].mxu0
    %4625 = vmatprep.mubr.f32.mxu0 0.0
    %4626 = vmatmul.mubr.f32.gmra.mrb[0].mxu0 %v4546
    %v4627 = vpop.f32.mrb[0].mxu0
    %v4628 = vadd.f32 0.0, %v4627
    %v4629 = vpop.f32.mrb[0].mxu0
    %4630 = vmatprep.mubr.f32.mxu0 0.0
    %4631 = vmatmul.mubr.f32.gmra.mrb[0].mxu0 %v4548
    %v4632 = vpop.f32.mrb[0].mxu0
    %v4633 = vadd.f32 0.0, %v4632
    %v4634 = vpop.f32.mrb[0].mxu0
    %4635 = vdwg.mxu0
    %4636 = vrot.lane.b32.xlu0 %v3161, 96
    %v4637 = vpop.permute.xlu0 %4636
    %4638 = vrot.lane.b32.xlu0 %v3163, 96
    %v4639 = vpop.permute.xlu0 %4638
    %4640 = vrot.lane.b32.xlu0 %v3165, 96
    %v4641 = vpop.permute.xlu0 %4640
    %v4642 = vsel %vm566, %v3161, 0
    %v4644 = vsel %vm566, %v3163, 0
    %v4646 = vsel %vm566, %v3165, 0
    %v4648 = vsel %vm566, %v4637, 0
    %v4650 = vsel %vm566, %v4639, 0
    %v4652 = vsel %vm566, %v4641, 0
    %4654 = vmatprep.subr.mxu0 0.0
    %4655 = vmatpush1.xpose.msra.mxu0 %v4648
    %4656 = vmatprep.subr.mxu0 0.0
    %4657 = vmatpush1.xpose.msra.mxu0 %v4650
    %4658 = vmatprep.subr.mxu0 0.0
    %4659 = vmatpush1.xpose.msra.mxu0 %v4652
    %4660 = vmatprep.subr.mxu0 0.0
    %4661 = vmatpush1.xpose.msra.mxu0 0.0
    %4662 = vmatprep.subr.mxu0 0.0
    %4663 = vmatpush1.xpose.msra.mxu0 0.0
    %4664 = vmatprep.subr.mxu0 0.0
    %4665 = vmatpush1.xpose.msra.mxu0 0.0
    %4666 = vmatprep.subr.mxu0 0.0
    %4667 = vmatpush1.xpose.msra.mxu0 0.0
    %4668 = vmatprep.subr.mxu0 0.0
    %4669 = vmatpush1.xpose.msra.mxu0 0.0
    %4670 = vmatprep.subr.mxu0 0.0
    %4671 = vmatpush1.xpose.msra.mxu0 0.0
    %4672 = vmatprep.subr.mxu0 0.0
    %4673 = vmatpush1.xpose.msra.mxu0 0.0
    %4674 = vmatprep.subr.mxu0 0.0
    %4675 = vmatpush1.xpose.msra.mxu0 0.0
    %4676 = vmatprep.subr.mxu0 0.0
    %4677 = vmatpush1.xpose.msra.mxu0 0.0
    %4678 = vmatprep.subr.mxu0 0.0
    %4679 = vmatpush1.xpose.msra.mxu0 0.0
    %4680 = vmatprep.subr.mxu0 0.0
    %4681 = vmatpush1.xpose.msra.mxu0 0.0
    %4682 = vmatprep.subr.mxu0 0.0
    %4683 = vmatpush1.xpose.msra.mxu0 0.0
    %4684 = vmatprep.subr.mxu0 0.0
    %4685 = vmatpush1.xpose.msra.mxu0 0.0
    %4686 = vmatprep.subr.mxu0 0.0
    %4687 = vmatpush1.xpose.msra.mxu0 0.0
    %4688 = vmatprep.subr.mxu0 0.0
    %4689 = vmatpush1.xpose.msra.mxu0 0.0
    %4690 = vmatprep.subr.mxu0 0.0
    %4691 = vmatpush1.xpose.msra.mxu0 0.0
    %4692 = vmatprep.subr.mxu0 0.0
    %4693 = vmatpush1.xpose.msra.mxu0 0.0
    %4694 = vmatprep.subr.mxu0 0.0
    %4695 = vmatpush1.xpose.msra.mxu0 0.0
    %4696 = vmatprep.subr.mxu0 0.0
    %4697 = vmatpush1.xpose.msra.mxu0 0.0
    %4698 = vmatprep.subr.mxu0 0.0
    %4699 = vmatpush1.xpose.msra.mxu0 0.0
    %4700 = vmatprep.subr.mxu0 0.0
    %4701 = vmatpush1.xpose.msra.mxu0 0.0
    %4702 = vmatprep.subr.mxu0 0.0
    %4703 = vmatpush1.xpose.msra.mxu0 0.0
    %4704 = vmatprep.subr.mxu0 0.0
    %4705 = vmatpush1.xpose.msra.mxu0 0.0
    %4706 = vmatprep.subr.mxu0 0.0
    %4707 = vmatpush1.xpose.msra.mxu0 0.0
    %4708 = vmatprep.subr.mxu0 0.0
    %4709 = vmatpush1.xpose.msra.mxu0 0.0
    %4710 = vmatprep.subr.mxu0 0.0
    %4711 = vmatpush1.xpose.msra.mxu0 0.0
    %4712 = vmatprep.subr.mxu0 0.0
    %4713 = vmatpush1.xpose.msra.mxu0 0.0
    %4714 = vmatprep.subr.mxu0 0.0
    %4715 = vmatpush1.xpose.msra.mxu0 0.0
    %4716 = vmatprep.subr.mxu0 0.0
    %4717 = vmatpush1.xpose.msra.mxu0 0.0
    %4718 = vmatprep.mubr.f32.mxu0 0.0
    %4719 = vmatmul.mubr.f32.gmra.mrb[0].mxu0 %v4642
    %v4720 = vpop.f32.mrb[0].mxu0
    %v4721 = vadd.f32 0.0, %v4720
    %v4722 = vpop.f32.mrb[0].mxu0
    %4723 = vmatprep.mubr.f32.mxu0 0.0
    %4724 = vmatmul.mubr.f32.gmra.mrb[0].mxu0 %v4644
    %v4725 = vpop.f32.mrb[0].mxu0
    %v4726 = vadd.f32 0.0, %v4725
    %v4727 = vpop.f32.mrb[0].mxu0
    %4728 = vmatprep.mubr.f32.mxu0 0.0
    %4729 = vmatmul.mubr.f32.gmra.mrb[0].mxu0 %v4646
    %v4730 = vpop.f32.mrb[0].mxu0
    %v4731 = vadd.f32 0.0, %v4730
    %v4732 = vpop.f32.mrb[0].mxu0
    %4733 = vdwg.mxu0
    %v4734 = vmul.f32 %v3251, 0.35355338
    %v4735 = vmul.f32 %v3256, 0.35355338
    %v4736 = vmul.f32 %v3261, 0.35355338
    %v4737 = vmul.f32 %v3349, 0.35355338
    %v4738 = vmul.f32 %v3354, 0.35355338
    %v4739 = vmul.f32 %v3359, 0.35355338
    %v4740 = vmul.f32 %v3447, 0.35355338
    %v4741 = vmul.f32 %v3452, 0.35355338
    %v4742 = vmul.f32 %v3457, 0.35355338
    %v4743 = vmul.f32 %v3545, 0.35355338
    %v4744 = vmul.f32 %v3550, 0.35355338
    %v4745 = vmul.f32 %v3555, 0.35355338
    %v4746 = vmul.f32 %v3643, 0.35355338
    %v4747 = vmul.f32 %v3648, 0.35355338
    %v4748 = vmul.f32 %v3653, 0.35355338
    %v4749 = vmul.f32 %v3741, 0.35355338
    %v4750 = vmul.f32 %v3746, 0.35355338
    %v4751 = vmul.f32 %v3751, 0.35355338
    %v4752 = vmul.f32 %v3839, 0.35355338
    %v4753 = vmul.f32 %v3844, 0.35355338
    %v4754 = vmul.f32 %v3849, 0.35355338
    %v4755 = vmul.f32 %v3937, 0.35355338
    %v4756 = vmul.f32 %v3942, 0.35355338
    %v4757 = vmul.f32 %v3947, 0.35355338
    %v4758 = vmul.f32 %v4035, 0.35355338
    %v4759 = vmul.f32 %v4040, 0.35355338
    %v4760 = vmul.f32 %v4045, 0.35355338
    %v4761 = vmul.f32 %v4133, 0.35355338
    %v4762 = vmul.f32 %v4138, 0.35355338
    %v4763 = vmul.f32 %v4143, 0.35355338
    %v4764 = vmul.f32 %v4231, 0.35355338
    %v4765 = vmul.f32 %v4236, 0.35355338
    %v4766 = vmul.f32 %v4241, 0.35355338
    %v4767 = vmul.f32 %v4329, 0.35355338
    %v4768 = vmul.f32 %v4334, 0.35355338
    %v4769 = vmul.f32 %v4339, 0.35355338
    %v4770 = vmul.f32 %v4427, 0.35355338
    %v4771 = vmul.f32 %v4432, 0.35355338
    %v4772 = vmul.f32 %v4437, 0.35355338
    %v4773 = vmul.f32 %v4525, 0.35355338
    %v4774 = vmul.f32 %v4530, 0.35355338
    %v4775 = vmul.f32 %v4535, 0.35355338
    %v4776 = vmul.f32 %v4623, 0.35355338
    %v4777 = vmul.f32 %v4628, 0.35355338
    %v4778 = vmul.f32 %v4633, 0.35355338
    %v4779 = vmul.f32 %v4721, 0.35355338
    %v4780 = vmul.f32 %v4726, 0.35355338
    %v4781 = vmul.f32 %v4731, 0.35355338
    %v4782 = vlaneseq
    %v4783 = vand.u32 %v4782, 127
    %vm4784 = vcmp.lt.s32.totalorder %v4783, 17
    %v4785 = vsel %vm4784, 1, 0
    %vm4786 = vcmp.eq.s32.totalorder %v4785, 1
    %v4787 = vsel %vm4786, %v4734, -1e+30
    %v4788 = vsel %vm4786, %v4735, -1e+30
    %v4789 = vsel %vm4786, %v4736, -1e+30
    %v4790 = vsel %vm4786, %v4737, -1e+30
    %v4791 = vsel %vm4786, %v4738, -1e+30
    %v4792 = vsel %vm4786, %v4739, -1e+30
    %v4793 = vsel %vm4786, %v4740, -1e+30
    %v4794 = vsel %vm4786, %v4741, -1e+30
    %v4795 = vsel %vm4786, %v4742, -1e+30
    %v4796 = vsel %vm4786, %v4743, -1e+30
    %v4797 = vsel %vm4786, %v4744, -1e+30
    %v4798 = vsel %vm4786, %v4745, -1e+30
    %v4799 = vsel %vm4786, %v4746, -1e+30
    %v4800 = vsel %vm4786, %v4747, -1e+30
    %v4801 = vsel %vm4786, %v4748, -1e+30
    %v4802 = vsel %vm4786, %v4749, -1e+30
    %v4803 = vsel %vm4786, %v4750, -1e+30
    %v4804 = vsel %vm4786, %v4751, -1e+30
    %v4805 = vsel %vm4786, %v4752, -1e+30
    %v4806 = vsel %vm4786, %v4753, -1e+30
    %v4807 = vsel %vm4786, %v4754, -1e+30
    %v4808 = vsel %vm4786, %v4755, -1e+30
    %v4809 = vsel %vm4786, %v4756, -1e+30
    %v4810 = vsel %vm4786, %v4757, -1e+30
    %v4811 = vsel %vm4786, %v4758, -1e+30
    %v4812 = vsel %vm4786, %v4759, -1e+30
    %v4813 = vsel %vm4786, %v4760, -1e+30
    %v4814 = vsel %vm4786, %v4761, -1e+30
    %v4815 = vsel %vm4786, %v4762, -1e+30
    %v4816 = vsel %vm4786, %v4763, -1e+30
    %v4817 = vsel %vm4786, %v4764, -1e+30
    %v4818 = vsel %vm4786, %v4765, -1e+30
    %v4819 = vsel %vm4786, %v4766, -1e+30
    %v4820 = vsel %vm4786, %v4767, -1e+30
    %v4821 = vsel %vm4786, %v4768, -1e+30
    %v4822 = vsel %vm4786, %v4769, -1e+30
    %v4823 = vsel %vm4786, %v4770, -1e+30
    %v4824 = vsel %vm4786, %v4771, -1e+30
    %v4825 = vsel %vm4786, %v4772, -1e+30
    %v4826 = vsel %vm4786, %v4773, -1e+30
    %v4827 = vsel %vm4786, %v4774, -1e+30
    %v4828 = vsel %vm4786, %v4775, -1e+30
    %v4829 = vsel %vm4786, %v4776, -1e+30
    %v4830 = vsel %vm4786, %v4777, -1e+30
    %v4831 = vsel %vm4786, %v4778, -1e+30
    %v4832 = vsel %vm4786, %v4779, -1e+30
    %v4833 = vsel %vm4786, %v4780, -1e+30
    %v4834 = vsel %vm4786, %v4781, -1e+30
    %v4835 = vsel %vm2204, %v4787, -inf
    %4836 = vmax.xlane.f32.xlu0 %v4835
    %v4837 = vpop.xlane.xlu0 %4836
    %v4838 = vsel %vm2204, %v4788, -inf
    %4839 = vmax.xlane.f32.xlu0 %v4838
    %v4840 = vpop.xlane.xlu0 %4839
    %v4841 = vsel %vm2204, %v4789, -inf
    %4842 = vmax.xlane.f32.xlu0 %v4841
    %v4843 = vpop.xlane.xlu0 %4842
    %v4844 = vsel %vm2204, %v4790, -inf
    %4845 = vmax.xlane.f32.xlu0 %v4844
    %v4846 = vpop.xlane.xlu0 %4845
    %v4847 = vsel %vm2204, %v4791, -inf
    %4848 = vmax.xlane.f32.xlu0 %v4847
    %v4849 = vpop.xlane.xlu0 %4848
    %v4850 = vsel %vm2204, %v4792, -inf
    %4851 = vmax.xlane.f32.xlu0 %v4850
    %v4852 = vpop.xlane.xlu0 %4851
    %v4853 = vsel %vm2204, %v4793, -inf
    %4854 = vmax.xlane.f32.xlu0 %v4853
    %v4855 = vpop.xlane.xlu0 %4854
    %v4856 = vsel %vm2204, %v4794, -inf
    %4857 = vmax.xlane.f32.xlu0 %v4856
    %v4858 = vpop.xlane.xlu0 %4857
    %v4859 = vsel %vm2204, %v4795, -inf
    %4860 = vmax.xlane.f32.xlu0 %v4859
    %v4861 = vpop.xlane.xlu0 %4860
    %v4862 = vsel %vm2204, %v4796, -inf
    %4863 = vmax.xlane.f32.xlu0 %v4862
    %v4864 = vpop.xlane.xlu0 %4863
    %v4865 = vsel %vm2204, %v4797, -inf
    %4866 = vmax.xlane.f32.xlu0 %v4865
    %v4867 = vpop.xlane.xlu0 %4866
    %v4868 = vsel %vm2204, %v4798, -inf
    %4869 = vmax.xlane.f32.xlu0 %v4868
    %v4870 = vpop.xlane.xlu0 %4869
    %v4871 = vsel %vm2204, %v4799, -inf
    %4872 = vmax.xlane.f32.xlu0 %v4871
    %v4873 = vpop.xlane.xlu0 %4872
    %v4874 = vsel %vm2204, %v4800, -inf
    %4875 = vmax.xlane.f32.xlu0 %v4874
    %v4876 = vpop.xlane.xlu0 %4875
    %v4877 = vsel %vm2204, %v4801, -inf
    %4878 = vmax.xlane.f32.xlu0 %v4877
    %v4879 = vpop.xlane.xlu0 %4878
    %v4880 = vsel %vm2204, %v4802, -inf
    %4881 = vmax.xlane.f32.xlu0 %v4880
    %v4882 = vpop.xlane.xlu0 %4881
    %v4883 = vsel %vm2204, %v4803, -inf
    %4884 = vmax.xlane.f32.xlu0 %v4883
    %v4885 = vpop.xlane.xlu0 %4884
    %v4886 = vsel %vm2204, %v4804, -inf
    %4887 = vmax.xlane.f32.xlu0 %v4886
    %v4888 = vpop.xlane.xlu0 %4887
    %v4889 = vsel %vm2204, %v4805, -inf
    %4890 = vmax.xlane.f32.xlu0 %v4889
    %v4891 = vpop.xlane.xlu0 %4890
    %v4892 = vsel %vm2204, %v4806, -inf
    %4893 = vmax.xlane.f32.xlu0 %v4892
    %v4894 = vpop.xlane.xlu0 %4893
    %v4895 = vsel %vm2204, %v4807, -inf
    %4896 = vmax.xlane.f32.xlu0 %v4895
    %v4897 = vpop.xlane.xlu0 %4896
    %v4898 = vsel %vm2204, %v4808, -inf
    %4899 = vmax.xlane.f32.xlu0 %v4898
    %v4900 = vpop.xlane.xlu0 %4899
    %v4901 = vsel %vm2204, %v4809, -inf
    %4902 = vmax.xlane.f32.xlu0 %v4901
    %v4903 = vpop.xlane.xlu0 %4902
    %v4904 = vsel %vm2204, %v4810, -inf
    %4905 = vmax.xlane.f32.xlu0 %v4904
    %v4906 = vpop.xlane.xlu0 %4905
    %v4907 = vsel %vm2204, %v4811, -inf
    %4908 = vmax.xlane.f32.xlu0 %v4907
    %v4909 = vpop.xlane.xlu0 %4908
    %v4910 = vsel %vm2204, %v4812, -inf
    %4911 = vmax.xlane.f32.xlu0 %v4910
    %v4912 = vpop.xlane.xlu0 %4911
    %v4913 = vsel %vm2204, %v4813, -inf
    %4914 = vmax.xlane.f32.xlu0 %v4913
    %v4915 = vpop.xlane.xlu0 %4914
    %v4916 = vsel %vm2204, %v4814, -inf
    %4917 = vmax.xlane.f32.xlu0 %v4916
    %v4918 = vpop.xlane.xlu0 %4917
    %v4919 = vsel %vm2204, %v4815, -inf
    %4920 = vmax.xlane.f32.xlu0 %v4919
    %v4921 = vpop.xlane.xlu0 %4920
    %v4922 = vsel %vm2204, %v4816, -inf
    %4923 = vmax.xlane.f32.xlu0 %v4922
    %v4924 = vpop.xlane.xlu0 %4923
    %v4925 = vsel %vm2204, %v4817, -inf
    %4926 = vmax.xlane.f32.xlu0 %v4925
    %v4927 = vpop.xlane.xlu0 %4926
    %v4928 = vsel %vm2204, %v4818, -inf
    %4929 = vmax.xlane.f32.xlu0 %v4928
    %v4930 = vpop.xlane.xlu0 %4929
    %v4931 = vsel %vm2204, %v4819, -inf
    %4932 = vmax.xlane.f32.xlu0 %v4931
    %v4933 = vpop.xlane.xlu0 %4932
    %v4934 = vsel %vm2204, %v4820, -inf
    %4935 = vmax.xlane.f32.xlu0 %v4934
    %v4936 = vpop.xlane.xlu0 %4935
    %v4937 = vsel %vm2204, %v4821, -inf
    %4938 = vmax.xlane.f32.xlu0 %v4937
    %v4939 = vpop.xlane.xlu0 %4938
    %v4940 = vsel %vm2204, %v4822, -inf
    %4941 = vmax.xlane.f32.xlu0 %v4940
    %v4942 = vpop.xlane.xlu0 %4941
    %v4943 = vsel %vm2204, %v4823, -inf
    %4944 = vmax.xlane.f32.xlu0 %v4943
    %v4945 = vpop.xlane.xlu0 %4944
    %v4946 = vsel %vm2204, %v4824, -inf
    %4947 = vmax.xlane.f32.xlu0 %v4946
    %v4948 = vpop.xlane.xlu0 %4947
    %v4949 = vsel %vm2204, %v4825, -inf
    %4950 = vmax.xlane.f32.xlu0 %v4949
    %v4951 = vpop.xlane.xlu0 %4950
    %v4952 = vsel %vm2204, %v4826, -inf
    %4953 = vmax.xlane.f32.xlu0 %v4952
    %v4954 = vpop.xlane.xlu0 %4953
    %v4955 = vsel %vm2204, %v4827, -inf
    %4956 = vmax.xlane.f32.xlu0 %v4955
    %v4957 = vpop.xlane.xlu0 %4956
    %v4958 = vsel %vm2204, %v4828, -inf
    %4959 = vmax.xlane.f32.xlu0 %v4958
    %v4960 = vpop.xlane.xlu0 %4959
    %v4961 = vsel %vm2204, %v4829, -inf
    %4962 = vmax.xlane.f32.xlu0 %v4961
    %v4963 = vpop.xlane.xlu0 %4962
    %v4964 = vsel %vm2204, %v4830, -inf
    %4965 = vmax.xlane.f32.xlu0 %v4964
    %v4966 = vpop.xlane.xlu0 %4965
    %v4967 = vsel %vm2204, %v4831, -inf
    %4968 = vmax.xlane.f32.xlu0 %v4967
    %v4969 = vpop.xlane.xlu0 %4968
    %v4970 = vsel %vm2204, %v4832, -inf
    %4971 = vmax.xlane.f32.xlu0 %v4970
    %v4972 = vpop.xlane.xlu0 %4971
    %v4973 = vsel %vm2204, %v4833, -inf
    %4974 = vmax.xlane.f32.xlu0 %v4973
    %v4975 = vpop.xlane.xlu0 %4974
    %v4976 = vsel %vm2204, %v4834, -inf
    %4977 = vmax.xlane.f32.xlu0 %v4976
    %v4978 = vpop.xlane.xlu0 %4977
    %v4979 = vsub.f32 %v4787, %v4837
    %v4980 = vsub.f32 %v4788, %v4840
    %v4981 = vsub.f32 %v4789, %v4843
    %v4982 = vsub.f32 %v4790, %v4846
    %v4983 = vsub.f32 %v4791, %v4849
    %v4984 = vsub.f32 %v4792, %v4852
    %v4985 = vsub.f32 %v4793, %v4855
    %v4986 = vsub.f32 %v4794, %v4858
    %v4987 = vsub.f32 %v4795, %v4861
    %v4988 = vsub.f32 %v4796, %v4864
    %v4989 = vsub.f32 %v4797, %v4867
    %v4990 = vsub.f32 %v4798, %v4870
    %v4991 = vsub.f32 %v4799, %v4873
    %v4992 = vsub.f32 %v4800, %v4876
    %v4993 = vsub.f32 %v4801, %v4879
    %v4994 = vsub.f32 %v4802, %v4882
    %v4995 = vsub.f32 %v4803, %v4885
    %v4996 = vsub.f32 %v4804, %v4888
    %v4997 = vsub.f32 %v4805, %v4891
    %v4998 = vsub.f32 %v4806, %v4894
    %v4999 = vsub.f32 %v4807, %v4897
    %v5000 = vsub.f32 %v4808, %v4900
    %v5001 = vsub.f32 %v4809, %v4903
    %v5002 = vsub.f32 %v4810, %v4906
    %v5003 = vsub.f32 %v4811, %v4909
    %v5004 = vsub.f32 %v4812, %v4912
    %v5005 = vsub.f32 %v4813, %v4915
    %v5006 = vsub.f32 %v4814, %v4918
    %v5007 = vsub.f32 %v4815, %v4921
    %v5008 = vsub.f32 %v4816, %v4924
    %v5009 = vsub.f32 %v4817, %v4927
    %v5010 = vsub.f32 %v4818, %v4930
    %v5011 = vsub.f32 %v4819, %v4933
    %v5012 = vsub.f32 %v4820, %v4936
    %v5013 = vsub.f32 %v4821, %v4939
    %v5014 = vsub.f32 %v4822, %v4942
    %v5015 = vsub.f32 %v4823, %v4945
    %v5016 = vsub.f32 %v4824, %v4948
    %v5017 = vsub.f32 %v4825, %v4951
    %v5018 = vsub.f32 %v4826, %v4954
    %v5019 = vsub.f32 %v4827, %v4957
    %v5020 = vsub.f32 %v4828, %v4960
    %v5021 = vsub.f32 %v4829, %v4963
    %v5022 = vsub.f32 %v4830, %v4966
    %v5023 = vsub.f32 %v4831, %v4969
    %v5024 = vsub.f32 %v4832, %v4972
    %v5025 = vsub.f32 %v4833, %v4975
    %v5026 = vsub.f32 %v4834, %v4978
    %v5027 = vmul.f32 %v4979, 1.442695
    %v5028 = vpow.pop %v5027
    %v5029 = vmul.f32 %v4980, 1.442695
    %v5030 = vpow.pop %v5029
    %v5031 = vmul.f32 %v4981, 1.442695
    %v5032 = vpow.pop %v5031
    %v5033 = vmul.f32 %v4982, 1.442695
    %v5034 = vpow.pop %v5033
    %v5035 = vmul.f32 %v4983, 1.442695
    %v5036 = vpow.pop %v5035
    %v5037 = vmul.f32 %v4984, 1.442695
    %v5038 = vpow.pop %v5037
    %v5039 = vmul.f32 %v4985, 1.442695
    %v5040 = vpow.pop %v5039
    %v5041 = vmul.f32 %v4986, 1.442695
    %v5042 = vpow.pop %v5041
    %v5043 = vmul.f32 %v4987, 1.442695
    %v5044 = vpow.pop %v5043
    %v5045 = vmul.f32 %v4988, 1.442695
    %v5046 = vpow.pop %v5045
    %v5047 = vmul.f32 %v4989, 1.442695
    %v5048 = vpow.pop %v5047
    %v5049 = vmul.f32 %v4990, 1.442695
    %v5050 = vpow.pop %v5049
    %v5051 = vmul.f32 %v4991, 1.442695
    %v5052 = vpow.pop %v5051
    %v5053 = vmul.f32 %v4992, 1.442695
    %v5054 = vpow.pop %v5053
    %v5055 = vmul.f32 %v4993, 1.442695
    %v5056 = vpow.pop %v5055
    %v5057 = vmul.f32 %v4994, 1.442695
    %v5058 = vpow.pop %v5057
    %v5059 = vmul.f32 %v4995, 1.442695
    %v5060 = vpow.pop %v5059
    %v5061 = vmul.f32 %v4996, 1.442695
    %v5062 = vpow.pop %v5061
    %v5063 = vmul.f32 %v4997, 1.442695
    %v5064 = vpow.pop %v5063
    %v5065 = vmul.f32 %v4998, 1.442695
    %v5066 = vpow.pop %v5065
    %v5067 = vmul.f32 %v4999, 1.442695
    %v5068 = vpow.pop %v5067
    %v5069 = vmul.f32 %v5000, 1.442695
    %v5070 = vpow.pop %v5069
    %v5071 = vmul.f32 %v5001, 1.442695
    %v5072 = vpow.pop %v5071
    %v5073 = vmul.f32 %v5002, 1.442695
    %v5074 = vpow.pop %v5073
    %v5075 = vmul.f32 %v5003, 1.442695
    %v5076 = vpow.pop %v5075
    %v5077 = vmul.f32 %v5004, 1.442695
    %v5078 = vpow.pop %v5077
    %v5079 = vmul.f32 %v5005, 1.442695
    %v5080 = vpow.pop %v5079
    %v5081 = vmul.f32 %v5006, 1.442695
    %v5082 = vpow.pop %v5081
    %v5083 = vmul.f32 %v5007, 1.442695
    %v5084 = vpow.pop %v5083
    %v5085 = vmul.f32 %v5008, 1.442695
    %v5086 = vpow.pop %v5085
    %v5087 = vmul.f32 %v5009, 1.442695
    %v5088 = vpow.pop %v5087
    %v5089 = vmul.f32 %v5010, 1.442695
    %v5090 = vpow.pop %v5089
    %v5091 = vmul.f32 %v5011, 1.442695
    %v5092 = vpow.pop %v5091
    %v5093 = vmul.f32 %v5012, 1.442695
    %v5094 = vpow.pop %v5093
    %v5095 = vmul.f32 %v5013, 1.442695
    %v5096 = vpow.pop %v5095
    %v5097 = vmul.f32 %v5014, 1.442695
    %v5098 = vpow.pop %v5097
    %v5099 = vmul.f32 %v5015, 1.442695
    %v5100 = vpow.pop %v5099
    %v5101 = vmul.f32 %v5016, 1.442695
    %v5102 = vpow.pop %v5101
    %v5103 = vmul.f32 %v5017, 1.442695
    %v5104 = vpow.pop %v5103
    %v5105 = vmul.f32 %v5018, 1.442695
    %v5106 = vpow.pop %v5105
    %v5107 = vmul.f32 %v5019, 1.442695
    %v5108 = vpow.pop %v5107
    %v5109 = vmul.f32 %v5020, 1.442695
    %v5110 = vpow.pop %v5109
    %v5111 = vmul.f32 %v5021, 1.442695
    %v5112 = vpow.pop %v5111
    %v5113 = vmul.f32 %v5022, 1.442695
    %v5114 = vpow.pop %v5113
    %v5115 = vmul.f32 %v5023, 1.442695
    %v5116 = vpow.pop %v5115
    %v5117 = vmul.f32 %v5024, 1.442695
    %v5118 = vpow.pop %v5117
    %v5119 = vmul.f32 %v5025, 1.442695
    %v5120 = vpow.pop %v5119
    %v5121 = vmul.f32 %v5026, 1.442695
    %v5122 = vpow.pop %v5121
    %v5123 = vsel %vm2204, %v5028, 0.0
    %5124 = vadd.xlane.f32.xlu0 %v5123
    %v5125 = vpop.xlane.xlu0 %5124
    %v5126 = vsel %vm2204, %v5030, 0.0
    %5127 = vadd.xlane.f32.xlu0 %v5126
    %v5128 = vpop.xlane.xlu0 %5127
    %v5129 = vsel %vm2204, %v5032, 0.0
    %5130 = vadd.xlane.f32.xlu0 %v5129
    %v5131 = vpop.xlane.xlu0 %5130
    %v5132 = vsel %vm2204, %v5034, 0.0
    %5133 = vadd.xlane.f32.xlu0 %v5132
    %v5134 = vpop.xlane.xlu0 %5133
    %v5135 = vsel %vm2204, %v5036, 0.0
    %5136 = vadd.xlane.f32.xlu0 %v5135
    %v5137 = vpop.xlane.xlu0 %5136
    %v5138 = vsel %vm2204, %v5038, 0.0
    %5139 = vadd.xlane.f32.xlu0 %v5138
    %v5140 = vpop.xlane.xlu0 %5139
    %v5141 = vsel %vm2204, %v5040, 0.0
    %5142 = vadd.xlane.f32.xlu0 %v5141
    %v5143 = vpop.xlane.xlu0 %5142
    %v5144 = vsel %vm2204, %v5042, 0.0
    %5145 = vadd.xlane.f32.xlu0 %v5144
    %v5146 = vpop.xlane.xlu0 %5145
    %v5147 = vsel %vm2204, %v5044, 0.0
    %5148 = vadd.xlane.f32.xlu0 %v5147
    %v5149 = vpop.xlane.xlu0 %5148
    %v5150 = vsel %vm2204, %v5046, 0.0
    %5151 = vadd.xlane.f32.xlu0 %v5150
    %v5152 = vpop.xlane.xlu0 %5151
    %v5153 = vsel %vm2204, %v5048, 0.0
    %5154 = vadd.xlane.f32.xlu0 %v5153
    %v5155 = vpop.xlane.xlu0 %5154
    %v5156 = vsel %vm2204, %v5050, 0.0
    %5157 = vadd.xlane.f32.xlu0 %v5156
    %v5158 = vpop.xlane.xlu0 %5157
    %v5159 = vsel %vm2204, %v5052, 0.0
    %5160 = vadd.xlane.f32.xlu0 %v5159
    %v5161 = vpop.xlane.xlu0 %5160
    %v5162 = vsel %vm2204, %v5054, 0.0
    %5163 = vadd.xlane.f32.xlu0 %v5162
    %v5164 = vpop.xlane.xlu0 %5163
    %v5165 = vsel %vm2204, %v5056, 0.0
    %5166 = vadd.xlane.f32.xlu0 %v5165
    %v5167 = vpop.xlane.xlu0 %5166
    %v5168 = vsel %vm2204, %v5058, 0.0
    %5169 = vadd.xlane.f32.xlu0 %v5168
    %v5170 = vpop.xlane.xlu0 %5169
    %v5171 = vsel %vm2204, %v5060, 0.0
    %5172 = vadd.xlane.f32.xlu0 %v5171
    %v5173 = vpop.xlane.xlu0 %5172
    %v5174 = vsel %vm2204, %v5062, 0.0
    %5175 = vadd.xlane.f32.xlu0 %v5174
    %v5176 = vpop.xlane.xlu0 %5175
    %v5177 = vsel %vm2204, %v5064, 0.0
    %5178 = vadd.xlane.f32.xlu0 %v5177
    %v5179 = vpop.xlane.xlu0 %5178
    %v5180 = vsel %vm2204, %v5066, 0.0
    %5181 = vadd.xlane.f32.xlu0 %v5180
    %v5182 = vpop.xlane.xlu0 %5181
    %v5183 = vsel %vm2204, %v5068, 0.0
    %5184 = vadd.xlane.f32.xlu0 %v5183
    %v5185 = vpop.xlane.xlu0 %5184
    %v5186 = vsel %vm2204, %v5070, 0.0
    %5187 = vadd.xlane.f32.xlu0 %v5186
    %v5188 = vpop.xlane.xlu0 %5187
    %v5189 = vsel %vm2204, %v5072, 0.0
    %5190 = vadd.xlane.f32.xlu0 %v5189
    %v5191 = vpop.xlane.xlu0 %5190
    %v5192 = vsel %vm2204, %v5074, 0.0
    %5193 = vadd.xlane.f32.xlu0 %v5192
    %v5194 = vpop.xlane.xlu0 %5193
    %v5195 = vsel %vm2204, %v5076, 0.0
    %5196 = vadd.xlane.f32.xlu0 %v5195
    %v5197 = vpop.xlane.xlu0 %5196
    %v5198 = vsel %vm2204, %v5078, 0.0
    %5199 = vadd.xlane.f32.xlu0 %v5198
    %v5200 = vpop.xlane.xlu0 %5199
    %v5201 = vsel %vm2204, %v5080, 0.0
    %5202 = vadd.xlane.f32.xlu0 %v5201
    %v5203 = vpop.xlane.xlu0 %5202
    %v5204 = vsel %vm2204, %v5082, 0.0
    %5205 = vadd.xlane.f32.xlu0 %v5204
    %v5206 = vpop.xlane.xlu0 %5205
    %v5207 = vsel %vm2204, %v5084, 0.0
    %5208 = vadd.xlane.f32.xlu0 %v5207
    %v5209 = vpop.xlane.xlu0 %5208
    %v5210 = vsel %vm2204, %v5086, 0.0
    %5211 = vadd.xlane.f32.xlu0 %v5210
    %v5212 = vpop.xlane.xlu0 %5211
    %v5213 = vsel %vm2204, %v5088, 0.0
    %5214 = vadd.xlane.f32.xlu0 %v5213
    %v5215 = vpop.xlane.xlu0 %5214
    %v5216 = vsel %vm2204, %v5090, 0.0
    %5217 = vadd.xlane.f32.xlu0 %v5216
    %v5218 = vpop.xlane.xlu0 %5217
    %v5219 = vsel %vm2204, %v5092, 0.0
    %5220 = vadd.xlane.f32.xlu0 %v5219
    %v5221 = vpop.xlane.xlu0 %5220
    %v5222 = vsel %vm2204, %v5094, 0.0
    %5223 = vadd.xlane.f32.xlu0 %v5222
    %v5224 = vpop.xlane.xlu0 %5223
    %v5225 = vsel %vm2204, %v5096, 0.0
    %5226 = vadd.xlane.f32.xlu0 %v5225
    %v5227 = vpop.xlane.xlu0 %5226
    %v5228 = vsel %vm2204, %v5098, 0.0
    %5229 = vadd.xlane.f32.xlu0 %v5228
    %v5230 = vpop.xlane.xlu0 %5229
    %v5231 = vsel %vm2204, %v5100, 0.0
    %5232 = vadd.xlane.f32.xlu0 %v5231
    %v5233 = vpop.xlane.xlu0 %5232
    %v5234 = vsel %vm2204, %v5102, 0.0
    %5235 = vadd.xlane.f32.xlu0 %v5234
    %v5236 = vpop.xlane.xlu0 %5235
    %v5237 = vsel %vm2204, %v5104, 0.0
    %5238 = vadd.xlane.f32.xlu0 %v5237
    %v5239 = vpop.xlane.xlu0 %5238
    %v5240 = vsel %vm2204, %v5106, 0.0
    %5241 = vadd.xlane.f32.xlu0 %v5240
    %v5242 = vpop.xlane.xlu0 %5241
    %v5243 = vsel %vm2204, %v5108, 0.0
    %5244 = vadd.xlane.f32.xlu0 %v5243
    %v5245 = vpop.xlane.xlu0 %5244
    %v5246 = vsel %vm2204, %v5110, 0.0
    %5247 = vadd.xlane.f32.xlu0 %v5246
    %v5248 = vpop.xlane.xlu0 %5247
    %v5249 = vsel %vm2204, %v5112, 0.0
    %5250 = vadd.xlane.f32.xlu0 %v5249
    %v5251 = vpop.xlane.xlu0 %5250
    %v5252 = vsel %vm2204, %v5114, 0.0
    %5253 = vadd.xlane.f32.xlu0 %v5252
    %v5254 = vpop.xlane.xlu0 %5253
    %v5255 = vsel %vm2204, %v5116, 0.0
    %5256 = vadd.xlane.f32.xlu0 %v5255
    %v5257 = vpop.xlane.xlu0 %5256
    %v5258 = vsel %vm2204, %v5118, 0.0
    %5259 = vadd.xlane.f32.xlu0 %v5258
    %v5260 = vpop.xlane.xlu0 %5259
    %v5261 = vsel %vm2204, %v5120, 0.0
    %5262 = vadd.xlane.f32.xlu0 %v5261
    %v5263 = vpop.xlane.xlu0 %5262
    %v5264 = vsel %vm2204, %v5122, 0.0
    %5265 = vadd.xlane.f32.xlu0 %v5264
    %v5266 = vpop.xlane.xlu0 %5265
    %v5267 = vrcp.pop %v5125
    %v5268 = vrcp.pop %v5128
    %v5269 = vrcp.pop %v5131
    %v5270 = vrcp.pop %v5134
    %v5271 = vrcp.pop %v5137
    %v5272 = vrcp.pop %v5140
    %v5273 = vrcp.pop %v5143
    %v5274 = vrcp.pop %v5146
    %v5275 = vrcp.pop %v5149
    %v5276 = vrcp.pop %v5152
    %v5277 = vrcp.pop %v5155
    %v5278 = vrcp.pop %v5158
    %v5279 = vrcp.pop %v5161
    %v5280 = vrcp.pop %v5164
    %v5281 = vrcp.pop %v5167
    %v5282 = vrcp.pop %v5170
    %v5283 = vrcp.pop %v5173
    %v5284 = vrcp.pop %v5176
    %v5285 = vrcp.pop %v5179
    %v5286 = vrcp.pop %v5182
    %v5287 = vrcp.pop %v5185
    %v5288 = vrcp.pop %v5188
    %v5289 = vrcp.pop %v5191
    %v5290 = vrcp.pop %v5194
    %v5291 = vrcp.pop %v5197
    %v5292 = vrcp.pop %v5200
    %v5293 = vrcp.pop %v5203
    %v5294 = vrcp.pop %v5206
    %v5295 = vrcp.pop %v5209
    %v5296 = vrcp.pop %v5212
    %v5297 = vrcp.pop %v5215
    %v5298 = vrcp.pop %v5218
    %v5299 = vrcp.pop %v5221
    %v5300 = vrcp.pop %v5224
    %v5301 = vrcp.pop %v5227
    %v5302 = vrcp.pop %v5230
    %v5303 = vrcp.pop %v5233
    %v5304 = vrcp.pop %v5236
    %v5305 = vrcp.pop %v5239
    %v5306 = vrcp.pop %v5242
    %v5307 = vrcp.pop %v5245
    %v5308 = vrcp.pop %v5248
    %v5309 = vrcp.pop %v5251
    %v5310 = vrcp.pop %v5254
    %v5311 = vrcp.pop %v5257
    %v5312 = vrcp.pop %v5260
    %v5313 = vrcp.pop %v5263
    %v5314 = vrcp.pop %v5266
    %v5315 = vmul.f32 %v5028, %v5267
    %v5316 = vmul.f32 %v5030, %v5268
    %v5317 = vmul.f32 %v5032, %v5269
    %v5318 = vmul.f32 %v5034, %v5270
    %v5319 = vmul.f32 %v5036, %v5271
    %v5320 = vmul.f32 %v5038, %v5272
    %v5321 = vmul.f32 %v5040, %v5273
    %v5322 = vmul.f32 %v5042, %v5274
    %v5323 = vmul.f32 %v5044, %v5275
    %v5324 = vmul.f32 %v5046, %v5276
    %v5325 = vmul.f32 %v5048, %v5277
    %v5326 = vmul.f32 %v5050, %v5278
    %v5327 = vmul.f32 %v5052, %v5279
    %v5328 = vmul.f32 %v5054, %v5280
    %v5329 = vmul.f32 %v5056, %v5281
    %v5330 = vmul.f32 %v5058, %v5282
    %v5331 = vmul.f32 %v5060, %v5283
    %v5332 = vmul.f32 %v5062, %v5284
    %v5333 = vmul.f32 %v5064, %v5285
    %v5334 = vmul.f32 %v5066, %v5286
    %v5335 = vmul.f32 %v5068, %v5287
    %v5336 = vmul.f32 %v5070, %v5288
    %v5337 = vmul.f32 %v5072, %v5289
    %v5338 = vmul.f32 %v5074, %v5290
    %v5339 = vmul.f32 %v5076, %v5291
    %v5340 = vmul.f32 %v5078, %v5292
    %v5341 = vmul.f32 %v5080, %v5293
    %v5342 = vmul.f32 %v5082, %v5294
    %v5343 = vmul.f32 %v5084, %v5295
    %v5344 = vmul.f32 %v5086, %v5296
    %v5345 = vmul.f32 %v5088, %v5297
    %v5346 = vmul.f32 %v5090, %v5298
    %v5347 = vmul.f32 %v5092, %v5299
    %v5348 = vmul.f32 %v5094, %v5300
    %v5349 = vmul.f32 %v5096, %v5301
    %v5350 = vmul.f32 %v5098, %v5302
    %v5351 = vmul.f32 %v5100, %v5303
    %v5352 = vmul.f32 %v5102, %v5304
    %v5353 = vmul.f32 %v5104, %v5305
    %v5354 = vmul.f32 %v5106, %v5306
    %v5355 = vmul.f32 %v5108, %v5307
    %v5356 = vmul.f32 %v5110, %v5308
    %v5357 = vmul.f32 %v5112, %v5309
    %v5358 = vmul.f32 %v5114, %v5310
    %v5359 = vmul.f32 %v5116, %v5311
    %v5360 = vmul.f32 %v5118, %v5312
    %v5361 = vmul.f32 %v5120, %v5313
    %v5362 = vmul.f32 %v5122, %v5314
    %5363 = vrot.lane.b32.xlu0 %v3024, 64
    %v5364 = vpop.permute.xlu0 %5363
    %5365 = vrot.lane.b32.xlu0 %v3029, 64
    %v5366 = vpop.permute.xlu0 %5365
    %5367 = vrot.lane.b32.xlu0 %v3034, 64
    %v5368 = vpop.permute.xlu0 %5367
    %v5373 = vsel %vm2204, %v5315, 0
    %v5376 = vsel %vm2204, %v5316, 0
    %v5379 = vsel %vm2204, %v5317, 0
    %5381 = vmatprep.subr.mxu0 0.0
    %5382 = vmatpush1.msra.mxu0 %v5364
    %5383 = vmatprep.subr.mxu0 0.0
    %5384 = vmatpush1.msra.mxu0 %v5366
    %5385 = vmatprep.subr.mxu0 0.0
    %5386 = vmatpush1.msra.mxu0 %v5368
    %5387 = vmatprep.subr.mxu0 0.0
    %5388 = vmatpush1.msra.mxu0 0.0
    %5389 = vmatprep.subr.mxu0 0.0
    %5390 = vmatpush1.msra.mxu0 0.0
    %5391 = vmatprep.subr.mxu0 0.0
    %5392 = vmatpush1.msra.mxu0 0.0
    %5393 = vmatprep.subr.mxu0 0.0
    %5394 = vmatpush1.msra.mxu0 0.0
    %5395 = vmatprep.subr.mxu0 0.0
    %5396 = vmatpush1.msra.mxu0 0.0
    %5397 = vmatprep.subr.mxu0 0.0
    %5398 = vmatpush1.msra.mxu0 0.0
    %5399 = vmatprep.subr.mxu0 0.0
    %5400 = vmatpush1.msra.mxu0 0.0
    %5401 = vmatprep.subr.mxu0 0.0
    %5402 = vmatpush1.msra.mxu0 0.0
    %5403 = vmatprep.subr.mxu0 0.0
    %5404 = vmatpush1.msra.mxu0 0.0
    %5405 = vmatprep.subr.mxu0 0.0
    %5406 = vmatpush1.msra.mxu0 0.0
    %5407 = vmatprep.subr.mxu0 0.0
    %5408 = vmatpush1.msra.mxu0 0.0
    %5409 = vmatprep.subr.mxu0 0.0
    %5410 = vmatpush1.msra.mxu0 0.0
    %5411 = vmatprep.subr.mxu0 0.0
    %5412 = vmatpush1.msra.mxu0 0.0
    %5413 = vmatprep.subr.mxu0 0.0
    %5414 = vmatpush1.msra.mxu0 0.0
    %5415 = vmatprep.subr.mxu0 0.0
    %5416 = vmatpush1.msra.mxu0 0.0
    %5417 = vmatprep.subr.mxu0 0.0
    %5418 = vmatpush1.msra.mxu0 0.0
    %5419 = vmatprep.subr.mxu0 0.0
    %5420 = vmatpush1.msra.mxu0 0.0
    %5421 = vmatprep.subr.mxu0 0.0
    %5422 = vmatpush1.msra.mxu0 0.0
    %5423 = vmatprep.subr.mxu0 0.0
    %5424 = vmatpush1.msra.mxu0 0.0
    %5425 = vmatprep.subr.mxu0 0.0
    %5426 = vmatpush1.msra.mxu0 0.0
    %5427 = vmatprep.subr.mxu0 0.0
    %5428 = vmatpush1.msra.mxu0 0.0
    %5429 = vmatprep.subr.mxu0 0.0
    %5430 = vmatpush1.msra.mxu0 0.0
    %5431 = vmatprep.subr.mxu0 0.0
    %5432 = vmatpush1.msra.mxu0 0.0
    %5433 = vmatprep.subr.mxu0 0.0
    %5434 = vmatpush1.msra.mxu0 0.0
    %5435 = vmatprep.subr.mxu0 0.0
    %5436 = vmatpush1.msra.mxu0 0.0
    %5437 = vmatprep.subr.mxu0 0.0
    %5438 = vmatpush1.msra.mxu0 0.0
    %5439 = vmatprep.subr.mxu0 0.0
    %5440 = vmatpush1.msra.mxu0 0.0
    %5441 = vmatprep.subr.mxu0 0.0
    %5442 = vmatpush1.msra.mxu0 0.0
    %5443 = vmatprep.subr.mxu0 0.0
    %5444 = vmatpush1.msra.mxu0 0.0
    %5445 = vmatprep.mubr.f32.mxu0 0.0
    %5446 = vmatmul.mubr.f32.gmra.mrb[0].mxu0 %v5373
    %v5447 = vpop.f32.mrb[0].mxu0
    %v5448 = vadd.f32 0.0, %v5447
    %v5449 = vpop.f32.mrb[0].mxu0
    %5450 = vmatprep.mubr.f32.mxu0 0.0
    %5451 = vmatmul.mubr.f32.gmra.mrb[0].mxu0 %v5376
    %v5452 = vpop.f32.mrb[0].mxu0
    %v5453 = vadd.f32 0.0, %v5452
    %v5454 = vpop.f32.mrb[0].mxu0
    %5455 = vmatprep.mubr.f32.mxu0 0.0
    %5456 = vmatmul.mubr.f32.gmra.mrb[0].mxu0 %v5379
    %v5457 = vpop.f32.mrb[0].mxu0
    %v5458 = vadd.f32 0.0, %v5457
    %v5459 = vpop.f32.mrb[0].mxu0
    %5460 = vdwg.mxu0
    %5461 = vrot.lane.b32.xlu0 %v3039, 64
    %v5462 = vpop.permute.xlu0 %5461
    %5463 = vrot.lane.b32.xlu0 %v3044, 64
    %v5464 = vpop.permute.xlu0 %5463
    %5465 = vrot.lane.b32.xlu0 %v3049, 64
    %v5466 = vpop.permute.xlu0 %5465
    %v5471 = vsel %vm2204, %v5318, 0
    %v5474 = vsel %vm2204, %v5319, 0
    %v5477 = vsel %vm2204, %v5320, 0
    %5479 = vmatprep.subr.mxu0 0.0
    %5480 = vmatpush1.msra.mxu0 %v5462
    %5481 = vmatprep.subr.mxu0 0.0
    %5482 = vmatpush1.msra.mxu0 %v5464
    %5483 = vmatprep.subr.mxu0 0.0
    %5484 = vmatpush1.msra.mxu0 %v5466
    %5485 = vmatprep.subr.mxu0 0.0
    %5486 = vmatpush1.msra.mxu0 0.0
    %5487 = vmatprep.subr.mxu0 0.0
    %5488 = vmatpush1.msra.mxu0 0.0
    %5489 = vmatprep.subr.mxu0 0.0
    %5490 = vmatpush1.msra.mxu0 0.0
    %5491 = vmatprep.subr.mxu0 0.0
    %5492 = vmatpush1.msra.mxu0 0.0
    %5493 = vmatprep.subr.mxu0 0.0
    %5494 = vmatpush1.msra.mxu0 0.0
    %5495 = vmatprep.subr.mxu0 0.0
    %5496 = vmatpush1.msra.mxu0 0.0
    %5497 = vmatprep.subr.mxu0 0.0
    %5498 = vmatpush1.msra.mxu0 0.0
    %5499 = vmatprep.subr.mxu0 0.0
    %5500 = vmatpush1.msra.mxu0 0.0
    %5501 = vmatprep.subr.mxu0 0.0
    %5502 = vmatpush1.msra.mxu0 0.0
    %5503 = vmatprep.subr.mxu0 0.0
    %5504 = vmatpush1.msra.mxu0 0.0
    %5505 = vmatprep.subr.mxu0 0.0
    %5506 = vmatpush1.msra.mxu0 0.0
    %5507 = vmatprep.subr.mxu0 0.0
    %5508 = vmatpush1.msra.mxu0 0.0
    %5509 = vmatprep.subr.mxu0 0.0
    %5510 = vmatpush1.msra.mxu0 0.0
    %5511 = vmatprep.subr.mxu0 0.0
    %5512 = vmatpush1.msra.mxu0 0.0
    %5513 = vmatprep.subr.mxu0 0.0
    %5514 = vmatpush1.msra.mxu0 0.0
    %5515 = vmatprep.subr.mxu0 0.0
    %5516 = vmatpush1.msra.mxu0 0.0
    %5517 = vmatprep.subr.mxu0 0.0
    %5518 = vmatpush1.msra.mxu0 0.0
    %5519 = vmatprep.subr.mxu0 0.0
    %5520 = vmatpush1.msra.mxu0 0.0
    %5521 = vmatprep.subr.mxu0 0.0
    %5522 = vmatpush1.msra.mxu0 0.0
    %5523 = vmatprep.subr.mxu0 0.0
    %5524 = vmatpush1.msra.mxu0 0.0
    %5525 = vmatprep.subr.mxu0 0.0
    %5526 = vmatpush1.msra.mxu0 0.0
    %5527 = vmatprep.subr.mxu0 0.0
    %5528 = vmatpush1.msra.mxu0 0.0
    %5529 = vmatprep.subr.mxu0 0.0
    %5530 = vmatpush1.msra.mxu0 0.0
    %5531 = vmatprep.subr.mxu0 0.0
    %5532 = vmatpush1.msra.mxu0 0.0
    %5533 = vmatprep.subr.mxu0 0.0
    %5534 = vmatpush1.msra.mxu0 0.0
    %5535 = vmatprep.subr.mxu0 0.0
    %5536 = vmatpush1.msra.mxu0 0.0
    %5537 = vmatprep.subr.mxu0 0.0
    %5538 = vmatpush1.msra.mxu0 0.0
    %5539 = vmatprep.subr.mxu0 0.0
    %5540 = vmatpush1.msra.mxu0 0.0
    %5541 = vmatprep.subr.mxu0 0.0
    %5542 = vmatpush1.msra.mxu0 0.0
    %5543 = vmatprep.mubr.f32.mxu0 0.0
    %5544 = vmatmul.mubr.f32.gmra.mrb[0].mxu0 %v5471
    %v5545 = vpop.f32.mrb[0].mxu0
    %v5546 = vadd.f32 0.0, %v5545
    %v5547 = vpop.f32.mrb[0].mxu0
    %5548 = vmatprep.mubr.f32.mxu0 0.0
    %5549 = vmatmul.mubr.f32.gmra.mrb[0].mxu0 %v5474
    %v5550 = vpop.f32.mrb[0].mxu0
    %v5551 = vadd.f32 0.0, %v5550
    %v5552 = vpop.f32.mrb[0].mxu0
    %5553 = vmatprep.mubr.f32.mxu0 0.0
    %5554 = vmatmul.mubr.f32.gmra.mrb[0].mxu0 %v5477
    %v5555 = vpop.f32.mrb[0].mxu0
    %v5556 = vadd.f32 0.0, %v5555
    %v5557 = vpop.f32.mrb[0].mxu0
    %5558 = vdwg.mxu0
    %5559 = vrot.lane.b32.xlu0 %v3054, 64
    %v5560 = vpop.permute.xlu0 %5559
    %5561 = vrot.lane.b32.xlu0 %v3059, 64
    %v5562 = vpop.permute.xlu0 %5561
    %5563 = vrot.lane.b32.xlu0 %v3064, 64
    %v5564 = vpop.permute.xlu0 %5563
    %v5569 = vsel %vm2204, %v5321, 0
    %v5572 = vsel %vm2204, %v5322, 0
    %v5575 = vsel %vm2204, %v5323, 0
    %5577 = vmatprep.subr.mxu0 0.0
    %5578 = vmatpush1.msra.mxu0 %v5560
    %5579 = vmatprep.subr.mxu0 0.0
    %5580 = vmatpush1.msra.mxu0 %v5562
    %5581 = vmatprep.subr.mxu0 0.0
    %5582 = vmatpush1.msra.mxu0 %v5564
    %5583 = vmatprep.subr.mxu0 0.0
    %5584 = vmatpush1.msra.mxu0 0.0
    %5585 = vmatprep.subr.mxu0 0.0
    %5586 = vmatpush1.msra.mxu0 0.0
    %5587 = vmatprep.subr.mxu0 0.0
    %5588 = vmatpush1.msra.mxu0 0.0
    %5589 = vmatprep.subr.mxu0 0.0
    %5590 = vmatpush1.msra.mxu0 0.0
    %5591 = vmatprep.subr.mxu0 0.0
    %5592 = vmatpush1.msra.mxu0 0.0
    %5593 = vmatprep.subr.mxu0 0.0
    %5594 = vmatpush1.msra.mxu0 0.0
    %5595 = vmatprep.subr.mxu0 0.0
    %5596 = vmatpush1.msra.mxu0 0.0
    %5597 = vmatprep.subr.mxu0 0.0
    %5598 = vmatpush1.msra.mxu0 0.0
    %5599 = vmatprep.subr.mxu0 0.0
    %5600 = vmatpush1.msra.mxu0 0.0
    %5601 = vmatprep.subr.mxu0 0.0
    %5602 = vmatpush1.msra.mxu0 0.0
    %5603 = vmatprep.subr.mxu0 0.0
    %5604 = vmatpush1.msra.mxu0 0.0
    %5605 = vmatprep.subr.mxu0 0.0
    %5606 = vmatpush1.msra.mxu0 0.0
    %5607 = vmatprep.subr.mxu0 0.0
    %5608 = vmatpush1.msra.mxu0 0.0
    %5609 = vmatprep.subr.mxu0 0.0
    %5610 = vmatpush1.msra.mxu0 0.0
    %5611 = vmatprep.subr.mxu0 0.0
    %5612 = vmatpush1.msra.mxu0 0.0
    %5613 = vmatprep.subr.mxu0 0.0
    %5614 = vmatpush1.msra.mxu0 0.0
    %5615 = vmatprep.subr.mxu0 0.0
    %5616 = vmatpush1.msra.mxu0 0.0
    %5617 = vmatprep.subr.mxu0 0.0
    %5618 = vmatpush1.msra.mxu0 0.0
    %5619 = vmatprep.subr.mxu0 0.0
    %5620 = vmatpush1.msra.mxu0 0.0
    %5621 = vmatprep.subr.mxu0 0.0
    %5622 = vmatpush1.msra.mxu0 0.0
    %5623 = vmatprep.subr.mxu0 0.0
    %5624 = vmatpush1.msra.mxu0 0.0
    %5625 = vmatprep.subr.mxu0 0.0
    %5626 = vmatpush1.msra.mxu0 0.0
    %5627 = vmatprep.subr.mxu0 0.0
    %5628 = vmatpush1.msra.mxu0 0.0
    %5629 = vmatprep.subr.mxu0 0.0
    %5630 = vmatpush1.msra.mxu0 0.0
    %5631 = vmatprep.subr.mxu0 0.0
    %5632 = vmatpush1.msra.mxu0 0.0
    %5633 = vmatprep.subr.mxu0 0.0
    %5634 = vmatpush1.msra.mxu0 0.0
    %5635 = vmatprep.subr.mxu0 0.0
    %5636 = vmatpush1.msra.mxu0 0.0
    %5637 = vmatprep.subr.mxu0 0.0
    %5638 = vmatpush1.msra.mxu0 0.0
    %5639 = vmatprep.subr.mxu0 0.0
    %5640 = vmatpush1.msra.mxu0 0.0
    %5641 = vmatprep.mubr.f32.mxu0 0.0
    %5642 = vmatmul.mubr.f32.gmra.mrb[0].mxu0 %v5569
    %v5643 = vpop.f32.mrb[0].mxu0
    %v5644 = vadd.f32 0.0, %v5643
    %v5645 = vpop.f32.mrb[0].mxu0
    %5646 = vmatprep.mubr.f32.mxu0 0.0
    %5647 = vmatmul.mubr.f32.gmra.mrb[0].mxu0 %v5572
    %v5648 = vpop.f32.mrb[0].mxu0
    %v5649 = vadd.f32 0.0, %v5648
    %v5650 = vpop.f32.mrb[0].mxu0
    %5651 = vmatprep.mubr.f32.mxu0 0.0
    %5652 = vmatmul.mubr.f32.gmra.mrb[0].mxu0 %v5575
    %v5653 = vpop.f32.mrb[0].mxu0
    %v5654 = vadd.f32 0.0, %v5653
    %v5655 = vpop.f32.mrb[0].mxu0
    %5656 = vdwg.mxu0
    %5657 = vrot.lane.b32.xlu0 %v3069, 64
    %v5658 = vpop.permute.xlu0 %5657
    %5659 = vrot.lane.b32.xlu0 %v3074, 64
    %v5660 = vpop.permute.xlu0 %5659
    %5661 = vrot.lane.b32.xlu0 %v3079, 64
    %v5662 = vpop.permute.xlu0 %5661
    %v5667 = vsel %vm2204, %v5324, 0
    %v5670 = vsel %vm2204, %v5325, 0
    %v5673 = vsel %vm2204, %v5326, 0
    %5675 = vmatprep.subr.mxu0 0.0
    %5676 = vmatpush1.msra.mxu0 %v5658
    %5677 = vmatprep.subr.mxu0 0.0
    %5678 = vmatpush1.msra.mxu0 %v5660
    %5679 = vmatprep.subr.mxu0 0.0
    %5680 = vmatpush1.msra.mxu0 %v5662
    %5681 = vmatprep.subr.mxu0 0.0
    %5682 = vmatpush1.msra.mxu0 0.0
    %5683 = vmatprep.subr.mxu0 0.0
    %5684 = vmatpush1.msra.mxu0 0.0
    %5685 = vmatprep.subr.mxu0 0.0
    %5686 = vmatpush1.msra.mxu0 0.0
    %5687 = vmatprep.subr.mxu0 0.0
    %5688 = vmatpush1.msra.mxu0 0.0
    %5689 = vmatprep.subr.mxu0 0.0
    %5690 = vmatpush1.msra.mxu0 0.0
    %5691 = vmatprep.subr.mxu0 0.0
    %5692 = vmatpush1.msra.mxu0 0.0
    %5693 = vmatprep.subr.mxu0 0.0
    %5694 = vmatpush1.msra.mxu0 0.0
    %5695 = vmatprep.subr.mxu0 0.0
    %5696 = vmatpush1.msra.mxu0 0.0
    %5697 = vmatprep.subr.mxu0 0.0
    %5698 = vmatpush1.msra.mxu0 0.0
    %5699 = vmatprep.subr.mxu0 0.0
    %5700 = vmatpush1.msra.mxu0 0.0
    %5701 = vmatprep.subr.mxu0 0.0
    %5702 = vmatpush1.msra.mxu0 0.0
    %5703 = vmatprep.subr.mxu0 0.0
    %5704 = vmatpush1.msra.mxu0 0.0
    %5705 = vmatprep.subr.mxu0 0.0
    %5706 = vmatpush1.msra.mxu0 0.0
    %5707 = vmatprep.subr.mxu0 0.0
    %5708 = vmatpush1.msra.mxu0 0.0
    %5709 = vmatprep.subr.mxu0 0.0
    %5710 = vmatpush1.msra.mxu0 0.0
    %5711 = vmatprep.subr.mxu0 0.0
    %5712 = vmatpush1.msra.mxu0 0.0
    %5713 = vmatprep.subr.mxu0 0.0
    %5714 = vmatpush1.msra.mxu0 0.0
    %5715 = vmatprep.subr.mxu0 0.0
    %5716 = vmatpush1.msra.mxu0 0.0
    %5717 = vmatprep.subr.mxu0 0.0
    %5718 = vmatpush1.msra.mxu0 0.0
    %5719 = vmatprep.subr.mxu0 0.0
    %5720 = vmatpush1.msra.mxu0 0.0
    %5721 = vmatprep.subr.mxu0 0.0
    %5722 = vmatpush1.msra.mxu0 0.0
    %5723 = vmatprep.subr.mxu0 0.0
    %5724 = vmatpush1.msra.mxu0 0.0
    %5725 = vmatprep.subr.mxu0 0.0
    %5726 = vmatpush1.msra.mxu0 0.0
    %5727 = vmatprep.subr.mxu0 0.0
    %5728 = vmatpush1.msra.mxu0 0.0
    %5729 = vmatprep.subr.mxu0 0.0
    %5730 = vmatpush1.msra.mxu0 0.0
    %5731 = vmatprep.subr.mxu0 0.0
    %5732 = vmatpush1.msra.mxu0 0.0
    %5733 = vmatprep.subr.mxu0 0.0
    %5734 = vmatpush1.msra.mxu0 0.0
    %5735 = vmatprep.subr.mxu0 0.0
    %5736 = vmatpush1.msra.mxu0 0.0
    %5737 = vmatprep.subr.mxu0 0.0
    %5738 = vmatpush1.msra.mxu0 0.0
    %5739 = vmatprep.mubr.f32.mxu0 0.0
    %5740 = vmatmul.mubr.f32.gmra.mrb[0].mxu0 %v5667
    %v5741 = vpop.f32.mrb[0].mxu0
    %v5742 = vadd.f32 0.0, %v5741
    %v5743 = vpop.f32.mrb[0].mxu0
    %5744 = vmatprep.mubr.f32.mxu0 0.0
    %5745 = vmatmul.mubr.f32.gmra.mrb[0].mxu0 %v5670
    %v5746 = vpop.f32.mrb[0].mxu0
    %v5747 = vadd.f32 0.0, %v5746
    %v5748 = vpop.f32.mrb[0].mxu0
    %5749 = vmatprep.mubr.f32.mxu0 0.0
    %5750 = vmatmul.mubr.f32.gmra.mrb[0].mxu0 %v5673
    %v5751 = vpop.f32.mrb[0].mxu0
    %v5752 = vadd.f32 0.0, %v5751
    %v5753 = vpop.f32.mrb[0].mxu0
    %5754 = vdwg.mxu0
    %5755 = vrot.lane.b32.xlu0 %v3095, 64
    %v5756 = vpop.permute.xlu0 %5755
    %5757 = vrot.lane.b32.xlu0 %v3097, 64
    %v5758 = vpop.permute.xlu0 %5757
    %5759 = vrot.lane.b32.xlu0 %v3099, 64
    %v5760 = vpop.permute.xlu0 %5759
    %v5765 = vsel %vm2204, %v5327, 0
    %v5768 = vsel %vm2204, %v5328, 0
    %v5771 = vsel %vm2204, %v5329, 0
    %5773 = vmatprep.subr.mxu0 0.0
    %5774 = vmatpush1.msra.mxu0 %v5756
    %5775 = vmatprep.subr.mxu0 0.0
    %5776 = vmatpush1.msra.mxu0 %v5758
    %5777 = vmatprep.subr.mxu0 0.0
    %5778 = vmatpush1.msra.mxu0 %v5760
    %5779 = vmatprep.subr.mxu0 0.0
    %5780 = vmatpush1.msra.mxu0 0.0
    %5781 = vmatprep.subr.mxu0 0.0
    %5782 = vmatpush1.msra.mxu0 0.0
    %5783 = vmatprep.subr.mxu0 0.0
    %5784 = vmatpush1.msra.mxu0 0.0
    %5785 = vmatprep.subr.mxu0 0.0
    %5786 = vmatpush1.msra.mxu0 0.0
    %5787 = vmatprep.subr.mxu0 0.0
    %5788 = vmatpush1.msra.mxu0 0.0
    %5789 = vmatprep.subr.mxu0 0.0
    %5790 = vmatpush1.msra.mxu0 0.0
    %5791 = vmatprep.subr.mxu0 0.0
    %5792 = vmatpush1.msra.mxu0 0.0
    %5793 = vmatprep.subr.mxu0 0.0
    %5794 = vmatpush1.msra.mxu0 0.0
    %5795 = vmatprep.subr.mxu0 0.0
    %5796 = vmatpush1.msra.mxu0 0.0
    %5797 = vmatprep.subr.mxu0 0.0
    %5798 = vmatpush1.msra.mxu0 0.0
    %5799 = vmatprep.subr.mxu0 0.0
    %5800 = vmatpush1.msra.mxu0 0.0
    %5801 = vmatprep.subr.mxu0 0.0
    %5802 = vmatpush1.msra.mxu0 0.0
    %5803 = vmatprep.subr.mxu0 0.0
    %5804 = vmatpush1.msra.mxu0 0.0
    %5805 = vmatprep.subr.mxu0 0.0
    %5806 = vmatpush1.msra.mxu0 0.0
    %5807 = vmatprep.subr.mxu0 0.0
    %5808 = vmatpush1.msra.mxu0 0.0
    %5809 = vmatprep.subr.mxu0 0.0
    %5810 = vmatpush1.msra.mxu0 0.0
    %5811 = vmatprep.subr.mxu0 0.0
    %5812 = vmatpush1.msra.mxu0 0.0
    %5813 = vmatprep.subr.mxu0 0.0
    %5814 = vmatpush1.msra.mxu0 0.0
    %5815 = vmatprep.subr.mxu0 0.0
    %5816 = vmatpush1.msra.mxu0 0.0
    %5817 = vmatprep.subr.mxu0 0.0
    %5818 = vmatpush1.msra.mxu0 0.0
    %5819 = vmatprep.subr.mxu0 0.0
    %5820 = vmatpush1.msra.mxu0 0.0
    %5821 = vmatprep.subr.mxu0 0.0
    %5822 = vmatpush1.msra.mxu0 0.0
    %5823 = vmatprep.subr.mxu0 0.0
    %5824 = vmatpush1.msra.mxu0 0.0
    %5825 = vmatprep.subr.mxu0 0.0
    %5826 = vmatpush1.msra.mxu0 0.0
    %5827 = vmatprep.subr.mxu0 0.0
    %5828 = vmatpush1.msra.mxu0 0.0
    %5829 = vmatprep.subr.mxu0 0.0
    %5830 = vmatpush1.msra.mxu0 0.0
    %5831 = vmatprep.subr.mxu0 0.0
    %5832 = vmatpush1.msra.mxu0 0.0
    %5833 = vmatprep.subr.mxu0 0.0
    %5834 = vmatpush1.msra.mxu0 0.0
    %5835 = vmatprep.subr.mxu0 0.0
    %5836 = vmatpush1.msra.mxu0 0.0
    %5837 = vmatprep.mubr.f32.mxu0 0.0
    %5838 = vmatmul.mubr.f32.gmra.mrb[0].mxu0 %v5765
    %v5839 = vpop.f32.mrb[0].mxu0
    %v5840 = vadd.f32 0.0, %v5839
    %v5841 = vpop.f32.mrb[0].mxu0
    %5842 = vmatprep.mubr.f32.mxu0 0.0
    %5843 = vmatmul.mubr.f32.gmra.mrb[0].mxu0 %v5768
    %v5844 = vpop.f32.mrb[0].mxu0
    %v5845 = vadd.f32 0.0, %v5844
    %v5846 = vpop.f32.mrb[0].mxu0
    %5847 = vmatprep.mubr.f32.mxu0 0.0
    %5848 = vmatmul.mubr.f32.gmra.mrb[0].mxu0 %v5771
    %v5849 = vpop.f32.mrb[0].mxu0
    %v5850 = vadd.f32 0.0, %v5849
    %v5851 = vpop.f32.mrb[0].mxu0
    %5852 = vdwg.mxu0
    %5853 = vrot.lane.b32.xlu0 %v3101, 64
    %v5854 = vpop.permute.xlu0 %5853
    %5855 = vrot.lane.b32.xlu0 %v3103, 64
    %v5856 = vpop.permute.xlu0 %5855
    %5857 = vrot.lane.b32.xlu0 %v3105, 64
    %v5858 = vpop.permute.xlu0 %5857
    %v5863 = vsel %vm2204, %v5330, 0
    %v5866 = vsel %vm2204, %v5331, 0
    %v5869 = vsel %vm2204, %v5332, 0
    %5871 = vmatprep.subr.mxu0 0.0
    %5872 = vmatpush1.msra.mxu0 %v5854
    %5873 = vmatprep.subr.mxu0 0.0
    %5874 = vmatpush1.msra.mxu0 %v5856
    %5875 = vmatprep.subr.mxu0 0.0
    %5876 = vmatpush1.msra.mxu0 %v5858
    %5877 = vmatprep.subr.mxu0 0.0
    %5878 = vmatpush1.msra.mxu0 0.0
    %5879 = vmatprep.subr.mxu0 0.0
    %5880 = vmatpush1.msra.mxu0 0.0
    %5881 = vmatprep.subr.mxu0 0.0
    %5882 = vmatpush1.msra.mxu0 0.0
    %5883 = vmatprep.subr.mxu0 0.0
    %5884 = vmatpush1.msra.mxu0 0.0
    %5885 = vmatprep.subr.mxu0 0.0
    %5886 = vmatpush1.msra.mxu0 0.0
    %5887 = vmatprep.subr.mxu0 0.0
    %5888 = vmatpush1.msra.mxu0 0.0
    %5889 = vmatprep.subr.mxu0 0.0
    %5890 = vmatpush1.msra.mxu0 0.0
    %5891 = vmatprep.subr.mxu0 0.0
    %5892 = vmatpush1.msra.mxu0 0.0
    %5893 = vmatprep.subr.mxu0 0.0
    %5894 = vmatpush1.msra.mxu0 0.0
    %5895 = vmatprep.subr.mxu0 0.0
    %5896 = vmatpush1.msra.mxu0 0.0
    %5897 = vmatprep.subr.mxu0 0.0
    %5898 = vmatpush1.msra.mxu0 0.0
    %5899 = vmatprep.subr.mxu0 0.0
    %5900 = vmatpush1.msra.mxu0 0.0
    %5901 = vmatprep.subr.mxu0 0.0
    %5902 = vmatpush1.msra.mxu0 0.0
    %5903 = vmatprep.subr.mxu0 0.0
    %5904 = vmatpush1.msra.mxu0 0.0
    %5905 = vmatprep.subr.mxu0 0.0
    %5906 = vmatpush1.msra.mxu0 0.0
    %5907 = vmatprep.subr.mxu0 0.0
    %5908 = vmatpush1.msra.mxu0 0.0
    %5909 = vmatprep.subr.mxu0 0.0
    %5910 = vmatpush1.msra.mxu0 0.0
    %5911 = vmatprep.subr.mxu0 0.0
    %5912 = vmatpush1.msra.mxu0 0.0
    %5913 = vmatprep.subr.mxu0 0.0
    %5914 = vmatpush1.msra.mxu0 0.0
    %5915 = vmatprep.subr.mxu0 0.0
    %5916 = vmatpush1.msra.mxu0 0.0
    %5917 = vmatprep.subr.mxu0 0.0
    %5918 = vmatpush1.msra.mxu0 0.0
    %5919 = vmatprep.subr.mxu0 0.0
    %5920 = vmatpush1.msra.mxu0 0.0
    %5921 = vmatprep.subr.mxu0 0.0
    %5922 = vmatpush1.msra.mxu0 0.0
    %5923 = vmatprep.subr.mxu0 0.0
    %5924 = vmatpush1.msra.mxu0 0.0
    %5925 = vmatprep.subr.mxu0 0.0
    %5926 = vmatpush1.msra.mxu0 0.0
    %5927 = vmatprep.subr.mxu0 0.0
    %5928 = vmatpush1.msra.mxu0 0.0
    %5929 = vmatprep.subr.mxu0 0.0
    %5930 = vmatpush1.msra.mxu0 0.0
    %5931 = vmatprep.subr.mxu0 0.0
    %5932 = vmatpush1.msra.mxu0 0.0
    %5933 = vmatprep.subr.mxu0 0.0
    %5934 = vmatpush1.msra.mxu0 0.0
    %5935 = vmatprep.mubr.f32.mxu0 0.0
    %5936 = vmatmul.mubr.f32.gmra.mrb[0].mxu0 %v5863
    %v5937 = vpop.f32.mrb[0].mxu0
    %v5938 = vadd.f32 0.0, %v5937
    %v5939 = vpop.f32.mrb[0].mxu0
    %5940 = vmatprep.mubr.f32.mxu0 0.0
    %5941 = vmatmul.mubr.f32.gmra.mrb[0].mxu0 %v5866
    %v5942 = vpop.f32.mrb[0].mxu0
    %v5943 = vadd.f32 0.0, %v5942
    %v5944 = vpop.f32.mrb[0].mxu0
    %5945 = vmatprep.mubr.f32.mxu0 0.0
    %5946 = vmatmul.mubr.f32.gmra.mrb[0].mxu0 %v5869
    %v5947 = vpop.f32.mrb[0].mxu0
    %v5948 = vadd.f32 0.0, %v5947
    %v5949 = vpop.f32.mrb[0].mxu0
    %5950 = vdwg.mxu0
    %5951 = vrot.lane.b32.xlu0 %v3107, 64
    %v5952 = vpop.permute.xlu0 %5951
    %5953 = vrot.lane.b32.xlu0 %v3109, 64
    %v5954 = vpop.permute.xlu0 %5953
    %5955 = vrot.lane.b32.xlu0 %v3111, 64
    %v5956 = vpop.permute.xlu0 %5955
    %v5961 = vsel %vm2204, %v5333, 0
    %v5964 = vsel %vm2204, %v5334, 0
    %v5967 = vsel %vm2204, %v5335, 0
    %5969 = vmatprep.subr.mxu0 0.0
    %5970 = vmatpush1.msra.mxu0 %v5952
    %5971 = vmatprep.subr.mxu0 0.0
    %5972 = vmatpush1.msra.mxu0 %v5954
    %5973 = vmatprep.subr.mxu0 0.0
    %5974 = vmatpush1.msra.mxu0 %v5956
    %5975 = vmatprep.subr.mxu0 0.0
    %5976 = vmatpush1.msra.mxu0 0.0
    %5977 = vmatprep.subr.mxu0 0.0
    %5978 = vmatpush1.msra.mxu0 0.0
    %5979 = vmatprep.subr.mxu0 0.0
    %5980 = vmatpush1.msra.mxu0 0.0
    %5981 = vmatprep.subr.mxu0 0.0
    %5982 = vmatpush1.msra.mxu0 0.0
    %5983 = vmatprep.subr.mxu0 0.0
    %5984 = vmatpush1.msra.mxu0 0.0
    %5985 = vmatprep.subr.mxu0 0.0
    %5986 = vmatpush1.msra.mxu0 0.0
    %5987 = vmatprep.subr.mxu0 0.0
    %5988 = vmatpush1.msra.mxu0 0.0
    %5989 = vmatprep.subr.mxu0 0.0
    %5990 = vmatpush1.msra.mxu0 0.0
    %5991 = vmatprep.subr.mxu0 0.0
    %5992 = vmatpush1.msra.mxu0 0.0
    %5993 = vmatprep.subr.mxu0 0.0
    %5994 = vmatpush1.msra.mxu0 0.0
    %5995 = vmatprep.subr.mxu0 0.0
    %5996 = vmatpush1.msra.mxu0 0.0
    %5997 = vmatprep.subr.mxu0 0.0
    %5998 = vmatpush1.msra.mxu0 0.0
    %5999 = vmatprep.subr.mxu0 0.0
    %6000 = vmatpush1.msra.mxu0 0.0
    %6001 = vmatprep.subr.mxu0 0.0
    %6002 = vmatpush1.msra.mxu0 0.0
    %6003 = vmatprep.subr.mxu0 0.0
    %6004 = vmatpush1.msra.mxu0 0.0
    %6005 = vmatprep.subr.mxu0 0.0
    %6006 = vmatpush1.msra.mxu0 0.0
    %6007 = vmatprep.subr.mxu0 0.0
    %6008 = vmatpush1.msra.mxu0 0.0
    %6009 = vmatprep.subr.mxu0 0.0
    %6010 = vmatpush1.msra.mxu0 0.0
    %6011 = vmatprep.subr.mxu0 0.0
    %6012 = vmatpush1.msra.mxu0 0.0
    %6013 = vmatprep.subr.mxu0 0.0
    %6014 = vmatpush1.msra.mxu0 0.0
    %6015 = vmatprep.subr.mxu0 0.0
    %6016 = vmatpush1.msra.mxu0 0.0
    %6017 = vmatprep.subr.mxu0 0.0
    %6018 = vmatpush1.msra.mxu0 0.0
    %6019 = vmatprep.subr.mxu0 0.0
    %6020 = vmatpush1.msra.mxu0 0.0
    %6021 = vmatprep.subr.mxu0 0.0
    %6022 = vmatpush1.msra.mxu0 0.0
    %6023 = vmatprep.subr.mxu0 0.0
    %6024 = vmatpush1.msra.mxu0 0.0
    %6025 = vmatprep.subr.mxu0 0.0
    %6026 = vmatpush1.msra.mxu0 0.0
    %6027 = vmatprep.subr.mxu0 0.0
    %6028 = vmatpush1.msra.mxu0 0.0
    %6029 = vmatprep.subr.mxu0 0.0
    %6030 = vmatpush1.msra.mxu0 0.0
    %6031 = vmatprep.subr.mxu0 0.0
    %6032 = vmatpush1.msra.mxu0 0.0
    %6033 = vmatprep.mubr.f32.mxu0 0.0
    %6034 = vmatmul.mubr.f32.gmra.mrb[0].mxu0 %v5961
    %v6035 = vpop.f32.mrb[0].mxu0
    %v6036 = vadd.f32 0.0, %v6035
    %v6037 = vpop.f32.mrb[0].mxu0
    %6038 = vmatprep.mubr.f32.mxu0 0.0
    %6039 = vmatmul.mubr.f32.gmra.mrb[0].mxu0 %v5964
    %v6040 = vpop.f32.mrb[0].mxu0
    %v6041 = vadd.f32 0.0, %v6040
    %v6042 = vpop.f32.mrb[0].mxu0
    %6043 = vmatprep.mubr.f32.mxu0 0.0
    %6044 = vmatmul.mubr.f32.gmra.mrb[0].mxu0 %v5967
    %v6045 = vpop.f32.mrb[0].mxu0
    %v6046 = vadd.f32 0.0, %v6045
    %v6047 = vpop.f32.mrb[0].mxu0
    %6048 = vdwg.mxu0
    %6049 = vrot.lane.b32.xlu0 %v3113, 64
    %v6050 = vpop.permute.xlu0 %6049
    %6051 = vrot.lane.b32.xlu0 %v3115, 64
    %v6052 = vpop.permute.xlu0 %6051
    %6053 = vrot.lane.b32.xlu0 %v3117, 64
    %v6054 = vpop.permute.xlu0 %6053
    %v6059 = vsel %vm2204, %v5336, 0
    %v6062 = vsel %vm2204, %v5337, 0
    %v6065 = vsel %vm2204, %v5338, 0
    %6067 = vmatprep.subr.mxu0 0.0
    %6068 = vmatpush1.msra.mxu0 %v6050
    %6069 = vmatprep.subr.mxu0 0.0
    %6070 = vmatpush1.msra.mxu0 %v6052
    %6071 = vmatprep.subr.mxu0 0.0
    %6072 = vmatpush1.msra.mxu0 %v6054
    %6073 = vmatprep.subr.mxu0 0.0
    %6074 = vmatpush1.msra.mxu0 0.0
    %6075 = vmatprep.subr.mxu0 0.0
    %6076 = vmatpush1.msra.mxu0 0.0
    %6077 = vmatprep.subr.mxu0 0.0
    %6078 = vmatpush1.msra.mxu0 0.0
    %6079 = vmatprep.subr.mxu0 0.0
    %6080 = vmatpush1.msra.mxu0 0.0
    %6081 = vmatprep.subr.mxu0 0.0
    %6082 = vmatpush1.msra.mxu0 0.0
    %6083 = vmatprep.subr.mxu0 0.0
    %6084 = vmatpush1.msra.mxu0 0.0
    %6085 = vmatprep.subr.mxu0 0.0
    %6086 = vmatpush1.msra.mxu0 0.0
    %6087 = vmatprep.subr.mxu0 0.0
    %6088 = vmatpush1.msra.mxu0 0.0
    %6089 = vmatprep.subr.mxu0 0.0
    %6090 = vmatpush1.msra.mxu0 0.0
    %6091 = vmatprep.subr.mxu0 0.0
    %6092 = vmatpush1.msra.mxu0 0.0
    %6093 = vmatprep.subr.mxu0 0.0
    %6094 = vmatpush1.msra.mxu0 0.0
    %6095 = vmatprep.subr.mxu0 0.0
    %6096 = vmatpush1.msra.mxu0 0.0
    %6097 = vmatprep.subr.mxu0 0.0
    %6098 = vmatpush1.msra.mxu0 0.0
    %6099 = vmatprep.subr.mxu0 0.0
    %6100 = vmatpush1.msra.mxu0 0.0
    %6101 = vmatprep.subr.mxu0 0.0
    %6102 = vmatpush1.msra.mxu0 0.0
    %6103 = vmatprep.subr.mxu0 0.0
    %6104 = vmatpush1.msra.mxu0 0.0
    %6105 = vmatprep.subr.mxu0 0.0
    %6106 = vmatpush1.msra.mxu0 0.0
    %6107 = vmatprep.subr.mxu0 0.0
    %6108 = vmatpush1.msra.mxu0 0.0
    %6109 = vmatprep.subr.mxu0 0.0
    %6110 = vmatpush1.msra.mxu0 0.0
    %6111 = vmatprep.subr.mxu0 0.0
    %6112 = vmatpush1.msra.mxu0 0.0
    %6113 = vmatprep.subr.mxu0 0.0
    %6114 = vmatpush1.msra.mxu0 0.0
    %6115 = vmatprep.subr.mxu0 0.0
    %6116 = vmatpush1.msra.mxu0 0.0
    %6117 = vmatprep.subr.mxu0 0.0
    %6118 = vmatpush1.msra.mxu0 0.0
    %6119 = vmatprep.subr.mxu0 0.0
    %6120 = vmatpush1.msra.mxu0 0.0
    %6121 = vmatprep.subr.mxu0 0.0
    %6122 = vmatpush1.msra.mxu0 0.0
    %6123 = vmatprep.subr.mxu0 0.0
    %6124 = vmatpush1.msra.mxu0 0.0
    %6125 = vmatprep.subr.mxu0 0.0
    %6126 = vmatpush1.msra.mxu0 0.0
    %6127 = vmatprep.subr.mxu0 0.0
    %6128 = vmatpush1.msra.mxu0 0.0
    %6129 = vmatprep.subr.mxu0 0.0
    %6130 = vmatpush1.msra.mxu0 0.0
    %6131 = vmatprep.mubr.f32.mxu0 0.0
    %6132 = vmatmul.mubr.f32.gmra.mrb[0].mxu0 %v6059
    %v6133 = vpop.f32.mrb[0].mxu0
    %v6134 = vadd.f32 0.0, %v6133
    %v6135 = vpop.f32.mrb[0].mxu0
    %6136 = vmatprep.mubr.f32.mxu0 0.0
    %6137 = vmatmul.mubr.f32.gmra.mrb[0].mxu0 %v6062
    %v6138 = vpop.f32.mrb[0].mxu0
    %v6139 = vadd.f32 0.0, %v6138
    %v6140 = vpop.f32.mrb[0].mxu0
    %6141 = vmatprep.mubr.f32.mxu0 0.0
    %6142 = vmatmul.mubr.f32.gmra.mrb[0].mxu0 %v6065
    %v6143 = vpop.f32.mrb[0].mxu0
    %v6144 = vadd.f32 0.0, %v6143
    %v6145 = vpop.f32.mrb[0].mxu0
    %6146 = vdwg.mxu0
    %6147 = vrot.lane.b32.xlu0 %v3119, 64
    %v6148 = vpop.permute.xlu0 %6147
    %6149 = vrot.lane.b32.xlu0 %v3121, 64
    %v6150 = vpop.permute.xlu0 %6149
    %6151 = vrot.lane.b32.xlu0 %v3123, 64
    %v6152 = vpop.permute.xlu0 %6151
    %v6157 = vsel %vm2204, %v5339, 0
    %v6160 = vsel %vm2204, %v5340, 0
    %v6163 = vsel %vm2204, %v5341, 0
    %6165 = vmatprep.subr.mxu0 0.0
    %6166 = vmatpush1.msra.mxu0 %v6148
    %6167 = vmatprep.subr.mxu0 0.0
    %6168 = vmatpush1.msra.mxu0 %v6150
    %6169 = vmatprep.subr.mxu0 0.0
    %6170 = vmatpush1.msra.mxu0 %v6152
    %6171 = vmatprep.subr.mxu0 0.0
    %6172 = vmatpush1.msra.mxu0 0.0
    %6173 = vmatprep.subr.mxu0 0.0
    %6174 = vmatpush1.msra.mxu0 0.0
    %6175 = vmatprep.subr.mxu0 0.0
    %6176 = vmatpush1.msra.mxu0 0.0
    %6177 = vmatprep.subr.mxu0 0.0
    %6178 = vmatpush1.msra.mxu0 0.0
    %6179 = vmatprep.subr.mxu0 0.0
    %6180 = vmatpush1.msra.mxu0 0.0
    %6181 = vmatprep.subr.mxu0 0.0
    %6182 = vmatpush1.msra.mxu0 0.0
    %6183 = vmatprep.subr.mxu0 0.0
    %6184 = vmatpush1.msra.mxu0 0.0
    %6185 = vmatprep.subr.mxu0 0.0
    %6186 = vmatpush1.msra.mxu0 0.0
    %6187 = vmatprep.subr.mxu0 0.0
    %6188 = vmatpush1.msra.mxu0 0.0
    %6189 = vmatprep.subr.mxu0 0.0
    %6190 = vmatpush1.msra.mxu0 0.0
    %6191 = vmatprep.subr.mxu0 0.0
    %6192 = vmatpush1.msra.mxu0 0.0
    %6193 = vmatprep.subr.mxu0 0.0
    %6194 = vmatpush1.msra.mxu0 0.0
    %6195 = vmatprep.subr.mxu0 0.0
    %6196 = vmatpush1.msra.mxu0 0.0
    %6197 = vmatprep.subr.mxu0 0.0
    %6198 = vmatpush1.msra.mxu0 0.0
    %6199 = vmatprep.subr.mxu0 0.0
    %6200 = vmatpush1.msra.mxu0 0.0
    %6201 = vmatprep.subr.mxu0 0.0
    %6202 = vmatpush1.msra.mxu0 0.0
    %6203 = vmatprep.subr.mxu0 0.0
    %6204 = vmatpush1.msra.mxu0 0.0
    %6205 = vmatprep.subr.mxu0 0.0
    %6206 = vmatpush1.msra.mxu0 0.0
    %6207 = vmatprep.subr.mxu0 0.0
    %6208 = vmatpush1.msra.mxu0 0.0
    %6209 = vmatprep.subr.mxu0 0.0
    %6210 = vmatpush1.msra.mxu0 0.0
    %6211 = vmatprep.subr.mxu0 0.0
    %6212 = vmatpush1.msra.mxu0 0.0
    %6213 = vmatprep.subr.mxu0 0.0
    %6214 = vmatpush1.msra.mxu0 0.0
    %6215 = vmatprep.subr.mxu0 0.0
    %6216 = vmatpush1.msra.mxu0 0.0
    %6217 = vmatprep.subr.mxu0 0.0
    %6218 = vmatpush1.msra.mxu0 0.0
    %6219 = vmatprep.subr.mxu0 0.0
    %6220 = vmatpush1.msra.mxu0 0.0
    %6221 = vmatprep.subr.mxu0 0.0
    %6222 = vmatpush1.msra.mxu0 0.0
    %6223 = vmatprep.subr.mxu0 0.0
    %6224 = vmatpush1.msra.mxu0 0.0
    %6225 = vmatprep.subr.mxu0 0.0
    %6226 = vmatpush1.msra.mxu0 0.0
    %6227 = vmatprep.subr.mxu0 0.0
    %6228 = vmatpush1.msra.mxu0 0.0
    %6229 = vmatprep.mubr.f32.mxu0 0.0
    %6230 = vmatmul.mubr.f32.gmra.mrb[0].mxu0 %v6157
    %v6231 = vpop.f32.mrb[0].mxu0
    %v6232 = vadd.f32 0.0, %v6231
    %v6233 = vpop.f32.mrb[0].mxu0
    %6234 = vmatprep.mubr.f32.mxu0 0.0
    %6235 = vmatmul.mubr.f32.gmra.mrb[0].mxu0 %v6160
    %v6236 = vpop.f32.mrb[0].mxu0
    %v6237 = vadd.f32 0.0, %v6236
    %v6238 = vpop.f32.mrb[0].mxu0
    %6239 = vmatprep.mubr.f32.mxu0 0.0
    %6240 = vmatmul.mubr.f32.gmra.mrb[0].mxu0 %v6163
    %v6241 = vpop.f32.mrb[0].mxu0
    %v6242 = vadd.f32 0.0, %v6241
    %v6243 = vpop.f32.mrb[0].mxu0
    %6244 = vdwg.mxu0
    %6245 = vrot.lane.b32.xlu0 %v3125, 64
    %v6246 = vpop.permute.xlu0 %6245
    %6247 = vrot.lane.b32.xlu0 %v3127, 64
    %v6248 = vpop.permute.xlu0 %6247
    %6249 = vrot.lane.b32.xlu0 %v3129, 64
    %v6250 = vpop.permute.xlu0 %6249
    %v6255 = vsel %vm2204, %v5342, 0
    %v6258 = vsel %vm2204, %v5343, 0
    %v6261 = vsel %vm2204, %v5344, 0
    %6263 = vmatprep.subr.mxu0 0.0
    %6264 = vmatpush1.msra.mxu0 %v6246
    %6265 = vmatprep.subr.mxu0 0.0
    %6266 = vmatpush1.msra.mxu0 %v6248
    %6267 = vmatprep.subr.mxu0 0.0
    %6268 = vmatpush1.msra.mxu0 %v6250
    %6269 = vmatprep.subr.mxu0 0.0
    %6270 = vmatpush1.msra.mxu0 0.0
    %6271 = vmatprep.subr.mxu0 0.0
    %6272 = vmatpush1.msra.mxu0 0.0
    %6273 = vmatprep.subr.mxu0 0.0
    %6274 = vmatpush1.msra.mxu0 0.0
    %6275 = vmatprep.subr.mxu0 0.0
    %6276 = vmatpush1.msra.mxu0 0.0
    %6277 = vmatprep.subr.mxu0 0.0
    %6278 = vmatpush1.msra.mxu0 0.0
    %6279 = vmatprep.subr.mxu0 0.0
    %6280 = vmatpush1.msra.mxu0 0.0
    %6281 = vmatprep.subr.mxu0 0.0
    %6282 = vmatpush1.msra.mxu0 0.0
    %6283 = vmatprep.subr.mxu0 0.0
    %6284 = vmatpush1.msra.mxu0 0.0
    %6285 = vmatprep.subr.mxu0 0.0
    %6286 = vmatpush1.msra.mxu0 0.0
    %6287 = vmatprep.subr.mxu0 0.0
    %6288 = vmatpush1.msra.mxu0 0.0
    %6289 = vmatprep.subr.mxu0 0.0
    %6290 = vmatpush1.msra.mxu0 0.0
    %6291 = vmatprep.subr.mxu0 0.0
    %6292 = vmatpush1.msra.mxu0 0.0
    %6293 = vmatprep.subr.mxu0 0.0
    %6294 = vmatpush1.msra.mxu0 0.0
    %6295 = vmatprep.subr.mxu0 0.0
    %6296 = vmatpush1.msra.mxu0 0.0
    %6297 = vmatprep.subr.mxu0 0.0
    %6298 = vmatpush1.msra.mxu0 0.0
    %6299 = vmatprep.subr.mxu0 0.0
    %6300 = vmatpush1.msra.mxu0 0.0
    %6301 = vmatprep.subr.mxu0 0.0
    %6302 = vmatpush1.msra.mxu0 0.0
    %6303 = vmatprep.subr.mxu0 0.0
    %6304 = vmatpush1.msra.mxu0 0.0
    %6305 = vmatprep.subr.mxu0 0.0
    %6306 = vmatpush1.msra.mxu0 0.0
    %6307 = vmatprep.subr.mxu0 0.0
    %6308 = vmatpush1.msra.mxu0 0.0
    %6309 = vmatprep.subr.mxu0 0.0
    %6310 = vmatpush1.msra.mxu0 0.0
    %6311 = vmatprep.subr.mxu0 0.0
    %6312 = vmatpush1.msra.mxu0 0.0
    %6313 = vmatprep.subr.mxu0 0.0
    %6314 = vmatpush1.msra.mxu0 0.0
    %6315 = vmatprep.subr.mxu0 0.0
    %6316 = vmatpush1.msra.mxu0 0.0
    %6317 = vmatprep.subr.mxu0 0.0
    %6318 = vmatpush1.msra.mxu0 0.0
    %6319 = vmatprep.subr.mxu0 0.0
    %6320 = vmatpush1.msra.mxu0 0.0
    %6321 = vmatprep.subr.mxu0 0.0
    %6322 = vmatpush1.msra.mxu0 0.0
    %6323 = vmatprep.subr.mxu0 0.0
    %6324 = vmatpush1.msra.mxu0 0.0
    %6325 = vmatprep.subr.mxu0 0.0
    %6326 = vmatpush1.msra.mxu0 0.0
    %6327 = vmatprep.mubr.f32.mxu0 0.0
    %6328 = vmatmul.mubr.f32.gmra.mrb[0].mxu0 %v6255
    %v6329 = vpop.f32.mrb[0].mxu0
    %v6330 = vadd.f32 0.0, %v6329
    %v6331 = vpop.f32.mrb[0].mxu0
    %6332 = vmatprep.mubr.f32.mxu0 0.0
    %6333 = vmatmul.mubr.f32.gmra.mrb[0].mxu0 %v6258
    %v6334 = vpop.f32.mrb[0].mxu0
    %v6335 = vadd.f32 0.0, %v6334
    %v6336 = vpop.f32.mrb[0].mxu0
    %6337 = vmatprep.mubr.f32.mxu0 0.0
    %6338 = vmatmul.mubr.f32.gmra.mrb[0].mxu0 %v6261
    %v6339 = vpop.f32.mrb[0].mxu0
    %v6340 = vadd.f32 0.0, %v6339
    %v6341 = vpop.f32.mrb[0].mxu0
    %6342 = vdwg.mxu0
    %6343 = vrot.lane.b32.xlu0 %v3131, 64
    %v6344 = vpop.permute.xlu0 %6343
    %6345 = vrot.lane.b32.xlu0 %v3133, 64
    %v6346 = vpop.permute.xlu0 %6345
    %6347 = vrot.lane.b32.xlu0 %v3135, 64
    %v6348 = vpop.permute.xlu0 %6347
    %v6353 = vsel %vm2204, %v5345, 0
    %v6356 = vsel %vm2204, %v5346, 0
    %v6359 = vsel %vm2204, %v5347, 0
    %6361 = vmatprep.subr.mxu0 0.0
    %6362 = vmatpush1.msra.mxu0 %v6344
    %6363 = vmatprep.subr.mxu0 0.0
    %6364 = vmatpush1.msra.mxu0 %v6346
    %6365 = vmatprep.subr.mxu0 0.0
    %6366 = vmatpush1.msra.mxu0 %v6348
    %6367 = vmatprep.subr.mxu0 0.0
    %6368 = vmatpush1.msra.mxu0 0.0
    %6369 = vmatprep.subr.mxu0 0.0
    %6370 = vmatpush1.msra.mxu0 0.0
    %6371 = vmatprep.subr.mxu0 0.0
    %6372 = vmatpush1.msra.mxu0 0.0
    %6373 = vmatprep.subr.mxu0 0.0
    %6374 = vmatpush1.msra.mxu0 0.0
    %6375 = vmatprep.subr.mxu0 0.0
    %6376 = vmatpush1.msra.mxu0 0.0
    %6377 = vmatprep.subr.mxu0 0.0
    %6378 = vmatpush1.msra.mxu0 0.0
    %6379 = vmatprep.subr.mxu0 0.0
    %6380 = vmatpush1.msra.mxu0 0.0
    %6381 = vmatprep.subr.mxu0 0.0
    %6382 = vmatpush1.msra.mxu0 0.0
    %6383 = vmatprep.subr.mxu0 0.0
    %6384 = vmatpush1.msra.mxu0 0.0
    %6385 = vmatprep.subr.mxu0 0.0
    %6386 = vmatpush1.msra.mxu0 0.0
    %6387 = vmatprep.subr.mxu0 0.0
    %6388 = vmatpush1.msra.mxu0 0.0
    %6389 = vmatprep.subr.mxu0 0.0
    %6390 = vmatpush1.msra.mxu0 0.0
    %6391 = vmatprep.subr.mxu0 0.0
    %6392 = vmatpush1.msra.mxu0 0.0
    %6393 = vmatprep.subr.mxu0 0.0
    %6394 = vmatpush1.msra.mxu0 0.0
    %6395 = vmatprep.subr.mxu0 0.0
    %6396 = vmatpush1.msra.mxu0 0.0
    %6397 = vmatprep.subr.mxu0 0.0
    %6398 = vmatpush1.msra.mxu0 0.0
    %6399 = vmatprep.subr.mxu0 0.0
    %6400 = vmatpush1.msra.mxu0 0.0
    %6401 = vmatprep.subr.mxu0 0.0
    %6402 = vmatpush1.msra.mxu0 0.0
    %6403 = vmatprep.subr.mxu0 0.0
    %6404 = vmatpush1.msra.mxu0 0.0
    %6405 = vmatprep.subr.mxu0 0.0
    %6406 = vmatpush1.msra.mxu0 0.0
    %6407 = vmatprep.subr.mxu0 0.0
    %6408 = vmatpush1.msra.mxu0 0.0
    %6409 = vmatprep.subr.mxu0 0.0
    %6410 = vmatpush1.msra.mxu0 0.0
    %6411 = vmatprep.subr.mxu0 0.0
    %6412 = vmatpush1.msra.mxu0 0.0
    %6413 = vmatprep.subr.mxu0 0.0
    %6414 = vmatpush1.msra.mxu0 0.0
    %6415 = vmatprep.subr.mxu0 0.0
    %6416 = vmatpush1.msra.mxu0 0.0
    %6417 = vmatprep.subr.mxu0 0.0
    %6418 = vmatpush1.msra.mxu0 0.0
    %6419 = vmatprep.subr.mxu0 0.0
    %6420 = vmatpush1.msra.mxu0 0.0
    %6421 = vmatprep.subr.mxu0 0.0
    %6422 = vmatpush1.msra.mxu0 0.0
    %6423 = vmatprep.subr.mxu0 0.0
    %6424 = vmatpush1.msra.mxu0 0.0
    %6425 = vmatprep.mubr.f32.mxu0 0.0
    %6426 = vmatmul.mubr.f32.gmra.mrb[0].mxu0 %v6353
    %v6427 = vpop.f32.mrb[0].mxu0
    %v6428 = vadd.f32 0.0, %v6427
    %v6429 = vpop.f32.mrb[0].mxu0
    %6430 = vmatprep.mubr.f32.mxu0 0.0
    %6431 = vmatmul.mubr.f32.gmra.mrb[0].mxu0 %v6356
    %v6432 = vpop.f32.mrb[0].mxu0
    %v6433 = vadd.f32 0.0, %v6432
    %v6434 = vpop.f32.mrb[0].mxu0
    %6435 = vmatprep.mubr.f32.mxu0 0.0
    %6436 = vmatmul.mubr.f32.gmra.mrb[0].mxu0 %v6359
    %v6437 = vpop.f32.mrb[0].mxu0
    %v6438 = vadd.f32 0.0, %v6437
    %v6439 = vpop.f32.mrb[0].mxu0
    %6440 = vdwg.mxu0
    %6441 = vrot.lane.b32.xlu0 %v3137, 64
    %v6442 = vpop.permute.xlu0 %6441
    %6443 = vrot.lane.b32.xlu0 %v3139, 64
    %v6444 = vpop.permute.xlu0 %6443
    %6445 = vrot.lane.b32.xlu0 %v3141, 64
    %v6446 = vpop.permute.xlu0 %6445
    %v6451 = vsel %vm2204, %v5348, 0
    %v6454 = vsel %vm2204, %v5349, 0
    %v6457 = vsel %vm2204, %v5350, 0
    %6459 = vmatprep.subr.mxu0 0.0
    %6460 = vmatpush1.msra.mxu0 %v6442
    %6461 = vmatprep.subr.mxu0 0.0
    %6462 = vmatpush1.msra.mxu0 %v6444
    %6463 = vmatprep.subr.mxu0 0.0
    %6464 = vmatpush1.msra.mxu0 %v6446
    %6465 = vmatprep.subr.mxu0 0.0
    %6466 = vmatpush1.msra.mxu0 0.0
    %6467 = vmatprep.subr.mxu0 0.0
    %6468 = vmatpush1.msra.mxu0 0.0
    %6469 = vmatprep.subr.mxu0 0.0
    %6470 = vmatpush1.msra.mxu0 0.0
    %6471 = vmatprep.subr.mxu0 0.0
    %6472 = vmatpush1.msra.mxu0 0.0
    %6473 = vmatprep.subr.mxu0 0.0
    %6474 = vmatpush1.msra.mxu0 0.0
    %6475 = vmatprep.subr.mxu0 0.0
    %6476 = vmatpush1.msra.mxu0 0.0
    %6477 = vmatprep.subr.mxu0 0.0
    %6478 = vmatpush1.msra.mxu0 0.0
    %6479 = vmatprep.subr.mxu0 0.0
    %6480 = vmatpush1.msra.mxu0 0.0
    %6481 = vmatprep.subr.mxu0 0.0
    %6482 = vmatpush1.msra.mxu0 0.0
    %6483 = vmatprep.subr.mxu0 0.0
    %6484 = vmatpush1.msra.mxu0 0.0
    %6485 = vmatprep.subr.mxu0 0.0
    %6486 = vmatpush1.msra.mxu0 0.0
    %6487 = vmatprep.subr.mxu0 0.0
    %6488 = vmatpush1.msra.mxu0 0.0
    %6489 = vmatprep.subr.mxu0 0.0
    %6490 = vmatpush1.msra.mxu0 0.0
    %6491 = vmatprep.subr.mxu0 0.0
    %6492 = vmatpush1.msra.mxu0 0.0
    %6493 = vmatprep.subr.mxu0 0.0
    %6494 = vmatpush1.msra.mxu0 0.0
    %6495 = vmatprep.subr.mxu0 0.0
    %6496 = vmatpush1.msra.mxu0 0.0
    %6497 = vmatprep.subr.mxu0 0.0
    %6498 = vmatpush1.msra.mxu0 0.0
    %6499 = vmatprep.subr.mxu0 0.0
    %6500 = vmatpush1.msra.mxu0 0.0
    %6501 = vmatprep.subr.mxu0 0.0
    %6502 = vmatpush1.msra.mxu0 0.0
    %6503 = vmatprep.subr.mxu0 0.0
    %6504 = vmatpush1.msra.mxu0 0.0
    %6505 = vmatprep.subr.mxu0 0.0
    %6506 = vmatpush1.msra.mxu0 0.0
    %6507 = vmatprep.subr.mxu0 0.0
    %6508 = vmatpush1.msra.mxu0 0.0
    %6509 = vmatprep.subr.mxu0 0.0
    %6510 = vmatpush1.msra.mxu0 0.0
    %6511 = vmatprep.subr.mxu0 0.0
    %6512 = vmatpush1.msra.mxu0 0.0
    %6513 = vmatprep.subr.mxu0 0.0
    %6514 = vmatpush1.msra.mxu0 0.0
    %6515 = vmatprep.subr.mxu0 0.0
    %6516 = vmatpush1.msra.mxu0 0.0
    %6517 = vmatprep.subr.mxu0 0.0
    %6518 = vmatpush1.msra.mxu0 0.0
    %6519 = vmatprep.subr.mxu0 0.0
    %6520 = vmatpush1.msra.mxu0 0.0
    %6521 = vmatprep.subr.mxu0 0.0
    %6522 = vmatpush1.msra.mxu0 0.0
    %6523 = vmatprep.mubr.f32.mxu0 0.0
    %6524 = vmatmul.mubr.f32.gmra.mrb[0].mxu0 %v6451
    %v6525 = vpop.f32.mrb[0].mxu0
    %v6526 = vadd.f32 0.0, %v6525
    %v6527 = vpop.f32.mrb[0].mxu0
    %6528 = vmatprep.mubr.f32.mxu0 0.0
    %6529 = vmatmul.mubr.f32.gmra.mrb[0].mxu0 %v6454
    %v6530 = vpop.f32.mrb[0].mxu0
    %v6531 = vadd.f32 0.0, %v6530
    %v6532 = vpop.f32.mrb[0].mxu0
    %6533 = vmatprep.mubr.f32.mxu0 0.0
    %6534 = vmatmul.mubr.f32.gmra.mrb[0].mxu0 %v6457
    %v6535 = vpop.f32.mrb[0].mxu0
    %v6536 = vadd.f32 0.0, %v6535
    %v6537 = vpop.f32.mrb[0].mxu0
    %6538 = vdwg.mxu0
    %6539 = vrot.lane.b32.xlu0 %v3143, 64
    %v6540 = vpop.permute.xlu0 %6539
    %6541 = vrot.lane.b32.xlu0 %v3145, 64
    %v6542 = vpop.permute.xlu0 %6541
    %6543 = vrot.lane.b32.xlu0 %v3147, 64
    %v6544 = vpop.permute.xlu0 %6543
    %v6549 = vsel %vm2204, %v5351, 0
    %v6552 = vsel %vm2204, %v5352, 0
    %v6555 = vsel %vm2204, %v5353, 0
    %6557 = vmatprep.subr.mxu0 0.0
    %6558 = vmatpush1.msra.mxu0 %v6540
    %6559 = vmatprep.subr.mxu0 0.0
    %6560 = vmatpush1.msra.mxu0 %v6542
    %6561 = vmatprep.subr.mxu0 0.0
    %6562 = vmatpush1.msra.mxu0 %v6544
    %6563 = vmatprep.subr.mxu0 0.0
    %6564 = vmatpush1.msra.mxu0 0.0
    %6565 = vmatprep.subr.mxu0 0.0
    %6566 = vmatpush1.msra.mxu0 0.0
    %6567 = vmatprep.subr.mxu0 0.0
    %6568 = vmatpush1.msra.mxu0 0.0
    %6569 = vmatprep.subr.mxu0 0.0
    %6570 = vmatpush1.msra.mxu0 0.0
    %6571 = vmatprep.subr.mxu0 0.0
    %6572 = vmatpush1.msra.mxu0 0.0
    %6573 = vmatprep.subr.mxu0 0.0
    %6574 = vmatpush1.msra.mxu0 0.0
    %6575 = vmatprep.subr.mxu0 0.0
    %6576 = vmatpush1.msra.mxu0 0.0
    %6577 = vmatprep.subr.mxu0 0.0
    %6578 = vmatpush1.msra.mxu0 0.0
    %6579 = vmatprep.subr.mxu0 0.0
    %6580 = vmatpush1.msra.mxu0 0.0
    %6581 = vmatprep.subr.mxu0 0.0
    %6582 = vmatpush1.msra.mxu0 0.0
    %6583 = vmatprep.subr.mxu0 0.0
    %6584 = vmatpush1.msra.mxu0 0.0
    %6585 = vmatprep.subr.mxu0 0.0
    %6586 = vmatpush1.msra.mxu0 0.0
    %6587 = vmatprep.subr.mxu0 0.0
    %6588 = vmatpush1.msra.mxu0 0.0
    %6589 = vmatprep.subr.mxu0 0.0
    %6590 = vmatpush1.msra.mxu0 0.0
    %6591 = vmatprep.subr.mxu0 0.0
    %6592 = vmatpush1.msra.mxu0 0.0
    %6593 = vmatprep.subr.mxu0 0.0
    %6594 = vmatpush1.msra.mxu0 0.0
    %6595 = vmatprep.subr.mxu0 0.0
    %6596 = vmatpush1.msra.mxu0 0.0
    %6597 = vmatprep.subr.mxu0 0.0
    %6598 = vmatpush1.msra.mxu0 0.0
    %6599 = vmatprep.subr.mxu0 0.0
    %6600 = vmatpush1.msra.mxu0 0.0
    %6601 = vmatprep.subr.mxu0 0.0
    %6602 = vmatpush1.msra.mxu0 0.0
    %6603 = vmatprep.subr.mxu0 0.0
    %6604 = vmatpush1.msra.mxu0 0.0
    %6605 = vmatprep.subr.mxu0 0.0
    %6606 = vmatpush1.msra.mxu0 0.0
    %6607 = vmatprep.subr.mxu0 0.0
    %6608 = vmatpush1.msra.mxu0 0.0
    %6609 = vmatprep.subr.mxu0 0.0
    %6610 = vmatpush1.msra.mxu0 0.0
    %6611 = vmatprep.subr.mxu0 0.0
    %6612 = vmatpush1.msra.mxu0 0.0
    %6613 = vmatprep.subr.mxu0 0.0
    %6614 = vmatpush1.msra.mxu0 0.0
    %6615 = vmatprep.subr.mxu0 0.0
    %6616 = vmatpush1.msra.mxu0 0.0
    %6617 = vmatprep.subr.mxu0 0.0
    %6618 = vmatpush1.msra.mxu0 0.0
    %6619 = vmatprep.subr.mxu0 0.0
    %6620 = vmatpush1.msra.mxu0 0.0
    %6621 = vmatprep.mubr.f32.mxu0 0.0
    %6622 = vmatmul.mubr.f32.gmra.mrb[0].mxu0 %v6549
    %v6623 = vpop.f32.mrb[0].mxu0
    %v6624 = vadd.f32 0.0, %v6623
    %v6625 = vpop.f32.mrb[0].mxu0
    %6626 = vmatprep.mubr.f32.mxu0 0.0
    %6627 = vmatmul.mubr.f32.gmra.mrb[0].mxu0 %v6552
    %v6628 = vpop.f32.mrb[0].mxu0
    %v6629 = vadd.f32 0.0, %v6628
    %v6630 = vpop.f32.mrb[0].mxu0
    %6631 = vmatprep.mubr.f32.mxu0 0.0
    %6632 = vmatmul.mubr.f32.gmra.mrb[0].mxu0 %v6555
    %v6633 = vpop.f32.mrb[0].mxu0
    %v6634 = vadd.f32 0.0, %v6633
    %v6635 = vpop.f32.mrb[0].mxu0
    %6636 = vdwg.mxu0
    %6637 = vrot.lane.b32.xlu0 %v3149, 64
    %v6638 = vpop.permute.xlu0 %6637
    %6639 = vrot.lane.b32.xlu0 %v3151, 64
    %v6640 = vpop.permute.xlu0 %6639
    %6641 = vrot.lane.b32.xlu0 %v3153, 64
    %v6642 = vpop.permute.xlu0 %6641
    %v6647 = vsel %vm2204, %v5354, 0
    %v6650 = vsel %vm2204, %v5355, 0
    %v6653 = vsel %vm2204, %v5356, 0
    %6655 = vmatprep.subr.mxu0 0.0
    %6656 = vmatpush1.msra.mxu0 %v6638
    %6657 = vmatprep.subr.mxu0 0.0
    %6658 = vmatpush1.msra.mxu0 %v6640
    %6659 = vmatprep.subr.mxu0 0.0
    %6660 = vmatpush1.msra.mxu0 %v6642
    %6661 = vmatprep.subr.mxu0 0.0
    %6662 = vmatpush1.msra.mxu0 0.0
    %6663 = vmatprep.subr.mxu0 0.0
    %6664 = vmatpush1.msra.mxu0 0.0
    %6665 = vmatprep.subr.mxu0 0.0
    %6666 = vmatpush1.msra.mxu0 0.0
    %6667 = vmatprep.subr.mxu0 0.0
    %6668 = vmatpush1.msra.mxu0 0.0
    %6669 = vmatprep.subr.mxu0 0.0
    %6670 = vmatpush1.msra.mxu0 0.0
    %6671 = vmatprep.subr.mxu0 0.0
    %6672 = vmatpush1.msra.mxu0 0.0
    %6673 = vmatprep.subr.mxu0 0.0
    %6674 = vmatpush1.msra.mxu0 0.0
    %6675 = vmatprep.subr.mxu0 0.0
    %6676 = vmatpush1.msra.mxu0 0.0
    %6677 = vmatprep.subr.mxu0 0.0
    %6678 = vmatpush1.msra.mxu0 0.0
    %6679 = vmatprep.subr.mxu0 0.0
    %6680 = vmatpush1.msra.mxu0 0.0
    %6681 = vmatprep.subr.mxu0 0.0
    %6682 = vmatpush1.msra.mxu0 0.0
    %6683 = vmatprep.subr.mxu0 0.0
    %6684 = vmatpush1.msra.mxu0 0.0
    %6685 = vmatprep.subr.mxu0 0.0
    %6686 = vmatpush1.msra.mxu0 0.0
    %6687 = vmatprep.subr.mxu0 0.0
    %6688 = vmatpush1.msra.mxu0 0.0
    %6689 = vmatprep.subr.mxu0 0.0
    %6690 = vmatpush1.msra.mxu0 0.0
    %6691 = vmatprep.subr.mxu0 0.0
    %6692 = vmatpush1.msra.mxu0 0.0
    %6693 = vmatprep.subr.mxu0 0.0
    %6694 = vmatpush1.msra.mxu0 0.0
    %6695 = vmatprep.subr.mxu0 0.0
    %6696 = vmatpush1.msra.mxu0 0.0
    %6697 = vmatprep.subr.mxu0 0.0
    %6698 = vmatpush1.msra.mxu0 0.0
    %6699 = vmatprep.subr.mxu0 0.0
    %6700 = vmatpush1.msra.mxu0 0.0
    %6701 = vmatprep.subr.mxu0 0.0
    %6702 = vmatpush1.msra.mxu0 0.0
    %6703 = vmatprep.subr.mxu0 0.0
    %6704 = vmatpush1.msra.mxu0 0.0
    %6705 = vmatprep.subr.mxu0 0.0
    %6706 = vmatpush1.msra.mxu0 0.0
    %6707 = vmatprep.subr.mxu0 0.0
    %6708 = vmatpush1.msra.mxu0 0.0
    %6709 = vmatprep.subr.mxu0 0.0
    %6710 = vmatpush1.msra.mxu0 0.0
    %6711 = vmatprep.subr.mxu0 0.0
    %6712 = vmatpush1.msra.mxu0 0.0
    %6713 = vmatprep.subr.mxu0 0.0
    %6714 = vmatpush1.msra.mxu0 0.0
    %6715 = vmatprep.subr.mxu0 0.0
    %6716 = vmatpush1.msra.mxu0 0.0
    %6717 = vmatprep.subr.mxu0 0.0
    %6718 = vmatpush1.msra.mxu0 0.0
    %6719 = vmatprep.mubr.f32.mxu0 0.0
    %6720 = vmatmul.mubr.f32.gmra.mrb[0].mxu0 %v6647
    %v6721 = vpop.f32.mrb[0].mxu0
    %v6722 = vadd.f32 0.0, %v6721
    %v6723 = vpop.f32.mrb[0].mxu0
    %6724 = vmatprep.mubr.f32.mxu0 0.0
    %6725 = vmatmul.mubr.f32.gmra.mrb[0].mxu0 %v6650
    %v6726 = vpop.f32.mrb[0].mxu0
    %v6727 = vadd.f32 0.0, %v6726
    %v6728 = vpop.f32.mrb[0].mxu0
    %6729 = vmatprep.mubr.f32.mxu0 0.0
    %6730 = vmatmul.mubr.f32.gmra.mrb[0].mxu0 %v6653
    %v6731 = vpop.f32.mrb[0].mxu0
    %v6732 = vadd.f32 0.0, %v6731
    %v6733 = vpop.f32.mrb[0].mxu0
    %6734 = vdwg.mxu0
    %6735 = vrot.lane.b32.xlu0 %v3155, 64
    %v6736 = vpop.permute.xlu0 %6735
    %6737 = vrot.lane.b32.xlu0 %v3157, 64
    %v6738 = vpop.permute.xlu0 %6737
    %6739 = vrot.lane.b32.xlu0 %v3159, 64
    %v6740 = vpop.permute.xlu0 %6739
    %v6745 = vsel %vm2204, %v5357, 0
    %v6748 = vsel %vm2204, %v5358, 0
    %v6751 = vsel %vm2204, %v5359, 0
    %6753 = vmatprep.subr.mxu0 0.0
    %6754 = vmatpush1.msra.mxu0 %v6736
    %6755 = vmatprep.subr.mxu0 0.0
    %6756 = vmatpush1.msra.mxu0 %v6738
    %6757 = vmatprep.subr.mxu0 0.0
    %6758 = vmatpush1.msra.mxu0 %v6740
    %6759 = vmatprep.subr.mxu0 0.0
    %6760 = vmatpush1.msra.mxu0 0.0
    %6761 = vmatprep.subr.mxu0 0.0
    %6762 = vmatpush1.msra.mxu0 0.0
    %6763 = vmatprep.subr.mxu0 0.0
    %6764 = vmatpush1.msra.mxu0 0.0
    %6765 = vmatprep.subr.mxu0 0.0
    %6766 = vmatpush1.msra.mxu0 0.0
    %6767 = vmatprep.subr.mxu0 0.0
    %6768 = vmatpush1.msra.mxu0 0.0
    %6769 = vmatprep.subr.mxu0 0.0
    %6770 = vmatpush1.msra.mxu0 0.0
    %6771 = vmatprep.subr.mxu0 0.0
    %6772 = vmatpush1.msra.mxu0 0.0
    %6773 = vmatprep.subr.mxu0 0.0
    %6774 = vmatpush1.msra.mxu0 0.0
    %6775 = vmatprep.subr.mxu0 0.0
    %6776 = vmatpush1.msra.mxu0 0.0
    %6777 = vmatprep.subr.mxu0 0.0
    %6778 = vmatpush1.msra.mxu0 0.0
    %6779 = vmatprep.subr.mxu0 0.0
    %6780 = vmatpush1.msra.mxu0 0.0
    %6781 = vmatprep.subr.mxu0 0.0
    %6782 = vmatpush1.msra.mxu0 0.0
    %6783 = vmatprep.subr.mxu0 0.0
    %6784 = vmatpush1.msra.mxu0 0.0
    %6785 = vmatprep.subr.mxu0 0.0
    %6786 = vmatpush1.msra.mxu0 0.0
    %6787 = vmatprep.subr.mxu0 0.0
    %6788 = vmatpush1.msra.mxu0 0.0
    %6789 = vmatprep.subr.mxu0 0.0
    %6790 = vmatpush1.msra.mxu0 0.0
    %6791 = vmatprep.subr.mxu0 0.0
    %6792 = vmatpush1.msra.mxu0 0.0
    %6793 = vmatprep.subr.mxu0 0.0
    %6794 = vmatpush1.msra.mxu0 0.0
    %6795 = vmatprep.subr.mxu0 0.0
    %6796 = vmatpush1.msra.mxu0 0.0
    %6797 = vmatprep.subr.mxu0 0.0
    %6798 = vmatpush1.msra.mxu0 0.0
    %6799 = vmatprep.subr.mxu0 0.0
    %6800 = vmatpush1.msra.mxu0 0.0
    %6801 = vmatprep.subr.mxu0 0.0
    %6802 = vmatpush1.msra.mxu0 0.0
    %6803 = vmatprep.subr.mxu0 0.0
    %6804 = vmatpush1.msra.mxu0 0.0
    %6805 = vmatprep.subr.mxu0 0.0
    %6806 = vmatpush1.msra.mxu0 0.0
    %6807 = vmatprep.subr.mxu0 0.0
    %6808 = vmatpush1.msra.mxu0 0.0
    %6809 = vmatprep.subr.mxu0 0.0
    %6810 = vmatpush1.msra.mxu0 0.0
    %6811 = vmatprep.subr.mxu0 0.0
    %6812 = vmatpush1.msra.mxu0 0.0
    %6813 = vmatprep.subr.mxu0 0.0
    %6814 = vmatpush1.msra.mxu0 0.0
    %6815 = vmatprep.subr.mxu0 0.0
    %6816 = vmatpush1.msra.mxu0 0.0
    %6817 = vmatprep.mubr.f32.mxu0 0.0
    %6818 = vmatmul.mubr.f32.gmra.mrb[0].mxu0 %v6745
    %v6819 = vpop.f32.mrb[0].mxu0
    %v6820 = vadd.f32 0.0, %v6819
    %v6821 = vpop.f32.mrb[0].mxu0
    %6822 = vmatprep.mubr.f32.mxu0 0.0
    %6823 = vmatmul.mubr.f32.gmra.mrb[0].mxu0 %v6748
    %v6824 = vpop.f32.mrb[0].mxu0
    %v6825 = vadd.f32 0.0, %v6824
    %v6826 = vpop.f32.mrb[0].mxu0
    %6827 = vmatprep.mubr.f32.mxu0 0.0
    %6828 = vmatmul.mubr.f32.gmra.mrb[0].mxu0 %v6751
    %v6829 = vpop.f32.mrb[0].mxu0
    %v6830 = vadd.f32 0.0, %v6829
    %v6831 = vpop.f32.mrb[0].mxu0
    %6832 = vdwg.mxu0
    %6833 = vrot.lane.b32.xlu0 %v3161, 64
    %v6834 = vpop.permute.xlu0 %6833
    %6835 = vrot.lane.b32.xlu0 %v3163, 64
    %v6836 = vpop.permute.xlu0 %6835
    %6837 = vrot.lane.b32.xlu0 %v3165, 64
    %v6838 = vpop.permute.xlu0 %6837
    %v6843 = vsel %vm2204, %v5360, 0
    %v6846 = vsel %vm2204, %v5361, 0
    %v6849 = vsel %vm2204, %v5362, 0
    %6851 = vmatprep.subr.mxu0 0.0
    %6852 = vmatpush1.msra.mxu0 %v6834
    %6853 = vmatprep.subr.mxu0 0.0
    %6854 = vmatpush1.msra.mxu0 %v6836
    %6855 = vmatprep.subr.mxu0 0.0
    %6856 = vmatpush1.msra.mxu0 %v6838
    %6857 = vmatprep.subr.mxu0 0.0
    %6858 = vmatpush1.msra.mxu0 0.0
    %6859 = vmatprep.subr.mxu0 0.0
    %6860 = vmatpush1.msra.mxu0 0.0
    %6861 = vmatprep.subr.mxu0 0.0
    %6862 = vmatpush1.msra.mxu0 0.0
    %6863 = vmatprep.subr.mxu0 0.0
    %6864 = vmatpush1.msra.mxu0 0.0
    %6865 = vmatprep.subr.mxu0 0.0
    %6866 = vmatpush1.msra.mxu0 0.0
    %6867 = vmatprep.subr.mxu0 0.0
    %6868 = vmatpush1.msra.mxu0 0.0
    %6869 = vmatprep.subr.mxu0 0.0
    %6870 = vmatpush1.msra.mxu0 0.0
    %6871 = vmatprep.subr.mxu0 0.0
    %6872 = vmatpush1.msra.mxu0 0.0
    %6873 = vmatprep.subr.mxu0 0.0
    %6874 = vmatpush1.msra.mxu0 0.0
    %6875 = vmatprep.subr.mxu0 0.0
    %6876 = vmatpush1.msra.mxu0 0.0
    %6877 = vmatprep.subr.mxu0 0.0
    %6878 = vmatpush1.msra.mxu0 0.0
    %6879 = vmatprep.subr.mxu0 0.0
    %6880 = vmatpush1.msra.mxu0 0.0
    %6881 = vmatprep.subr.mxu0 0.0
    %6882 = vmatpush1.msra.mxu0 0.0
    %6883 = vmatprep.subr.mxu0 0.0
    %6884 = vmatpush1.msra.mxu0 0.0
    %6885 = vmatprep.subr.mxu0 0.0
    %6886 = vmatpush1.msra.mxu0 0.0
    %6887 = vmatprep.subr.mxu0 0.0
    %6888 = vmatpush1.msra.mxu0 0.0
    %6889 = vmatprep.subr.mxu0 0.0
    %6890 = vmatpush1.msra.mxu0 0.0
    %6891 = vmatprep.subr.mxu0 0.0
    %6892 = vmatpush1.msra.mxu0 0.0
    %6893 = vmatprep.subr.mxu0 0.0
    %6894 = vmatpush1.msra.mxu0 0.0
    %6895 = vmatprep.subr.mxu0 0.0
    %6896 = vmatpush1.msra.mxu0 0.0
    %6897 = vmatprep.subr.mxu0 0.0
    %6898 = vmatpush1.msra.mxu0 0.0
    %6899 = vmatprep.subr.mxu0 0.0
    %6900 = vmatpush1.msra.mxu0 0.0
    %6901 = vmatprep.subr.mxu0 0.0
    %6902 = vmatpush1.msra.mxu0 0.0
    %6903 = vmatprep.subr.mxu0 0.0
    %6904 = vmatpush1.msra.mxu0 0.0
    %6905 = vmatprep.subr.mxu0 0.0
    %6906 = vmatpush1.msra.mxu0 0.0
    %6907 = vmatprep.subr.mxu0 0.0
    %6908 = vmatpush1.msra.mxu0 0.0
    %6909 = vmatprep.subr.mxu0 0.0
    %6910 = vmatpush1.msra.mxu0 0.0
    %6911 = vmatprep.subr.mxu0 0.0
    %6912 = vmatpush1.msra.mxu0 0.0
    %6913 = vmatprep.subr.mxu0 0.0
    %6914 = vmatpush1.msra.mxu0 0.0
    %6915 = vmatprep.mubr.f32.mxu0 0.0
    %6916 = vmatmul.mubr.f32.gmra.mrb[0].mxu0 %v6843
    %v6917 = vpop.f32.mrb[0].mxu0
    %v6918 = vadd.f32 0.0, %v6917
    %v6919 = vpop.f32.mrb[0].mxu0
    %6920 = vmatprep.mubr.f32.mxu0 0.0
    %6921 = vmatmul.mubr.f32.gmra.mrb[0].mxu0 %v6846
    %v6922 = vpop.f32.mrb[0].mxu0
    %v6923 = vadd.f32 0.0, %v6922
    %v6924 = vpop.f32.mrb[0].mxu0
    %6925 = vmatprep.mubr.f32.mxu0 0.0
    %6926 = vmatmul.mubr.f32.gmra.mrb[0].mxu0 %v6849
    %v6927 = vpop.f32.mrb[0].mxu0
    %v6928 = vadd.f32 0.0, %v6927
    %v6929 = vpop.f32.mrb[0].mxu0
    %6930 = vdwg.mxu0
    %6943 = vrot.lane.b32.xlu0 %v5840, 8
    %v6944 = vpop.permute.xlu0 %6943
    %6945 = vrot.lane.b32.xlu0 %v5845, 8
    %v6946 = vpop.permute.xlu0 %6945
    %6947 = vrot.lane.b32.xlu0 %v5850, 8
    %v6948 = vpop.permute.xlu0 %6947
    %6949 = vrot.lane.b32.xlu0 %v5938, 8
    %v6950 = vpop.permute.xlu0 %6949
    %6951 = vrot.lane.b32.xlu0 %v5943, 8
    %v6952 = vpop.permute.xlu0 %6951
    %6953 = vrot.lane.b32.xlu0 %v5948, 8
    %v6954 = vpop.permute.xlu0 %6953
    %6955 = vrot.lane.b32.xlu0 %v6036, 8
    %v6956 = vpop.permute.xlu0 %6955
    %6957 = vrot.lane.b32.xlu0 %v6041, 8
    %v6958 = vpop.permute.xlu0 %6957
    %6959 = vrot.lane.b32.xlu0 %v6046, 8
    %v6960 = vpop.permute.xlu0 %6959
    %6961 = vrot.lane.b32.xlu0 %v6134, 8
    %v6962 = vpop.permute.xlu0 %6961
    %6963 = vrot.lane.b32.xlu0 %v6139, 8
    %v6964 = vpop.permute.xlu0 %6963
    %6965 = vrot.lane.b32.xlu0 %v6144, 8
    %v6966 = vpop.permute.xlu0 %6965
    %6991 = vrot.lane.b32.xlu0 %v6232, 16
    %v6992 = vpop.permute.xlu0 %6991
    %6993 = vrot.lane.b32.xlu0 %v6237, 16
    %v6994 = vpop.permute.xlu0 %6993
    %6995 = vrot.lane.b32.xlu0 %v6242, 16
    %v6996 = vpop.permute.xlu0 %6995
    %6997 = vrot.lane.b32.xlu0 %v6330, 16
    %v6998 = vpop.permute.xlu0 %6997
    %6999 = vrot.lane.b32.xlu0 %v6335, 16
    %v7000 = vpop.permute.xlu0 %6999
    %7001 = vrot.lane.b32.xlu0 %v6340, 16
    %v7002 = vpop.permute.xlu0 %7001
    %7003 = vrot.lane.b32.xlu0 %v6428, 16
    %v7004 = vpop.permute.xlu0 %7003
    %7005 = vrot.lane.b32.xlu0 %v6433, 16
    %v7006 = vpop.permute.xlu0 %7005
    %7007 = vrot.lane.b32.xlu0 %v6438, 16
    %v7008 = vpop.permute.xlu0 %7007
    %7009 = vrot.lane.b32.xlu0 %v6526, 16
    %v7010 = vpop.permute.xlu0 %7009
    %7011 = vrot.lane.b32.xlu0 %v6531, 16
    %v7012 = vpop.permute.xlu0 %7011
    %7013 = vrot.lane.b32.xlu0 %v6536, 16
    %v7014 = vpop.permute.xlu0 %7013
    %7039 = vrot.lane.b32.xlu0 %v6624, 24
    %v7040 = vpop.permute.xlu0 %7039
    %7041 = vrot.lane.b32.xlu0 %v6629, 24
    %v7042 = vpop.permute.xlu0 %7041
    %7043 = vrot.lane.b32.xlu0 %v6634, 24
    %v7044 = vpop.permute.xlu0 %7043
    %7045 = vrot.lane.b32.xlu0 %v6722, 24
    %v7046 = vpop.permute.xlu0 %7045
    %7047 = vrot.lane.b32.xlu0 %v6727, 24
    %v7048 = vpop.permute.xlu0 %7047
    %7049 = vrot.lane.b32.xlu0 %v6732, 24
    %v7050 = vpop.permute.xlu0 %7049
    %7051 = vrot.lane.b32.xlu0 %v6820, 24
    %v7052 = vpop.permute.xlu0 %7051
    %7053 = vrot.lane.b32.xlu0 %v6825, 24
    %v7054 = vpop.permute.xlu0 %7053
    %7055 = vrot.lane.b32.xlu0 %v6830, 24
    %v7056 = vpop.permute.xlu0 %7055
    %7057 = vrot.lane.b32.xlu0 %v6918, 24
    %v7058 = vpop.permute.xlu0 %7057
    %7059 = vrot.lane.b32.xlu0 %v6923, 24
    %v7060 = vpop.permute.xlu0 %7059
    %7061 = vrot.lane.b32.xlu0 %v6928, 24
    %v7062 = vpop.permute.xlu0 %7061
    %v7075 = vsel %vm566, %v5448, %v6944
    %v7076 = vsel %vm566, %v5453, %v6946
    %v7077 = vsel %vm566, %v5458, %v6948
    %v7078 = vsel %vm566, %v5546, %v6950
    %v7079 = vsel %vm566, %v5551, %v6952
    %v7080 = vsel %vm566, %v5556, %v6954
    %v7081 = vsel %vm566, %v5644, %v6956
    %v7082 = vsel %vm566, %v5649, %v6958
    %v7083 = vsel %vm566, %v5654, %v6960
    %v7084 = vsel %vm566, %v5742, %v6962
    %v7085 = vsel %vm566, %v5747, %v6964
    %v7086 = vsel %vm566, %v5752, %v6966
    %v7087 = vsel %vm1275, %v7075, %v6992
    %v7088 = vsel %vm1275, %v7076, %v6994
    %v7089 = vsel %vm1275, %v7077, %v6996
    %v7090 = vsel %vm1275, %v7078, %v6998
    %v7091 = vsel %vm1275, %v7079, %v7000
    %v7092 = vsel %vm1275, %v7080, %v7002
    %v7093 = vsel %vm1275, %v7081, %v7004
    %v7094 = vsel %vm1275, %v7082, %v7006
    %v7095 = vsel %vm1275, %v7083, %v7008
    %v7096 = vsel %vm1275, %v7084, %v7010
    %v7097 = vsel %vm1275, %v7085, %v7012
    %v7098 = vsel %vm1275, %v7086, %v7014
    %v7099 = vsel %vm2204, %v7087, %v7040
    %v7100 = vsel %vm2204, %v7088, %v7042
    %v7101 = vsel %vm2204, %v7089, %v7044
    %v7102 = vsel %vm2204, %v7090, %v7046
    %v7103 = vsel %vm2204, %v7091, %v7048
    %v7104 = vsel %vm2204, %v7092, %v7050
    %v7105 = vsel %vm2204, %v7093, %v7052
    %v7106 = vsel %vm2204, %v7094, %v7054
    %v7107 = vsel %vm2204, %v7095, %v7056
    %v7108 = vsel %vm2204, %v7096, %v7058
    %v7109 = vsel %vm2204, %v7097, %v7060
    %v7110 = vsel %vm2204, %v7098, %v7062
    %s7111 = scalar_lea.vmem %s16, 32
    %v7112 = vld [vmem:[%s7111] sm:$0xff]
    %v7113 = vld [vmem:[%s7111 + $0x8] sm:$0xff]
    %v7114 = vld [vmem:[%s7111 + $0x10] sm:$0xff]
    %v7115 = vld [vmem:[%s7111 + $0x18] sm:$0xff]
    %v7117 = vsel %vm272, %v7099, 0
    %v7120 = vsel %vm272, %v7100, 0
    %v7123 = vsel %vm272, %v7101, 0
    %v7126 = vsel %vm272, %v7102, 0
    %v7129 = vsel %vm272, %v7103, 0
    %v7132 = vsel %vm272, %v7104, 0
    %v7135 = vsel %vm272, %v7105, 0
    %v7138 = vsel %vm272, %v7106, 0
    %v7141 = vsel %vm272, %v7107, 0
    %v7144 = vsel %vm272, %v7108, 0
    %v7147 = vsel %vm272, %v7109, 0
    %v7150 = vsel %vm272, %v7110, 0
    %7152 = vmatprep.subr.mxu0 0.0
    %7153 = vmatpush1.msra.mxu0 %v7112
    %7154 = vmatprep.subr.mxu0 0.0
    %7155 = vmatpush1.msra.mxu0 %v7113
    %7156 = vmatprep.subr.mxu0 0.0
    %7157 = vmatpush1.msra.mxu0 %v7114
    %7158 = vmatprep.subr.mxu0 0.0
    %7159 = vmatpush1.msra.mxu0 %v7115
    %7160 = vmatprep.subr.mxu0 0.0
    %7161 = vmatpush1.msra.mxu0 0.0
    %7162 = vmatprep.subr.mxu0 0.0
    %7163 = vmatpush1.msra.mxu0 0.0
    %7164 = vmatprep.subr.mxu0 0.0
    %7165 = vmatpush1.msra.mxu0 0.0
    %7166 = vmatprep.subr.mxu0 0.0
    %7167 = vmatpush1.msra.mxu0 0.0
    %7168 = vmatprep.subr.mxu0 0.0
    %7169 = vmatpush1.msra.mxu0 0.0
    %7170 = vmatprep.subr.mxu0 0.0
    %7171 = vmatpush1.msra.mxu0 0.0
    %7172 = vmatprep.subr.mxu0 0.0
    %7173 = vmatpush1.msra.mxu0 0.0
    %7174 = vmatprep.subr.mxu0 0.0
    %7175 = vmatpush1.msra.mxu0 0.0
    %7176 = vmatprep.subr.mxu0 0.0
    %7177 = vmatpush1.msra.mxu0 0.0
    %7178 = vmatprep.subr.mxu0 0.0
    %7179 = vmatpush1.msra.mxu0 0.0
    %7180 = vmatprep.subr.mxu0 0.0
    %7181 = vmatpush1.msra.mxu0 0.0
    %7182 = vmatprep.subr.mxu0 0.0
    %7183 = vmatpush1.msra.mxu0 0.0
    %7184 = vmatprep.subr.mxu0 0.0
    %7185 = vmatpush1.msra.mxu0 0.0
    %7186 = vmatprep.subr.mxu0 0.0
    %7187 = vmatpush1.msra.mxu0 0.0
    %7188 = vmatprep.subr.mxu0 0.0
    %7189 = vmatpush1.msra.mxu0 0.0
    %7190 = vmatprep.subr.mxu0 0.0
    %7191 = vmatpush1.msra.mxu0 0.0
    %7192 = vmatprep.subr.mxu0 0.0
    %7193 = vmatpush1.msra.mxu0 0.0
    %7194 = vmatprep.subr.mxu0 0.0
    %7195 = vmatpush1.msra.mxu0 0.0
    %7196 = vmatprep.subr.mxu0 0.0
    %7197 = vmatpush1.msra.mxu0 0.0
    %7198 = vmatprep.subr.mxu0 0.0
    %7199 = vmatpush1.msra.mxu0 0.0
    %7200 = vmatprep.subr.mxu0 0.0
    %7201 = vmatpush1.msra.mxu0 0.0
    %7202 = vmatprep.subr.mxu0 0.0
    %7203 = vmatpush1.msra.mxu0 0.0
    %7204 = vmatprep.subr.mxu0 0.0
    %7205 = vmatpush1.msra.mxu0 0.0
    %7206 = vmatprep.subr.mxu0 0.0
    %7207 = vmatpush1.msra.mxu0 0.0
    %7208 = vmatprep.subr.mxu0 0.0
    %7209 = vmatpush1.msra.mxu0 0.0
    %7210 = vmatprep.subr.mxu0 0.0
    %7211 = vmatpush1.msra.mxu0 0.0
    %7212 = vmatprep.subr.mxu0 0.0
    %7213 = vmatpush1.msra.mxu0 0.0
    %7214 = vmatprep.subr.mxu0 0.0
    %7215 = vmatpush1.msra.mxu0 0.0
    %7216 = vmatprep.mubr.f32.mxu0 0.0
    %7217 = vmatmul.mubr.f32.gmra.mrb[0].mxu0 %v7117
    %v7218 = vpop.f32.mrb[0].mxu0
    %v7219 = vadd.f32 0.0, %v7218
    %v7220 = vpop.f32.mrb[0].mxu0
    %7221 = vmatprep.mubr.f32.mxu0 0.0
    %7222 = vmatmul.mubr.f32.gmra.mrb[0].mxu0 %v7120
    %v7223 = vpop.f32.mrb[0].mxu0
    %v7224 = vadd.f32 0.0, %v7223
    %v7225 = vpop.f32.mrb[0].mxu0
    %7226 = vmatprep.mubr.f32.mxu0 0.0
    %7227 = vmatmul.mubr.f32.gmra.mrb[0].mxu0 %v7123
    %v7228 = vpop.f32.mrb[0].mxu0
    %v7229 = vadd.f32 0.0, %v7228
    %v7230 = vpop.f32.mrb[0].mxu0
    %7231 = vmatprep.mubr.f32.mxu0 0.0
    %7232 = vmatmul.mubr.f32.gmra.mrb[0].mxu0 %v7126
    %v7233 = vpop.f32.mrb[0].mxu0
    %v7234 = vadd.f32 0.0, %v7233
    %v7235 = vpop.f32.mrb[0].mxu0
    %7236 = vmatprep.mubr.f32.mxu0 0.0
    %7237 = vmatmul.mubr.f32.gmra.mrb[0].mxu0 %v7129
    %v7238 = vpop.f32.mrb[0].mxu0
    %v7239 = vadd.f32 0.0, %v7238
    %v7240 = vpop.f32.mrb[0].mxu0
    %7241 = vmatprep.mubr.f32.mxu0 0.0
    %7242 = vmatmul.mubr.f32.gmra.mrb[0].mxu0 %v7132
    %v7243 = vpop.f32.mrb[0].mxu0
    %v7244 = vadd.f32 0.0, %v7243
    %v7245 = vpop.f32.mrb[0].mxu0
    %7246 = vmatprep.mubr.f32.mxu0 0.0
    %7247 = vmatmul.mubr.f32.gmra.mrb[0].mxu0 %v7135
    %v7248 = vpop.f32.mrb[0].mxu0
    %v7249 = vadd.f32 0.0, %v7248
    %v7250 = vpop.f32.mrb[0].mxu0
    %7251 = vmatprep.mubr.f32.mxu0 0.0
    %7252 = vmatmul.mubr.f32.gmra.mrb[0].mxu0 %v7138
    %v7253 = vpop.f32.mrb[0].mxu0
    %v7254 = vadd.f32 0.0, %v7253
    %v7255 = vpop.f32.mrb[0].mxu0
    %7256 = vmatprep.mubr.f32.mxu0 0.0
    %7257 = vmatmul.mubr.f32.gmra.mrb[0].mxu0 %v7141
    %v7258 = vpop.f32.mrb[0].mxu0
    %v7259 = vadd.f32 0.0, %v7258
    %v7260 = vpop.f32.mrb[0].mxu0
    %7261 = vmatprep.mubr.f32.mxu0 0.0
    %7262 = vmatmul.mubr.f32.gmra.mrb[0].mxu0 %v7144
    %v7263 = vpop.f32.mrb[0].mxu0
    %v7264 = vadd.f32 0.0, %v7263
    %v7265 = vpop.f32.mrb[0].mxu0
    %7266 = vmatprep.mubr.f32.mxu0 0.0
    %7267 = vmatmul.mubr.f32.gmra.mrb[0].mxu0 %v7147
    %v7268 = vpop.f32.mrb[0].mxu0
    %v7269 = vadd.f32 0.0, %v7268
    %v7270 = vpop.f32.mrb[0].mxu0
    %7271 = vmatprep.mubr.f32.mxu0 0.0
    %7272 = vmatmul.mubr.f32.gmra.mrb[0].mxu0 %v7150
    %v7273 = vpop.f32.mrb[0].mxu0
    %v7274 = vadd.f32 0.0, %v7273
    %v7275 = vpop.f32.mrb[0].mxu0
    %7276 = vdwg.mxu0
    %v7277 = vadd.f32 %v2700, %v7219
    %v7278 = vadd.f32 %v2701, %v7224
    %v7279 = vadd.f32 %v2702, %v7229
    %v7280 = vadd.f32 %v2703, %v7234
    %v7281 = vadd.f32 %v2704, %v7239
    %v7282 = vadd.f32 %v2705, %v7244
    %v7283 = vadd.f32 %v2706, %v7249
    %v7284 = vadd.f32 %v2707, %v7254
    %v7285 = vadd.f32 %v2708, %v7259
    %v7286 = vadd.f32 %v2709, %v7264
    %v7287 = vadd.f32 %v2710, %v7269
    %v7288 = vadd.f32 %v2711, %v7274
    %s7289 = scalar_lea.vmem %s17, 1
    %v7290 = vld [vmem:[%s7289] sm:$0x1]
    %v7292 = vlaneseq
    %v7293 = vshrl.u32 %v7292, 7
    %v7294 = vsub.s32 0, %v7293
    %v7295 = vrot.slane %v7290, %v7294
    %v7297 = vadd.f32 %v7277, %v7295
    %v7298 = vadd.f32 %v7278, %v7295
    %v7299 = vadd.f32 %v7279, %v7295
    %v7300 = vadd.f32 %v7280, %v7295
    %v7301 = vadd.f32 %v7281, %v7295
    %v7302 = vadd.f32 %v7282, %v7295
    %v7303 = vadd.f32 %v7283, %v7295
    %v7304 = vadd.f32 %v7284, %v7295
    %v7305 = vadd.f32 %v7285, %v7295
    %v7306 = vadd.f32 %v7286, %v7295
    %v7307 = vadd.f32 %v7287, %v7295
    %v7308 = vadd.f32 %v7288, %v7295
    %s7309 = scalar_lea.vmem %s18, 1
    %v7310 = vld [vmem:[%s7309] sm:$0x1]
    %s7311 = scalar_lea.vmem %s19, 1
    %v7312 = vld [vmem:[%s7311] sm:$0x1]
    %v7313 = vsel %vm272, %v7297, 0.0
    %7314 = vadd.xlane.f32.xlu0 %v7313
    %v7315 = vpop.xlane.xlu0 %7314
    %v7316 = vsel %vm272, %v7298, 0.0
    %7317 = vadd.xlane.f32.xlu0 %v7316
    %v7318 = vpop.xlane.xlu0 %7317
    %v7319 = vsel %vm272, %v7299, 0.0
    %7320 = vadd.xlane.f32.xlu0 %v7319
    %v7321 = vpop.xlane.xlu0 %7320
    %v7322 = vsel %vm272, %v7300, 0.0
    %7323 = vadd.xlane.f32.xlu0 %v7322
    %v7324 = vpop.xlane.xlu0 %7323
    %v7325 = vsel %vm272, %v7301, 0.0
    %7326 = vadd.xlane.f32.xlu0 %v7325
    %v7327 = vpop.xlane.xlu0 %7326
    %v7328 = vsel %vm272, %v7302, 0.0
    %7329 = vadd.xlane.f32.xlu0 %v7328
    %v7330 = vpop.xlane.xlu0 %7329
    %v7331 = vsel %vm272, %v7303, 0.0
    %7332 = vadd.xlane.f32.xlu0 %v7331
    %v7333 = vpop.xlane.xlu0 %7332
    %v7334 = vsel %vm272, %v7304, 0.0
    %7335 = vadd.xlane.f32.xlu0 %v7334
    %v7336 = vpop.xlane.xlu0 %7335
    %v7337 = vsel %vm272, %v7305, 0.0
    %7338 = vadd.xlane.f32.xlu0 %v7337
    %v7339 = vpop.xlane.xlu0 %7338
    %v7340 = vsel %vm272, %v7306, 0.0
    %7341 = vadd.xlane.f32.xlu0 %v7340
    %v7342 = vpop.xlane.xlu0 %7341
    %v7343 = vsel %vm272, %v7307, 0.0
    %7344 = vadd.xlane.f32.xlu0 %v7343
    %v7345 = vpop.xlane.xlu0 %7344
    %v7346 = vsel %vm272, %v7308, 0.0
    %7347 = vadd.xlane.f32.xlu0 %v7346
    %v7348 = vpop.xlane.xlu0 %7347
    %v7349 = vmul.f32 %v7315, %v285
    %v7350 = vmul.f32 %v7318, %v285
    %v7351 = vmul.f32 %v7321, %v285
    %v7352 = vmul.f32 %v7324, %v285
    %v7353 = vmul.f32 %v7327, %v285
    %v7354 = vmul.f32 %v7330, %v285
    %v7355 = vmul.f32 %v7333, %v285
    %v7356 = vmul.f32 %v7336, %v285
    %v7357 = vmul.f32 %v7339, %v285
    %v7358 = vmul.f32 %v7342, %v285
    %v7359 = vmul.f32 %v7345, %v285
    %v7360 = vmul.f32 %v7348, %v285
    %v7361 = vsub.f32 %v7297, %v7349
    %v7362 = vsub.f32 %v7298, %v7350
    %v7363 = vsub.f32 %v7299, %v7351
    %v7364 = vsub.f32 %v7300, %v7352
    %v7365 = vsub.f32 %v7301, %v7353
    %v7366 = vsub.f32 %v7302, %v7354
    %v7367 = vsub.f32 %v7303, %v7355
    %v7368 = vsub.f32 %v7304, %v7356
    %v7369 = vsub.f32 %v7305, %v7357
    %v7370 = vsub.f32 %v7306, %v7358
    %v7371 = vsub.f32 %v7307, %v7359
    %v7372 = vsub.f32 %v7308, %v7360
    %v7373 = vmul.f32 %v7361, %v7361
    %v7374 = vmul.f32 %v7362, %v7362
    %v7375 = vmul.f32 %v7363, %v7363
    %v7376 = vmul.f32 %v7364, %v7364
    %v7377 = vmul.f32 %v7365, %v7365
    %v7378 = vmul.f32 %v7366, %v7366
    %v7379 = vmul.f32 %v7367, %v7367
    %v7380 = vmul.f32 %v7368, %v7368
    %v7381 = vmul.f32 %v7369, %v7369
    %v7382 = vmul.f32 %v7370, %v7370
    %v7383 = vmul.f32 %v7371, %v7371
    %v7384 = vmul.f32 %v7372, %v7372
    %v7385 = vsel %vm272, %v7373, 0.0
    %7386 = vadd.xlane.f32.xlu0 %v7385
    %v7387 = vpop.xlane.xlu0 %7386
    %v7388 = vsel %vm272, %v7374, 0.0
    %7389 = vadd.xlane.f32.xlu0 %v7388
    %v7390 = vpop.xlane.xlu0 %7389
    %v7391 = vsel %vm272, %v7375, 0.0
    %7392 = vadd.xlane.f32.xlu0 %v7391
    %v7393 = vpop.xlane.xlu0 %7392
    %v7394 = vsel %vm272, %v7376, 0.0
    %7395 = vadd.xlane.f32.xlu0 %v7394
    %v7396 = vpop.xlane.xlu0 %7395
    %v7397 = vsel %vm272, %v7377, 0.0
    %7398 = vadd.xlane.f32.xlu0 %v7397
    %v7399 = vpop.xlane.xlu0 %7398
    %v7400 = vsel %vm272, %v7378, 0.0
    %7401 = vadd.xlane.f32.xlu0 %v7400
    %v7402 = vpop.xlane.xlu0 %7401
    %v7403 = vsel %vm272, %v7379, 0.0
    %7404 = vadd.xlane.f32.xlu0 %v7403
    %v7405 = vpop.xlane.xlu0 %7404
    %v7406 = vsel %vm272, %v7380, 0.0
    %7407 = vadd.xlane.f32.xlu0 %v7406
    %v7408 = vpop.xlane.xlu0 %7407
    %v7409 = vsel %vm272, %v7381, 0.0
    %7410 = vadd.xlane.f32.xlu0 %v7409
    %v7411 = vpop.xlane.xlu0 %7410
    %v7412 = vsel %vm272, %v7382, 0.0
    %7413 = vadd.xlane.f32.xlu0 %v7412
    %v7414 = vpop.xlane.xlu0 %7413
    %v7415 = vsel %vm272, %v7383, 0.0
    %7416 = vadd.xlane.f32.xlu0 %v7415
    %v7417 = vpop.xlane.xlu0 %7416
    %v7418 = vsel %vm272, %v7384, 0.0
    %7419 = vadd.xlane.f32.xlu0 %v7418
    %v7420 = vpop.xlane.xlu0 %7419
    %v7421 = vmul.f32 %v7387, %v285
    %v7422 = vmul.f32 %v7390, %v285
    %v7423 = vmul.f32 %v7393, %v285
    %v7424 = vmul.f32 %v7396, %v285
    %v7425 = vmul.f32 %v7399, %v285
    %v7426 = vmul.f32 %v7402, %v285
    %v7427 = vmul.f32 %v7405, %v285
    %v7428 = vmul.f32 %v7408, %v285
    %v7429 = vmul.f32 %v7411, %v285
    %v7430 = vmul.f32 %v7414, %v285
    %v7431 = vmul.f32 %v7417, %v285
    %v7432 = vmul.f32 %v7420, %v285
    %v7433 = vadd.f32 %v7421, 1e-05
    %v7434 = vadd.f32 %v7422, 1e-05
    %v7435 = vadd.f32 %v7423, 1e-05
    %v7436 = vadd.f32 %v7424, 1e-05
    %v7437 = vadd.f32 %v7425, 1e-05
    %v7438 = vadd.f32 %v7426, 1e-05
    %v7439 = vadd.f32 %v7427, 1e-05
    %v7440 = vadd.f32 %v7428, 1e-05
    %v7441 = vadd.f32 %v7429, 1e-05
    %v7442 = vadd.f32 %v7430, 1e-05
    %v7443 = vadd.f32 %v7431, 1e-05
    %v7444 = vadd.f32 %v7432, 1e-05
    %v7445 = vrsqrt.pop %v7433
    %v7446 = vrsqrt.pop %v7434
    %v7447 = vrsqrt.pop %v7435
    %v7448 = vrsqrt.pop %v7436
    %v7449 = vrsqrt.pop %v7437
    %v7450 = vrsqrt.pop %v7438
    %v7451 = vrsqrt.pop %v7439
    %v7452 = vrsqrt.pop %v7440
    %v7453 = vrsqrt.pop %v7441
    %v7454 = vrsqrt.pop %v7442
    %v7455 = vrsqrt.pop %v7443
    %v7456 = vrsqrt.pop %v7444
    %v7457 = vmul.f32 %v7361, %v7445
    %v7458 = vmul.f32 %v7362, %v7446
    %v7459 = vmul.f32 %v7363, %v7447
    %v7460 = vmul.f32 %v7364, %v7448
    %v7461 = vmul.f32 %v7365, %v7449
    %v7462 = vmul.f32 %v7366, %v7450
    %v7463 = vmul.f32 %v7367, %v7451
    %v7464 = vmul.f32 %v7368, %v7452
    %v7465 = vmul.f32 %v7369, %v7453
    %v7466 = vmul.f32 %v7370, %v7454
    %v7467 = vmul.f32 %v7371, %v7455
    %v7468 = vmul.f32 %v7372, %v7456
    %v7470 = vlaneseq
    %v7471 = vshrl.u32 %v7470, 7
    %v7472 = vsub.s32 0, %v7471
    %v7473 = vrot.slane %v7310, %v7472
    %v7475 = vmul.f32 %v7457, %v7473
    %v7476 = vmul.f32 %v7458, %v7473
    %v7477 = vmul.f32 %v7459, %v7473
    %v7478 = vmul.f32 %v7460, %v7473
    %v7479 = vmul.f32 %v7461, %v7473
    %v7480 = vmul.f32 %v7462, %v7473
    %v7481 = vmul.f32 %v7463, %v7473
    %v7482 = vmul.f32 %v7464, %v7473
    %v7483 = vmul.f32 %v7465, %v7473
    %v7484 = vmul.f32 %v7466, %v7473
    %v7485 = vmul.f32 %v7467, %v7473
    %v7486 = vmul.f32 %v7468, %v7473
    %v7488 = vlaneseq
    %v7489 = vshrl.u32 %v7488, 7
    %v7490 = vsub.s32 0, %v7489
    %v7491 = vrot.slane %v7312, %v7490
    %v7493 = vadd.f32 %v7475, %v7491
    %v7494 = vadd.f32 %v7476, %v7491
    %v7495 = vadd.f32 %v7477, %v7491
    %v7496 = vadd.f32 %v7478, %v7491
    %v7497 = vadd.f32 %v7479, %v7491
    %v7498 = vadd.f32 %v7480, %v7491
    %v7499 = vadd.f32 %v7481, %v7491
    %v7500 = vadd.f32 %v7482, %v7491
    %v7501 = vadd.f32 %v7483, %v7491
    %v7502 = vadd.f32 %v7484, %v7491
    %v7503 = vadd.f32 %v7485, %v7491
    %v7504 = vadd.f32 %v7486, %v7491
    %s7505 = scalar_lea.vmem %s20, 32
    %v7506 = vld [vmem:[%s7505] sm:$0xff]
    %v7507 = vld [vmem:[%s7505 + $0x8] sm:$0xff]
    %v7508 = vld [vmem:[%s7505 + $0x10] sm:$0xff]
    %v7509 = vld [vmem:[%s7505 + $0x18] sm:$0xff]
    %s7510 = scalar_lea.vmem %s21, 1
    %v7511 = vld [vmem:[%s7510] sm:$0x1]
    %v7513 = vlaneseq
    %v7514 = vshrl.u32 %v7513, 7
    %v7515 = vsub.s32 0, %v7514
    %v7516 = vrot.slane %v7511, %v7515
    %v7519 = vsel %vm272, %v7493, 0
    %v7522 = vsel %vm272, %v7494, 0
    %v7525 = vsel %vm272, %v7495, 0
    %v7528 = vsel %vm272, %v7496, 0
    %v7531 = vsel %vm272, %v7497, 0
    %v7534 = vsel %vm272, %v7498, 0
    %v7537 = vsel %vm272, %v7499, 0
    %v7540 = vsel %vm272, %v7500, 0
    %v7543 = vsel %vm272, %v7501, 0
    %v7546 = vsel %vm272, %v7502, 0
    %v7549 = vsel %vm272, %v7503, 0
    %v7552 = vsel %vm272, %v7504, 0
    %7554 = vmatprep.subr.mxu0 0.0
    %7555 = vmatpush1.msra.mxu0 %v7506
    %7556 = vmatprep.subr.mxu0 0.0
    %7557 = vmatpush1.msra.mxu0 %v7507
    %7558 = vmatprep.subr.mxu0 0.0
    %7559 = vmatpush1.msra.mxu0 %v7508
    %7560 = vmatprep.subr.mxu0 0.0
    %7561 = vmatpush1.msra.mxu0 %v7509
    %7562 = vmatprep.subr.mxu0 0.0
    %7563 = vmatpush1.msra.mxu0 0.0
    %7564 = vmatprep.subr.mxu0 0.0
    %7565 = vmatpush1.msra.mxu0 0.0
    %7566 = vmatprep.subr.mxu0 0.0
    %7567 = vmatpush1.msra.mxu0 0.0
    %7568 = vmatprep.subr.mxu0 0.0
    %7569 = vmatpush1.msra.mxu0 0.0
    %7570 = vmatprep.subr.mxu0 0.0
    %7571 = vmatpush1.msra.mxu0 0.0
    %7572 = vmatprep.subr.mxu0 0.0
    %7573 = vmatpush1.msra.mxu0 0.0
    %7574 = vmatprep.subr.mxu0 0.0
    %7575 = vmatpush1.msra.mxu0 0.0
    %7576 = vmatprep.subr.mxu0 0.0
    %7577 = vmatpush1.msra.mxu0 0.0
    %7578 = vmatprep.subr.mxu0 0.0
    %7579 = vmatpush1.msra.mxu0 0.0
    %7580 = vmatprep.subr.mxu0 0.0
    %7581 = vmatpush1.msra.mxu0 0.0
    %7582 = vmatprep.subr.mxu0 0.0
    %7583 = vmatpush1.msra.mxu0 0.0
    %7584 = vmatprep.subr.mxu0 0.0
    %7585 = vmatpush1.msra.mxu0 0.0
    %7586 = vmatprep.subr.mxu0 0.0
    %7587 = vmatpush1.msra.mxu0 0.0
    %7588 = vmatprep.subr.mxu0 0.0
    %7589 = vmatpush1.msra.mxu0 0.0
    %7590 = vmatprep.subr.mxu0 0.0
    %7591 = vmatpush1.msra.mxu0 0.0
    %7592 = vmatprep.subr.mxu0 0.0
    %7593 = vmatpush1.msra.mxu0 0.0
    %7594 = vmatprep.subr.mxu0 0.0
    %7595 = vmatpush1.msra.mxu0 0.0
    %7596 = vmatprep.subr.mxu0 0.0
    %7597 = vmatpush1.msra.mxu0 0.0
    %7598 = vmatprep.subr.mxu0 0.0
    %7599 = vmatpush1.msra.mxu0 0.0
    %7600 = vmatprep.subr.mxu0 0.0
    %7601 = vmatpush1.msra.mxu0 0.0
    %7602 = vmatprep.subr.mxu0 0.0
    %7603 = vmatpush1.msra.mxu0 0.0
    %7604 = vmatprep.subr.mxu0 0.0
    %7605 = vmatpush1.msra.mxu0 0.0
    %7606 = vmatprep.subr.mxu0 0.0
    %7607 = vmatpush1.msra.mxu0 0.0
    %7608 = vmatprep.subr.mxu0 0.0
    %7609 = vmatpush1.msra.mxu0 0.0
    %7610 = vmatprep.subr.mxu0 0.0
    %7611 = vmatpush1.msra.mxu0 0.0
    %7612 = vmatprep.subr.mxu0 0.0
    %7613 = vmatpush1.msra.mxu0 0.0
    %7614 = vmatprep.subr.mxu0 0.0
    %7615 = vmatpush1.msra.mxu0 0.0
    %7616 = vmatprep.subr.mxu0 0.0
    %7617 = vmatpush1.msra.mxu0 0.0
    %7618 = vmatprep.mubr.f32.mxu0 0.0
    %7619 = vmatmul.mubr.f32.gmra.mrb[0].mxu0 %v7519
    %v7620 = vpop.f32.mrb[0].mxu0
    %v7621 = vadd.f32 %v7516, %v7620
    %v7622 = vpop.f32.mrb[0].mxu0
    %7623 = vmatprep.mubr.f32.mxu0 0.0
    %7624 = vmatmul.mubr.f32.gmra.mrb[0].mxu0 %v7522
    %v7625 = vpop.f32.mrb[0].mxu0
    %v7626 = vadd.f32 %v7516, %v7625
    %v7627 = vpop.f32.mrb[0].mxu0
    %7628 = vmatprep.mubr.f32.mxu0 0.0
    %7629 = vmatmul.mubr.f32.gmra.mrb[0].mxu0 %v7525
    %v7630 = vpop.f32.mrb[0].mxu0
    %v7631 = vadd.f32 %v7516, %v7630
    %v7632 = vpop.f32.mrb[0].mxu0
    %7633 = vmatprep.mubr.f32.mxu0 0.0
    %7634 = vmatmul.mubr.f32.gmra.mrb[0].mxu0 %v7528
    %v7635 = vpop.f32.mrb[0].mxu0
    %v7636 = vadd.f32 %v7516, %v7635
    %v7637 = vpop.f32.mrb[0].mxu0
    %7638 = vmatprep.mubr.f32.mxu0 0.0
    %7639 = vmatmul.mubr.f32.gmra.mrb[0].mxu0 %v7531
    %v7640 = vpop.f32.mrb[0].mxu0
    %v7641 = vadd.f32 %v7516, %v7640
    %v7642 = vpop.f32.mrb[0].mxu0
    %7643 = vmatprep.mubr.f32.mxu0 0.0
    %7644 = vmatmul.mubr.f32.gmra.mrb[0].mxu0 %v7534
    %v7645 = vpop.f32.mrb[0].mxu0
    %v7646 = vadd.f32 %v7516, %v7645
    %v7647 = vpop.f32.mrb[0].mxu0
    %7648 = vmatprep.mubr.f32.mxu0 0.0
    %7649 = vmatmul.mubr.f32.gmra.mrb[0].mxu0 %v7537
    %v7650 = vpop.f32.mrb[0].mxu0
    %v7651 = vadd.f32 %v7516, %v7650
    %v7652 = vpop.f32.mrb[0].mxu0
    %7653 = vmatprep.mubr.f32.mxu0 0.0
    %7654 = vmatmul.mubr.f32.gmra.mrb[0].mxu0 %v7540
    %v7655 = vpop.f32.mrb[0].mxu0
    %v7656 = vadd.f32 %v7516, %v7655
    %v7657 = vpop.f32.mrb[0].mxu0
    %7658 = vmatprep.mubr.f32.mxu0 0.0
    %7659 = vmatmul.mubr.f32.gmra.mrb[0].mxu0 %v7543
    %v7660 = vpop.f32.mrb[0].mxu0
    %v7661 = vadd.f32 %v7516, %v7660
    %v7662 = vpop.f32.mrb[0].mxu0
    %7663 = vmatprep.mubr.f32.mxu0 0.0
    %7664 = vmatmul.mubr.f32.gmra.mrb[0].mxu0 %v7546
    %v7665 = vpop.f32.mrb[0].mxu0
    %v7666 = vadd.f32 %v7516, %v7665
    %v7667 = vpop.f32.mrb[0].mxu0
    %7668 = vmatprep.mubr.f32.mxu0 0.0
    %7669 = vmatmul.mubr.f32.gmra.mrb[0].mxu0 %v7549
    %v7670 = vpop.f32.mrb[0].mxu0
    %v7671 = vadd.f32 %v7516, %v7670
    %v7672 = vpop.f32.mrb[0].mxu0
    %7673 = vmatprep.mubr.f32.mxu0 0.0
    %7674 = vmatmul.mubr.f32.gmra.mrb[0].mxu0 %v7552
    %v7675 = vpop.f32.mrb[0].mxu0
    %v7676 = vadd.f32 %v7516, %v7675
    %v7677 = vpop.f32.mrb[0].mxu0
    %7678 = vdwg.mxu0
    %v7679 = vmul.f32 %v7621, %v7621
    %v7680 = vmul.f32 %v7626, %v7626
    %v7681 = vmul.f32 %v7631, %v7631
    %v7682 = vmul.f32 %v7636, %v7636
    %v7683 = vmul.f32 %v7641, %v7641
    %v7684 = vmul.f32 %v7646, %v7646
    %v7685 = vmul.f32 %v7651, %v7651
    %v7686 = vmul.f32 %v7656, %v7656
    %v7687 = vmul.f32 %v7661, %v7661
    %v7688 = vmul.f32 %v7666, %v7666
    %v7689 = vmul.f32 %v7671, %v7671
    %v7690 = vmul.f32 %v7676, %v7676
    %v7691 = vmul.f32 %v7621, %v7679
    %v7692 = vmul.f32 %v7626, %v7680
    %v7693 = vmul.f32 %v7631, %v7681
    %v7694 = vmul.f32 %v7636, %v7682
    %v7695 = vmul.f32 %v7641, %v7683
    %v7696 = vmul.f32 %v7646, %v7684
    %v7697 = vmul.f32 %v7651, %v7685
    %v7698 = vmul.f32 %v7656, %v7686
    %v7699 = vmul.f32 %v7661, %v7687
    %v7700 = vmul.f32 %v7666, %v7688
    %v7701 = vmul.f32 %v7671, %v7689
    %v7702 = vmul.f32 %v7676, %v7690
    %v7703 = vmul.f32 %v7691, 0.044715
    %v7704 = vmul.f32 %v7692, 0.044715
    %v7705 = vmul.f32 %v7693, 0.044715
    %v7706 = vmul.f32 %v7694, 0.044715
    %v7707 = vmul.f32 %v7695, 0.044715
    %v7708 = vmul.f32 %v7696, 0.044715
    %v7709 = vmul.f32 %v7697, 0.044715
    %v7710 = vmul.f32 %v7698, 0.044715
    %v7711 = vmul.f32 %v7699, 0.044715
    %v7712 = vmul.f32 %v7700, 0.044715
    %v7713 = vmul.f32 %v7701, 0.044715
    %v7714 = vmul.f32 %v7702, 0.044715
    %v7715 = vadd.f32 %v7621, %v7703
    %v7716 = vadd.f32 %v7626, %v7704
    %v7717 = vadd.f32 %v7631, %v7705
    %v7718 = vadd.f32 %v7636, %v7706
    %v7719 = vadd.f32 %v7641, %v7707
    %v7720 = vadd.f32 %v7646, %v7708
    %v7721 = vadd.f32 %v7651, %v7709
    %v7722 = vadd.f32 %v7656, %v7710
    %v7723 = vadd.f32 %v7661, %v7711
    %v7724 = vadd.f32 %v7666, %v7712
    %v7725 = vadd.f32 %v7671, %v7713
    %v7726 = vadd.f32 %v7676, %v7714
    %v7727 = vmul.f32 %v7715, 0.7978846
    %v7728 = vmul.f32 %v7716, 0.7978846
    %v7729 = vmul.f32 %v7717, 0.7978846
    %v7730 = vmul.f32 %v7718, 0.7978846
    %v7731 = vmul.f32 %v7719, 0.7978846
    %v7732 = vmul.f32 %v7720, 0.7978846
    %v7733 = vmul.f32 %v7721, 0.7978846
    %v7734 = vmul.f32 %v7722, 0.7978846
    %v7735 = vmul.f32 %v7723, 0.7978846
    %v7736 = vmul.f32 %v7724, 0.7978846
    %v7737 = vmul.f32 %v7725, 0.7978846
    %v7738 = vmul.f32 %v7726, 0.7978846
    %v7739 = vtanh.pop %v7727
    %v7740 = vtanh.pop %v7728
    %v7741 = vtanh.pop %v7729
    %v7742 = vtanh.pop %v7730
    %v7743 = vtanh.pop %v7731
    %v7744 = vtanh.pop %v7732
    %v7745 = vtanh.pop %v7733
    %v7746 = vtanh.pop %v7734
    %v7747 = vtanh.pop %v7735
    %v7748 = vtanh.pop %v7736
    %v7749 = vtanh.pop %v7737
    %v7750 = vtanh.pop %v7738
    %v7751 = vadd.f32 %v7739, 1.0
    %v7752 = vadd.f32 %v7740, 1.0
    %v7753 = vadd.f32 %v7741, 1.0
    %v7754 = vadd.f32 %v7742, 1.0
    %v7755 = vadd.f32 %v7743, 1.0
    %v7756 = vadd.f32 %v7744, 1.0
    %v7757 = vadd.f32 %v7745, 1.0
    %v7758 = vadd.f32 %v7746, 1.0
    %v7759 = vadd.f32 %v7747, 1.0
    %v7760 = vadd.f32 %v7748, 1.0
    %v7761 = vadd.f32 %v7749, 1.0
    %v7762 = vadd.f32 %v7750, 1.0
    %v7763 = vmul.f32 %v7751, 0.5
    %v7764 = vmul.f32 %v7752, 0.5
    %v7765 = vmul.f32 %v7753, 0.5
    %v7766 = vmul.f32 %v7754, 0.5
    %v7767 = vmul.f32 %v7755, 0.5
    %v7768 = vmul.f32 %v7756, 0.5
    %v7769 = vmul.f32 %v7757, 0.5
    %v7770 = vmul.f32 %v7758, 0.5
    %v7771 = vmul.f32 %v7759, 0.5
    %v7772 = vmul.f32 %v7760, 0.5
    %v7773 = vmul.f32 %v7761, 0.5
    %v7774 = vmul.f32 %v7762, 0.5
    %v7775 = vmul.f32 %v7621, %v7763
    %v7776 = vmul.f32 %v7626, %v7764
    %v7777 = vmul.f32 %v7631, %v7765
    %v7778 = vmul.f32 %v7636, %v7766
    %v7779 = vmul.f32 %v7641, %v7767
    %v7780 = vmul.f32 %v7646, %v7768
    %v7781 = vmul.f32 %v7651, %v7769
    %v7782 = vmul.f32 %v7656, %v7770
    %v7783 = vmul.f32 %v7661, %v7771
    %v7784 = vmul.f32 %v7666, %v7772
    %v7785 = vmul.f32 %v7671, %v7773
    %v7786 = vmul.f32 %v7676, %v7774
    %s7787 = scalar_lea.vmem %s22, 128
    %v7788 = vld [vmem:[%s7787] sm:$0xff]
    %v7789 = vld [vmem:[%s7787 + $0x8] sm:$0xff]
    %v7790 = vld [vmem:[%s7787 + $0x10] sm:$0xff]
    %v7791 = vld [vmem:[%s7787 + $0x18] sm:$0xff]
    %v7792 = vld [vmem:[%s7787 + $0x20] sm:$0xff]
    %v7793 = vld [vmem:[%s7787 + $0x28] sm:$0xff]
    %v7794 = vld [vmem:[%s7787 + $0x30] sm:$0xff]
    %v7795 = vld [vmem:[%s7787 + $0x38] sm:$0xff]
    %v7796 = vld [vmem:[%s7787 + $0x40] sm:$0xff]
    %v7797 = vld [vmem:[%s7787 + $0x48] sm:$0xff]
    %v7798 = vld [vmem:[%s7787 + $0x50] sm:$0xff]
    %v7799 = vld [vmem:[%s7787 + $0x58] sm:$0xff]
    %v7800 = vld [vmem:[%s7787 + $0x60] sm:$0xff]
    %v7801 = vld [vmem:[%s7787 + $0x68] sm:$0xff]
    %v7802 = vld [vmem:[%s7787 + $0x70] sm:$0xff]
    %v7803 = vld [vmem:[%s7787 + $0x78] sm:$0xff]
    %s7804 = scalar_lea.vmem %s23, 1
    %v7805 = vld [vmem:[%s7804] sm:$0x1]
    %v7807 = vlaneseq
    %v7808 = vshrl.u32 %v7807, 7
    %v7809 = vsub.s32 0, %v7808
    %v7810 = vrot.slane %v7805, %v7809
    %7812 = vmatprep.subr.mxu0 0.0
    %7813 = vmatpush1.msra.mxu0 %v7788
    %7814 = vmatprep.subr.mxu0 0.0
    %7815 = vmatpush1.msra.mxu0 %v7789
    %7816 = vmatprep.subr.mxu0 0.0
    %7817 = vmatpush1.msra.mxu0 %v7790
    %7818 = vmatprep.subr.mxu0 0.0
    %7819 = vmatpush1.msra.mxu0 %v7791
    %7820 = vmatprep.subr.mxu0 0.0
    %7821 = vmatpush1.msra.mxu0 %v7792
    %7822 = vmatprep.subr.mxu0 0.0
    %7823 = vmatpush1.msra.mxu0 %v7793
    %7824 = vmatprep.subr.mxu0 0.0
    %7825 = vmatpush1.msra.mxu0 %v7794
    %7826 = vmatprep.subr.mxu0 0.0
    %7827 = vmatpush1.msra.mxu0 %v7795
    %7828 = vmatprep.subr.mxu0 0.0
    %7829 = vmatpush1.msra.mxu0 %v7796
    %7830 = vmatprep.subr.mxu0 0.0
    %7831 = vmatpush1.msra.mxu0 %v7797
    %7832 = vmatprep.subr.mxu0 0.0
    %7833 = vmatpush1.msra.mxu0 %v7798
    %7834 = vmatprep.subr.mxu0 0.0
    %7835 = vmatpush1.msra.mxu0 %v7799
    %7836 = vmatprep.subr.mxu0 0.0
    %7837 = vmatpush1.msra.mxu0 %v7800
    %7838 = vmatprep.subr.mxu0 0.0
    %7839 = vmatpush1.msra.mxu0 %v7801
    %7840 = vmatprep.subr.mxu0 0.0
    %7841 = vmatpush1.msra.mxu0 %v7802
    %7842 = vmatprep.subr.mxu0 0.0
    %7843 = vmatpush1.msra.mxu0 %v7803
    %7844 = vmatprep.subr.mxu0 0.0
    %7845 = vmatpush1.msra.mxu0 0.0
    %7846 = vmatprep.subr.mxu0 0.0
    %7847 = vmatpush1.msra.mxu0 0.0
    %7848 = vmatprep.subr.mxu0 0.0
    %7849 = vmatpush1.msra.mxu0 0.0
    %7850 = vmatprep.subr.mxu0 0.0
    %7851 = vmatpush1.msra.mxu0 0.0
    %7852 = vmatprep.subr.mxu0 0.0
    %7853 = vmatpush1.msra.mxu0 0.0
    %7854 = vmatprep.subr.mxu0 0.0
    %7855 = vmatpush1.msra.mxu0 0.0
    %7856 = vmatprep.subr.mxu0 0.0
    %7857 = vmatpush1.msra.mxu0 0.0
    %7858 = vmatprep.subr.mxu0 0.0
    %7859 = vmatpush1.msra.mxu0 0.0
    %7860 = vmatprep.subr.mxu0 0.0
    %7861 = vmatpush1.msra.mxu0 0.0
    %7862 = vmatprep.subr.mxu0 0.0
    %7863 = vmatpush1.msra.mxu0 0.0
    %7864 = vmatprep.subr.mxu0 0.0
    %7865 = vmatpush1.msra.mxu0 0.0
    %7866 = vmatprep.subr.mxu0 0.0
    %7867 = vmatpush1.msra.mxu0 0.0
    %7868 = vmatprep.subr.mxu0 0.0
    %7869 = vmatpush1.msra.mxu0 0.0
    %7870 = vmatprep.subr.mxu0 0.0
    %7871 = vmatpush1.msra.mxu0 0.0
    %7872 = vmatprep.subr.mxu0 0.0
    %7873 = vmatpush1.msra.mxu0 0.0
    %7874 = vmatprep.subr.mxu0 0.0
    %7875 = vmatpush1.msra.mxu0 0.0
    %7876 = vmatprep.mubr.f32.mxu0 0.0
    %7877 = vmatmul.mubr.f32.gmra.mrb[0].mxu0 %v7775
    %v7878 = vpop.f32.mrb[0].mxu0
    %v7879 = vadd.f32 %v7810, %v7878
    %v7880 = vpop.f32.mrb[0].mxu0
    %7881 = vmatprep.mubr.f32.mxu0 0.0
    %7882 = vmatmul.mubr.f32.gmra.mrb[0].mxu0 %v7776
    %v7883 = vpop.f32.mrb[0].mxu0
    %v7884 = vpop.f32.mrb[0].mxu0
    %7885 = vmatprep.mubr.f32.mxu0 0.0
    %7886 = vmatmul.mubr.f32.gmra.mrb[0].mxu0 %v7777
    %v7887 = vpop.f32.mrb[0].mxu0
    %v7888 = vpop.f32.mrb[0].mxu0
    %7889 = vmatprep.mubr.f32.mxu0 0.0
    %7890 = vmatmul.mubr.f32.gmra.mrb[0].mxu0 %v7778
    %v7891 = vpop.f32.mrb[0].mxu0
    %v7892 = vadd.f32 %v7810, %v7891
    %v7893 = vpop.f32.mrb[0].mxu0
    %7894 = vmatprep.mubr.f32.mxu0 0.0
    %7895 = vmatmul.mubr.f32.gmra.mrb[0].mxu0 %v7779
    %v7896 = vpop.f32.mrb[0].mxu0
    %v7897 = vpop.f32.mrb[0].mxu0
    %7898 = vmatprep.mubr.f32.mxu0 0.0
    %7899 = vmatmul.mubr.f32.gmra.mrb[0].mxu0 %v7780
    %v7900 = vpop.f32.mrb[0].mxu0
    %v7901 = vpop.f32.mrb[0].mxu0
    %7902 = vmatprep.mubr.f32.mxu0 0.0
    %7903 = vmatmul.mubr.f32.gmra.mrb[0].mxu0 %v7781
    %v7904 = vpop.f32.mrb[0].mxu0
    %v7905 = vadd.f32 %v7810, %v7904
    %v7906 = vpop.f32.mrb[0].mxu0
    %7907 = vmatprep.mubr.f32.mxu0 0.0
    %7908 = vmatmul.mubr.f32.gmra.mrb[0].mxu0 %v7782
    %v7909 = vpop.f32.mrb[0].mxu0
    %v7910 = vpop.f32.mrb[0].mxu0
    %7911 = vmatprep.mubr.f32.mxu0 0.0
    %7912 = vmatmul.mubr.f32.gmra.mrb[0].mxu0 %v7783
    %v7913 = vpop.f32.mrb[0].mxu0
    %v7914 = vpop.f32.mrb[0].mxu0
    %7915 = vmatprep.mubr.f32.mxu0 0.0
    %7916 = vmatmul.mubr.f32.gmra.mrb[0].mxu0 %v7784
    %v7917 = vpop.f32.mrb[0].mxu0
    %v7918 = vadd.f32 %v7810, %v7917
    %v7919 = vpop.f32.mrb[0].mxu0
    %7920 = vmatprep.mubr.f32.mxu0 0.0
    %7921 = vmatmul.mubr.f32.gmra.mrb[0].mxu0 %v7785
    %v7922 = vpop.f32.mrb[0].mxu0
    %v7923 = vpop.f32.mrb[0].mxu0
    %7924 = vmatprep.mubr.f32.mxu0 0.0
    %7925 = vmatmul.mubr.f32.gmra.mrb[0].mxu0 %v7786
    %v7926 = vpop.f32.mrb[0].mxu0
    %v7927 = vpop.f32.mrb[0].mxu0
    %7928 = vdwg.mxu0
    %v7929 = vadd.f32 %v7297, %v7879
    %v7930 = vadd.f32 %v7300, %v7892
    %v7931 = vadd.f32 %v7303, %v7905
    %v7932 = vadd.f32 %v7306, %v7918
    %v7933 = vld [vmem:[%s10] sm:$0xff]
    %v7934 = vld [vmem:[%s10 + $0x8] sm:$0xff]
    %v7935 = vld [vmem:[%s10 + $0x10] sm:$0xff]
    %v7936 = vld [vmem:[%s10 + $0x18] sm:$0xff]
    %v7937 = vld [vmem:[%s11] sm:$0x1]
    %v7939 = vlaneseq
    %v7940 = vshrl.u32 %v7939, 7
    %v7941 = vsub.s32 0, %v7940
    %v7942 = vrot.slane %v7937, %v7941
    %v7948 = vrot.slane %v7930, 7
    %vm7949 = vcmask 1041409
    %v7950 = vsel %vm7949, %v7948, %v7929
    %v7951 = vrot.slane %v7931, 6
    %vm7952 = vcmask 1042434
    %v7953 = vsel %vm7952, %v7951, %v7950
    %v7954 = vrot.slane %v7932, 5
    %vm7955 = vcmask 1043459
    %v7956 = vsel %vm7955, %v7954, %v7953
    %v7957 = vsel %vm272, %v7956, 0
    %7959 = vmatprep.subr.mxu0 0.0
    %7960 = vmatpush1.msra.mxu0 %v7933
    %7961 = vmatprep.subr.mxu0 0.0
    %7962 = vmatpush1.msra.mxu0 %v7934
    %7963 = vmatprep.subr.mxu0 0.0
    %7964 = vmatpush1.msra.mxu0 %v7935
    %7965 = vmatprep.subr.mxu0 0.0
    %7966 = vmatpush1.msra.mxu0 %v7936
    %7967 = vmatprep.subr.mxu0 0.0
    %7968 = vmatpush1.msra.mxu0 0.0
    %7969 = vmatprep.subr.mxu0 0.0
    %7970 = vmatpush1.msra.mxu0 0.0
    %7971 = vmatprep.subr.mxu0 0.0
    %7972 = vmatpush1.msra.mxu0 0.0
    %7973 = vmatprep.subr.mxu0 0.0
    %7974 = vmatpush1.msra.mxu0 0.0
    %7975 = vmatprep.subr.mxu0 0.0
    %7976 = vmatpush1.msra.mxu0 0.0
    %7977 = vmatprep.subr.mxu0 0.0
    %7978 = vmatpush1.msra.mxu0 0.0
    %7979 = vmatprep.subr.mxu0 0.0
    %7980 = vmatpush1.msra.mxu0 0.0
    %7981 = vmatprep.subr.mxu0 0.0
    %7982 = vmatpush1.msra.mxu0 0.0
    %7983 = vmatprep.subr.mxu0 0.0
    %7984 = vmatpush1.msra.mxu0 0.0
    %7985 = vmatprep.subr.mxu0 0.0
    %7986 = vmatpush1.msra.mxu0 0.0
    %7987 = vmatprep.subr.mxu0 0.0
    %7988 = vmatpush1.msra.mxu0 0.0
    %7989 = vmatprep.subr.mxu0 0.0
    %7990 = vmatpush1.msra.mxu0 0.0
    %7991 = vmatprep.subr.mxu0 0.0
    %7992 = vmatpush1.msra.mxu0 0.0
    %7993 = vmatprep.subr.mxu0 0.0
    %7994 = vmatpush1.msra.mxu0 0.0
    %7995 = vmatprep.subr.mxu0 0.0
    %7996 = vmatpush1.msra.mxu0 0.0
    %7997 = vmatprep.subr.mxu0 0.0
    %7998 = vmatpush1.msra.mxu0 0.0
    %7999 = vmatprep.subr.mxu0 0.0
    %8000 = vmatpush1.msra.mxu0 0.0
    %8001 = vmatprep.subr.mxu0 0.0
    %8002 = vmatpush1.msra.mxu0 0.0
    %8003 = vmatprep.subr.mxu0 0.0
    %8004 = vmatpush1.msra.mxu0 0.0
    %8005 = vmatprep.subr.mxu0 0.0
    %8006 = vmatpush1.msra.mxu0 0.0
    %8007 = vmatprep.subr.mxu0 0.0
    %8008 = vmatpush1.msra.mxu0 0.0
    %8009 = vmatprep.subr.mxu0 0.0
    %8010 = vmatpush1.msra.mxu0 0.0
    %8011 = vmatprep.subr.mxu0 0.0
    %8012 = vmatpush1.msra.mxu0 0.0
    %8013 = vmatprep.subr.mxu0 0.0
    %8014 = vmatpush1.msra.mxu0 0.0
    %8015 = vmatprep.subr.mxu0 0.0
    %8016 = vmatpush1.msra.mxu0 0.0
    %8017 = vmatprep.subr.mxu0 0.0
    %8018 = vmatpush1.msra.mxu0 0.0
    %8019 = vmatprep.subr.mxu0 0.0
    %8020 = vmatpush1.msra.mxu0 0.0
    %8021 = vmatprep.subr.mxu0 0.0
    %8022 = vmatpush1.msra.mxu0 0.0
    %8023 = vmatprep.mubr.f32.mxu0 0.0
    %8024 = vmatmul.mubr.f32.gmra.mrb[0].mxu0 %v7957
    %v8025 = vpop.f32.mrb[0].mxu0
    %v8026 = vadd.f32 %v7942, %v8025
    %v8027 = vpop.f32.mrb[0].mxu0
    %8028 = vdwg.mxu0
    %vm8029 = vcmask 33792
    %v8030 = vsel %vm8029, %v8026, -inf
    %8031 = vmax.xlane.f32.xlu0 %v8030
    %v8032 = vpop.xlane.xlu0 %8031
    %v8033 = vsub.f32 %v8026, %v8032
    %v8034 = vmul.f32 %v8033, 1.442695
    %v8035 = vpow.pop %v8034
    %v8036 = vsel %vm8029, %v8035, 0.0
    %8037 = vadd.xlane.f32.xlu0 %v8036
    %v8038 = vpop.xlane.xlu0 %8037
    %v8039 = vrcp.pop %v8038
    %v8040 = vmul.f32 %v8035, %v8039
    %vm8041 = vcmask 76842
    %v8042 = vsel %vm8041, %v8026, -inf
    %8043 = vmax.xlane.f32.xlu0 %v8042
    %v8044 = vpop.xlane.xlu0 %8043
    %v8045 = vsub.f32 %v8026, %v8044
    %v8046 = vmul.f32 %v8045, 1.442695
    %v8047 = vpow.pop %v8046
    %8049 = vrot.lane.b32.xlu0 %v8047, 123
    %v8050 = vpop.permute.xlu0 %8049
    %vm8052 = vcmask 35842
    %v8053 = vsel %vm8052, %v8050, 0.0
    %8054 = vadd.xlane.f32.xlu0 %v8053
    %v8055 = vpop.xlane.xlu0 %8054
    %v8056 = vrcp.pop %v8055
    %v8057 = vmul.f32 %v8047, %v8056
    %v8060 = vunpack.c.l.s4 1966171168
    %v8061 = vunpack.c.0.s8 %v8060
    %v8062 = vlaneseq
    %v8063 = vshrl.u32 %v8062, 7
    %v8064 = vsub.s32 %v8061, %v8063
    %v8065 = vrot.slane %v8040, %v8064
    %v8066 = vcombine.high %v8065, %v8065
    %v8068 = vunpack.c.l.s4 1966171168
    %v8069 = vunpack.c.0.s8 %v8068
    %v8070 = vlaneseq
    %v8071 = vshrl.u32 %v8070, 7
    %v8072 = vsub.s32 %v8069, %v8071
    %v8073 = vrot.slane %v8065, %v8072
    %v8075 = vunpack.c.l.s4 1966171168
    %v8076 = vunpack.c.0.s8 %v8075
    %v8077 = vlaneseq
    %v8078 = vshrl.u32 %v8077, 7
    %v8079 = vsub.s32 %v8076, %v8078
    %v8080 = vrot.slane %v8066, %v8079
    %vm8083 = vcmask 32768
    %8084 = vst.msk [vmem:[#allocation3] sm:$0x1] %vm8083, %v8073
    %8085 = vst.msk [vmem:[#allocation3 + $0x2] sm:$0x1] %vm8083, %v8080
    %v8088 = vunpack.c.l.s4 1966171168
    %v8089 = vunpack.c.0.s8 %v8088
    %v8090 = vlaneseq
    %v8091 = vshrl.u32 %v8090, 7
    %v8092 = vsub.s32 %v8089, %v8091
    %v8093 = vrot.slane %v8057, %v8092
    %v8094 = vcombine.high %v8093, %v8093
    %v8096 = vunpack.c.l.s4 1966171168
    %v8097 = vunpack.c.0.s8 %v8096
    %v8098 = vlaneseq
    %v8099 = vshrl.u32 %v8098, 7
    %v8100 = vsub.s32 %v8097, %v8099
    %v8101 = vrot.slane %v8093, %v8100
    %v8103 = vunpack.c.l.s4 1966171168
    %v8104 = vunpack.c.0.s8 %v8103
    %v8105 = vlaneseq
    %v8106 = vshrl.u32 %v8105, 7
    %v8107 = vsub.s32 %v8104, %v8106
    %v8108 = vrot.slane %v8094, %v8107
    %v8109 = vcombine.high %v8101, %v8101
    %v8110 = vcombine.high %v8108, %v8108
    %v8111 = vlaneseq
    %v8112 = vshrl.u32 %v8111, 7
    %v8113 = vsub.s32 0, %v8112
    %v8114 = vrot.slane %v8109, %v8113
    %v8115 = vlaneseq
    %v8116 = vshrl.u32 %v8115, 7
    %v8117 = vsub.s32 0, %v8116
    %v8118 = vrot.slane %v8110, %v8117
    %8119 = vrot.lane.b32.xlu0 %v8114, 123
    %v8120 = vpop.permute.xlu0 %8119
    %8121 = vrot.lane.b32.xlu0 %v8118, 123
    %v8122 = vpop.permute.xlu0 %8121
    %8125 = vst.msk [vmem:[#allocation3 + $0x1] sm:$0x1] %vm8083, %v8120
    %8126 = vst.msk [vmem:[#allocation3 + $0x3] sm:$0x1] %vm8083, %v8122
    // Predicated region
    $region98: #{mixvit_forward.1} parent=1 // pred_check
      _
    $region99: #{mixvit_forward.1} parent=1 // pred_check_branch
      %8128 = sbr.rel (0) target = $region101
    $region100: #{mixvit_forward.1} parent=1 // pred_region
      %s8130 = ssub.s32 64, 64
      %8131 = vsyncadd [#allocation4], %s8130
      %s8132 = sshll.u32 [#allocation3], 4
      %s8133 = int_to_ptr.vmem [resolvable:$true] %s8132
      %8138 = dma.vmem_to_hbm [thread:$0]  %s8133, 64, %s24, [#allocation4], 32, 32, 2
    $region101: #{mixvit_forward.1} parent=1 // pred_fallthru
      _
    // Predicated region
    $region102: #{mixvit_forward.1} parent=1 // pred_check
      _
    $region103: #{mixvit_forward.1} parent=1 // pred_check_branch
      %8140 = sbr.rel (0) target = $region105
    $region104: #{mixvit_forward.1} parent=1 // pred_region
      %8141 = dma.done [#allocation4], 64
    $region105: #{mixvit_forward.1} parent=1 // pred_fallthru
      _
    %8142 = vsyncpa [#allocation4], 1

</llo_original>
